<compile_context>
chip_gen: v7x
topology: tpu7x:2x2x1
jax: 0.10.0
libtpu: 0.0.40
codegen_flags: <defaults>
</compile_context>

<pallas_src>
import jax
import jax.numpy as jnp
from jax.experimental import pallas as pl
from jax.experimental.pallas import tpu as pltpu

EPS = 1e-5
OUT_FEATURES = 140      # real output width of the last Linear
OUT_PADDED = 256        # lane-dense (multiple of 128) padded width


def _bn_relu(h, gamma, beta, *, relu=True):
    # BatchNorm1d (training mode): per-batch mean, biased variance, f32 math.
    mean = jnp.mean(h, axis=0, keepdims=True)
    var = jnp.mean((h - mean) * (h - mean), axis=0, keepdims=True)
    out = (h - mean) * jax.lax.rsqrt(var + EPS) * gamma + beta
    if relu:
        out = jnp.maximum(out, 0.0)
    return out


def _encoder_decoder_kernel(
    x_ref,        # (B, tk)   f32, streamed over K
    w1_ref,       # (tk, 512) int8, streamed over K
    meta1_ref,    # (4, 512)  f32: rows = [scale1, b1, gamma1, beta1]
    w2_ref,       # (512, 256) bf16
    meta2_ref,    # (3, 256)  f32: rows = [b2, gamma2, beta2]
    w3_ref,       # (256, 512) bf16
    meta3_ref,    # (3, 512)  f32: rows = [b3, gamma3, beta3]
    w4_ref,       # (512, 256) bf16 (output-padded)
    b4_ref,       # (1, 256)  f32  (output-padded)
    o_ref,        # (B, 256)  f32
    acc_ref,      # (B, 512)  f32 scratch
):
    k = pl.program_id(0)

    @pl.when(k == 0)
    def _():
        # Seed the accumulator with the layer-1 bias (saves an epilogue add).
        acc_ref[...] = jnp.broadcast_to(meta1_ref[1:2, :], acc_ref.shape)

    # Layer 1: Linear(4096, 512) as a pipelined K reduction.
    # int8 weights dequantized per-output-channel on the fly (free under DMA).
    w1 = (w1_ref[...].astype(jnp.float32) * meta1_ref[0:1, :]).astype(jnp.bfloat16)
    acc_ref[...] += jnp.dot(x_ref[...].astype(jnp.bfloat16), w1,
                            preferred_element_type=jnp.float32)

    @pl.when(k == pl.num_programs(0) - 1)
    def _():
        # encoder: BN(512) -> ReLU
        h = _bn_relu(acc_ref[...], meta1_ref[2:3, :], meta1_ref[3:4, :])

        # encoder: Linear(512, 256) -> BN(256) -> ReLU
        h = jnp.dot(h.astype(jnp.bfloat16), w2_ref[...],
                    preferred_element_type=jnp.float32) + meta2_ref[0:1, :]
        h = _bn_relu(h, meta2_ref[1:2, :], meta2_ref[2:3, :])

        # decoder: Linear(256, 512) -> BN(512) -> ReLU
        h = jnp.dot(h.astype(jnp.bfloat16), w3_ref[...],
                    preferred_element_type=jnp.float32) + meta3_ref[0:1, :]
        h = _bn_relu(h, meta3_ref[1:2, :], meta3_ref[2:3, :])

        # decoder: Linear(512, 140) (padded to 256 lanes)
        h = jnp.dot(h.astype(jnp.bfloat16), w4_ref[...],
                    preferred_element_type=jnp.float32) + b4_ref[...]

        o_ref[...] = h.astype(o_ref.dtype)


def _full_spec(shape):
    """Whole-array VMEM block, constant across the reduction grid axis."""
    return pl.BlockSpec(shape, lambda k: (0,) * len(shape))


def encoder_decoder_forward(x, params, *, tk=2048):
    """x: [B, 4096] float32.  params: dict from init_params."""
    B, K = x.shape
    assert K % tk == 0, (K, tk)
    assert B >= 2, "BatchNorm1d training-mode statistics need B >= 2"

    small_args = (
        params["meta1"],
        params["w2"], params["meta2"],
        params["w3"], params["meta3"],
        params["w4"], params["b4"],
    )

    in_specs = [
        pl.BlockSpec((B, tk), lambda k: (0, k)),      # x  : stream along K (f32)
        pl.BlockSpec((tk, 512), lambda k: (k, 0)),    # w1 : stream along K (int8)
    ] + [_full_spec(a.shape) for a in small_args]     # small params: resident

    out = pl.pallas_call(
        _encoder_decoder_kernel,
        out_shape=jax.ShapeDtypeStruct((B, OUT_PADDED), jnp.float32),
        grid=(K // tk,),
        in_specs=in_specs,
        out_specs=pl.BlockSpec((B, OUT_PADDED), lambda k: (0, 0)),
        scratch_shapes=[pltpu.VMEM((B, 512), jnp.float32)],
        compiler_params=pltpu.CompilerParams(
            dimension_semantics=("arbitrary",),
            vmem_limit_bytes=32 * 1024 * 1024,
        ),
    )(x, params["w1"], *small_args)

    return out[:, :OUT_FEATURES]


def init_params(key):
    """Deterministic synthetic init matching the module's __init__ shapes.

    Weights stored [in, out] (transposed PyTorch layout).  w1 is int8 with
    per-output-channel scales; w2/w3/w4 are bf16.  Biases and BatchNorm
    gamma/beta are f32, packed row-wise per layer.  Last layer padded 140->256.
    """
    dims = [(4096, 512), (512, 256), (256, 512), (512, OUT_FEATURES)]
    keys = jax.random.split(key, 2 * len(dims))
    raw_w, raw_b = [], []
    for i, (fan_in, fan_out) in enumerate(dims):
        bound = 1.0 / jnp.sqrt(float(fan_in))
        raw_w.append(jax.random.uniform(keys[2 * i], (fan_in, fan_out),
                                        jnp.float32, -bound, bound))
        raw_b.append(jax.random.uniform(keys[2 * i + 1], (1, fan_out),
                                        jnp.float32, -bound, bound))

    p = {}

    # Layer 1: int8 weight with per-output-channel scale.
    w1 = raw_w[0]
    amax = jnp.maximum(jnp.max(jnp.abs(w1), axis=0, keepdims=True), 1e-8)
    s1 = amax / 127.0                                         # (1, 512) f32
    p["w1"] = jnp.clip(jnp.round(w1 / s1), -127, 127).astype(jnp.int8)
    p["meta1"] = jnp.concatenate(
        [s1, raw_b[0],
         jnp.ones((1, 512), jnp.float32), jnp.zeros((1, 512), jnp.float32)],
        axis=0)                                               # (4, 512)

    # Layers 2-3: bf16 weight + (3, C) meta rows [bias, gamma, beta].
    p["w2"] = raw_w[1].astype(jnp.bfloat16)
    p["meta2"] = jnp.concatenate(
        [raw_b[1],
         jnp.ones((1, 256), jnp.float32), jnp.zeros((1, 256), jnp.float32)],
        axis=0)                                               # (3, 256)
    p["w3"] = raw_w[2].astype(jnp.bfloat16)
    p["meta3"] = jnp.concatenate(
        [raw_b[2],
         jnp.ones((1, 512), jnp.float32), jnp.zeros((1, 512), jnp.float32)],
        axis=0)                                               # (3, 512)

    # Layer 4: pad 140 -> 256 lanes for unmasked lane-dense stores.
    pad = OUT_PADDED - OUT_FEATURES
    p["w4"] = jnp.pad(raw_w[3], ((0, 0), (0, pad))).astype(jnp.bfloat16)
    p["b4"] = jnp.pad(raw_b[3], ((0, 0), (0, pad)))
    return p


def reference_forward(x, params):
    """Pure-JAX reference with the identical quant/bf16/f32-accum recipe."""
    def bn_relu(h, g, b, relu=True):
        m = jnp.mean(h, axis=0, keepdims=True)
        v = jnp.mean((h - m) ** 2, axis=0, keepdims=True)
        o = (h - m) * jax.lax.rsqrt(v + EPS) * g + b
        return jnp.maximum(o, 0.0) if relu else o

    s1, b1, g1, be1 = (params["meta1"][i:i + 1, :] for i in range(4))
    b2, g2, be2 = (params["meta2"][i:i + 1, :] for i in range(3))
    b3, g3, be3 = (params["meta3"][i:i + 1, :] for i in range(3))

    w1 = (params["w1"].astype(jnp.float32) * s1).astype(jnp.bfloat16)
    h = jnp.dot(x.astype(jnp.bfloat16), w1,
                preferred_element_type=jnp.float32) + b1
    h = bn_relu(h, g1, be1)
    h = jnp.dot(h.astype(jnp.bfloat16), params["w2"],
                preferred_element_type=jnp.float32) + b2
    h = bn_relu(h, g2, be2)
    h = jnp.dot(h.astype(jnp.bfloat16), params["w3"],
                preferred_element_type=jnp.float32) + b3
    h = bn_relu(h, g3, be3)
    h = jnp.dot(h.astype(jnp.bfloat16), params["w4"],
                preferred_element_type=jnp.float32) + params["b4"]
    return h[:, :OUT_FEATURES]


if __name__ == "__main__":
    key = jax.random.PRNGKey(0)
    k_params, k_x = jax.random.split(key)

    params = init_params(k_params)
    B = 8  # BN training-mode statistics need B >= 2
    x = jax.random.normal(k_x, (B, 4096), jnp.float32)

    out = encoder_decoder_forward(x, params)
    out = jax.block_until_ready(out)

    ref = reference_forward(x, params)
    assert out.shape == (B, OUT_FEATURES), out.shape
    max_err = float(jnp.max(jnp.abs(out - ref)))
    assert jnp.allclose(out, ref, atol=1e-2, rtol=1e-2), max_err

    print("KERNEL_OK")
</pallas_src>

<mosaic_0001>
module attributes {stable_mosaic.version = 11 : i64} {
  func.func @_encoder_decoder_kernel(%arg0: i32, %arg1: memref<8x2048xf32, #tpu.memory_space<vmem>>, %arg2: memref<2048x512xi8, #tpu.memory_space<vmem>>, %arg3: memref<4x512xf32, #tpu.memory_space<vmem>>, %arg4: memref<512x256xbf16, #tpu.memory_space<vmem>>, %arg5: memref<3x256xf32, #tpu.memory_space<vmem>>, %arg6: memref<256x512xbf16, #tpu.memory_space<vmem>>, %arg7: memref<3x512xf32, #tpu.memory_space<vmem>>, %arg8: memref<512x256xbf16, #tpu.memory_space<vmem>>, %arg9: memref<1x256xf32, #tpu.memory_space<vmem>>, %arg10: memref<8x256xf32, #tpu.memory_space<vmem>>, %arg11: memref<8x512xf32, #tpu.memory_space<vmem>>) attributes {dimension_semantics = [#tpu.dimension_semantics<arbitrary>], iteration_bounds = array<i64: 2>, scalar_prefetch = 0 : i64, scratch_operands = 1 : i64, tpu.core_type = #tpu.core_type<tc>, window_params = [{transform_indices = @transform_0, window_bounds = array<i64: 8, 2048>}, {transform_indices = @transform_1, window_bounds = array<i64: 2048, 512>}, {pipeline_mode = #tpu.pipeline_mode<synchronous>, transform_indices = @transform_2, window_bounds = array<i64: 4, 512>}, {pipeline_mode = #tpu.pipeline_mode<synchronous>, transform_indices = @transform_3, window_bounds = array<i64: 512, 256>}, {pipeline_mode = #tpu.pipeline_mode<synchronous>, transform_indices = @transform_4, window_bounds = array<i64: 3, 256>}, {pipeline_mode = #tpu.pipeline_mode<synchronous>, transform_indices = @transform_5, window_bounds = array<i64: 256, 512>}, {pipeline_mode = #tpu.pipeline_mode<synchronous>, transform_indices = @transform_6, window_bounds = array<i64: 3, 512>}, {pipeline_mode = #tpu.pipeline_mode<synchronous>, transform_indices = @transform_7, window_bounds = array<i64: 512, 256>}, {pipeline_mode = #tpu.pipeline_mode<synchronous>, transform_indices = @transform_8, window_bounds = array<i64: 1, 256>}, {pipeline_mode = #tpu.pipeline_mode<synchronous>, transform_indices = @transform_9, window_bounds = array<i64: 8, 256>}]} {
    %c0_i32 = arith.constant 0 : i32
    %0 = arith.cmpi eq, %arg0, %c0_i32 : i32
    %1 = arith.extui %0 : i1 to i32
    %c0_i32_0 = arith.constant 0 : i32
    %2 = arith.cmpi ne, %1, %c0_i32_0 : i32
    scf.if %2 {
      %c1 = arith.constant 1 : index
      %c0_11 = arith.constant 0 : index
      %18 = vector.load %arg3[%c1, %c0_11] : memref<4x512xf32, #tpu.memory_space<vmem>>, vector<1x512xf32>
      %19 = vector.shape_cast %18 : vector<1x512xf32> to vector<1x512xf32>
      %20 = vector.broadcast %19 : vector<1x512xf32> to vector<8x512xf32>
      %c0_12 = arith.constant 0 : index
      %c0_13 = arith.constant 0 : index
      %21 = vector.load %arg11[%c0_12, %c0_13] : memref<8x512xf32, #tpu.memory_space<vmem>>, vector<8x512xf32>
      tpu.vector_store %arg11[%c0_12, %c0_13], %20 {strides = array<i32>} : memref<8x512xf32, #tpu.memory_space<vmem>>, vector<8x512xf32>,
    } else {
    }
    %c0 = arith.constant 0 : index
    %c0_1 = arith.constant 0 : index
    %3 = vector.load %arg2[%c0, %c0_1] : memref<2048x512xi8, #tpu.memory_space<vmem>>, vector<2048x512xi8>
    %4 = arith.sitofp %3 : vector<2048x512xi8> to vector<2048x512xf32>
    %c0_2 = arith.constant 0 : index
    %c0_3 = arith.constant 0 : index
    %5 = vector.load %arg3[%c0_2, %c0_3] : memref<4x512xf32, #tpu.memory_space<vmem>>, vector<1x512xf32>
    %6 = vector.broadcast %5 : vector<1x512xf32> to vector<2048x512xf32>
    %7 = arith.mulf %4, %6 : vector<2048x512xf32>
    %8 = arith.truncf %7 : vector<2048x512xf32> to vector<2048x512xbf16>
    %c0_4 = arith.constant 0 : index
    %c0_5 = arith.constant 0 : index
    %9 = vector.load %arg11[%c0_4, %c0_5] : memref<8x512xf32, #tpu.memory_space<vmem>>, vector<8x512xf32>
    %c0_6 = arith.constant 0 : index
    %c0_7 = arith.constant 0 : index
    %10 = vector.load %arg1[%c0_6, %c0_7] : memref<8x2048xf32, #tpu.memory_space<vmem>>, vector<8x2048xf32>
    %11 = arith.truncf %10 : vector<8x2048xf32> to vector<8x2048xbf16>
    %cst = arith.constant dense<0.000000e+00> : vector<8x512xf32>
    %12 = tpu.matmul %11, %8, %cst {dimension_numbers = #tpu.dot_dimension_numbers<[1], [0], [0], [1], [0, 0, 1, 1], [], []>} : vector<8x2048xbf16>, vector<2048x512xbf16>, vector<8x512xf32> -> vector<8x512xf32>
    %13 = arith.addf %9, %12 : vector<8x512xf32>
    %c0_8 = arith.constant 0 : index
    %c0_9 = arith.constant 0 : index
    %14 = vector.load %arg11[%c0_8, %c0_9] : memref<8x512xf32, #tpu.memory_space<vmem>>, vector<8x512xf32>
    tpu.vector_store %arg11[%c0_8, %c0_9], %13 {strides = array<i32>} : memref<8x512xf32, #tpu.memory_space<vmem>>, vector<8x512xf32>,
    %c1_i32 = arith.constant 1 : i32
    %15 = arith.cmpi eq, %arg0, %c1_i32 : i32
    %16 = arith.extui %15 : i1 to i32
    %c0_i32_10 = arith.constant 0 : i32
    %17 = arith.cmpi ne, %16, %c0_i32_10 : i32
    scf.if %17 {
      %c0_11 = arith.constant 0 : index
      %c0_12 = arith.constant 0 : index
      %18 = vector.load %arg11[%c0_11, %c0_12] : memref<8x512xf32, #tpu.memory_space<vmem>>, vector<8x512xf32>
      %c2 = arith.constant 2 : index
      %c0_13 = arith.constant 0 : index
      %19 = vector.load %arg3[%c2, %c0_13] : memref<4x512xf32, #tpu.memory_space<vmem>>, vector<1x512xf32>
      %c3 = arith.constant 3 : index
      %c0_14 = arith.constant 0 : index
      %20 = vector.load %arg3[%c3, %c0_14] : memref<4x512xf32, #tpu.memory_space<vmem>>, vector<1x512xf32>
      %cst_15 = arith.constant dense<0.000000e+00> : vector<512xf32>
      %21 = vector.multi_reduction <add>, %18, %cst_15 [0] : vector<8x512xf32> to vector<512xf32>
      %22 = vector.shape_cast %21 : vector<512xf32> to vector<1x512xf32>
      %cst_16 = arith.constant 8.000000e+00 : f32
      %23 = vector.broadcast %cst_16 : f32 to vector<1x512xf32>
      %24 = arith.divf %22, %23 : vector<1x512xf32>
      %25 = vector.broadcast %24 : vector<1x512xf32> to vector<8x512xf32>
      %26 = arith.subf %18, %25 : vector<8x512xf32>
      %27 = vector.broadcast %24 : vector<1x512xf32> to vector<8x512xf32>
      %28 = arith.subf %18, %27 : vector<8x512xf32>
      %29 = arith.mulf %26, %28 : vector<8x512xf32>
      %cst_17 = arith.constant dense<0.000000e+00> : vector<512xf32>
      %30 = vector.multi_reduction <add>, %29, %cst_17 [0] : vector<8x512xf32> to vector<512xf32>
      %31 = vector.shape_cast %30 : vector<512xf32> to vector<1x512xf32>
      %cst_18 = arith.constant 8.000000e+00 : f32
      %32 = vector.broadcast %cst_18 : f32 to vector<1x512xf32>
      %33 = arith.divf %31, %32 : vector<1x512xf32>
      %34 = vector.broadcast %24 : vector<1x512xf32> to vector<8x512xf32>
      %35 = arith.subf %18, %34 : vector<8x512xf32>
      %cst_19 = arith.constant 9.99999974E-6 : f32
      %36 = vector.broadcast %cst_19 : f32 to vector<1x512xf32>
      %37 = arith.addf %33, %36 : vector<1x512xf32>
      %38 = math.rsqrt %37 : vector<1x512xf32>
      %39 = vector.broadcast %38 : vector<1x512xf32> to vector<8x512xf32>
      %40 = arith.mulf %35, %39 : vector<8x512xf32>
      %41 = vector.broadcast %19 : vector<1x512xf32> to vector<8x512xf32>
      %42 = arith.mulf %40, %41 : vector<8x512xf32>
      %43 = vector.broadcast %20 : vector<1x512xf32> to vector<8x512xf32>
      %44 = arith.addf %42, %43 : vector<8x512xf32>
      %cst_20 = arith.constant 0.000000e+00 : f32
      %45 = vector.broadcast %cst_20 : f32 to vector<8x512xf32>
      %46 = arith.maximumf %44, %45 : vector<8x512xf32>
      %47 = arith.truncf %46 : vector<8x512xf32> to vector<8x512xbf16>
      %c0_21 = arith.constant 0 : index
      %c0_22 = arith.constant 0 : index
      %48 = vector.load %arg4[%c0_21, %c0_22] : memref<512x256xbf16, #tpu.memory_space<vmem>>, vector<512x256xbf16>
      %cst_23 = arith.constant dense<0.000000e+00> : vector<8x256xf32>
      %49 = tpu.matmul %47, %48, %cst_23 {dimension_numbers = #tpu.dot_dimension_numbers<[1], [0], [0], [1], [0, 0, 1, 1], [], []>} : vector<8x512xbf16>, vector<512x256xbf16>, vector<8x256xf32> -> vector<8x256xf32>
      %c0_24 = arith.constant 0 : index
      %c0_25 = arith.constant 0 : index
      %50 = vector.load %arg5[%c0_24, %c0_25] : memref<3x256xf32, #tpu.memory_space<vmem>>, vector<1x256xf32>
      %51 = vector.broadcast %50 : vector<1x256xf32> to vector<8x256xf32>
      %52 = arith.addf %49, %51 : vector<8x256xf32>
      %c1 = arith.constant 1 : index
      %c0_26 = arith.constant 0 : index
      %53 = vector.load %arg5[%c1, %c0_26] : memref<3x256xf32, #tpu.memory_space<vmem>>, vector<1x256xf32>
      %c2_27 = arith.constant 2 : index
      %c0_28 = arith.constant 0 : index
      %54 = vector.load %arg5[%c2_27, %c0_28] : memref<3x256xf32, #tpu.memory_space<vmem>>, vector<1x256xf32>
      %cst_29 = arith.constant dense<0.000000e+00> : vector<256xf32>
      %55 = vector.multi_reduction <add>, %52, %cst_29 [0] : vector<8x256xf32> to vector<256xf32>
      %56 = vector.shape_cast %55 : vector<256xf32> to vector<1x256xf32>
      %cst_30 = arith.constant 8.000000e+00 : f32
      %57 = vector.broadcast %cst_30 : f32 to vector<1x256xf32>
      %58 = arith.divf %56, %57 : vector<1x256xf32>
      %59 = vector.broadcast %58 : vector<1x256xf32> to vector<8x256xf32>
      %60 = arith.subf %52, %59 : vector<8x256xf32>
      %61 = vector.broadcast %58 : vector<1x256xf32> to vector<8x256xf32>
      %62 = arith.subf %52, %61 : vector<8x256xf32>
      %63 = arith.mulf %60, %62 : vector<8x256xf32>
      %cst_31 = arith.constant dense<0.000000e+00> : vector<256xf32>
      %64 = vector.multi_reduction <add>, %63, %cst_31 [0] : vector<8x256xf32> to vector<256xf32>
      %65 = vector.shape_cast %64 : vector<256xf32> to vector<1x256xf32>
      %cst_32 = arith.constant 8.000000e+00 : f32
      %66 = vector.broadcast %cst_32 : f32 to vector<1x256xf32>
      %67 = arith.divf %65, %66 : vector<1x256xf32>
      %68 = vector.broadcast %58 : vector<1x256xf32> to vector<8x256xf32>
      %69 = arith.subf %52, %68 : vector<8x256xf32>
      %cst_33 = arith.constant 9.99999974E-6 : f32
      %70 = vector.broadcast %cst_33 : f32 to vector<1x256xf32>
      %71 = arith.addf %67, %70 : vector<1x256xf32>
      %72 = math.rsqrt %71 : vector<1x256xf32>
      %73 = vector.broadcast %72 : vector<1x256xf32> to vector<8x256xf32>
      %74 = arith.mulf %69, %73 : vector<8x256xf32>
      %75 = vector.broadcast %53 : vector<1x256xf32> to vector<8x256xf32>
      %76 = arith.mulf %74, %75 : vector<8x256xf32>
      %77 = vector.broadcast %54 : vector<1x256xf32> to vector<8x256xf32>
      %78 = arith.addf %76, %77 : vector<8x256xf32>
      %cst_34 = arith.constant 0.000000e+00 : f32
      %79 = vector.broadcast %cst_34 : f32 to vector<8x256xf32>
      %80 = arith.maximumf %78, %79 : vector<8x256xf32>
      %81 = arith.truncf %80 : vector<8x256xf32> to vector<8x256xbf16>
      %c0_35 = arith.constant 0 : index
      %c0_36 = arith.constant 0 : index
      %82 = vector.load %arg6[%c0_35, %c0_36] : memref<256x512xbf16, #tpu.memory_space<vmem>>, vector<256x512xbf16>
      %cst_37 = arith.constant dense<0.000000e+00> : vector<8x512xf32>
      %83 = tpu.matmul %81, %82, %cst_37 {dimension_numbers = #tpu.dot_dimension_numbers<[1], [0], [0], [1], [0, 0, 1, 1], [], []>} : vector<8x256xbf16>, vector<256x512xbf16>, vector<8x512xf32> -> vector<8x512xf32>
      %c0_38 = arith.constant 0 : index
      %c0_39 = arith.constant 0 : index
      %84 = vector.load %arg7[%c0_38, %c0_39] : memref<3x512xf32, #tpu.memory_space<vmem>>, vector<1x512xf32>
      %85 = vector.broadcast %84 : vector<1x512xf32> to vector<8x512xf32>
      %86 = arith.addf %83, %85 : vector<8x512xf32>
      %c1_40 = arith.constant 1 : index
      %c0_41 = arith.constant 0 : index
      %87 = vector.load %arg7[%c1_40, %c0_41] : memref<3x512xf32, #tpu.memory_space<vmem>>, vector<1x512xf32>
      %c2_42 = arith.constant 2 : index
      %c0_43 = arith.constant 0 : index
      %88 = vector.load %arg7[%c2_42, %c0_43] : memref<3x512xf32, #tpu.memory_space<vmem>>, vector<1x512xf32>
      %cst_44 = arith.constant dense<0.000000e+00> : vector<512xf32>
      %89 = vector.multi_reduction <add>, %86, %cst_44 [0] : vector<8x512xf32> to vector<512xf32>
      %90 = vector.shape_cast %89 : vector<512xf32> to vector<1x512xf32>
      %cst_45 = arith.constant 8.000000e+00 : f32
      %91 = vector.broadcast %cst_45 : f32 to vector<1x512xf32>
      %92 = arith.divf %90, %91 : vector<1x512xf32>
      %93 = vector.broadcast %92 : vector<1x512xf32> to vector<8x512xf32>
      %94 = arith.subf %86, %93 : vector<8x512xf32>
      %95 = vector.broadcast %92 : vector<1x512xf32> to vector<8x512xf32>
      %96 = arith.subf %86, %95 : vector<8x512xf32>
      %97 = arith.mulf %94, %96 : vector<8x512xf32>
      %cst_46 = arith.constant dense<0.000000e+00> : vector<512xf32>
      %98 = vector.multi_reduction <add>, %97, %cst_46 [0] : vector<8x512xf32> to vector<512xf32>
      %99 = vector.shape_cast %98 : vector<512xf32> to vector<1x512xf32>
      %cst_47 = arith.constant 8.000000e+00 : f32
      %100 = vector.broadcast %cst_47 : f32 to vector<1x512xf32>
      %101 = arith.divf %99, %100 : vector<1x512xf32>
      %102 = vector.broadcast %92 : vector<1x512xf32> to vector<8x512xf32>
      %103 = arith.subf %86, %102 : vector<8x512xf32>
      %cst_48 = arith.constant 9.99999974E-6 : f32
      %104 = vector.broadcast %cst_48 : f32 to vector<1x512xf32>
      %105 = arith.addf %101, %104 : vector<1x512xf32>
      %106 = math.rsqrt %105 : vector<1x512xf32>
      %107 = vector.broadcast %106 : vector<1x512xf32> to vector<8x512xf32>
      %108 = arith.mulf %103, %107 : vector<8x512xf32>
      %109 = vector.broadcast %87 : vector<1x512xf32> to vector<8x512xf32>
      %110 = arith.mulf %108, %109 : vector<8x512xf32>
      %111 = vector.broadcast %88 : vector<1x512xf32> to vector<8x512xf32>
      %112 = arith.addf %110, %111 : vector<8x512xf32>
      %cst_49 = arith.constant 0.000000e+00 : f32
      %113 = vector.broadcast %cst_49 : f32 to vector<8x512xf32>
      %114 = arith.maximumf %112, %113 : vector<8x512xf32>
      %115 = arith.truncf %114 : vector<8x512xf32> to vector<8x512xbf16>
      %c0_50 = arith.constant 0 : index
      %c0_51 = arith.constant 0 : index
      %116 = vector.load %arg8[%c0_50, %c0_51] : memref<512x256xbf16, #tpu.memory_space<vmem>>, vector<512x256xbf16>
      %cst_52 = arith.constant dense<0.000000e+00> : vector<8x256xf32>
      %117 = tpu.matmul %115, %116, %cst_52 {dimension_numbers = #tpu.dot_dimension_numbers<[1], [0], [0], [1], [0, 0, 1, 1], [], []>} : vector<8x512xbf16>, vector<512x256xbf16>, vector<8x256xf32> -> vector<8x256xf32>
      %c0_53 = arith.constant 0 : index
      %c0_54 = arith.constant 0 : index
      %118 = vector.load %arg9[%c0_53, %c0_54] : memref<1x256xf32, #tpu.memory_space<vmem>>, vector<1x256xf32>
      %119 = vector.broadcast %118 : vector<1x256xf32> to vector<8x256xf32>
      %120 = arith.addf %117, %119 : vector<8x256xf32>
      %c0_55 = arith.constant 0 : index
      %c0_56 = arith.constant 0 : index
      %121 = vector.load %arg10[%c0_55, %c0_56] : memref<8x256xf32, #tpu.memory_space<vmem>>, vector<8x256xf32>
      tpu.vector_store %arg10[%c0_55, %c0_56], %120 {strides = array<i32>} : memref<8x256xf32, #tpu.memory_space<vmem>>, vector<8x256xf32>,
    } else {
    }
    return
  }
  func.func @transform_0(%arg0: i32) -> (i32, i32) {
    %c0_i32 = arith.constant 0 : i32
    %c0_i32_0 = arith.constant 0 : i32
    return %c0_i32, %arg0 : i32, i32
  }
  func.func @transform_1(%arg0: i32) -> (i32, i32) {
    %c0_i32 = arith.constant 0 : i32
    %c0_i32_0 = arith.constant 0 : i32
    return %arg0, %c0_i32 : i32, i32
  }
  func.func @transform_2(%arg0: i32) -> (i32, i32) {
    %c0_i32 = arith.constant 0 : i32
    %c0_i32_0 = arith.constant 0 : i32
    %c0_i32_1 = arith.constant 0 : i32
    return %c0_i32, %c0_i32_0 : i32, i32
  }
  func.func @transform_3(%arg0: i32) -> (i32, i32) {
    %c0_i32 = arith.constant 0 : i32
    %c0_i32_0 = arith.constant 0 : i32
    %c0_i32_1 = arith.constant 0 : i32
    return %c0_i32, %c0_i32_0 : i32, i32
  }
  func.func @transform_4(%arg0: i32) -> (i32, i32) {
    %c0_i32 = arith.constant 0 : i32
    %c0_i32_0 = arith.constant 0 : i32
    %c0_i32_1 = arith.constant 0 : i32
    return %c0_i32, %c0_i32_0 : i32, i32
  }
  func.func @transform_5(%arg0: i32) -> (i32, i32) {
    %c0_i32 = arith.constant 0 : i32
    %c0_i32_0 = arith.constant 0 : i32
    %c0_i32_1 = arith.constant 0 : i32
    return %c0_i32, %c0_i32_0 : i32, i32
  }
  func.func @transform_6(%arg0: i32) -> (i32, i32) {
    %c0_i32 = arith.constant 0 : i32
    %c0_i32_0 = arith.constant 0 : i32
    %c0_i32_1 = arith.constant 0 : i32
    return %c0_i32, %c0_i32_0 : i32, i32
  }
  func.func @transform_7(%arg0: i32) -> (i32, i32) {
    %c0_i32 = arith.constant 0 : i32
    %c0_i32_0 = arith.constant 0 : i32
    %c0_i32_1 = arith.constant 0 : i32
    return %c0_i32, %c0_i32_0 : i32, i32
  }
  func.func @transform_8(%arg0: i32) -> (i32, i32) {
    %c0_i32 = arith.constant 0 : i32
    %c0_i32_0 = arith.constant 0 : i32
    %c0_i32_1 = arith.constant 0 : i32
    return %c0_i32, %c0_i32_0 : i32, i32
  }
  func.func @transform_9(%arg0: i32) -> (i32, i32) {
    %c0_i32 = arith.constant 0 : i32
    %c0_i32_0 = arith.constant 0 : i32
    %c0_i32_1 = arith.constant 0 : i32
    return %c0_i32, %c0_i32_0 : i32, i32
  }
}

</mosaic_0001>

<llo_original>
// kernel: tpu_custom_call.1
$region0: #{tpu_custom_call.1}
  #allocation0 [shape = 'u32[]', space=smem, size = 0x4, offset = 0x4, fixed_abs, tag = 'smem constant byte address 0x4 - core index']
  #allocation1 [shape = 'u32[144,128]{1,0:T(1,128)}', space=vmem, size = 0x12000, scoped, tag = 'internal scratch']
  #allocation2 [shape = 'f32[8,512]{1,0:T(8,128)}', space=vmem, size = 0x4000, scoped, tag = 'scratch operand']
  %s0 = inlined_call_operand.hbm [shape: f32[8,4096], index: 0, kind: input, shape index: {}]
  %s1 = inlined_call_operand.hbm [shape: s8[4096,512], index: 1, kind: input, shape index: {}]
  %s2 = inlined_call_operand.hbm [shape: f32[4,512], index: 2, kind: input, shape index: {}]
  %s3 = inlined_call_operand.hbm [shape: bf16[512,256], index: 3, kind: input, shape index: {}]
  %s4 = inlined_call_operand.hbm [shape: f32[3,256], index: 4, kind: input, shape index: {}]
  %s5 = inlined_call_operand.hbm [shape: bf16[256,512], index: 5, kind: input, shape index: {}]
  %s6 = inlined_call_operand.hbm [shape: f32[3,512], index: 6, kind: input, shape index: {}]
  %s7 = inlined_call_operand.hbm [shape: bf16[512,256], index: 7, kind: input, shape index: {}]
  %s8 = inlined_call_operand.hbm [shape: f32[1,256], index: 8, kind: input, shape index: {}]
  %s9 = inlined_call_operand.hbm [shape: f32[8,256], index: 9, kind: output, shape index: {}]
  %s10 = sld [smem:[#allocation0]]
  $region113: #{tpu_custom_call.1} parent=0
    _
  %s12 = ssub.s32 1, %s10
  %s13 = scalar_select 0, %s12, %s10
  $region1: #{tpu_custom_call.1} parent=0
    #allocation3 [shape = 'u8[131072]{0}', space=vmem, size = 0x20000, scoped, tag = 'input window, operand 0']
    #allocation4 [shape = 's32[2]{0}', space=sflag, size = 0x8, scoped, tag = 'scoped memory for tpu_custom_call.1']
    #allocation5 [shape = 's32[2]{0}', space=sflag, size = 0x8, scoped, tag = 'scoped memory for tpu_custom_call.1']
    #allocation6 [shape = 'u8[2097152]{0}', space=vmem, size = 0x200000, scoped, tag = 'input window, operand 1']
    #allocation7 [shape = 's32[2]{0}', space=sflag, size = 0x8, scoped, tag = 'scoped memory for tpu_custom_call.1']
    #allocation8 [shape = 'u8[8192]{0}', space=vmem, size = 0x2000, scoped, tag = 'input window, operand 2, single buffered']
    #allocation9 [shape = 'u8[262144]{0}', space=vmem, size = 0x40000, scoped, tag = 'input window, operand 3, single buffered']
    #allocation10 [shape = 's32[1]{0}', space=sflag, size = 0x4, scoped, tag = 'scoped memory for tpu_custom_call.1']
    #allocation11 [shape = 'u8[4096]{0}', space=vmem, size = 0x1000, scoped, tag = 'input window, operand 4, single buffered']
    #allocation12 [shape = 'u8[262144]{0}', space=vmem, size = 0x40000, scoped, tag = 'input window, operand 5, single buffered']
    #allocation13 [shape = 's32[1]{0}', space=sflag, size = 0x4, scoped, tag = 'scoped memory for tpu_custom_call.1']
    #allocation14 [shape = 'u8[8192]{0}', space=vmem, size = 0x2000, scoped, tag = 'input window, operand 6, single buffered']
    #allocation15 [shape = 'u8[262144]{0}', space=vmem, size = 0x40000, scoped, tag = 'input window, operand 7, single buffered']
    #allocation16 [shape = 's32[1]{0}', space=sflag, size = 0x4, scoped, tag = 'scoped memory for tpu_custom_call.1']
    #allocation17 [shape = 'u8[1024]{0}', space=vmem, size = 0x400, scoped, tag = 'input window, operand 8, single buffered']
    #allocation18 [shape = 'u8[8192]{0}', space=vmem, size = 0x2000, scoped, tag = 'output window, operand 0, single buffered']
    %14 = vsyncpa [#allocation4], 0
    %s15 = scalar_lea.sflag [#allocation4], 1
    %16 = vsyncpa %s15, 0
    %17 = vsyncpa [#allocation7], 0
    %s18 = scalar_lea.sflag [#allocation7], 1
    %19 = vsyncpa %s18, 0
    %20 = vsyncpa [#allocation10], 0
    %21 = vsyncpa [#allocation13], 0
    %22 = vsyncpa [#allocation16], 0
    %23 = vsyncpa [#allocation5], 0
    loop: start=0, step=1, limit=4
    $region2: #{tpu_custom_call.1} parent=1 // loop_pre_header
      _
    $region3: #{tpu_custom_call.1} parent=1 // loop_header
      %s25 = sphi 0, %s29
      %p26 = scmp.ge.s32.totalorder %s25, 4
      %s35 = sphi 0, %s37
      %s38 = sphi 0, %s35
      %s39 = sphi 0, %s38
      %s55 = sphi 0, %s39
      %s61 = sphi 0, %s63
      %s64 = sphi 0, %s61
      %s65 = sphi 0, %s64
      %s81 = sphi 0, %s65
      %s85 = sphi 0, %s85
      %s87 = sphi 0, %s85
      %s88 = sphi 0, %s87
      %s102 = sphi 0, %s88
      %s106 = sphi 0, %s106
      %s108 = sphi 0, %s106
      %s109 = sphi 0, %s108
      %s123 = sphi 0, %s109
      %s127 = sphi 0, %s127
      %s129 = sphi 0, %s127
      %s130 = sphi 0, %s129
      %s144 = sphi 0, %s130
      %s148 = sphi 0, %s148
      %s150 = sphi 0, %s148
      %s151 = sphi 0, %s150
      %s165 = sphi 0, %s151
      %s169 = sphi 0, %s169
      %s171 = sphi 0, %s169
      %s172 = sphi 0, %s171
      %s186 = sphi 0, %s172
      %s190 = sphi 0, %s190
      %s192 = sphi 0, %s190
      %s193 = sphi 0, %s192
      %s207 = sphi 0, %s193
      %s211 = sphi 0, %s211
      %s213 = sphi 0, %s211
      %s214 = sphi 0, %s213
      %s228 = sphi 0, %s214
      %s232 = sphi 0, %s232
      %s234 = sphi 0, %s232
      %s235 = sphi 0, %s234
      %s249 = sphi 0, %s235
    $region4: #{tpu_custom_call.1} parent=1 // loop_header_branch
      %28 = sbr.rel (%p26) target = $region8
    $region5: #{tpu_custom_call.1} parent=1 // loop_body
      %s30 = ssub.s32 %s25, 1
      %s31 = ssub.s32 %s25, 2
      %s32 = sadd.s32 %s25, 1
      %s33 = ssub.s32 %s25, %s32
      %p34 = scmp.eq.s32.totalorder %s33, 0
      %s36 = sadd.s32 %s35, 1
      %s37 = scalar_select %p34, %s35, %s36
      %p40 = pneg %p34
      %p41 = scmp.eq.s32.totalorder %s25, 1
      %p42 = por %p40, %p41
      %p43 = scmp.ne.s32.totalorder %s35, %s38
      %p44 = scmp.eq.s32.totalorder %s25, 0
      %p45 = por %p43, %p44
      %p46 = scmp.ne.s32.totalorder %s35, %s38
      %p47 = scmp.eq.s32.totalorder %s30, 1
      %p48 = por %p46, %p47
      %p49 = scmp.ne.s32.totalorder %s38, %s39
      %p50 = scmp.eq.s32.totalorder %s30, 0
      %p51 = por %p49, %p50
      %p52 = scmp.ne.s32.totalorder %s38, %s39
      %p53 = scmp.eq.s32.totalorder %s31, 1
      %p54 = por %p52, %p53
      %p56 = scmp.ne.s32.totalorder %s39, %s55
      %p57 = scmp.eq.s32.totalorder %s31, 0
      %p58 = por %p56, %p57
      %s59 = ssub.s32 %s25, %s32
      %p60 = scmp.eq.s32.totalorder %s59, 0
      %s62 = sadd.s32 %s61, 1
      %s63 = scalar_select %p60, %s61, %s62
      %p66 = pneg %p60
      %p67 = scmp.eq.s32.totalorder %s25, 1
      %p68 = por %p66, %p67
      %p69 = scmp.ne.s32.totalorder %s61, %s64
      %p70 = scmp.eq.s32.totalorder %s25, 0
      %p71 = por %p69, %p70
      %p72 = scmp.ne.s32.totalorder %s61, %s64
      %p73 = scmp.eq.s32.totalorder %s30, 1
      %p74 = por %p72, %p73
      %p75 = scmp.ne.s32.totalorder %s64, %s65
      %p76 = scmp.eq.s32.totalorder %s30, 0
      %p77 = por %p75, %p76
      %p78 = scmp.ne.s32.totalorder %s64, %s65
      %p79 = scmp.eq.s32.totalorder %s31, 1
      %p80 = por %p78, %p79
      %p82 = scmp.ne.s32.totalorder %s65, %s81
      %p83 = scmp.eq.s32.totalorder %s31, 0
      %p84 = por %p82, %p83
      %s86 = sadd.s32 %s85, 1
      %p89 = scmp.eq.s32.totalorder %s25, 1
      %p90 = scmp.ne.s32.totalorder %s85, %s87
      %p91 = scmp.eq.s32.totalorder %s25, 0
      %p92 = por %p90, %p91
      %p93 = scmp.ne.s32.totalorder %s85, %s87
      %p94 = scmp.eq.s32.totalorder %s30, 1
      %p95 = por %p93, %p94
      %p96 = scmp.ne.s32.totalorder %s87, %s88
      %p97 = scmp.eq.s32.totalorder %s30, 0
      %p98 = por %p96, %p97
      %p99 = scmp.ne.s32.totalorder %s87, %s88
      %p100 = scmp.eq.s32.totalorder %s31, 1
      %p101 = por %p99, %p100
      %p103 = scmp.ne.s32.totalorder %s88, %s102
      %p104 = scmp.eq.s32.totalorder %s31, 0
      %p105 = por %p103, %p104
      %s107 = sadd.s32 %s106, 1
      %p110 = scmp.eq.s32.totalorder %s25, 1
      %p111 = scmp.ne.s32.totalorder %s106, %s108
      %p112 = scmp.eq.s32.totalorder %s25, 0
      %p113 = por %p111, %p112
      %p114 = scmp.ne.s32.totalorder %s106, %s108
      %p115 = scmp.eq.s32.totalorder %s30, 1
      %p116 = por %p114, %p115
      %p117 = scmp.ne.s32.totalorder %s108, %s109
      %p118 = scmp.eq.s32.totalorder %s30, 0
      %p119 = por %p117, %p118
      %p120 = scmp.ne.s32.totalorder %s108, %s109
      %p121 = scmp.eq.s32.totalorder %s31, 1
      %p122 = por %p120, %p121
      %p124 = scmp.ne.s32.totalorder %s109, %s123
      %p125 = scmp.eq.s32.totalorder %s31, 0
      %p126 = por %p124, %p125
      %s128 = sadd.s32 %s127, 1
      %p131 = scmp.eq.s32.totalorder %s25, 1
      %p132 = scmp.ne.s32.totalorder %s127, %s129
      %p133 = scmp.eq.s32.totalorder %s25, 0
      %p134 = por %p132, %p133
      %p135 = scmp.ne.s32.totalorder %s127, %s129
      %p136 = scmp.eq.s32.totalorder %s30, 1
      %p137 = por %p135, %p136
      %p138 = scmp.ne.s32.totalorder %s129, %s130
      %p139 = scmp.eq.s32.totalorder %s30, 0
      %p140 = por %p138, %p139
      %p141 = scmp.ne.s32.totalorder %s129, %s130
      %p142 = scmp.eq.s32.totalorder %s31, 1
      %p143 = por %p141, %p142
      %p145 = scmp.ne.s32.totalorder %s130, %s144
      %p146 = scmp.eq.s32.totalorder %s31, 0
      %p147 = por %p145, %p146
      %s149 = sadd.s32 %s148, 1
      %p152 = scmp.eq.s32.totalorder %s25, 1
      %p153 = scmp.ne.s32.totalorder %s148, %s150
      %p154 = scmp.eq.s32.totalorder %s25, 0
      %p155 = por %p153, %p154
      %p156 = scmp.ne.s32.totalorder %s148, %s150
      %p157 = scmp.eq.s32.totalorder %s30, 1
      %p158 = por %p156, %p157
      %p159 = scmp.ne.s32.totalorder %s150, %s151
      %p160 = scmp.eq.s32.totalorder %s30, 0
      %p161 = por %p159, %p160
      %p162 = scmp.ne.s32.totalorder %s150, %s151
      %p163 = scmp.eq.s32.totalorder %s31, 1
      %p164 = por %p162, %p163
      %p166 = scmp.ne.s32.totalorder %s151, %s165
      %p167 = scmp.eq.s32.totalorder %s31, 0
      %p168 = por %p166, %p167
      %s170 = sadd.s32 %s169, 1
      %p173 = scmp.eq.s32.totalorder %s25, 1
      %p174 = scmp.ne.s32.totalorder %s169, %s171
      %p175 = scmp.eq.s32.totalorder %s25, 0
      %p176 = por %p174, %p175
      %p177 = scmp.ne.s32.totalorder %s169, %s171
      %p178 = scmp.eq.s32.totalorder %s30, 1
      %p179 = por %p177, %p178
      %p180 = scmp.ne.s32.totalorder %s171, %s172
      %p181 = scmp.eq.s32.totalorder %s30, 0
      %p182 = por %p180, %p181
      %p183 = scmp.ne.s32.totalorder %s171, %s172
      %p184 = scmp.eq.s32.totalorder %s31, 1
      %p185 = por %p183, %p184
      %p187 = scmp.ne.s32.totalorder %s172, %s186
      %p188 = scmp.eq.s32.totalorder %s31, 0
      %p189 = por %p187, %p188
      %s191 = sadd.s32 %s190, 1
      %p194 = scmp.eq.s32.totalorder %s25, 1
      %p195 = scmp.ne.s32.totalorder %s190, %s192
      %p196 = scmp.eq.s32.totalorder %s25, 0
      %p197 = por %p195, %p196
      %p198 = scmp.ne.s32.totalorder %s190, %s192
      %p199 = scmp.eq.s32.totalorder %s30, 1
      %p200 = por %p198, %p199
      %p201 = scmp.ne.s32.totalorder %s192, %s193
      %p202 = scmp.eq.s32.totalorder %s30, 0
      %p203 = por %p201, %p202
      %p204 = scmp.ne.s32.totalorder %s192, %s193
      %p205 = scmp.eq.s32.totalorder %s31, 1
      %p206 = por %p204, %p205
      %p208 = scmp.ne.s32.totalorder %s193, %s207
      %p209 = scmp.eq.s32.totalorder %s31, 0
      %p210 = por %p208, %p209
      %s212 = sadd.s32 %s211, 1
      %p215 = scmp.eq.s32.totalorder %s25, 1
      %p216 = scmp.ne.s32.totalorder %s211, %s213
      %p217 = scmp.eq.s32.totalorder %s25, 0
      %p218 = por %p216, %p217
      %p219 = scmp.ne.s32.totalorder %s211, %s213
      %p220 = scmp.eq.s32.totalorder %s30, 1
      %p221 = por %p219, %p220
      %p222 = scmp.ne.s32.totalorder %s213, %s214
      %p223 = scmp.eq.s32.totalorder %s30, 0
      %p224 = por %p222, %p223
      %p225 = scmp.ne.s32.totalorder %s213, %s214
      %p226 = scmp.eq.s32.totalorder %s31, 1
      %p227 = por %p225, %p226
      %p229 = scmp.ne.s32.totalorder %s214, %s228
      %p230 = scmp.eq.s32.totalorder %s31, 0
      %p231 = por %p229, %p230
      %s233 = sadd.s32 %s232, 1
      %p236 = scmp.eq.s32.totalorder %s25, 1
      %p237 = scmp.ne.s32.totalorder %s232, %s234
      %p238 = scmp.eq.s32.totalorder %s25, 0
      %p239 = por %p237, %p238
      %p240 = scmp.ne.s32.totalorder %s232, %s234
      %p241 = scmp.eq.s32.totalorder %s30, 1
      %p242 = por %p240, %p241
      %p243 = scmp.ne.s32.totalorder %s234, %s235
      %p244 = scmp.eq.s32.totalorder %s30, 0
      %p245 = por %p243, %p244
      %p246 = scmp.ne.s32.totalorder %s234, %s235
      %p247 = scmp.eq.s32.totalorder %s31, 1
      %p248 = por %p246, %p247
      %p250 = scmp.ne.s32.totalorder %s235, %s249
      %p251 = scmp.eq.s32.totalorder %s31, 0
      %p252 = por %p250, %p251
      %p253 = scmp.le.s32.totalorder 1, %s25
      %p254 = scmp.lt.s32.totalorder %s25, 3
      %p255 = pnand %p253, %p254
      %p256 = pneg %p255
      // Predicated region
      $region9: #{tpu_custom_call.1} parent=5 // pred_check
        _
      $region10: #{tpu_custom_call.1} parent=5 // pred_check_branch
        %258 = sbr.rel (%p255) target = $region12
      $region11: #{tpu_custom_call.1} parent=5 // pred_region
        %s259 = ssub.s32 %s25, 1
        // Predicated region
        $region13: #{tpu_custom_call.1} parent=11 // pred_check
          %p260 = pneg %p98
        $region14: #{tpu_custom_call.1} parent=11 // pred_check_branch
          %262 = sbr.rel (%p260) target = $region16
        $region15: #{tpu_custom_call.1} parent=11 // pred_region
          %s264 = ssub.s32 256, 256
          %265 = vsyncadd [#allocation7], %s264
          %s267 = sshll.u32 [#allocation8], 4
          %s268 = int_to_ptr.vmem [resolvable:$true] %s267
          %270 = dma.hbm_to_vmem [thread:$0]  %s2, 256, %s268, [#allocation7]
        $region16: #{tpu_custom_call.1} parent=11 // pred_fallthru
          _
        // Predicated region
        $region17: #{tpu_custom_call.1} parent=11 // pred_check
          %p271 = pneg %p119
        $region18: #{tpu_custom_call.1} parent=11 // pred_check_branch
          %273 = sbr.rel (%p271) target = $region20
        $region19: #{tpu_custom_call.1} parent=11 // pred_region
          %s275 = ssub.s32 8192, 8192
          %276 = vsyncadd [#allocation10], %s275
          %s277 = sshll.u32 [#allocation9], 4
          %s278 = int_to_ptr.vmem [resolvable:$true] %s277
          %283 = dma.hbm_to_vmem [thread:$0]  %s3, 8192, %s278, [#allocation10], 128, 128, 8
        $region20: #{tpu_custom_call.1} parent=11 // pred_fallthru
          _
        // Predicated region
        $region21: #{tpu_custom_call.1} parent=11 // pred_check
          %p284 = pneg %p140
        $region22: #{tpu_custom_call.1} parent=11 // pred_check_branch
          %286 = sbr.rel (%p284) target = $region24
        $region23: #{tpu_custom_call.1} parent=11 // pred_region
          %s288 = ssub.s32 128, 128
          %289 = vsyncadd [#allocation10], %s288
          %s291 = sshll.u32 [#allocation11], 4
          %s292 = int_to_ptr.vmem [resolvable:$true] %s291
          %294 = dma.hbm_to_vmem [thread:$0]  %s4, 128, %s292, [#allocation10]
        $region24: #{tpu_custom_call.1} parent=11 // pred_fallthru
          _
        // Predicated region
        $region25: #{tpu_custom_call.1} parent=11 // pred_check
          %p295 = pneg %p161
        $region26: #{tpu_custom_call.1} parent=11 // pred_check_branch
          %297 = sbr.rel (%p295) target = $region28
        $region27: #{tpu_custom_call.1} parent=11 // pred_region
          %s299 = ssub.s32 8192, 8192
          %300 = vsyncadd [#allocation13], %s299
          %s301 = sshll.u32 [#allocation12], 4
          %s302 = int_to_ptr.vmem [resolvable:$true] %s301
          %307 = dma.hbm_to_vmem [thread:$0]  %s5, 8192, %s302, [#allocation13], 256, 256, 16
        $region28: #{tpu_custom_call.1} parent=11 // pred_fallthru
          _
        // Predicated region
        $region29: #{tpu_custom_call.1} parent=11 // pred_check
          %p308 = pneg %p182
        $region30: #{tpu_custom_call.1} parent=11 // pred_check_branch
          %310 = sbr.rel (%p308) target = $region32
        $region31: #{tpu_custom_call.1} parent=11 // pred_region
          %s312 = ssub.s32 256, 256
          %313 = vsyncadd [#allocation13], %s312
          %s315 = sshll.u32 [#allocation14], 4
          %s316 = int_to_ptr.vmem [resolvable:$true] %s315
          %318 = dma.hbm_to_vmem [thread:$0]  %s6, 256, %s316, [#allocation13]
        $region32: #{tpu_custom_call.1} parent=11 // pred_fallthru
          _
        // Predicated region
        $region33: #{tpu_custom_call.1} parent=11 // pred_check
          %p319 = pneg %p203
        $region34: #{tpu_custom_call.1} parent=11 // pred_check_branch
          %321 = sbr.rel (%p319) target = $region36
        $region35: #{tpu_custom_call.1} parent=11 // pred_region
          %s323 = ssub.s32 8192, 8192
          %324 = vsyncadd [#allocation16], %s323
          %s325 = sshll.u32 [#allocation15], 4
          %s326 = int_to_ptr.vmem [resolvable:$true] %s325
          %331 = dma.hbm_to_vmem [thread:$0]  %s7, 8192, %s326, [#allocation16], 128, 128, 8
        $region36: #{tpu_custom_call.1} parent=11 // pred_fallthru
          _
        // Predicated region
        $region37: #{tpu_custom_call.1} parent=11 // pred_check
          %p332 = pneg %p224
        $region38: #{tpu_custom_call.1} parent=11 // pred_check_branch
          %334 = sbr.rel (%p332) target = $region40
        $region39: #{tpu_custom_call.1} parent=11 // pred_region
          %s336 = ssub.s32 32, 32
          %337 = vsyncadd [#allocation16], %s336
          %s339 = sshll.u32 [#allocation17], 4
          %s340 = int_to_ptr.vmem [resolvable:$true] %s339
          %342 = dma.hbm_to_vmem [thread:$0]  %s8, 32, %s340, [#allocation16]
        $region40: #{tpu_custom_call.1} parent=11 // pred_fallthru
          _
      $region12: #{tpu_custom_call.1} parent=5 // pred_fallthru
        _
      %p343 = scmp.lt.s32.totalorder %s25, 2
      // Predicated region
      $region41: #{tpu_custom_call.1} parent=5 // pred_check
        %p344 = pneg %p343
      $region42: #{tpu_custom_call.1} parent=5 // pred_check_branch
        %346 = sbr.rel (%p344) target = $region44
      $region43: #{tpu_custom_call.1} parent=5 // pred_region
        // Predicated region
        $region45: #{tpu_custom_call.1} parent=43 // pred_check
          %p347 = pneg %p45
        $region46: #{tpu_custom_call.1} parent=43 // pred_check_branch
          %349 = sbr.rel (%p347) target = $region48
        $region47: #{tpu_custom_call.1} parent=43 // pred_region
          %s350 = sand.u32 %s35, 1
          %s351 = scalar_lea.sflag [#allocation4], %s350
          %s352 = sand.u32 %s35, 1
          %s353 = smul.addr %s352, 128
          %s354 = scalar_lea.vmem [#allocation3], %s353
          %s355 = smul.u32 16, %s25
          %s357 = ssub.s32 2048, 2048
          %358 = vsyncadd %s351, %s357
          %s359 = smul.addr %s355, 128
          %s360 = scalar_lea.hbm %s0, %s359
          %s362 = sshll.u32 %s354, 4
          %s363 = int_to_ptr.vmem [resolvable:$true] %s362
          %365 = dma.hbm_to_vmem [thread:$0]  %s360, 2048, %s363, %s351
        $region48: #{tpu_custom_call.1} parent=43 // pred_fallthru
          _
        // Predicated region
        $region49: #{tpu_custom_call.1} parent=43 // pred_check
          %p366 = pneg %p71
        $region50: #{tpu_custom_call.1} parent=43 // pred_check_branch
          %368 = sbr.rel (%p366) target = $region52
        $region51: #{tpu_custom_call.1} parent=43 // pred_region
          %s369 = sand.u32 %s25, 1
          %s370 = scalar_lea.sflag [#allocation7], %s369
          %s371 = sand.u32 %s61, 1
          %s372 = smul.addr %s371, 2048
          %s373 = scalar_lea.vmem [#allocation6], %s372
          %s374 = smul.u32 64, %s25
          %s376 = ssub.s32 32768, 32768
          %377 = vsyncadd %s370, %s376
          %s378 = smul.addr %s374, 4
          %s379 = smul.addr %s378, 128
          %s380 = scalar_lea.hbm %s1, %s379
          %s381 = sshll.u32 %s373, 4
          %s382 = int_to_ptr.vmem [resolvable:$true] %s381
          %387 = dma.hbm_to_vmem [thread:$0]  %s380, 32768, %s382, %s370, 512, 512, 32
        $region52: #{tpu_custom_call.1} parent=43 // pred_fallthru
          _
      $region44: #{tpu_custom_call.1} parent=5 // pred_fallthru
        _
      %p388 = scmp.le.s32.totalorder 1, %s25
      %p389 = scmp.lt.s32.totalorder %s25, 3
      %p390 = pnand %p388, %p389
      %p391 = pneg %p390
      // Predicated region
      $region53: #{tpu_custom_call.1} parent=5 // pred_check
        _
      $region54: #{tpu_custom_call.1} parent=5 // pred_check_branch
        %393 = sbr.rel (%p390) target = $region56
      $region55: #{tpu_custom_call.1} parent=5 // pred_region
        %s394 = ssub.s32 %s25, 1
        %s395 = sand.u32 %s38, 1
        %s396 = scalar_lea.sflag [#allocation4], %s395
        %s397 = sand.u32 %s38, 1
        %s398 = smul.addr %s397, 128
        %s399 = scalar_lea.vmem [#allocation3], %s398
        // Predicated region
        $region57: #{tpu_custom_call.1} parent=55 // pred_check
          %p400 = pneg %p51
        $region58: #{tpu_custom_call.1} parent=55 // pred_check_branch
          %402 = sbr.rel (%p400) target = $region60
        $region59: #{tpu_custom_call.1} parent=55 // pred_region
          %403 = dma.done %s396, 2048
        $region60: #{tpu_custom_call.1} parent=55 // pred_fallthru
          _
        %s404 = sand.u32 %s30, 1
        %s405 = scalar_lea.sflag [#allocation7], %s404
        %s406 = sand.u32 %s64, 1
        %s407 = smul.addr %s406, 2048
        %s408 = scalar_lea.vmem [#allocation6], %s407
        // Predicated region
        $region61: #{tpu_custom_call.1} parent=55 // pred_check
          %p409 = pneg %p77
        $region62: #{tpu_custom_call.1} parent=55 // pred_check_branch
          %411 = sbr.rel (%p409) target = $region64
        $region63: #{tpu_custom_call.1} parent=55 // pred_region
          %412 = dma.done %s405, 32768
        $region64: #{tpu_custom_call.1} parent=55 // pred_fallthru
          _
        // Predicated region
        $region65: #{tpu_custom_call.1} parent=55 // pred_check
          %p413 = pneg %p98
        $region66: #{tpu_custom_call.1} parent=55 // pred_check_branch
          %415 = sbr.rel (%p413) target = $region68
        $region67: #{tpu_custom_call.1} parent=55 // pred_region
          %416 = dma.done [#allocation7], 256
        $region68: #{tpu_custom_call.1} parent=55 // pred_fallthru
          _
        // Predicated region
        $region69: #{tpu_custom_call.1} parent=55 // pred_check
          %p417 = pneg %p119
        $region70: #{tpu_custom_call.1} parent=55 // pred_check_branch
          %419 = sbr.rel (%p417) target = $region72
        $region71: #{tpu_custom_call.1} parent=55 // pred_region
          %420 = dma.done [#allocation10], 8192
        $region72: #{tpu_custom_call.1} parent=55 // pred_fallthru
          _
        // Predicated region
        $region73: #{tpu_custom_call.1} parent=55 // pred_check
          %p421 = pneg %p140
        $region74: #{tpu_custom_call.1} parent=55 // pred_check_branch
          %423 = sbr.rel (%p421) target = $region76
        $region75: #{tpu_custom_call.1} parent=55 // pred_region
          %424 = dma.done [#allocation10], 128
        $region76: #{tpu_custom_call.1} parent=55 // pred_fallthru
          _
        // Predicated region
        $region77: #{tpu_custom_call.1} parent=55 // pred_check
          %p425 = pneg %p161
        $region78: #{tpu_custom_call.1} parent=55 // pred_check_branch
          %427 = sbr.rel (%p425) target = $region80
        $region79: #{tpu_custom_call.1} parent=55 // pred_region
          %428 = dma.done [#allocation13], 8192
        $region80: #{tpu_custom_call.1} parent=55 // pred_fallthru
          _
        // Predicated region
        $region81: #{tpu_custom_call.1} parent=55 // pred_check
          %p429 = pneg %p182
        $region82: #{tpu_custom_call.1} parent=55 // pred_check_branch
          %431 = sbr.rel (%p429) target = $region84
        $region83: #{tpu_custom_call.1} parent=55 // pred_region
          %432 = dma.done [#allocation13], 256
        $region84: #{tpu_custom_call.1} parent=55 // pred_fallthru
          _
        // Predicated region
        $region85: #{tpu_custom_call.1} parent=55 // pred_check
          %p433 = pneg %p203
        $region86: #{tpu_custom_call.1} parent=55 // pred_check_branch
          %435 = sbr.rel (%p433) target = $region88
        $region87: #{tpu_custom_call.1} parent=55 // pred_region
          %436 = dma.done [#allocation16], 8192
        $region88: #{tpu_custom_call.1} parent=55 // pred_fallthru
          _
        // Predicated region
        $region89: #{tpu_custom_call.1} parent=55 // pred_check
          %p437 = pneg %p224
        $region90: #{tpu_custom_call.1} parent=55 // pred_check_branch
          %439 = sbr.rel (%p437) target = $region92
        $region91: #{tpu_custom_call.1} parent=55 // pred_region
          %440 = dma.done [#allocation16], 32
        $region92: #{tpu_custom_call.1} parent=55 // pred_fallthru
          _
        %s441 = sand.u32 %s38, 1
        %s442 = scalar_lea.sflag [#allocation4], %s441
        %s443 = sand.u32 %s38, 1
        %s444 = smul.addr %s443, 128
        %s445 = scalar_lea.vmem [#allocation3], %s444
        %p446 = pneg %p51
        %p447 = pneg %p48
        %s448 = sand.u32 %s30, 1
        %s449 = scalar_lea.sflag [#allocation7], %s448
        %s450 = sand.u32 %s64, 1
        %s451 = smul.addr %s450, 2048
        %s452 = scalar_lea.vmem [#allocation6], %s451
        %p453 = pneg %p77
        %p454 = pneg %p74
        %p455 = pneg %p98
        %p456 = pneg %p95
        %p457 = pneg %p119
        %p458 = pneg %p116
        %p459 = pneg %p140
        %p460 = pneg %p137
        %p461 = pneg %p161
        %p462 = pneg %p158
        %p463 = pneg %p182
        %p464 = pneg %p179
        %p465 = pneg %p203
        %p466 = pneg %p200
        %p467 = pneg %p224
        %p468 = pneg %p221
        %p469 = pneg %p245
        %p470 = pneg %p242
        %s471 = smul.u32 16, %s30
        %s472 = smul.u32 64, %s30
        %p473 = scmp.eq.s32.totalorder %s30, 0
        // Predicated region
        $region93: #{tpu_custom_call.1} parent=55 // pred_check
          %p474 = pneg %p473
        $region94: #{tpu_custom_call.1} parent=55 // pred_check_branch
          %476 = sbr.rel (%p474) target = $region96
        $region95: #{tpu_custom_call.1} parent=55 // pred_region
          %s477 = scalar_lea.vmem [#allocation8], 1
          %v478 = vld [vmem:[%s477] ss:$4 sm:$0xf]
          %v480 = vlaneseq
          %v481 = vshrl.u32 %v480, 7
          %v482 = vsub.s32 0, %v481
          %v483 = vrot.slane %v478, %v482
          %v484 = vlaneseq
          %v485 = vshrl.u32 %v484, 7
          %v486 = vsub.s32 1, %v485
          %v487 = vrot.slane %v478, %v486
          %v488 = vlaneseq
          %v489 = vshrl.u32 %v488, 7
          %v490 = vsub.s32 2, %v489
          %v491 = vrot.slane %v478, %v490
          %v492 = vlaneseq
          %v493 = vshrl.u32 %v492, 7
          %v494 = vsub.s32 3, %v493
          %v495 = vrot.slane %v478, %v494
          %500 = vst [vmem:[#allocation2] sm:$0xff] %v483
          %501 = vst [vmem:[#allocation2 + $0x8] sm:$0xff] %v487
          %502 = vst [vmem:[#allocation2 + $0x10] sm:$0xff] %v491
          %503 = vst [vmem:[#allocation2 + $0x18] sm:$0xff] %v495
        $region96: #{tpu_custom_call.1} parent=55 // pred_fallthru
          _
        %v504 = vld [vmem:[%s408] sm:$0xff]
        %v505 = vld [vmem:[%s408 + $0x8] sm:$0xff]
        %v506 = vld [vmem:[%s408 + $0x10] sm:$0xff]
        %v507 = vld [vmem:[%s408 + $0x18] sm:$0xff]
        %v508 = vld [vmem:[%s408 + $0x20] sm:$0xff]
        %v509 = vld [vmem:[%s408 + $0x28] sm:$0xff]
        %v510 = vld [vmem:[%s408 + $0x30] sm:$0xff]
        %v511 = vld [vmem:[%s408 + $0x38] sm:$0xff]
        %v512 = vld [vmem:[%s408 + $0x40] sm:$0xff]
        %v513 = vld [vmem:[%s408 + $0x48] sm:$0xff]
        %v514 = vld [vmem:[%s408 + $0x50] sm:$0xff]
        %v515 = vld [vmem:[%s408 + $0x58] sm:$0xff]
        %v516 = vld [vmem:[%s408 + $0x60] sm:$0xff]
        %v517 = vld [vmem:[%s408 + $0x68] sm:$0xff]
        %v518 = vld [vmem:[%s408 + $0x70] sm:$0xff]
        %v519 = vld [vmem:[%s408 + $0x78] sm:$0xff]
        %v520 = vld [vmem:[%s408 + $0x80] sm:$0xff]
        %v521 = vld [vmem:[%s408 + $0x88] sm:$0xff]
        %v522 = vld [vmem:[%s408 + $0x90] sm:$0xff]
        %v523 = vld [vmem:[%s408 + $0x98] sm:$0xff]
        %v524 = vld [vmem:[%s408 + $0xa0] sm:$0xff]
        %v525 = vld [vmem:[%s408 + $0xa8] sm:$0xff]
        %v526 = vld [vmem:[%s408 + $0xb0] sm:$0xff]
        %v527 = vld [vmem:[%s408 + $0xb8] sm:$0xff]
        %v528 = vld [vmem:[%s408 + $0xc0] sm:$0xff]
        %v529 = vld [vmem:[%s408 + $0xc8] sm:$0xff]
        %v530 = vld [vmem:[%s408 + $0xd0] sm:$0xff]
        %v531 = vld [vmem:[%s408 + $0xd8] sm:$0xff]
        %v532 = vld [vmem:[%s408 + $0xe0] sm:$0xff]
        %v533 = vld [vmem:[%s408 + $0xe8] sm:$0xff]
        %v534 = vld [vmem:[%s408 + $0xf0] sm:$0xff]
        %v535 = vld [vmem:[%s408 + $0xf8] sm:$0xff]
        %v536 = vld [vmem:[%s408 + $0x100] sm:$0xff]
        %v537 = vld [vmem:[%s408 + $0x108] sm:$0xff]
        %v538 = vld [vmem:[%s408 + $0x110] sm:$0xff]
        %v539 = vld [vmem:[%s408 + $0x118] sm:$0xff]
        %v540 = vld [vmem:[%s408 + $0x120] sm:$0xff]
        %v541 = vld [vmem:[%s408 + $0x128] sm:$0xff]
        %v542 = vld [vmem:[%s408 + $0x130] sm:$0xff]
        %v543 = vld [vmem:[%s408 + $0x138] sm:$0xff]
        %v544 = vld [vmem:[%s408 + $0x140] sm:$0xff]
        %v545 = vld [vmem:[%s408 + $0x148] sm:$0xff]
        %v546 = vld [vmem:[%s408 + $0x150] sm:$0xff]
        %v547 = vld [vmem:[%s408 + $0x158] sm:$0xff]
        %v548 = vld [vmem:[%s408 + $0x160] sm:$0xff]
        %v549 = vld [vmem:[%s408 + $0x168] sm:$0xff]
        %v550 = vld [vmem:[%s408 + $0x170] sm:$0xff]
        %v551 = vld [vmem:[%s408 + $0x178] sm:$0xff]
        %v552 = vld [vmem:[%s408 + $0x180] sm:$0xff]
        %v553 = vld [vmem:[%s408 + $0x188] sm:$0xff]
        %v554 = vld [vmem:[%s408 + $0x190] sm:$0xff]
        %v555 = vld [vmem:[%s408 + $0x198] sm:$0xff]
        %v556 = vld [vmem:[%s408 + $0x1a0] sm:$0xff]
        %v557 = vld [vmem:[%s408 + $0x1a8] sm:$0xff]
        %v558 = vld [vmem:[%s408 + $0x1b0] sm:$0xff]
        %v559 = vld [vmem:[%s408 + $0x1b8] sm:$0xff]
        %v560 = vld [vmem:[%s408 + $0x1c0] sm:$0xff]
        %v561 = vld [vmem:[%s408 + $0x1c8] sm:$0xff]
        %v562 = vld [vmem:[%s408 + $0x1d0] sm:$0xff]
        %v563 = vld [vmem:[%s408 + $0x1d8] sm:$0xff]
        %v564 = vld [vmem:[%s408 + $0x1e0] sm:$0xff]
        %v565 = vld [vmem:[%s408 + $0x1e8] sm:$0xff]
        %v566 = vld [vmem:[%s408 + $0x1f0] sm:$0xff]
        %v567 = vld [vmem:[%s408 + $0x1f8] sm:$0xff]
        %v568 = vld [vmem:[%s408 + $0x200] sm:$0xff]
        %v569 = vld [vmem:[%s408 + $0x208] sm:$0xff]
        %v570 = vld [vmem:[%s408 + $0x210] sm:$0xff]
        %v571 = vld [vmem:[%s408 + $0x218] sm:$0xff]
        %v572 = vld [vmem:[%s408 + $0x220] sm:$0xff]
        %v573 = vld [vmem:[%s408 + $0x228] sm:$0xff]
        %v574 = vld [vmem:[%s408 + $0x230] sm:$0xff]
        %v575 = vld [vmem:[%s408 + $0x238] sm:$0xff]
        %v576 = vld [vmem:[%s408 + $0x240] sm:$0xff]
        %v577 = vld [vmem:[%s408 + $0x248] sm:$0xff]
        %v578 = vld [vmem:[%s408 + $0x250] sm:$0xff]
        %v579 = vld [vmem:[%s408 + $0x258] sm:$0xff]
        %v580 = vld [vmem:[%s408 + $0x260] sm:$0xff]
        %v581 = vld [vmem:[%s408 + $0x268] sm:$0xff]
        %v582 = vld [vmem:[%s408 + $0x270] sm:$0xff]
        %v583 = vld [vmem:[%s408 + $0x278] sm:$0xff]
        %v584 = vld [vmem:[%s408 + $0x280] sm:$0xff]
        %v585 = vld [vmem:[%s408 + $0x288] sm:$0xff]
        %v586 = vld [vmem:[%s408 + $0x290] sm:$0xff]
        %v587 = vld [vmem:[%s408 + $0x298] sm:$0xff]
        %v588 = vld [vmem:[%s408 + $0x2a0] sm:$0xff]
        %v589 = vld [vmem:[%s408 + $0x2a8] sm:$0xff]
        %v590 = vld [vmem:[%s408 + $0x2b0] sm:$0xff]
        %v591 = vld [vmem:[%s408 + $0x2b8] sm:$0xff]
        %v592 = vld [vmem:[%s408 + $0x2c0] sm:$0xff]
        %v593 = vld [vmem:[%s408 + $0x2c8] sm:$0xff]
        %v594 = vld [vmem:[%s408 + $0x2d0] sm:$0xff]
        %v595 = vld [vmem:[%s408 + $0x2d8] sm:$0xff]
        %v596 = vld [vmem:[%s408 + $0x2e0] sm:$0xff]
        %v597 = vld [vmem:[%s408 + $0x2e8] sm:$0xff]
        %v598 = vld [vmem:[%s408 + $0x2f0] sm:$0xff]
        %v599 = vld [vmem:[%s408 + $0x2f8] sm:$0xff]
        %v600 = vld [vmem:[%s408 + $0x300] sm:$0xff]
        %v601 = vld [vmem:[%s408 + $0x308] sm:$0xff]
        %v602 = vld [vmem:[%s408 + $0x310] sm:$0xff]
        %v603 = vld [vmem:[%s408 + $0x318] sm:$0xff]
        %v604 = vld [vmem:[%s408 + $0x320] sm:$0xff]
        %v605 = vld [vmem:[%s408 + $0x328] sm:$0xff]
        %v606 = vld [vmem:[%s408 + $0x330] sm:$0xff]
        %v607 = vld [vmem:[%s408 + $0x338] sm:$0xff]
        %v608 = vld [vmem:[%s408 + $0x340] sm:$0xff]
        %v609 = vld [vmem:[%s408 + $0x348] sm:$0xff]
        %v610 = vld [vmem:[%s408 + $0x350] sm:$0xff]
        %v611 = vld [vmem:[%s408 + $0x358] sm:$0xff]
        %v612 = vld [vmem:[%s408 + $0x360] sm:$0xff]
        %v613 = vld [vmem:[%s408 + $0x368] sm:$0xff]
        %v614 = vld [vmem:[%s408 + $0x370] sm:$0xff]
        %v615 = vld [vmem:[%s408 + $0x378] sm:$0xff]
        %v616 = vld [vmem:[%s408 + $0x380] sm:$0xff]
        %v617 = vld [vmem:[%s408 + $0x388] sm:$0xff]
        %v618 = vld [vmem:[%s408 + $0x390] sm:$0xff]
        %v619 = vld [vmem:[%s408 + $0x398] sm:$0xff]
        %v620 = vld [vmem:[%s408 + $0x3a0] sm:$0xff]
        %v621 = vld [vmem:[%s408 + $0x3a8] sm:$0xff]
        %v622 = vld [vmem:[%s408 + $0x3b0] sm:$0xff]
        %v623 = vld [vmem:[%s408 + $0x3b8] sm:$0xff]
        %v624 = vld [vmem:[%s408 + $0x3c0] sm:$0xff]
        %v625 = vld [vmem:[%s408 + $0x3c8] sm:$0xff]
        %v626 = vld [vmem:[%s408 + $0x3d0] sm:$0xff]
        %v627 = vld [vmem:[%s408 + $0x3d8] sm:$0xff]
        %v628 = vld [vmem:[%s408 + $0x3e0] sm:$0xff]
        %v629 = vld [vmem:[%s408 + $0x3e8] sm:$0xff]
        %v630 = vld [vmem:[%s408 + $0x3f0] sm:$0xff]
        %v631 = vld [vmem:[%s408 + $0x3f8] sm:$0xff]
        %v632 = vld [vmem:[%s408 + $0x400] sm:$0xff]
        %v633 = vld [vmem:[%s408 + $0x408] sm:$0xff]
        %v634 = vld [vmem:[%s408 + $0x410] sm:$0xff]
        %v635 = vld [vmem:[%s408 + $0x418] sm:$0xff]
        %v636 = vld [vmem:[%s408 + $0x420] sm:$0xff]
        %v637 = vld [vmem:[%s408 + $0x428] sm:$0xff]
        %v638 = vld [vmem:[%s408 + $0x430] sm:$0xff]
        %v639 = vld [vmem:[%s408 + $0x438] sm:$0xff]
        %v640 = vld [vmem:[%s408 + $0x440] sm:$0xff]
        %v641 = vld [vmem:[%s408 + $0x448] sm:$0xff]
        %v642 = vld [vmem:[%s408 + $0x450] sm:$0xff]
        %v643 = vld [vmem:[%s408 + $0x458] sm:$0xff]
        %v644 = vld [vmem:[%s408 + $0x460] sm:$0xff]
        %v645 = vld [vmem:[%s408 + $0x468] sm:$0xff]
        %v646 = vld [vmem:[%s408 + $0x470] sm:$0xff]
        %v647 = vld [vmem:[%s408 + $0x478] sm:$0xff]
        %v648 = vld [vmem:[%s408 + $0x480] sm:$0xff]
        %v649 = vld [vmem:[%s408 + $0x488] sm:$0xff]
        %v650 = vld [vmem:[%s408 + $0x490] sm:$0xff]
        %v651 = vld [vmem:[%s408 + $0x498] sm:$0xff]
        %v652 = vld [vmem:[%s408 + $0x4a0] sm:$0xff]
        %v653 = vld [vmem:[%s408 + $0x4a8] sm:$0xff]
        %v654 = vld [vmem:[%s408 + $0x4b0] sm:$0xff]
        %v655 = vld [vmem:[%s408 + $0x4b8] sm:$0xff]
        %v656 = vld [vmem:[%s408 + $0x4c0] sm:$0xff]
        %v657 = vld [vmem:[%s408 + $0x4c8] sm:$0xff]
        %v658 = vld [vmem:[%s408 + $0x4d0] sm:$0xff]
        %v659 = vld [vmem:[%s408 + $0x4d8] sm:$0xff]
        %v660 = vld [vmem:[%s408 + $0x4e0] sm:$0xff]
        %v661 = vld [vmem:[%s408 + $0x4e8] sm:$0xff]
        %v662 = vld [vmem:[%s408 + $0x4f0] sm:$0xff]
        %v663 = vld [vmem:[%s408 + $0x4f8] sm:$0xff]
        %v664 = vld [vmem:[%s408 + $0x500] sm:$0xff]
        %v665 = vld [vmem:[%s408 + $0x508] sm:$0xff]
        %v666 = vld [vmem:[%s408 + $0x510] sm:$0xff]
        %v667 = vld [vmem:[%s408 + $0x518] sm:$0xff]
        %v668 = vld [vmem:[%s408 + $0x520] sm:$0xff]
        %v669 = vld [vmem:[%s408 + $0x528] sm:$0xff]
        %v670 = vld [vmem:[%s408 + $0x530] sm:$0xff]
        %v671 = vld [vmem:[%s408 + $0x538] sm:$0xff]
        %v672 = vld [vmem:[%s408 + $0x540] sm:$0xff]
        %v673 = vld [vmem:[%s408 + $0x548] sm:$0xff]
        %v674 = vld [vmem:[%s408 + $0x550] sm:$0xff]
        %v675 = vld [vmem:[%s408 + $0x558] sm:$0xff]
        %v676 = vld [vmem:[%s408 + $0x560] sm:$0xff]
        %v677 = vld [vmem:[%s408 + $0x568] sm:$0xff]
        %v678 = vld [vmem:[%s408 + $0x570] sm:$0xff]
        %v679 = vld [vmem:[%s408 + $0x578] sm:$0xff]
        %v680 = vld [vmem:[%s408 + $0x580] sm:$0xff]
        %v681 = vld [vmem:[%s408 + $0x588] sm:$0xff]
        %v682 = vld [vmem:[%s408 + $0x590] sm:$0xff]
        %v683 = vld [vmem:[%s408 + $0x598] sm:$0xff]
        %v684 = vld [vmem:[%s408 + $0x5a0] sm:$0xff]
        %v685 = vld [vmem:[%s408 + $0x5a8] sm:$0xff]
        %v686 = vld [vmem:[%s408 + $0x5b0] sm:$0xff]
        %v687 = vld [vmem:[%s408 + $0x5b8] sm:$0xff]
        %v688 = vld [vmem:[%s408 + $0x5c0] sm:$0xff]
        %v689 = vld [vmem:[%s408 + $0x5c8] sm:$0xff]
        %v690 = vld [vmem:[%s408 + $0x5d0] sm:$0xff]
        %v691 = vld [vmem:[%s408 + $0x5d8] sm:$0xff]
        %v692 = vld [vmem:[%s408 + $0x5e0] sm:$0xff]
        %v693 = vld [vmem:[%s408 + $0x5e8] sm:$0xff]
        %v694 = vld [vmem:[%s408 + $0x5f0] sm:$0xff]
        %v695 = vld [vmem:[%s408 + $0x5f8] sm:$0xff]
        %v696 = vld [vmem:[%s408 + $0x600] sm:$0xff]
        %v697 = vld [vmem:[%s408 + $0x608] sm:$0xff]
        %v698 = vld [vmem:[%s408 + $0x610] sm:$0xff]
        %v699 = vld [vmem:[%s408 + $0x618] sm:$0xff]
        %v700 = vld [vmem:[%s408 + $0x620] sm:$0xff]
        %v701 = vld [vmem:[%s408 + $0x628] sm:$0xff]
        %v702 = vld [vmem:[%s408 + $0x630] sm:$0xff]
        %v703 = vld [vmem:[%s408 + $0x638] sm:$0xff]
        %v704 = vld [vmem:[%s408 + $0x640] sm:$0xff]
        %v705 = vld [vmem:[%s408 + $0x648] sm:$0xff]
        %v706 = vld [vmem:[%s408 + $0x650] sm:$0xff]
        %v707 = vld [vmem:[%s408 + $0x658] sm:$0xff]
        %v708 = vld [vmem:[%s408 + $0x660] sm:$0xff]
        %v709 = vld [vmem:[%s408 + $0x668] sm:$0xff]
        %v710 = vld [vmem:[%s408 + $0x670] sm:$0xff]
        %v711 = vld [vmem:[%s408 + $0x678] sm:$0xff]
        %v712 = vld [vmem:[%s408 + $0x680] sm:$0xff]
        %v713 = vld [vmem:[%s408 + $0x688] sm:$0xff]
        %v714 = vld [vmem:[%s408 + $0x690] sm:$0xff]
        %v715 = vld [vmem:[%s408 + $0x698] sm:$0xff]
        %v716 = vld [vmem:[%s408 + $0x6a0] sm:$0xff]
        %v717 = vld [vmem:[%s408 + $0x6a8] sm:$0xff]
        %v718 = vld [vmem:[%s408 + $0x6b0] sm:$0xff]
        %v719 = vld [vmem:[%s408 + $0x6b8] sm:$0xff]
        %v720 = vld [vmem:[%s408 + $0x6c0] sm:$0xff]
        %v721 = vld [vmem:[%s408 + $0x6c8] sm:$0xff]
        %v722 = vld [vmem:[%s408 + $0x6d0] sm:$0xff]
        %v723 = vld [vmem:[%s408 + $0x6d8] sm:$0xff]
        %v724 = vld [vmem:[%s408 + $0x6e0] sm:$0xff]
        %v725 = vld [vmem:[%s408 + $0x6e8] sm:$0xff]
        %v726 = vld [vmem:[%s408 + $0x6f0] sm:$0xff]
        %v727 = vld [vmem:[%s408 + $0x6f8] sm:$0xff]
        %v728 = vld [vmem:[%s408 + $0x700] sm:$0xff]
        %v729 = vld [vmem:[%s408 + $0x708] sm:$0xff]
        %v730 = vld [vmem:[%s408 + $0x710] sm:$0xff]
        %v731 = vld [vmem:[%s408 + $0x718] sm:$0xff]
        %v732 = vld [vmem:[%s408 + $0x720] sm:$0xff]
        %v733 = vld [vmem:[%s408 + $0x728] sm:$0xff]
        %v734 = vld [vmem:[%s408 + $0x730] sm:$0xff]
        %v735 = vld [vmem:[%s408 + $0x738] sm:$0xff]
        %v736 = vld [vmem:[%s408 + $0x740] sm:$0xff]
        %v737 = vld [vmem:[%s408 + $0x748] sm:$0xff]
        %v738 = vld [vmem:[%s408 + $0x750] sm:$0xff]
        %v739 = vld [vmem:[%s408 + $0x758] sm:$0xff]
        %v740 = vld [vmem:[%s408 + $0x760] sm:$0xff]
        %v741 = vld [vmem:[%s408 + $0x768] sm:$0xff]
        %v742 = vld [vmem:[%s408 + $0x770] sm:$0xff]
        %v743 = vld [vmem:[%s408 + $0x778] sm:$0xff]
        %v744 = vld [vmem:[%s408 + $0x780] sm:$0xff]
        %v745 = vld [vmem:[%s408 + $0x788] sm:$0xff]
        %v746 = vld [vmem:[%s408 + $0x790] sm:$0xff]
        %v747 = vld [vmem:[%s408 + $0x798] sm:$0xff]
        %v748 = vld [vmem:[%s408 + $0x7a0] sm:$0xff]
        %v749 = vld [vmem:[%s408 + $0x7a8] sm:$0xff]
        %v750 = vld [vmem:[%s408 + $0x7b0] sm:$0xff]
        %v751 = vld [vmem:[%s408 + $0x7b8] sm:$0xff]
        %v752 = vld [vmem:[%s408 + $0x7c0] sm:$0xff]
        %v753 = vld [vmem:[%s408 + $0x7c8] sm:$0xff]
        %v754 = vld [vmem:[%s408 + $0x7d0] sm:$0xff]
        %v755 = vld [vmem:[%s408 + $0x7d8] sm:$0xff]
        %v756 = vld [vmem:[%s408 + $0x7e0] sm:$0xff]
        %v757 = vld [vmem:[%s408 + $0x7e8] sm:$0xff]
        %v758 = vld [vmem:[%s408 + $0x7f0] sm:$0xff]
        %v759 = vld [vmem:[%s408 + $0x7f8] sm:$0xff]
        %v760 = vunpack.c.0.s8 %v504
        %v761 = vunpack.c.0.s8 %v505
        %v762 = vunpack.c.0.s8 %v506
        %v763 = vunpack.c.0.s8 %v507
        %v764 = vunpack.c.1.s8 %v504
        %v765 = vunpack.c.1.s8 %v505
        %v766 = vunpack.c.1.s8 %v506
        %v767 = vunpack.c.1.s8 %v507
        %v768 = vunpack.c.2.s8 %v504
        %v769 = vunpack.c.2.s8 %v505
        %v770 = vunpack.c.2.s8 %v506
        %v771 = vunpack.c.2.s8 %v507
        %v772 = vunpack.c.3.s8 %v504
        %v773 = vunpack.c.3.s8 %v505
        %v774 = vunpack.c.3.s8 %v506
        %v775 = vunpack.c.3.s8 %v507
        %v776 = vunpack.c.0.s8 %v508
        %v777 = vunpack.c.0.s8 %v509
        %v778 = vunpack.c.0.s8 %v510
        %v779 = vunpack.c.0.s8 %v511
        %v780 = vunpack.c.1.s8 %v508
        %v781 = vunpack.c.1.s8 %v509
        %v782 = vunpack.c.1.s8 %v510
        %v783 = vunpack.c.1.s8 %v511
        %v784 = vunpack.c.2.s8 %v508
        %v785 = vunpack.c.2.s8 %v509
        %v786 = vunpack.c.2.s8 %v510
        %v787 = vunpack.c.2.s8 %v511
        %v788 = vunpack.c.3.s8 %v508
        %v789 = vunpack.c.3.s8 %v509
        %v790 = vunpack.c.3.s8 %v510
        %v791 = vunpack.c.3.s8 %v511
        %v792 = vunpack.c.0.s8 %v512
        %v793 = vunpack.c.0.s8 %v513
        %v794 = vunpack.c.0.s8 %v514
        %v795 = vunpack.c.0.s8 %v515
        %v796 = vunpack.c.1.s8 %v512
        %v797 = vunpack.c.1.s8 %v513
        %v798 = vunpack.c.1.s8 %v514
        %v799 = vunpack.c.1.s8 %v515
        %v800 = vunpack.c.2.s8 %v512
        %v801 = vunpack.c.2.s8 %v513
        %v802 = vunpack.c.2.s8 %v514
        %v803 = vunpack.c.2.s8 %v515
        %v804 = vunpack.c.3.s8 %v512
        %v805 = vunpack.c.3.s8 %v513
        %v806 = vunpack.c.3.s8 %v514
        %v807 = vunpack.c.3.s8 %v515
        %v808 = vunpack.c.0.s8 %v516
        %v809 = vunpack.c.0.s8 %v517
        %v810 = vunpack.c.0.s8 %v518
        %v811 = vunpack.c.0.s8 %v519
        %v812 = vunpack.c.1.s8 %v516
        %v813 = vunpack.c.1.s8 %v517
        %v814 = vunpack.c.1.s8 %v518
        %v815 = vunpack.c.1.s8 %v519
        %v816 = vunpack.c.2.s8 %v516
        %v817 = vunpack.c.2.s8 %v517
        %v818 = vunpack.c.2.s8 %v518
        %v819 = vunpack.c.2.s8 %v519
        %v820 = vunpack.c.3.s8 %v516
        %v821 = vunpack.c.3.s8 %v517
        %v822 = vunpack.c.3.s8 %v518
        %v823 = vunpack.c.3.s8 %v519
        %v824 = vunpack.c.0.s8 %v520
        %v825 = vunpack.c.0.s8 %v521
        %v826 = vunpack.c.0.s8 %v522
        %v827 = vunpack.c.0.s8 %v523
        %v828 = vunpack.c.1.s8 %v520
        %v829 = vunpack.c.1.s8 %v521
        %v830 = vunpack.c.1.s8 %v522
        %v831 = vunpack.c.1.s8 %v523
        %v832 = vunpack.c.2.s8 %v520
        %v833 = vunpack.c.2.s8 %v521
        %v834 = vunpack.c.2.s8 %v522
        %v835 = vunpack.c.2.s8 %v523
        %v836 = vunpack.c.3.s8 %v520
        %v837 = vunpack.c.3.s8 %v521
        %v838 = vunpack.c.3.s8 %v522
        %v839 = vunpack.c.3.s8 %v523
        %v840 = vunpack.c.0.s8 %v524
        %v841 = vunpack.c.0.s8 %v525
        %v842 = vunpack.c.0.s8 %v526
        %v843 = vunpack.c.0.s8 %v527
        %v844 = vunpack.c.1.s8 %v524
        %v845 = vunpack.c.1.s8 %v525
        %v846 = vunpack.c.1.s8 %v526
        %v847 = vunpack.c.1.s8 %v527
        %v848 = vunpack.c.2.s8 %v524
        %v849 = vunpack.c.2.s8 %v525
        %v850 = vunpack.c.2.s8 %v526
        %v851 = vunpack.c.2.s8 %v527
        %v852 = vunpack.c.3.s8 %v524
        %v853 = vunpack.c.3.s8 %v525
        %v854 = vunpack.c.3.s8 %v526
        %v855 = vunpack.c.3.s8 %v527
        %v856 = vunpack.c.0.s8 %v528
        %v857 = vunpack.c.0.s8 %v529
        %v858 = vunpack.c.0.s8 %v530
        %v859 = vunpack.c.0.s8 %v531
        %v860 = vunpack.c.1.s8 %v528
        %v861 = vunpack.c.1.s8 %v529
        %v862 = vunpack.c.1.s8 %v530
        %v863 = vunpack.c.1.s8 %v531
        %v864 = vunpack.c.2.s8 %v528
        %v865 = vunpack.c.2.s8 %v529
        %v866 = vunpack.c.2.s8 %v530
        %v867 = vunpack.c.2.s8 %v531
        %v868 = vunpack.c.3.s8 %v528
        %v869 = vunpack.c.3.s8 %v529
        %v870 = vunpack.c.3.s8 %v530
        %v871 = vunpack.c.3.s8 %v531
        %v872 = vunpack.c.0.s8 %v532
        %v873 = vunpack.c.0.s8 %v533
        %v874 = vunpack.c.0.s8 %v534
        %v875 = vunpack.c.0.s8 %v535
        %v876 = vunpack.c.1.s8 %v532
        %v877 = vunpack.c.1.s8 %v533
        %v878 = vunpack.c.1.s8 %v534
        %v879 = vunpack.c.1.s8 %v535
        %v880 = vunpack.c.2.s8 %v532
        %v881 = vunpack.c.2.s8 %v533
        %v882 = vunpack.c.2.s8 %v534
        %v883 = vunpack.c.2.s8 %v535
        %v884 = vunpack.c.3.s8 %v532
        %v885 = vunpack.c.3.s8 %v533
        %v886 = vunpack.c.3.s8 %v534
        %v887 = vunpack.c.3.s8 %v535
        %v888 = vunpack.c.0.s8 %v536
        %v889 = vunpack.c.0.s8 %v537
        %v890 = vunpack.c.0.s8 %v538
        %v891 = vunpack.c.0.s8 %v539
        %v892 = vunpack.c.1.s8 %v536
        %v893 = vunpack.c.1.s8 %v537
        %v894 = vunpack.c.1.s8 %v538
        %v895 = vunpack.c.1.s8 %v539
        %v896 = vunpack.c.2.s8 %v536
        %v897 = vunpack.c.2.s8 %v537
        %v898 = vunpack.c.2.s8 %v538
        %v899 = vunpack.c.2.s8 %v539
        %v900 = vunpack.c.3.s8 %v536
        %v901 = vunpack.c.3.s8 %v537
        %v902 = vunpack.c.3.s8 %v538
        %v903 = vunpack.c.3.s8 %v539
        %v904 = vunpack.c.0.s8 %v540
        %v905 = vunpack.c.0.s8 %v541
        %v906 = vunpack.c.0.s8 %v542
        %v907 = vunpack.c.0.s8 %v543
        %v908 = vunpack.c.1.s8 %v540
        %v909 = vunpack.c.1.s8 %v541
        %v910 = vunpack.c.1.s8 %v542
        %v911 = vunpack.c.1.s8 %v543
        %v912 = vunpack.c.2.s8 %v540
        %v913 = vunpack.c.2.s8 %v541
        %v914 = vunpack.c.2.s8 %v542
        %v915 = vunpack.c.2.s8 %v543
        %v916 = vunpack.c.3.s8 %v540
        %v917 = vunpack.c.3.s8 %v541
        %v918 = vunpack.c.3.s8 %v542
        %v919 = vunpack.c.3.s8 %v543
        %v920 = vunpack.c.0.s8 %v544
        %v921 = vunpack.c.0.s8 %v545
        %v922 = vunpack.c.0.s8 %v546
        %v923 = vunpack.c.0.s8 %v547
        %v924 = vunpack.c.1.s8 %v544
        %v925 = vunpack.c.1.s8 %v545
        %v926 = vunpack.c.1.s8 %v546
        %v927 = vunpack.c.1.s8 %v547
        %v928 = vunpack.c.2.s8 %v544
        %v929 = vunpack.c.2.s8 %v545
        %v930 = vunpack.c.2.s8 %v546
        %v931 = vunpack.c.2.s8 %v547
        %v932 = vunpack.c.3.s8 %v544
        %v933 = vunpack.c.3.s8 %v545
        %v934 = vunpack.c.3.s8 %v546
        %v935 = vunpack.c.3.s8 %v547
        %v936 = vunpack.c.0.s8 %v548
        %v937 = vunpack.c.0.s8 %v549
        %v938 = vunpack.c.0.s8 %v550
        %v939 = vunpack.c.0.s8 %v551
        %v940 = vunpack.c.1.s8 %v548
        %v941 = vunpack.c.1.s8 %v549
        %v942 = vunpack.c.1.s8 %v550
        %v943 = vunpack.c.1.s8 %v551
        %v944 = vunpack.c.2.s8 %v548
        %v945 = vunpack.c.2.s8 %v549
        %v946 = vunpack.c.2.s8 %v550
        %v947 = vunpack.c.2.s8 %v551
        %v948 = vunpack.c.3.s8 %v548
        %v949 = vunpack.c.3.s8 %v549
        %v950 = vunpack.c.3.s8 %v550
        %v951 = vunpack.c.3.s8 %v551
        %v952 = vunpack.c.0.s8 %v552
        %v953 = vunpack.c.0.s8 %v553
        %v954 = vunpack.c.0.s8 %v554
        %v955 = vunpack.c.0.s8 %v555
        %v956 = vunpack.c.1.s8 %v552
        %v957 = vunpack.c.1.s8 %v553
        %v958 = vunpack.c.1.s8 %v554
        %v959 = vunpack.c.1.s8 %v555
        %v960 = vunpack.c.2.s8 %v552
        %v961 = vunpack.c.2.s8 %v553
        %v962 = vunpack.c.2.s8 %v554
        %v963 = vunpack.c.2.s8 %v555
        %v964 = vunpack.c.3.s8 %v552
        %v965 = vunpack.c.3.s8 %v553
        %v966 = vunpack.c.3.s8 %v554
        %v967 = vunpack.c.3.s8 %v555
        %v968 = vunpack.c.0.s8 %v556
        %v969 = vunpack.c.0.s8 %v557
        %v970 = vunpack.c.0.s8 %v558
        %v971 = vunpack.c.0.s8 %v559
        %v972 = vunpack.c.1.s8 %v556
        %v973 = vunpack.c.1.s8 %v557
        %v974 = vunpack.c.1.s8 %v558
        %v975 = vunpack.c.1.s8 %v559
        %v976 = vunpack.c.2.s8 %v556
        %v977 = vunpack.c.2.s8 %v557
        %v978 = vunpack.c.2.s8 %v558
        %v979 = vunpack.c.2.s8 %v559
        %v980 = vunpack.c.3.s8 %v556
        %v981 = vunpack.c.3.s8 %v557
        %v982 = vunpack.c.3.s8 %v558
        %v983 = vunpack.c.3.s8 %v559
        %v984 = vunpack.c.0.s8 %v560
        %v985 = vunpack.c.0.s8 %v561
        %v986 = vunpack.c.0.s8 %v562
        %v987 = vunpack.c.0.s8 %v563
        %v988 = vunpack.c.1.s8 %v560
        %v989 = vunpack.c.1.s8 %v561
        %v990 = vunpack.c.1.s8 %v562
        %v991 = vunpack.c.1.s8 %v563
        %v992 = vunpack.c.2.s8 %v560
        %v993 = vunpack.c.2.s8 %v561
        %v994 = vunpack.c.2.s8 %v562
        %v995 = vunpack.c.2.s8 %v563
        %v996 = vunpack.c.3.s8 %v560
        %v997 = vunpack.c.3.s8 %v561
        %v998 = vunpack.c.3.s8 %v562
        %v999 = vunpack.c.3.s8 %v563
        %v1000 = vunpack.c.0.s8 %v564
        %v1001 = vunpack.c.0.s8 %v565
        %v1002 = vunpack.c.0.s8 %v566
        %v1003 = vunpack.c.0.s8 %v567
        %v1004 = vunpack.c.1.s8 %v564
        %v1005 = vunpack.c.1.s8 %v565
        %v1006 = vunpack.c.1.s8 %v566
        %v1007 = vunpack.c.1.s8 %v567
        %v1008 = vunpack.c.2.s8 %v564
        %v1009 = vunpack.c.2.s8 %v565
        %v1010 = vunpack.c.2.s8 %v566
        %v1011 = vunpack.c.2.s8 %v567
        %v1012 = vunpack.c.3.s8 %v564
        %v1013 = vunpack.c.3.s8 %v565
        %v1014 = vunpack.c.3.s8 %v566
        %v1015 = vunpack.c.3.s8 %v567
        %v1016 = vunpack.c.0.s8 %v568
        %v1017 = vunpack.c.0.s8 %v569
        %v1018 = vunpack.c.0.s8 %v570
        %v1019 = vunpack.c.0.s8 %v571
        %v1020 = vunpack.c.1.s8 %v568
        %v1021 = vunpack.c.1.s8 %v569
        %v1022 = vunpack.c.1.s8 %v570
        %v1023 = vunpack.c.1.s8 %v571
        %v1024 = vunpack.c.2.s8 %v568
        %v1025 = vunpack.c.2.s8 %v569
        %v1026 = vunpack.c.2.s8 %v570
        %v1027 = vunpack.c.2.s8 %v571
        %v1028 = vunpack.c.3.s8 %v568
        %v1029 = vunpack.c.3.s8 %v569
        %v1030 = vunpack.c.3.s8 %v570
        %v1031 = vunpack.c.3.s8 %v571
        %v1032 = vunpack.c.0.s8 %v572
        %v1033 = vunpack.c.0.s8 %v573
        %v1034 = vunpack.c.0.s8 %v574
        %v1035 = vunpack.c.0.s8 %v575
        %v1036 = vunpack.c.1.s8 %v572
        %v1037 = vunpack.c.1.s8 %v573
        %v1038 = vunpack.c.1.s8 %v574
        %v1039 = vunpack.c.1.s8 %v575
        %v1040 = vunpack.c.2.s8 %v572
        %v1041 = vunpack.c.2.s8 %v573
        %v1042 = vunpack.c.2.s8 %v574
        %v1043 = vunpack.c.2.s8 %v575
        %v1044 = vunpack.c.3.s8 %v572
        %v1045 = vunpack.c.3.s8 %v573
        %v1046 = vunpack.c.3.s8 %v574
        %v1047 = vunpack.c.3.s8 %v575
        %v1048 = vunpack.c.0.s8 %v576
        %v1049 = vunpack.c.0.s8 %v577
        %v1050 = vunpack.c.0.s8 %v578
        %v1051 = vunpack.c.0.s8 %v579
        %v1052 = vunpack.c.1.s8 %v576
        %v1053 = vunpack.c.1.s8 %v577
        %v1054 = vunpack.c.1.s8 %v578
        %v1055 = vunpack.c.1.s8 %v579
        %v1056 = vunpack.c.2.s8 %v576
        %v1057 = vunpack.c.2.s8 %v577
        %v1058 = vunpack.c.2.s8 %v578
        %v1059 = vunpack.c.2.s8 %v579
        %v1060 = vunpack.c.3.s8 %v576
        %v1061 = vunpack.c.3.s8 %v577
        %v1062 = vunpack.c.3.s8 %v578
        %v1063 = vunpack.c.3.s8 %v579
        %v1064 = vunpack.c.0.s8 %v580
        %v1065 = vunpack.c.0.s8 %v581
        %v1066 = vunpack.c.0.s8 %v582
        %v1067 = vunpack.c.0.s8 %v583
        %v1068 = vunpack.c.1.s8 %v580
        %v1069 = vunpack.c.1.s8 %v581
        %v1070 = vunpack.c.1.s8 %v582
        %v1071 = vunpack.c.1.s8 %v583
        %v1072 = vunpack.c.2.s8 %v580
        %v1073 = vunpack.c.2.s8 %v581
        %v1074 = vunpack.c.2.s8 %v582
        %v1075 = vunpack.c.2.s8 %v583
        %v1076 = vunpack.c.3.s8 %v580
        %v1077 = vunpack.c.3.s8 %v581
        %v1078 = vunpack.c.3.s8 %v582
        %v1079 = vunpack.c.3.s8 %v583
        %v1080 = vunpack.c.0.s8 %v584
        %v1081 = vunpack.c.0.s8 %v585
        %v1082 = vunpack.c.0.s8 %v586
        %v1083 = vunpack.c.0.s8 %v587
        %v1084 = vunpack.c.1.s8 %v584
        %v1085 = vunpack.c.1.s8 %v585
        %v1086 = vunpack.c.1.s8 %v586
        %v1087 = vunpack.c.1.s8 %v587
        %v1088 = vunpack.c.2.s8 %v584
        %v1089 = vunpack.c.2.s8 %v585
        %v1090 = vunpack.c.2.s8 %v586
        %v1091 = vunpack.c.2.s8 %v587
        %v1092 = vunpack.c.3.s8 %v584
        %v1093 = vunpack.c.3.s8 %v585
        %v1094 = vunpack.c.3.s8 %v586
        %v1095 = vunpack.c.3.s8 %v587
        %v1096 = vunpack.c.0.s8 %v588
        %v1097 = vunpack.c.0.s8 %v589
        %v1098 = vunpack.c.0.s8 %v590
        %v1099 = vunpack.c.0.s8 %v591
        %v1100 = vunpack.c.1.s8 %v588
        %v1101 = vunpack.c.1.s8 %v589
        %v1102 = vunpack.c.1.s8 %v590
        %v1103 = vunpack.c.1.s8 %v591
        %v1104 = vunpack.c.2.s8 %v588
        %v1105 = vunpack.c.2.s8 %v589
        %v1106 = vunpack.c.2.s8 %v590
        %v1107 = vunpack.c.2.s8 %v591
        %v1108 = vunpack.c.3.s8 %v588
        %v1109 = vunpack.c.3.s8 %v589
        %v1110 = vunpack.c.3.s8 %v590
        %v1111 = vunpack.c.3.s8 %v591
        %v1112 = vunpack.c.0.s8 %v592
        %v1113 = vunpack.c.0.s8 %v593
        %v1114 = vunpack.c.0.s8 %v594
        %v1115 = vunpack.c.0.s8 %v595
        %v1116 = vunpack.c.1.s8 %v592
        %v1117 = vunpack.c.1.s8 %v593
        %v1118 = vunpack.c.1.s8 %v594
        %v1119 = vunpack.c.1.s8 %v595
        %v1120 = vunpack.c.2.s8 %v592
        %v1121 = vunpack.c.2.s8 %v593
        %v1122 = vunpack.c.2.s8 %v594
        %v1123 = vunpack.c.2.s8 %v595
        %v1124 = vunpack.c.3.s8 %v592
        %v1125 = vunpack.c.3.s8 %v593
        %v1126 = vunpack.c.3.s8 %v594
        %v1127 = vunpack.c.3.s8 %v595
        %v1128 = vunpack.c.0.s8 %v596
        %v1129 = vunpack.c.0.s8 %v597
        %v1130 = vunpack.c.0.s8 %v598
        %v1131 = vunpack.c.0.s8 %v599
        %v1132 = vunpack.c.1.s8 %v596
        %v1133 = vunpack.c.1.s8 %v597
        %v1134 = vunpack.c.1.s8 %v598
        %v1135 = vunpack.c.1.s8 %v599
        %v1136 = vunpack.c.2.s8 %v596
        %v1137 = vunpack.c.2.s8 %v597
        %v1138 = vunpack.c.2.s8 %v598
        %v1139 = vunpack.c.2.s8 %v599
        %v1140 = vunpack.c.3.s8 %v596
        %v1141 = vunpack.c.3.s8 %v597
        %v1142 = vunpack.c.3.s8 %v598
        %v1143 = vunpack.c.3.s8 %v599
        %v1144 = vunpack.c.0.s8 %v600
        %v1145 = vunpack.c.0.s8 %v601
        %v1146 = vunpack.c.0.s8 %v602
        %v1147 = vunpack.c.0.s8 %v603
        %v1148 = vunpack.c.1.s8 %v600
        %v1149 = vunpack.c.1.s8 %v601
        %v1150 = vunpack.c.1.s8 %v602
        %v1151 = vunpack.c.1.s8 %v603
        %v1152 = vunpack.c.2.s8 %v600
        %v1153 = vunpack.c.2.s8 %v601
        %v1154 = vunpack.c.2.s8 %v602
        %v1155 = vunpack.c.2.s8 %v603
        %v1156 = vunpack.c.3.s8 %v600
        %v1157 = vunpack.c.3.s8 %v601
        %v1158 = vunpack.c.3.s8 %v602
        %v1159 = vunpack.c.3.s8 %v603
        %v1160 = vunpack.c.0.s8 %v604
        %v1161 = vunpack.c.0.s8 %v605
        %v1162 = vunpack.c.0.s8 %v606
        %v1163 = vunpack.c.0.s8 %v607
        %v1164 = vunpack.c.1.s8 %v604
        %v1165 = vunpack.c.1.s8 %v605
        %v1166 = vunpack.c.1.s8 %v606
        %v1167 = vunpack.c.1.s8 %v607
        %v1168 = vunpack.c.2.s8 %v604
        %v1169 = vunpack.c.2.s8 %v605
        %v1170 = vunpack.c.2.s8 %v606
        %v1171 = vunpack.c.2.s8 %v607
        %v1172 = vunpack.c.3.s8 %v604
        %v1173 = vunpack.c.3.s8 %v605
        %v1174 = vunpack.c.3.s8 %v606
        %v1175 = vunpack.c.3.s8 %v607
        %v1176 = vunpack.c.0.s8 %v608
        %v1177 = vunpack.c.0.s8 %v609
        %v1178 = vunpack.c.0.s8 %v610
        %v1179 = vunpack.c.0.s8 %v611
        %v1180 = vunpack.c.1.s8 %v608
        %v1181 = vunpack.c.1.s8 %v609
        %v1182 = vunpack.c.1.s8 %v610
        %v1183 = vunpack.c.1.s8 %v611
        %v1184 = vunpack.c.2.s8 %v608
        %v1185 = vunpack.c.2.s8 %v609
        %v1186 = vunpack.c.2.s8 %v610
        %v1187 = vunpack.c.2.s8 %v611
        %v1188 = vunpack.c.3.s8 %v608
        %v1189 = vunpack.c.3.s8 %v609
        %v1190 = vunpack.c.3.s8 %v610
        %v1191 = vunpack.c.3.s8 %v611
        %v1192 = vunpack.c.0.s8 %v612
        %v1193 = vunpack.c.0.s8 %v613
        %v1194 = vunpack.c.0.s8 %v614
        %v1195 = vunpack.c.0.s8 %v615
        %v1196 = vunpack.c.1.s8 %v612
        %v1197 = vunpack.c.1.s8 %v613
        %v1198 = vunpack.c.1.s8 %v614
        %v1199 = vunpack.c.1.s8 %v615
        %v1200 = vunpack.c.2.s8 %v612
        %v1201 = vunpack.c.2.s8 %v613
        %v1202 = vunpack.c.2.s8 %v614
        %v1203 = vunpack.c.2.s8 %v615
        %v1204 = vunpack.c.3.s8 %v612
        %v1205 = vunpack.c.3.s8 %v613
        %v1206 = vunpack.c.3.s8 %v614
        %v1207 = vunpack.c.3.s8 %v615
        %v1208 = vunpack.c.0.s8 %v616
        %v1209 = vunpack.c.0.s8 %v617
        %v1210 = vunpack.c.0.s8 %v618
        %v1211 = vunpack.c.0.s8 %v619
        %v1212 = vunpack.c.1.s8 %v616
        %v1213 = vunpack.c.1.s8 %v617
        %v1214 = vunpack.c.1.s8 %v618
        %v1215 = vunpack.c.1.s8 %v619
        %v1216 = vunpack.c.2.s8 %v616
        %v1217 = vunpack.c.2.s8 %v617
        %v1218 = vunpack.c.2.s8 %v618
        %v1219 = vunpack.c.2.s8 %v619
        %v1220 = vunpack.c.3.s8 %v616
        %v1221 = vunpack.c.3.s8 %v617
        %v1222 = vunpack.c.3.s8 %v618
        %v1223 = vunpack.c.3.s8 %v619
        %v1224 = vunpack.c.0.s8 %v620
        %v1225 = vunpack.c.0.s8 %v621
        %v1226 = vunpack.c.0.s8 %v622
        %v1227 = vunpack.c.0.s8 %v623
        %v1228 = vunpack.c.1.s8 %v620
        %v1229 = vunpack.c.1.s8 %v621
        %v1230 = vunpack.c.1.s8 %v622
        %v1231 = vunpack.c.1.s8 %v623
        %v1232 = vunpack.c.2.s8 %v620
        %v1233 = vunpack.c.2.s8 %v621
        %v1234 = vunpack.c.2.s8 %v622
        %v1235 = vunpack.c.2.s8 %v623
        %v1236 = vunpack.c.3.s8 %v620
        %v1237 = vunpack.c.3.s8 %v621
        %v1238 = vunpack.c.3.s8 %v622
        %v1239 = vunpack.c.3.s8 %v623
        %v1240 = vunpack.c.0.s8 %v624
        %v1241 = vunpack.c.0.s8 %v625
        %v1242 = vunpack.c.0.s8 %v626
        %v1243 = vunpack.c.0.s8 %v627
        %v1244 = vunpack.c.1.s8 %v624
        %v1245 = vunpack.c.1.s8 %v625
        %v1246 = vunpack.c.1.s8 %v626
        %v1247 = vunpack.c.1.s8 %v627
        %v1248 = vunpack.c.2.s8 %v624
        %v1249 = vunpack.c.2.s8 %v625
        %v1250 = vunpack.c.2.s8 %v626
        %v1251 = vunpack.c.2.s8 %v627
        %v1252 = vunpack.c.3.s8 %v624
        %v1253 = vunpack.c.3.s8 %v625
        %v1254 = vunpack.c.3.s8 %v626
        %v1255 = vunpack.c.3.s8 %v627
        %v1256 = vunpack.c.0.s8 %v628
        %v1257 = vunpack.c.0.s8 %v629
        %v1258 = vunpack.c.0.s8 %v630
        %v1259 = vunpack.c.0.s8 %v631
        %v1260 = vunpack.c.1.s8 %v628
        %v1261 = vunpack.c.1.s8 %v629
        %v1262 = vunpack.c.1.s8 %v630
        %v1263 = vunpack.c.1.s8 %v631
        %v1264 = vunpack.c.2.s8 %v628
        %v1265 = vunpack.c.2.s8 %v629
        %v1266 = vunpack.c.2.s8 %v630
        %v1267 = vunpack.c.2.s8 %v631
        %v1268 = vunpack.c.3.s8 %v628
        %v1269 = vunpack.c.3.s8 %v629
        %v1270 = vunpack.c.3.s8 %v630
        %v1271 = vunpack.c.3.s8 %v631
        %v1272 = vunpack.c.0.s8 %v632
        %v1273 = vunpack.c.0.s8 %v633
        %v1274 = vunpack.c.0.s8 %v634
        %v1275 = vunpack.c.0.s8 %v635
        %v1276 = vunpack.c.1.s8 %v632
        %v1277 = vunpack.c.1.s8 %v633
        %v1278 = vunpack.c.1.s8 %v634
        %v1279 = vunpack.c.1.s8 %v635
        %v1280 = vunpack.c.2.s8 %v632
        %v1281 = vunpack.c.2.s8 %v633
        %v1282 = vunpack.c.2.s8 %v634
        %v1283 = vunpack.c.2.s8 %v635
        %v1284 = vunpack.c.3.s8 %v632
        %v1285 = vunpack.c.3.s8 %v633
        %v1286 = vunpack.c.3.s8 %v634
        %v1287 = vunpack.c.3.s8 %v635
        %v1288 = vunpack.c.0.s8 %v636
        %v1289 = vunpack.c.0.s8 %v637
        %v1290 = vunpack.c.0.s8 %v638
        %v1291 = vunpack.c.0.s8 %v639
        %v1292 = vunpack.c.1.s8 %v636
        %v1293 = vunpack.c.1.s8 %v637
        %v1294 = vunpack.c.1.s8 %v638
        %v1295 = vunpack.c.1.s8 %v639
        %v1296 = vunpack.c.2.s8 %v636
        %v1297 = vunpack.c.2.s8 %v637
        %v1298 = vunpack.c.2.s8 %v638
        %v1299 = vunpack.c.2.s8 %v639
        %v1300 = vunpack.c.3.s8 %v636
        %v1301 = vunpack.c.3.s8 %v637
        %v1302 = vunpack.c.3.s8 %v638
        %v1303 = vunpack.c.3.s8 %v639
        %v1304 = vunpack.c.0.s8 %v640
        %v1305 = vunpack.c.0.s8 %v641
        %v1306 = vunpack.c.0.s8 %v642
        %v1307 = vunpack.c.0.s8 %v643
        %v1308 = vunpack.c.1.s8 %v640
        %v1309 = vunpack.c.1.s8 %v641
        %v1310 = vunpack.c.1.s8 %v642
        %v1311 = vunpack.c.1.s8 %v643
        %v1312 = vunpack.c.2.s8 %v640
        %v1313 = vunpack.c.2.s8 %v641
        %v1314 = vunpack.c.2.s8 %v642
        %v1315 = vunpack.c.2.s8 %v643
        %v1316 = vunpack.c.3.s8 %v640
        %v1317 = vunpack.c.3.s8 %v641
        %v1318 = vunpack.c.3.s8 %v642
        %v1319 = vunpack.c.3.s8 %v643
        %v1320 = vunpack.c.0.s8 %v644
        %v1321 = vunpack.c.0.s8 %v645
        %v1322 = vunpack.c.0.s8 %v646
        %v1323 = vunpack.c.0.s8 %v647
        %v1324 = vunpack.c.1.s8 %v644
        %v1325 = vunpack.c.1.s8 %v645
        %v1326 = vunpack.c.1.s8 %v646
        %v1327 = vunpack.c.1.s8 %v647
        %v1328 = vunpack.c.2.s8 %v644
        %v1329 = vunpack.c.2.s8 %v645
        %v1330 = vunpack.c.2.s8 %v646
        %v1331 = vunpack.c.2.s8 %v647
        %v1332 = vunpack.c.3.s8 %v644
        %v1333 = vunpack.c.3.s8 %v645
        %v1334 = vunpack.c.3.s8 %v646
        %v1335 = vunpack.c.3.s8 %v647
        %v1336 = vunpack.c.0.s8 %v648
        %v1337 = vunpack.c.0.s8 %v649
        %v1338 = vunpack.c.0.s8 %v650
        %v1339 = vunpack.c.0.s8 %v651
        %v1340 = vunpack.c.1.s8 %v648
        %v1341 = vunpack.c.1.s8 %v649
        %v1342 = vunpack.c.1.s8 %v650
        %v1343 = vunpack.c.1.s8 %v651
        %v1344 = vunpack.c.2.s8 %v648
        %v1345 = vunpack.c.2.s8 %v649
        %v1346 = vunpack.c.2.s8 %v650
        %v1347 = vunpack.c.2.s8 %v651
        %v1348 = vunpack.c.3.s8 %v648
        %v1349 = vunpack.c.3.s8 %v649
        %v1350 = vunpack.c.3.s8 %v650
        %v1351 = vunpack.c.3.s8 %v651
        %v1352 = vunpack.c.0.s8 %v652
        %v1353 = vunpack.c.0.s8 %v653
        %v1354 = vunpack.c.0.s8 %v654
        %v1355 = vunpack.c.0.s8 %v655
        %v1356 = vunpack.c.1.s8 %v652
        %v1357 = vunpack.c.1.s8 %v653
        %v1358 = vunpack.c.1.s8 %v654
        %v1359 = vunpack.c.1.s8 %v655
        %v1360 = vunpack.c.2.s8 %v652
        %v1361 = vunpack.c.2.s8 %v653
        %v1362 = vunpack.c.2.s8 %v654
        %v1363 = vunpack.c.2.s8 %v655
        %v1364 = vunpack.c.3.s8 %v652
        %v1365 = vunpack.c.3.s8 %v653
        %v1366 = vunpack.c.3.s8 %v654
        %v1367 = vunpack.c.3.s8 %v655
        %v1368 = vunpack.c.0.s8 %v656
        %v1369 = vunpack.c.0.s8 %v657
        %v1370 = vunpack.c.0.s8 %v658
        %v1371 = vunpack.c.0.s8 %v659
        %v1372 = vunpack.c.1.s8 %v656
        %v1373 = vunpack.c.1.s8 %v657
        %v1374 = vunpack.c.1.s8 %v658
        %v1375 = vunpack.c.1.s8 %v659
        %v1376 = vunpack.c.2.s8 %v656
        %v1377 = vunpack.c.2.s8 %v657
        %v1378 = vunpack.c.2.s8 %v658
        %v1379 = vunpack.c.2.s8 %v659
        %v1380 = vunpack.c.3.s8 %v656
        %v1381 = vunpack.c.3.s8 %v657
        %v1382 = vunpack.c.3.s8 %v658
        %v1383 = vunpack.c.3.s8 %v659
        %v1384 = vunpack.c.0.s8 %v660
        %v1385 = vunpack.c.0.s8 %v661
        %v1386 = vunpack.c.0.s8 %v662
        %v1387 = vunpack.c.0.s8 %v663
        %v1388 = vunpack.c.1.s8 %v660
        %v1389 = vunpack.c.1.s8 %v661
        %v1390 = vunpack.c.1.s8 %v662
        %v1391 = vunpack.c.1.s8 %v663
        %v1392 = vunpack.c.2.s8 %v660
        %v1393 = vunpack.c.2.s8 %v661
        %v1394 = vunpack.c.2.s8 %v662
        %v1395 = vunpack.c.2.s8 %v663
        %v1396 = vunpack.c.3.s8 %v660
        %v1397 = vunpack.c.3.s8 %v661
        %v1398 = vunpack.c.3.s8 %v662
        %v1399 = vunpack.c.3.s8 %v663
        %v1400 = vunpack.c.0.s8 %v664
        %v1401 = vunpack.c.0.s8 %v665
        %v1402 = vunpack.c.0.s8 %v666
        %v1403 = vunpack.c.0.s8 %v667
        %v1404 = vunpack.c.1.s8 %v664
        %v1405 = vunpack.c.1.s8 %v665
        %v1406 = vunpack.c.1.s8 %v666
        %v1407 = vunpack.c.1.s8 %v667
        %v1408 = vunpack.c.2.s8 %v664
        %v1409 = vunpack.c.2.s8 %v665
        %v1410 = vunpack.c.2.s8 %v666
        %v1411 = vunpack.c.2.s8 %v667
        %v1412 = vunpack.c.3.s8 %v664
        %v1413 = vunpack.c.3.s8 %v665
        %v1414 = vunpack.c.3.s8 %v666
        %v1415 = vunpack.c.3.s8 %v667
        %v1416 = vunpack.c.0.s8 %v668
        %v1417 = vunpack.c.0.s8 %v669
        %v1418 = vunpack.c.0.s8 %v670
        %v1419 = vunpack.c.0.s8 %v671
        %v1420 = vunpack.c.1.s8 %v668
        %v1421 = vunpack.c.1.s8 %v669
        %v1422 = vunpack.c.1.s8 %v670
        %v1423 = vunpack.c.1.s8 %v671
        %v1424 = vunpack.c.2.s8 %v668
        %v1425 = vunpack.c.2.s8 %v669
        %v1426 = vunpack.c.2.s8 %v670
        %v1427 = vunpack.c.2.s8 %v671
        %v1428 = vunpack.c.3.s8 %v668
        %v1429 = vunpack.c.3.s8 %v669
        %v1430 = vunpack.c.3.s8 %v670
        %v1431 = vunpack.c.3.s8 %v671
        %v1432 = vunpack.c.0.s8 %v672
        %v1433 = vunpack.c.0.s8 %v673
        %v1434 = vunpack.c.0.s8 %v674
        %v1435 = vunpack.c.0.s8 %v675
        %v1436 = vunpack.c.1.s8 %v672
        %v1437 = vunpack.c.1.s8 %v673
        %v1438 = vunpack.c.1.s8 %v674
        %v1439 = vunpack.c.1.s8 %v675
        %v1440 = vunpack.c.2.s8 %v672
        %v1441 = vunpack.c.2.s8 %v673
        %v1442 = vunpack.c.2.s8 %v674
        %v1443 = vunpack.c.2.s8 %v675
        %v1444 = vunpack.c.3.s8 %v672
        %v1445 = vunpack.c.3.s8 %v673
        %v1446 = vunpack.c.3.s8 %v674
        %v1447 = vunpack.c.3.s8 %v675
        %v1448 = vunpack.c.0.s8 %v676
        %v1449 = vunpack.c.0.s8 %v677
        %v1450 = vunpack.c.0.s8 %v678
        %v1451 = vunpack.c.0.s8 %v679
        %v1452 = vunpack.c.1.s8 %v676
        %v1453 = vunpack.c.1.s8 %v677
        %v1454 = vunpack.c.1.s8 %v678
        %v1455 = vunpack.c.1.s8 %v679
        %v1456 = vunpack.c.2.s8 %v676
        %v1457 = vunpack.c.2.s8 %v677
        %v1458 = vunpack.c.2.s8 %v678
        %v1459 = vunpack.c.2.s8 %v679
        %v1460 = vunpack.c.3.s8 %v676
        %v1461 = vunpack.c.3.s8 %v677
        %v1462 = vunpack.c.3.s8 %v678
        %v1463 = vunpack.c.3.s8 %v679
        %v1464 = vunpack.c.0.s8 %v680
        %v1465 = vunpack.c.0.s8 %v681
        %v1466 = vunpack.c.0.s8 %v682
        %v1467 = vunpack.c.0.s8 %v683
        %v1468 = vunpack.c.1.s8 %v680
        %v1469 = vunpack.c.1.s8 %v681
        %v1470 = vunpack.c.1.s8 %v682
        %v1471 = vunpack.c.1.s8 %v683
        %v1472 = vunpack.c.2.s8 %v680
        %v1473 = vunpack.c.2.s8 %v681
        %v1474 = vunpack.c.2.s8 %v682
        %v1475 = vunpack.c.2.s8 %v683
        %v1476 = vunpack.c.3.s8 %v680
        %v1477 = vunpack.c.3.s8 %v681
        %v1478 = vunpack.c.3.s8 %v682
        %v1479 = vunpack.c.3.s8 %v683
        %v1480 = vunpack.c.0.s8 %v684
        %v1481 = vunpack.c.0.s8 %v685
        %v1482 = vunpack.c.0.s8 %v686
        %v1483 = vunpack.c.0.s8 %v687
        %v1484 = vunpack.c.1.s8 %v684
        %v1485 = vunpack.c.1.s8 %v685
        %v1486 = vunpack.c.1.s8 %v686
        %v1487 = vunpack.c.1.s8 %v687
        %v1488 = vunpack.c.2.s8 %v684
        %v1489 = vunpack.c.2.s8 %v685
        %v1490 = vunpack.c.2.s8 %v686
        %v1491 = vunpack.c.2.s8 %v687
        %v1492 = vunpack.c.3.s8 %v684
        %v1493 = vunpack.c.3.s8 %v685
        %v1494 = vunpack.c.3.s8 %v686
        %v1495 = vunpack.c.3.s8 %v687
        %v1496 = vunpack.c.0.s8 %v688
        %v1497 = vunpack.c.0.s8 %v689
        %v1498 = vunpack.c.0.s8 %v690
        %v1499 = vunpack.c.0.s8 %v691
        %v1500 = vunpack.c.1.s8 %v688
        %v1501 = vunpack.c.1.s8 %v689
        %v1502 = vunpack.c.1.s8 %v690
        %v1503 = vunpack.c.1.s8 %v691
        %v1504 = vunpack.c.2.s8 %v688
        %v1505 = vunpack.c.2.s8 %v689
        %v1506 = vunpack.c.2.s8 %v690
        %v1507 = vunpack.c.2.s8 %v691
        %v1508 = vunpack.c.3.s8 %v688
        %v1509 = vunpack.c.3.s8 %v689
        %v1510 = vunpack.c.3.s8 %v690
        %v1511 = vunpack.c.3.s8 %v691
        %v1512 = vunpack.c.0.s8 %v692
        %v1513 = vunpack.c.0.s8 %v693
        %v1514 = vunpack.c.0.s8 %v694
        %v1515 = vunpack.c.0.s8 %v695
        %v1516 = vunpack.c.1.s8 %v692
        %v1517 = vunpack.c.1.s8 %v693
        %v1518 = vunpack.c.1.s8 %v694
        %v1519 = vunpack.c.1.s8 %v695
        %v1520 = vunpack.c.2.s8 %v692
        %v1521 = vunpack.c.2.s8 %v693
        %v1522 = vunpack.c.2.s8 %v694
        %v1523 = vunpack.c.2.s8 %v695
        %v1524 = vunpack.c.3.s8 %v692
        %v1525 = vunpack.c.3.s8 %v693
        %v1526 = vunpack.c.3.s8 %v694
        %v1527 = vunpack.c.3.s8 %v695
        %v1528 = vunpack.c.0.s8 %v696
        %v1529 = vunpack.c.0.s8 %v697
        %v1530 = vunpack.c.0.s8 %v698
        %v1531 = vunpack.c.0.s8 %v699
        %v1532 = vunpack.c.1.s8 %v696
        %v1533 = vunpack.c.1.s8 %v697
        %v1534 = vunpack.c.1.s8 %v698
        %v1535 = vunpack.c.1.s8 %v699
        %v1536 = vunpack.c.2.s8 %v696
        %v1537 = vunpack.c.2.s8 %v697
        %v1538 = vunpack.c.2.s8 %v698
        %v1539 = vunpack.c.2.s8 %v699
        %v1540 = vunpack.c.3.s8 %v696
        %v1541 = vunpack.c.3.s8 %v697
        %v1542 = vunpack.c.3.s8 %v698
        %v1543 = vunpack.c.3.s8 %v699
        %v1544 = vunpack.c.0.s8 %v700
        %v1545 = vunpack.c.0.s8 %v701
        %v1546 = vunpack.c.0.s8 %v702
        %v1547 = vunpack.c.0.s8 %v703
        %v1548 = vunpack.c.1.s8 %v700
        %v1549 = vunpack.c.1.s8 %v701
        %v1550 = vunpack.c.1.s8 %v702
        %v1551 = vunpack.c.1.s8 %v703
        %v1552 = vunpack.c.2.s8 %v700
        %v1553 = vunpack.c.2.s8 %v701
        %v1554 = vunpack.c.2.s8 %v702
        %v1555 = vunpack.c.2.s8 %v703
        %v1556 = vunpack.c.3.s8 %v700
        %v1557 = vunpack.c.3.s8 %v701
        %v1558 = vunpack.c.3.s8 %v702
        %v1559 = vunpack.c.3.s8 %v703
        %v1560 = vunpack.c.0.s8 %v704
        %v1561 = vunpack.c.0.s8 %v705
        %v1562 = vunpack.c.0.s8 %v706
        %v1563 = vunpack.c.0.s8 %v707
        %v1564 = vunpack.c.1.s8 %v704
        %v1565 = vunpack.c.1.s8 %v705
        %v1566 = vunpack.c.1.s8 %v706
        %v1567 = vunpack.c.1.s8 %v707
        %v1568 = vunpack.c.2.s8 %v704
        %v1569 = vunpack.c.2.s8 %v705
        %v1570 = vunpack.c.2.s8 %v706
        %v1571 = vunpack.c.2.s8 %v707
        %v1572 = vunpack.c.3.s8 %v704
        %v1573 = vunpack.c.3.s8 %v705
        %v1574 = vunpack.c.3.s8 %v706
        %v1575 = vunpack.c.3.s8 %v707
        %v1576 = vunpack.c.0.s8 %v708
        %v1577 = vunpack.c.0.s8 %v709
        %v1578 = vunpack.c.0.s8 %v710
        %v1579 = vunpack.c.0.s8 %v711
        %v1580 = vunpack.c.1.s8 %v708
        %v1581 = vunpack.c.1.s8 %v709
        %v1582 = vunpack.c.1.s8 %v710
        %v1583 = vunpack.c.1.s8 %v711
        %v1584 = vunpack.c.2.s8 %v708
        %v1585 = vunpack.c.2.s8 %v709
        %v1586 = vunpack.c.2.s8 %v710
        %v1587 = vunpack.c.2.s8 %v711
        %v1588 = vunpack.c.3.s8 %v708
        %v1589 = vunpack.c.3.s8 %v709
        %v1590 = vunpack.c.3.s8 %v710
        %v1591 = vunpack.c.3.s8 %v711
        %v1592 = vunpack.c.0.s8 %v712
        %v1593 = vunpack.c.0.s8 %v713
        %v1594 = vunpack.c.0.s8 %v714
        %v1595 = vunpack.c.0.s8 %v715
        %v1596 = vunpack.c.1.s8 %v712
        %v1597 = vunpack.c.1.s8 %v713
        %v1598 = vunpack.c.1.s8 %v714
        %v1599 = vunpack.c.1.s8 %v715
        %v1600 = vunpack.c.2.s8 %v712
        %v1601 = vunpack.c.2.s8 %v713
        %v1602 = vunpack.c.2.s8 %v714
        %v1603 = vunpack.c.2.s8 %v715
        %v1604 = vunpack.c.3.s8 %v712
        %v1605 = vunpack.c.3.s8 %v713
        %v1606 = vunpack.c.3.s8 %v714
        %v1607 = vunpack.c.3.s8 %v715
        %v1608 = vunpack.c.0.s8 %v716
        %v1609 = vunpack.c.0.s8 %v717
        %v1610 = vunpack.c.0.s8 %v718
        %v1611 = vunpack.c.0.s8 %v719
        %v1612 = vunpack.c.1.s8 %v716
        %v1613 = vunpack.c.1.s8 %v717
        %v1614 = vunpack.c.1.s8 %v718
        %v1615 = vunpack.c.1.s8 %v719
        %v1616 = vunpack.c.2.s8 %v716
        %v1617 = vunpack.c.2.s8 %v717
        %v1618 = vunpack.c.2.s8 %v718
        %v1619 = vunpack.c.2.s8 %v719
        %v1620 = vunpack.c.3.s8 %v716
        %v1621 = vunpack.c.3.s8 %v717
        %v1622 = vunpack.c.3.s8 %v718
        %v1623 = vunpack.c.3.s8 %v719
        %v1624 = vunpack.c.0.s8 %v720
        %v1625 = vunpack.c.0.s8 %v721
        %v1626 = vunpack.c.0.s8 %v722
        %v1627 = vunpack.c.0.s8 %v723
        %v1628 = vunpack.c.1.s8 %v720
        %v1629 = vunpack.c.1.s8 %v721
        %v1630 = vunpack.c.1.s8 %v722
        %v1631 = vunpack.c.1.s8 %v723
        %v1632 = vunpack.c.2.s8 %v720
        %v1633 = vunpack.c.2.s8 %v721
        %v1634 = vunpack.c.2.s8 %v722
        %v1635 = vunpack.c.2.s8 %v723
        %v1636 = vunpack.c.3.s8 %v720
        %v1637 = vunpack.c.3.s8 %v721
        %v1638 = vunpack.c.3.s8 %v722
        %v1639 = vunpack.c.3.s8 %v723
        %v1640 = vunpack.c.0.s8 %v724
        %v1641 = vunpack.c.0.s8 %v725
        %v1642 = vunpack.c.0.s8 %v726
        %v1643 = vunpack.c.0.s8 %v727
        %v1644 = vunpack.c.1.s8 %v724
        %v1645 = vunpack.c.1.s8 %v725
        %v1646 = vunpack.c.1.s8 %v726
        %v1647 = vunpack.c.1.s8 %v727
        %v1648 = vunpack.c.2.s8 %v724
        %v1649 = vunpack.c.2.s8 %v725
        %v1650 = vunpack.c.2.s8 %v726
        %v1651 = vunpack.c.2.s8 %v727
        %v1652 = vunpack.c.3.s8 %v724
        %v1653 = vunpack.c.3.s8 %v725
        %v1654 = vunpack.c.3.s8 %v726
        %v1655 = vunpack.c.3.s8 %v727
        %v1656 = vunpack.c.0.s8 %v728
        %v1657 = vunpack.c.0.s8 %v729
        %v1658 = vunpack.c.0.s8 %v730
        %v1659 = vunpack.c.0.s8 %v731
        %v1660 = vunpack.c.1.s8 %v728
        %v1661 = vunpack.c.1.s8 %v729
        %v1662 = vunpack.c.1.s8 %v730
        %v1663 = vunpack.c.1.s8 %v731
        %v1664 = vunpack.c.2.s8 %v728
        %v1665 = vunpack.c.2.s8 %v729
        %v1666 = vunpack.c.2.s8 %v730
        %v1667 = vunpack.c.2.s8 %v731
        %v1668 = vunpack.c.3.s8 %v728
        %v1669 = vunpack.c.3.s8 %v729
        %v1670 = vunpack.c.3.s8 %v730
        %v1671 = vunpack.c.3.s8 %v731
        %v1672 = vunpack.c.0.s8 %v732
        %v1673 = vunpack.c.0.s8 %v733
        %v1674 = vunpack.c.0.s8 %v734
        %v1675 = vunpack.c.0.s8 %v735
        %v1676 = vunpack.c.1.s8 %v732
        %v1677 = vunpack.c.1.s8 %v733
        %v1678 = vunpack.c.1.s8 %v734
        %v1679 = vunpack.c.1.s8 %v735
        %v1680 = vunpack.c.2.s8 %v732
        %v1681 = vunpack.c.2.s8 %v733
        %v1682 = vunpack.c.2.s8 %v734
        %v1683 = vunpack.c.2.s8 %v735
        %v1684 = vunpack.c.3.s8 %v732
        %v1685 = vunpack.c.3.s8 %v733
        %v1686 = vunpack.c.3.s8 %v734
        %v1687 = vunpack.c.3.s8 %v735
        %v1688 = vunpack.c.0.s8 %v736
        %v1689 = vunpack.c.0.s8 %v737
        %v1690 = vunpack.c.0.s8 %v738
        %v1691 = vunpack.c.0.s8 %v739
        %v1692 = vunpack.c.1.s8 %v736
        %v1693 = vunpack.c.1.s8 %v737
        %v1694 = vunpack.c.1.s8 %v738
        %v1695 = vunpack.c.1.s8 %v739
        %v1696 = vunpack.c.2.s8 %v736
        %v1697 = vunpack.c.2.s8 %v737
        %v1698 = vunpack.c.2.s8 %v738
        %v1699 = vunpack.c.2.s8 %v739
        %v1700 = vunpack.c.3.s8 %v736
        %v1701 = vunpack.c.3.s8 %v737
        %v1702 = vunpack.c.3.s8 %v738
        %v1703 = vunpack.c.3.s8 %v739
        %v1704 = vunpack.c.0.s8 %v740
        %v1705 = vunpack.c.0.s8 %v741
        %v1706 = vunpack.c.0.s8 %v742
        %v1707 = vunpack.c.0.s8 %v743
        %v1708 = vunpack.c.1.s8 %v740
        %v1709 = vunpack.c.1.s8 %v741
        %v1710 = vunpack.c.1.s8 %v742
        %v1711 = vunpack.c.1.s8 %v743
        %v1712 = vunpack.c.2.s8 %v740
        %v1713 = vunpack.c.2.s8 %v741
        %v1714 = vunpack.c.2.s8 %v742
        %v1715 = vunpack.c.2.s8 %v743
        %v1716 = vunpack.c.3.s8 %v740
        %v1717 = vunpack.c.3.s8 %v741
        %v1718 = vunpack.c.3.s8 %v742
        %v1719 = vunpack.c.3.s8 %v743
        %v1720 = vunpack.c.0.s8 %v744
        %v1721 = vunpack.c.0.s8 %v745
        %v1722 = vunpack.c.0.s8 %v746
        %v1723 = vunpack.c.0.s8 %v747
        %v1724 = vunpack.c.1.s8 %v744
        %v1725 = vunpack.c.1.s8 %v745
        %v1726 = vunpack.c.1.s8 %v746
        %v1727 = vunpack.c.1.s8 %v747
        %v1728 = vunpack.c.2.s8 %v744
        %v1729 = vunpack.c.2.s8 %v745
        %v1730 = vunpack.c.2.s8 %v746
        %v1731 = vunpack.c.2.s8 %v747
        %v1732 = vunpack.c.3.s8 %v744
        %v1733 = vunpack.c.3.s8 %v745
        %v1734 = vunpack.c.3.s8 %v746
        %v1735 = vunpack.c.3.s8 %v747
        %v1736 = vunpack.c.0.s8 %v748
        %v1737 = vunpack.c.0.s8 %v749
        %v1738 = vunpack.c.0.s8 %v750
        %v1739 = vunpack.c.0.s8 %v751
        %v1740 = vunpack.c.1.s8 %v748
        %v1741 = vunpack.c.1.s8 %v749
        %v1742 = vunpack.c.1.s8 %v750
        %v1743 = vunpack.c.1.s8 %v751
        %v1744 = vunpack.c.2.s8 %v748
        %v1745 = vunpack.c.2.s8 %v749
        %v1746 = vunpack.c.2.s8 %v750
        %v1747 = vunpack.c.2.s8 %v751
        %v1748 = vunpack.c.3.s8 %v748
        %v1749 = vunpack.c.3.s8 %v749
        %v1750 = vunpack.c.3.s8 %v750
        %v1751 = vunpack.c.3.s8 %v751
        %v1752 = vunpack.c.0.s8 %v752
        %v1753 = vunpack.c.0.s8 %v753
        %v1754 = vunpack.c.0.s8 %v754
        %v1755 = vunpack.c.0.s8 %v755
        %v1756 = vunpack.c.1.s8 %v752
        %v1757 = vunpack.c.1.s8 %v753
        %v1758 = vunpack.c.1.s8 %v754
        %v1759 = vunpack.c.1.s8 %v755
        %v1760 = vunpack.c.2.s8 %v752
        %v1761 = vunpack.c.2.s8 %v753
        %v1762 = vunpack.c.2.s8 %v754
        %v1763 = vunpack.c.2.s8 %v755
        %v1764 = vunpack.c.3.s8 %v752
        %v1765 = vunpack.c.3.s8 %v753
        %v1766 = vunpack.c.3.s8 %v754
        %v1767 = vunpack.c.3.s8 %v755
        %v1768 = vunpack.c.0.s8 %v756
        %v1769 = vunpack.c.0.s8 %v757
        %v1770 = vunpack.c.0.s8 %v758
        %v1771 = vunpack.c.0.s8 %v759
        %v1772 = vunpack.c.1.s8 %v756
        %v1773 = vunpack.c.1.s8 %v757
        %v1774 = vunpack.c.1.s8 %v758
        %v1775 = vunpack.c.1.s8 %v759
        %v1776 = vunpack.c.2.s8 %v756
        %v1777 = vunpack.c.2.s8 %v757
        %v1778 = vunpack.c.2.s8 %v758
        %v1779 = vunpack.c.2.s8 %v759
        %v1780 = vunpack.c.3.s8 %v756
        %v1781 = vunpack.c.3.s8 %v757
        %v1782 = vunpack.c.3.s8 %v758
        %v1783 = vunpack.c.3.s8 %v759
        %v1784 = vcvt.s32.f32 %v760
        %v1785 = vcvt.s32.f32 %v761
        %v1786 = vcvt.s32.f32 %v762
        %v1787 = vcvt.s32.f32 %v763
        %v1788 = vcvt.s32.f32 %v764
        %v1789 = vcvt.s32.f32 %v765
        %v1790 = vcvt.s32.f32 %v766
        %v1791 = vcvt.s32.f32 %v767
        %v1792 = vcvt.s32.f32 %v768
        %v1793 = vcvt.s32.f32 %v769
        %v1794 = vcvt.s32.f32 %v770
        %v1795 = vcvt.s32.f32 %v771
        %v1796 = vcvt.s32.f32 %v772
        %v1797 = vcvt.s32.f32 %v773
        %v1798 = vcvt.s32.f32 %v774
        %v1799 = vcvt.s32.f32 %v775
        %v1800 = vcvt.s32.f32 %v776
        %v1801 = vcvt.s32.f32 %v777
        %v1802 = vcvt.s32.f32 %v778
        %v1803 = vcvt.s32.f32 %v779
        %v1804 = vcvt.s32.f32 %v780
        %v1805 = vcvt.s32.f32 %v781
        %v1806 = vcvt.s32.f32 %v782
        %v1807 = vcvt.s32.f32 %v783
        %v1808 = vcvt.s32.f32 %v784
        %v1809 = vcvt.s32.f32 %v785
        %v1810 = vcvt.s32.f32 %v786
        %v1811 = vcvt.s32.f32 %v787
        %v1812 = vcvt.s32.f32 %v788
        %v1813 = vcvt.s32.f32 %v789
        %v1814 = vcvt.s32.f32 %v790
        %v1815 = vcvt.s32.f32 %v791
        %v1816 = vcvt.s32.f32 %v792
        %v1817 = vcvt.s32.f32 %v793
        %v1818 = vcvt.s32.f32 %v794
        %v1819 = vcvt.s32.f32 %v795
        %v1820 = vcvt.s32.f32 %v796
        %v1821 = vcvt.s32.f32 %v797
        %v1822 = vcvt.s32.f32 %v798
        %v1823 = vcvt.s32.f32 %v799
        %v1824 = vcvt.s32.f32 %v800
        %v1825 = vcvt.s32.f32 %v801
        %v1826 = vcvt.s32.f32 %v802
        %v1827 = vcvt.s32.f32 %v803
        %v1828 = vcvt.s32.f32 %v804
        %v1829 = vcvt.s32.f32 %v805
        %v1830 = vcvt.s32.f32 %v806
        %v1831 = vcvt.s32.f32 %v807
        %v1832 = vcvt.s32.f32 %v808
        %v1833 = vcvt.s32.f32 %v809
        %v1834 = vcvt.s32.f32 %v810
        %v1835 = vcvt.s32.f32 %v811
        %v1836 = vcvt.s32.f32 %v812
        %v1837 = vcvt.s32.f32 %v813
        %v1838 = vcvt.s32.f32 %v814
        %v1839 = vcvt.s32.f32 %v815
        %v1840 = vcvt.s32.f32 %v816
        %v1841 = vcvt.s32.f32 %v817
        %v1842 = vcvt.s32.f32 %v818
        %v1843 = vcvt.s32.f32 %v819
        %v1844 = vcvt.s32.f32 %v820
        %v1845 = vcvt.s32.f32 %v821
        %v1846 = vcvt.s32.f32 %v822
        %v1847 = vcvt.s32.f32 %v823
        %v1848 = vcvt.s32.f32 %v824
        %v1849 = vcvt.s32.f32 %v825
        %v1850 = vcvt.s32.f32 %v826
        %v1851 = vcvt.s32.f32 %v827
        %v1852 = vcvt.s32.f32 %v828
        %v1853 = vcvt.s32.f32 %v829
        %v1854 = vcvt.s32.f32 %v830
        %v1855 = vcvt.s32.f32 %v831
        %v1856 = vcvt.s32.f32 %v832
        %v1857 = vcvt.s32.f32 %v833
        %v1858 = vcvt.s32.f32 %v834
        %v1859 = vcvt.s32.f32 %v835
        %v1860 = vcvt.s32.f32 %v836
        %v1861 = vcvt.s32.f32 %v837
        %v1862 = vcvt.s32.f32 %v838
        %v1863 = vcvt.s32.f32 %v839
        %v1864 = vcvt.s32.f32 %v840
        %v1865 = vcvt.s32.f32 %v841
        %v1866 = vcvt.s32.f32 %v842
        %v1867 = vcvt.s32.f32 %v843
        %v1868 = vcvt.s32.f32 %v844
        %v1869 = vcvt.s32.f32 %v845
        %v1870 = vcvt.s32.f32 %v846
        %v1871 = vcvt.s32.f32 %v847
        %v1872 = vcvt.s32.f32 %v848
        %v1873 = vcvt.s32.f32 %v849
        %v1874 = vcvt.s32.f32 %v850
        %v1875 = vcvt.s32.f32 %v851
        %v1876 = vcvt.s32.f32 %v852
        %v1877 = vcvt.s32.f32 %v853
        %v1878 = vcvt.s32.f32 %v854
        %v1879 = vcvt.s32.f32 %v855
        %v1880 = vcvt.s32.f32 %v856
        %v1881 = vcvt.s32.f32 %v857
        %v1882 = vcvt.s32.f32 %v858
        %v1883 = vcvt.s32.f32 %v859
        %v1884 = vcvt.s32.f32 %v860
        %v1885 = vcvt.s32.f32 %v861
        %v1886 = vcvt.s32.f32 %v862
        %v1887 = vcvt.s32.f32 %v863
        %v1888 = vcvt.s32.f32 %v864
        %v1889 = vcvt.s32.f32 %v865
        %v1890 = vcvt.s32.f32 %v866
        %v1891 = vcvt.s32.f32 %v867
        %v1892 = vcvt.s32.f32 %v868
        %v1893 = vcvt.s32.f32 %v869
        %v1894 = vcvt.s32.f32 %v870
        %v1895 = vcvt.s32.f32 %v871
        %v1896 = vcvt.s32.f32 %v872
        %v1897 = vcvt.s32.f32 %v873
        %v1898 = vcvt.s32.f32 %v874
        %v1899 = vcvt.s32.f32 %v875
        %v1900 = vcvt.s32.f32 %v876
        %v1901 = vcvt.s32.f32 %v877
        %v1902 = vcvt.s32.f32 %v878
        %v1903 = vcvt.s32.f32 %v879
        %v1904 = vcvt.s32.f32 %v880
        %v1905 = vcvt.s32.f32 %v881
        %v1906 = vcvt.s32.f32 %v882
        %v1907 = vcvt.s32.f32 %v883
        %v1908 = vcvt.s32.f32 %v884
        %v1909 = vcvt.s32.f32 %v885
        %v1910 = vcvt.s32.f32 %v886
        %v1911 = vcvt.s32.f32 %v887
        %v1912 = vcvt.s32.f32 %v888
        %v1913 = vcvt.s32.f32 %v889
        %v1914 = vcvt.s32.f32 %v890
        %v1915 = vcvt.s32.f32 %v891
        %v1916 = vcvt.s32.f32 %v892
        %v1917 = vcvt.s32.f32 %v893
        %v1918 = vcvt.s32.f32 %v894
        %v1919 = vcvt.s32.f32 %v895
        %v1920 = vcvt.s32.f32 %v896
        %v1921 = vcvt.s32.f32 %v897
        %v1922 = vcvt.s32.f32 %v898
        %v1923 = vcvt.s32.f32 %v899
        %v1924 = vcvt.s32.f32 %v900
        %v1925 = vcvt.s32.f32 %v901
        %v1926 = vcvt.s32.f32 %v902
        %v1927 = vcvt.s32.f32 %v903
        %v1928 = vcvt.s32.f32 %v904
        %v1929 = vcvt.s32.f32 %v905
        %v1930 = vcvt.s32.f32 %v906
        %v1931 = vcvt.s32.f32 %v907
        %v1932 = vcvt.s32.f32 %v908
        %v1933 = vcvt.s32.f32 %v909
        %v1934 = vcvt.s32.f32 %v910
        %v1935 = vcvt.s32.f32 %v911
        %v1936 = vcvt.s32.f32 %v912
        %v1937 = vcvt.s32.f32 %v913
        %v1938 = vcvt.s32.f32 %v914
        %v1939 = vcvt.s32.f32 %v915
        %v1940 = vcvt.s32.f32 %v916
        %v1941 = vcvt.s32.f32 %v917
        %v1942 = vcvt.s32.f32 %v918
        %v1943 = vcvt.s32.f32 %v919
        %v1944 = vcvt.s32.f32 %v920
        %v1945 = vcvt.s32.f32 %v921
        %v1946 = vcvt.s32.f32 %v922
        %v1947 = vcvt.s32.f32 %v923
        %v1948 = vcvt.s32.f32 %v924
        %v1949 = vcvt.s32.f32 %v925
        %v1950 = vcvt.s32.f32 %v926
        %v1951 = vcvt.s32.f32 %v927
        %v1952 = vcvt.s32.f32 %v928
        %v1953 = vcvt.s32.f32 %v929
        %v1954 = vcvt.s32.f32 %v930
        %v1955 = vcvt.s32.f32 %v931
        %v1956 = vcvt.s32.f32 %v932
        %v1957 = vcvt.s32.f32 %v933
        %v1958 = vcvt.s32.f32 %v934
        %v1959 = vcvt.s32.f32 %v935
        %v1960 = vcvt.s32.f32 %v936
        %v1961 = vcvt.s32.f32 %v937
        %v1962 = vcvt.s32.f32 %v938
        %v1963 = vcvt.s32.f32 %v939
        %v1964 = vcvt.s32.f32 %v940
        %v1965 = vcvt.s32.f32 %v941
        %v1966 = vcvt.s32.f32 %v942
        %v1967 = vcvt.s32.f32 %v943
        %v1968 = vcvt.s32.f32 %v944
        %v1969 = vcvt.s32.f32 %v945
        %v1970 = vcvt.s32.f32 %v946
        %v1971 = vcvt.s32.f32 %v947
        %v1972 = vcvt.s32.f32 %v948
        %v1973 = vcvt.s32.f32 %v949
        %v1974 = vcvt.s32.f32 %v950
        %v1975 = vcvt.s32.f32 %v951
        %v1976 = vcvt.s32.f32 %v952
        %v1977 = vcvt.s32.f32 %v953
        %v1978 = vcvt.s32.f32 %v954
        %v1979 = vcvt.s32.f32 %v955
        %v1980 = vcvt.s32.f32 %v956
        %v1981 = vcvt.s32.f32 %v957
        %v1982 = vcvt.s32.f32 %v958
        %v1983 = vcvt.s32.f32 %v959
        %v1984 = vcvt.s32.f32 %v960
        %v1985 = vcvt.s32.f32 %v961
        %v1986 = vcvt.s32.f32 %v962
        %v1987 = vcvt.s32.f32 %v963
        %v1988 = vcvt.s32.f32 %v964
        %v1989 = vcvt.s32.f32 %v965
        %v1990 = vcvt.s32.f32 %v966
        %v1991 = vcvt.s32.f32 %v967
        %v1992 = vcvt.s32.f32 %v968
        %v1993 = vcvt.s32.f32 %v969
        %v1994 = vcvt.s32.f32 %v970
        %v1995 = vcvt.s32.f32 %v971
        %v1996 = vcvt.s32.f32 %v972
        %v1997 = vcvt.s32.f32 %v973
        %v1998 = vcvt.s32.f32 %v974
        %v1999 = vcvt.s32.f32 %v975
        %v2000 = vcvt.s32.f32 %v976
        %v2001 = vcvt.s32.f32 %v977
        %v2002 = vcvt.s32.f32 %v978
        %v2003 = vcvt.s32.f32 %v979
        %v2004 = vcvt.s32.f32 %v980
        %v2005 = vcvt.s32.f32 %v981
        %v2006 = vcvt.s32.f32 %v982
        %v2007 = vcvt.s32.f32 %v983
        %v2008 = vcvt.s32.f32 %v984
        %v2009 = vcvt.s32.f32 %v985
        %v2010 = vcvt.s32.f32 %v986
        %v2011 = vcvt.s32.f32 %v987
        %v2012 = vcvt.s32.f32 %v988
        %v2013 = vcvt.s32.f32 %v989
        %v2014 = vcvt.s32.f32 %v990
        %v2015 = vcvt.s32.f32 %v991
        %v2016 = vcvt.s32.f32 %v992
        %v2017 = vcvt.s32.f32 %v993
        %v2018 = vcvt.s32.f32 %v994
        %v2019 = vcvt.s32.f32 %v995
        %v2020 = vcvt.s32.f32 %v996
        %v2021 = vcvt.s32.f32 %v997
        %v2022 = vcvt.s32.f32 %v998
        %v2023 = vcvt.s32.f32 %v999
        %v2024 = vcvt.s32.f32 %v1000
        %v2025 = vcvt.s32.f32 %v1001
        %v2026 = vcvt.s32.f32 %v1002
        %v2027 = vcvt.s32.f32 %v1003
        %v2028 = vcvt.s32.f32 %v1004
        %v2029 = vcvt.s32.f32 %v1005
        %v2030 = vcvt.s32.f32 %v1006
        %v2031 = vcvt.s32.f32 %v1007
        %v2032 = vcvt.s32.f32 %v1008
        %v2033 = vcvt.s32.f32 %v1009
        %v2034 = vcvt.s32.f32 %v1010
        %v2035 = vcvt.s32.f32 %v1011
        %v2036 = vcvt.s32.f32 %v1012
        %v2037 = vcvt.s32.f32 %v1013
        %v2038 = vcvt.s32.f32 %v1014
        %v2039 = vcvt.s32.f32 %v1015
        %v2040 = vcvt.s32.f32 %v1016
        %v2041 = vcvt.s32.f32 %v1017
        %v2042 = vcvt.s32.f32 %v1018
        %v2043 = vcvt.s32.f32 %v1019
        %v2044 = vcvt.s32.f32 %v1020
        %v2045 = vcvt.s32.f32 %v1021
        %v2046 = vcvt.s32.f32 %v1022
        %v2047 = vcvt.s32.f32 %v1023
        %v2048 = vcvt.s32.f32 %v1024
        %v2049 = vcvt.s32.f32 %v1025
        %v2050 = vcvt.s32.f32 %v1026
        %v2051 = vcvt.s32.f32 %v1027
        %v2052 = vcvt.s32.f32 %v1028
        %v2053 = vcvt.s32.f32 %v1029
        %v2054 = vcvt.s32.f32 %v1030
        %v2055 = vcvt.s32.f32 %v1031
        %v2056 = vcvt.s32.f32 %v1032
        %v2057 = vcvt.s32.f32 %v1033
        %v2058 = vcvt.s32.f32 %v1034
        %v2059 = vcvt.s32.f32 %v1035
        %v2060 = vcvt.s32.f32 %v1036
        %v2061 = vcvt.s32.f32 %v1037
        %v2062 = vcvt.s32.f32 %v1038
        %v2063 = vcvt.s32.f32 %v1039
        %v2064 = vcvt.s32.f32 %v1040
        %v2065 = vcvt.s32.f32 %v1041
        %v2066 = vcvt.s32.f32 %v1042
        %v2067 = vcvt.s32.f32 %v1043
        %v2068 = vcvt.s32.f32 %v1044
        %v2069 = vcvt.s32.f32 %v1045
        %v2070 = vcvt.s32.f32 %v1046
        %v2071 = vcvt.s32.f32 %v1047
        %v2072 = vcvt.s32.f32 %v1048
        %v2073 = vcvt.s32.f32 %v1049
        %v2074 = vcvt.s32.f32 %v1050
        %v2075 = vcvt.s32.f32 %v1051
        %v2076 = vcvt.s32.f32 %v1052
        %v2077 = vcvt.s32.f32 %v1053
        %v2078 = vcvt.s32.f32 %v1054
        %v2079 = vcvt.s32.f32 %v1055
        %v2080 = vcvt.s32.f32 %v1056
        %v2081 = vcvt.s32.f32 %v1057
        %v2082 = vcvt.s32.f32 %v1058
        %v2083 = vcvt.s32.f32 %v1059
        %v2084 = vcvt.s32.f32 %v1060
        %v2085 = vcvt.s32.f32 %v1061
        %v2086 = vcvt.s32.f32 %v1062
        %v2087 = vcvt.s32.f32 %v1063
        %v2088 = vcvt.s32.f32 %v1064
        %v2089 = vcvt.s32.f32 %v1065
        %v2090 = vcvt.s32.f32 %v1066
        %v2091 = vcvt.s32.f32 %v1067
        %v2092 = vcvt.s32.f32 %v1068
        %v2093 = vcvt.s32.f32 %v1069
        %v2094 = vcvt.s32.f32 %v1070
        %v2095 = vcvt.s32.f32 %v1071
        %v2096 = vcvt.s32.f32 %v1072
        %v2097 = vcvt.s32.f32 %v1073
        %v2098 = vcvt.s32.f32 %v1074
        %v2099 = vcvt.s32.f32 %v1075
        %v2100 = vcvt.s32.f32 %v1076
        %v2101 = vcvt.s32.f32 %v1077
        %v2102 = vcvt.s32.f32 %v1078
        %v2103 = vcvt.s32.f32 %v1079
        %v2104 = vcvt.s32.f32 %v1080
        %v2105 = vcvt.s32.f32 %v1081
        %v2106 = vcvt.s32.f32 %v1082
        %v2107 = vcvt.s32.f32 %v1083
        %v2108 = vcvt.s32.f32 %v1084
        %v2109 = vcvt.s32.f32 %v1085
        %v2110 = vcvt.s32.f32 %v1086
        %v2111 = vcvt.s32.f32 %v1087
        %v2112 = vcvt.s32.f32 %v1088
        %v2113 = vcvt.s32.f32 %v1089
        %v2114 = vcvt.s32.f32 %v1090
        %v2115 = vcvt.s32.f32 %v1091
        %v2116 = vcvt.s32.f32 %v1092
        %v2117 = vcvt.s32.f32 %v1093
        %v2118 = vcvt.s32.f32 %v1094
        %v2119 = vcvt.s32.f32 %v1095
        %v2120 = vcvt.s32.f32 %v1096
        %v2121 = vcvt.s32.f32 %v1097
        %v2122 = vcvt.s32.f32 %v1098
        %v2123 = vcvt.s32.f32 %v1099
        %v2124 = vcvt.s32.f32 %v1100
        %v2125 = vcvt.s32.f32 %v1101
        %v2126 = vcvt.s32.f32 %v1102
        %v2127 = vcvt.s32.f32 %v1103
        %v2128 = vcvt.s32.f32 %v1104
        %v2129 = vcvt.s32.f32 %v1105
        %v2130 = vcvt.s32.f32 %v1106
        %v2131 = vcvt.s32.f32 %v1107
        %v2132 = vcvt.s32.f32 %v1108
        %v2133 = vcvt.s32.f32 %v1109
        %v2134 = vcvt.s32.f32 %v1110
        %v2135 = vcvt.s32.f32 %v1111
        %v2136 = vcvt.s32.f32 %v1112
        %v2137 = vcvt.s32.f32 %v1113
        %v2138 = vcvt.s32.f32 %v1114
        %v2139 = vcvt.s32.f32 %v1115
        %v2140 = vcvt.s32.f32 %v1116
        %v2141 = vcvt.s32.f32 %v1117
        %v2142 = vcvt.s32.f32 %v1118
        %v2143 = vcvt.s32.f32 %v1119
        %v2144 = vcvt.s32.f32 %v1120
        %v2145 = vcvt.s32.f32 %v1121
        %v2146 = vcvt.s32.f32 %v1122
        %v2147 = vcvt.s32.f32 %v1123
        %v2148 = vcvt.s32.f32 %v1124
        %v2149 = vcvt.s32.f32 %v1125
        %v2150 = vcvt.s32.f32 %v1126
        %v2151 = vcvt.s32.f32 %v1127
        %v2152 = vcvt.s32.f32 %v1128
        %v2153 = vcvt.s32.f32 %v1129
        %v2154 = vcvt.s32.f32 %v1130
        %v2155 = vcvt.s32.f32 %v1131
        %v2156 = vcvt.s32.f32 %v1132
        %v2157 = vcvt.s32.f32 %v1133
        %v2158 = vcvt.s32.f32 %v1134
        %v2159 = vcvt.s32.f32 %v1135
        %v2160 = vcvt.s32.f32 %v1136
        %v2161 = vcvt.s32.f32 %v1137
        %v2162 = vcvt.s32.f32 %v1138
        %v2163 = vcvt.s32.f32 %v1139
        %v2164 = vcvt.s32.f32 %v1140
        %v2165 = vcvt.s32.f32 %v1141
        %v2166 = vcvt.s32.f32 %v1142
        %v2167 = vcvt.s32.f32 %v1143
        %v2168 = vcvt.s32.f32 %v1144
        %v2169 = vcvt.s32.f32 %v1145
        %v2170 = vcvt.s32.f32 %v1146
        %v2171 = vcvt.s32.f32 %v1147
        %v2172 = vcvt.s32.f32 %v1148
        %v2173 = vcvt.s32.f32 %v1149
        %v2174 = vcvt.s32.f32 %v1150
        %v2175 = vcvt.s32.f32 %v1151
        %v2176 = vcvt.s32.f32 %v1152
        %v2177 = vcvt.s32.f32 %v1153
        %v2178 = vcvt.s32.f32 %v1154
        %v2179 = vcvt.s32.f32 %v1155
        %v2180 = vcvt.s32.f32 %v1156
        %v2181 = vcvt.s32.f32 %v1157
        %v2182 = vcvt.s32.f32 %v1158
        %v2183 = vcvt.s32.f32 %v1159
        %v2184 = vcvt.s32.f32 %v1160
        %v2185 = vcvt.s32.f32 %v1161
        %v2186 = vcvt.s32.f32 %v1162
        %v2187 = vcvt.s32.f32 %v1163
        %v2188 = vcvt.s32.f32 %v1164
        %v2189 = vcvt.s32.f32 %v1165
        %v2190 = vcvt.s32.f32 %v1166
        %v2191 = vcvt.s32.f32 %v1167
        %v2192 = vcvt.s32.f32 %v1168
        %v2193 = vcvt.s32.f32 %v1169
        %v2194 = vcvt.s32.f32 %v1170
        %v2195 = vcvt.s32.f32 %v1171
        %v2196 = vcvt.s32.f32 %v1172
        %v2197 = vcvt.s32.f32 %v1173
        %v2198 = vcvt.s32.f32 %v1174
        %v2199 = vcvt.s32.f32 %v1175
        %v2200 = vcvt.s32.f32 %v1176
        %v2201 = vcvt.s32.f32 %v1177
        %v2202 = vcvt.s32.f32 %v1178
        %v2203 = vcvt.s32.f32 %v1179
        %v2204 = vcvt.s32.f32 %v1180
        %v2205 = vcvt.s32.f32 %v1181
        %v2206 = vcvt.s32.f32 %v1182
        %v2207 = vcvt.s32.f32 %v1183
        %v2208 = vcvt.s32.f32 %v1184
        %v2209 = vcvt.s32.f32 %v1185
        %v2210 = vcvt.s32.f32 %v1186
        %v2211 = vcvt.s32.f32 %v1187
        %v2212 = vcvt.s32.f32 %v1188
        %v2213 = vcvt.s32.f32 %v1189
        %v2214 = vcvt.s32.f32 %v1190
        %v2215 = vcvt.s32.f32 %v1191
        %v2216 = vcvt.s32.f32 %v1192
        %v2217 = vcvt.s32.f32 %v1193
        %v2218 = vcvt.s32.f32 %v1194
        %v2219 = vcvt.s32.f32 %v1195
        %v2220 = vcvt.s32.f32 %v1196
        %v2221 = vcvt.s32.f32 %v1197
        %v2222 = vcvt.s32.f32 %v1198
        %v2223 = vcvt.s32.f32 %v1199
        %v2224 = vcvt.s32.f32 %v1200
        %v2225 = vcvt.s32.f32 %v1201
        %v2226 = vcvt.s32.f32 %v1202
        %v2227 = vcvt.s32.f32 %v1203
        %v2228 = vcvt.s32.f32 %v1204
        %v2229 = vcvt.s32.f32 %v1205
        %v2230 = vcvt.s32.f32 %v1206
        %v2231 = vcvt.s32.f32 %v1207
        %v2232 = vcvt.s32.f32 %v1208
        %v2233 = vcvt.s32.f32 %v1209
        %v2234 = vcvt.s32.f32 %v1210
        %v2235 = vcvt.s32.f32 %v1211
        %v2236 = vcvt.s32.f32 %v1212
        %v2237 = vcvt.s32.f32 %v1213
        %v2238 = vcvt.s32.f32 %v1214
        %v2239 = vcvt.s32.f32 %v1215
        %v2240 = vcvt.s32.f32 %v1216
        %v2241 = vcvt.s32.f32 %v1217
        %v2242 = vcvt.s32.f32 %v1218
        %v2243 = vcvt.s32.f32 %v1219
        %v2244 = vcvt.s32.f32 %v1220
        %v2245 = vcvt.s32.f32 %v1221
        %v2246 = vcvt.s32.f32 %v1222
        %v2247 = vcvt.s32.f32 %v1223
        %v2248 = vcvt.s32.f32 %v1224
        %v2249 = vcvt.s32.f32 %v1225
        %v2250 = vcvt.s32.f32 %v1226
        %v2251 = vcvt.s32.f32 %v1227
        %v2252 = vcvt.s32.f32 %v1228
        %v2253 = vcvt.s32.f32 %v1229
        %v2254 = vcvt.s32.f32 %v1230
        %v2255 = vcvt.s32.f32 %v1231
        %v2256 = vcvt.s32.f32 %v1232
        %v2257 = vcvt.s32.f32 %v1233
        %v2258 = vcvt.s32.f32 %v1234
        %v2259 = vcvt.s32.f32 %v1235
        %v2260 = vcvt.s32.f32 %v1236
        %v2261 = vcvt.s32.f32 %v1237
        %v2262 = vcvt.s32.f32 %v1238
        %v2263 = vcvt.s32.f32 %v1239
        %v2264 = vcvt.s32.f32 %v1240
        %v2265 = vcvt.s32.f32 %v1241
        %v2266 = vcvt.s32.f32 %v1242
        %v2267 = vcvt.s32.f32 %v1243
        %v2268 = vcvt.s32.f32 %v1244
        %v2269 = vcvt.s32.f32 %v1245
        %v2270 = vcvt.s32.f32 %v1246
        %v2271 = vcvt.s32.f32 %v1247
        %v2272 = vcvt.s32.f32 %v1248
        %v2273 = vcvt.s32.f32 %v1249
        %v2274 = vcvt.s32.f32 %v1250
        %v2275 = vcvt.s32.f32 %v1251
        %v2276 = vcvt.s32.f32 %v1252
        %v2277 = vcvt.s32.f32 %v1253
        %v2278 = vcvt.s32.f32 %v1254
        %v2279 = vcvt.s32.f32 %v1255
        %v2280 = vcvt.s32.f32 %v1256
        %v2281 = vcvt.s32.f32 %v1257
        %v2282 = vcvt.s32.f32 %v1258
        %v2283 = vcvt.s32.f32 %v1259
        %v2284 = vcvt.s32.f32 %v1260
        %v2285 = vcvt.s32.f32 %v1261
        %v2286 = vcvt.s32.f32 %v1262
        %v2287 = vcvt.s32.f32 %v1263
        %v2288 = vcvt.s32.f32 %v1264
        %v2289 = vcvt.s32.f32 %v1265
        %v2290 = vcvt.s32.f32 %v1266
        %v2291 = vcvt.s32.f32 %v1267
        %v2292 = vcvt.s32.f32 %v1268
        %v2293 = vcvt.s32.f32 %v1269
        %v2294 = vcvt.s32.f32 %v1270
        %v2295 = vcvt.s32.f32 %v1271
        %v2296 = vcvt.s32.f32 %v1272
        %v2297 = vcvt.s32.f32 %v1273
        %v2298 = vcvt.s32.f32 %v1274
        %v2299 = vcvt.s32.f32 %v1275
        %v2300 = vcvt.s32.f32 %v1276
        %v2301 = vcvt.s32.f32 %v1277
        %v2302 = vcvt.s32.f32 %v1278
        %v2303 = vcvt.s32.f32 %v1279
        %v2304 = vcvt.s32.f32 %v1280
        %v2305 = vcvt.s32.f32 %v1281
        %v2306 = vcvt.s32.f32 %v1282
        %v2307 = vcvt.s32.f32 %v1283
        %v2308 = vcvt.s32.f32 %v1284
        %v2309 = vcvt.s32.f32 %v1285
        %v2310 = vcvt.s32.f32 %v1286
        %v2311 = vcvt.s32.f32 %v1287
        %v2312 = vcvt.s32.f32 %v1288
        %v2313 = vcvt.s32.f32 %v1289
        %v2314 = vcvt.s32.f32 %v1290
        %v2315 = vcvt.s32.f32 %v1291
        %v2316 = vcvt.s32.f32 %v1292
        %v2317 = vcvt.s32.f32 %v1293
        %v2318 = vcvt.s32.f32 %v1294
        %v2319 = vcvt.s32.f32 %v1295
        %v2320 = vcvt.s32.f32 %v1296
        %v2321 = vcvt.s32.f32 %v1297
        %v2322 = vcvt.s32.f32 %v1298
        %v2323 = vcvt.s32.f32 %v1299
        %v2324 = vcvt.s32.f32 %v1300
        %v2325 = vcvt.s32.f32 %v1301
        %v2326 = vcvt.s32.f32 %v1302
        %v2327 = vcvt.s32.f32 %v1303
        %v2328 = vcvt.s32.f32 %v1304
        %v2329 = vcvt.s32.f32 %v1305
        %v2330 = vcvt.s32.f32 %v1306
        %v2331 = vcvt.s32.f32 %v1307
        %v2332 = vcvt.s32.f32 %v1308
        %v2333 = vcvt.s32.f32 %v1309
        %v2334 = vcvt.s32.f32 %v1310
        %v2335 = vcvt.s32.f32 %v1311
        %v2336 = vcvt.s32.f32 %v1312
        %v2337 = vcvt.s32.f32 %v1313
        %v2338 = vcvt.s32.f32 %v1314
        %v2339 = vcvt.s32.f32 %v1315
        %v2340 = vcvt.s32.f32 %v1316
        %v2341 = vcvt.s32.f32 %v1317
        %v2342 = vcvt.s32.f32 %v1318
        %v2343 = vcvt.s32.f32 %v1319
        %v2344 = vcvt.s32.f32 %v1320
        %v2345 = vcvt.s32.f32 %v1321
        %v2346 = vcvt.s32.f32 %v1322
        %v2347 = vcvt.s32.f32 %v1323
        %v2348 = vcvt.s32.f32 %v1324
        %v2349 = vcvt.s32.f32 %v1325
        %v2350 = vcvt.s32.f32 %v1326
        %v2351 = vcvt.s32.f32 %v1327
        %v2352 = vcvt.s32.f32 %v1328
        %v2353 = vcvt.s32.f32 %v1329
        %v2354 = vcvt.s32.f32 %v1330
        %v2355 = vcvt.s32.f32 %v1331
        %v2356 = vcvt.s32.f32 %v1332
        %v2357 = vcvt.s32.f32 %v1333
        %v2358 = vcvt.s32.f32 %v1334
        %v2359 = vcvt.s32.f32 %v1335
        %v2360 = vcvt.s32.f32 %v1336
        %v2361 = vcvt.s32.f32 %v1337
        %v2362 = vcvt.s32.f32 %v1338
        %v2363 = vcvt.s32.f32 %v1339
        %v2364 = vcvt.s32.f32 %v1340
        %v2365 = vcvt.s32.f32 %v1341
        %v2366 = vcvt.s32.f32 %v1342
        %v2367 = vcvt.s32.f32 %v1343
        %v2368 = vcvt.s32.f32 %v1344
        %v2369 = vcvt.s32.f32 %v1345
        %v2370 = vcvt.s32.f32 %v1346
        %v2371 = vcvt.s32.f32 %v1347
        %v2372 = vcvt.s32.f32 %v1348
        %v2373 = vcvt.s32.f32 %v1349
        %v2374 = vcvt.s32.f32 %v1350
        %v2375 = vcvt.s32.f32 %v1351
        %v2376 = vcvt.s32.f32 %v1352
        %v2377 = vcvt.s32.f32 %v1353
        %v2378 = vcvt.s32.f32 %v1354
        %v2379 = vcvt.s32.f32 %v1355
        %v2380 = vcvt.s32.f32 %v1356
        %v2381 = vcvt.s32.f32 %v1357
        %v2382 = vcvt.s32.f32 %v1358
        %v2383 = vcvt.s32.f32 %v1359
        %v2384 = vcvt.s32.f32 %v1360
        %v2385 = vcvt.s32.f32 %v1361
        %v2386 = vcvt.s32.f32 %v1362
        %v2387 = vcvt.s32.f32 %v1363
        %v2388 = vcvt.s32.f32 %v1364
        %v2389 = vcvt.s32.f32 %v1365
        %v2390 = vcvt.s32.f32 %v1366
        %v2391 = vcvt.s32.f32 %v1367
        %v2392 = vcvt.s32.f32 %v1368
        %v2393 = vcvt.s32.f32 %v1369
        %v2394 = vcvt.s32.f32 %v1370
        %v2395 = vcvt.s32.f32 %v1371
        %v2396 = vcvt.s32.f32 %v1372
        %v2397 = vcvt.s32.f32 %v1373
        %v2398 = vcvt.s32.f32 %v1374
        %v2399 = vcvt.s32.f32 %v1375
        %v2400 = vcvt.s32.f32 %v1376
        %v2401 = vcvt.s32.f32 %v1377
        %v2402 = vcvt.s32.f32 %v1378
        %v2403 = vcvt.s32.f32 %v1379
        %v2404 = vcvt.s32.f32 %v1380
        %v2405 = vcvt.s32.f32 %v1381
        %v2406 = vcvt.s32.f32 %v1382
        %v2407 = vcvt.s32.f32 %v1383
        %v2408 = vcvt.s32.f32 %v1384
        %v2409 = vcvt.s32.f32 %v1385
        %v2410 = vcvt.s32.f32 %v1386
        %v2411 = vcvt.s32.f32 %v1387
        %v2412 = vcvt.s32.f32 %v1388
        %v2413 = vcvt.s32.f32 %v1389
        %v2414 = vcvt.s32.f32 %v1390
        %v2415 = vcvt.s32.f32 %v1391
        %v2416 = vcvt.s32.f32 %v1392
        %v2417 = vcvt.s32.f32 %v1393
        %v2418 = vcvt.s32.f32 %v1394
        %v2419 = vcvt.s32.f32 %v1395
        %v2420 = vcvt.s32.f32 %v1396
        %v2421 = vcvt.s32.f32 %v1397
        %v2422 = vcvt.s32.f32 %v1398
        %v2423 = vcvt.s32.f32 %v1399
        %v2424 = vcvt.s32.f32 %v1400
        %v2425 = vcvt.s32.f32 %v1401
        %v2426 = vcvt.s32.f32 %v1402
        %v2427 = vcvt.s32.f32 %v1403
        %v2428 = vcvt.s32.f32 %v1404
        %v2429 = vcvt.s32.f32 %v1405
        %v2430 = vcvt.s32.f32 %v1406
        %v2431 = vcvt.s32.f32 %v1407
        %v2432 = vcvt.s32.f32 %v1408
        %v2433 = vcvt.s32.f32 %v1409
        %v2434 = vcvt.s32.f32 %v1410
        %v2435 = vcvt.s32.f32 %v1411
        %v2436 = vcvt.s32.f32 %v1412
        %v2437 = vcvt.s32.f32 %v1413
        %v2438 = vcvt.s32.f32 %v1414
        %v2439 = vcvt.s32.f32 %v1415
        %v2440 = vcvt.s32.f32 %v1416
        %v2441 = vcvt.s32.f32 %v1417
        %v2442 = vcvt.s32.f32 %v1418
        %v2443 = vcvt.s32.f32 %v1419
        %v2444 = vcvt.s32.f32 %v1420
        %v2445 = vcvt.s32.f32 %v1421
        %v2446 = vcvt.s32.f32 %v1422
        %v2447 = vcvt.s32.f32 %v1423
        %v2448 = vcvt.s32.f32 %v1424
        %v2449 = vcvt.s32.f32 %v1425
        %v2450 = vcvt.s32.f32 %v1426
        %v2451 = vcvt.s32.f32 %v1427
        %v2452 = vcvt.s32.f32 %v1428
        %v2453 = vcvt.s32.f32 %v1429
        %v2454 = vcvt.s32.f32 %v1430
        %v2455 = vcvt.s32.f32 %v1431
        %v2456 = vcvt.s32.f32 %v1432
        %v2457 = vcvt.s32.f32 %v1433
        %v2458 = vcvt.s32.f32 %v1434
        %v2459 = vcvt.s32.f32 %v1435
        %v2460 = vcvt.s32.f32 %v1436
        %v2461 = vcvt.s32.f32 %v1437
        %v2462 = vcvt.s32.f32 %v1438
        %v2463 = vcvt.s32.f32 %v1439
        %v2464 = vcvt.s32.f32 %v1440
        %v2465 = vcvt.s32.f32 %v1441
        %v2466 = vcvt.s32.f32 %v1442
        %v2467 = vcvt.s32.f32 %v1443
        %v2468 = vcvt.s32.f32 %v1444
        %v2469 = vcvt.s32.f32 %v1445
        %v2470 = vcvt.s32.f32 %v1446
        %v2471 = vcvt.s32.f32 %v1447
        %v2472 = vcvt.s32.f32 %v1448
        %v2473 = vcvt.s32.f32 %v1449
        %v2474 = vcvt.s32.f32 %v1450
        %v2475 = vcvt.s32.f32 %v1451
        %v2476 = vcvt.s32.f32 %v1452
        %v2477 = vcvt.s32.f32 %v1453
        %v2478 = vcvt.s32.f32 %v1454
        %v2479 = vcvt.s32.f32 %v1455
        %v2480 = vcvt.s32.f32 %v1456
        %v2481 = vcvt.s32.f32 %v1457
        %v2482 = vcvt.s32.f32 %v1458
        %v2483 = vcvt.s32.f32 %v1459
        %v2484 = vcvt.s32.f32 %v1460
        %v2485 = vcvt.s32.f32 %v1461
        %v2486 = vcvt.s32.f32 %v1462
        %v2487 = vcvt.s32.f32 %v1463
        %v2488 = vcvt.s32.f32 %v1464
        %v2489 = vcvt.s32.f32 %v1465
        %v2490 = vcvt.s32.f32 %v1466
        %v2491 = vcvt.s32.f32 %v1467
        %v2492 = vcvt.s32.f32 %v1468
        %v2493 = vcvt.s32.f32 %v1469
        %v2494 = vcvt.s32.f32 %v1470
        %v2495 = vcvt.s32.f32 %v1471
        %v2496 = vcvt.s32.f32 %v1472
        %v2497 = vcvt.s32.f32 %v1473
        %v2498 = vcvt.s32.f32 %v1474
        %v2499 = vcvt.s32.f32 %v1475
        %v2500 = vcvt.s32.f32 %v1476
        %v2501 = vcvt.s32.f32 %v1477
        %v2502 = vcvt.s32.f32 %v1478
        %v2503 = vcvt.s32.f32 %v1479
        %v2504 = vcvt.s32.f32 %v1480
        %v2505 = vcvt.s32.f32 %v1481
        %v2506 = vcvt.s32.f32 %v1482
        %v2507 = vcvt.s32.f32 %v1483
        %v2508 = vcvt.s32.f32 %v1484
        %v2509 = vcvt.s32.f32 %v1485
        %v2510 = vcvt.s32.f32 %v1486
        %v2511 = vcvt.s32.f32 %v1487
        %v2512 = vcvt.s32.f32 %v1488
        %v2513 = vcvt.s32.f32 %v1489
        %v2514 = vcvt.s32.f32 %v1490
        %v2515 = vcvt.s32.f32 %v1491
        %v2516 = vcvt.s32.f32 %v1492
        %v2517 = vcvt.s32.f32 %v1493
        %v2518 = vcvt.s32.f32 %v1494
        %v2519 = vcvt.s32.f32 %v1495
        %v2520 = vcvt.s32.f32 %v1496
        %v2521 = vcvt.s32.f32 %v1497
        %v2522 = vcvt.s32.f32 %v1498
        %v2523 = vcvt.s32.f32 %v1499
        %v2524 = vcvt.s32.f32 %v1500
        %v2525 = vcvt.s32.f32 %v1501
        %v2526 = vcvt.s32.f32 %v1502
        %v2527 = vcvt.s32.f32 %v1503
        %v2528 = vcvt.s32.f32 %v1504
        %v2529 = vcvt.s32.f32 %v1505
        %v2530 = vcvt.s32.f32 %v1506
        %v2531 = vcvt.s32.f32 %v1507
        %v2532 = vcvt.s32.f32 %v1508
        %v2533 = vcvt.s32.f32 %v1509
        %v2534 = vcvt.s32.f32 %v1510
        %v2535 = vcvt.s32.f32 %v1511
        %v2536 = vcvt.s32.f32 %v1512
        %v2537 = vcvt.s32.f32 %v1513
        %v2538 = vcvt.s32.f32 %v1514
        %v2539 = vcvt.s32.f32 %v1515
        %v2540 = vcvt.s32.f32 %v1516
        %v2541 = vcvt.s32.f32 %v1517
        %v2542 = vcvt.s32.f32 %v1518
        %v2543 = vcvt.s32.f32 %v1519
        %v2544 = vcvt.s32.f32 %v1520
        %v2545 = vcvt.s32.f32 %v1521
        %v2546 = vcvt.s32.f32 %v1522
        %v2547 = vcvt.s32.f32 %v1523
        %v2548 = vcvt.s32.f32 %v1524
        %v2549 = vcvt.s32.f32 %v1525
        %v2550 = vcvt.s32.f32 %v1526
        %v2551 = vcvt.s32.f32 %v1527
        %v2552 = vcvt.s32.f32 %v1528
        %v2553 = vcvt.s32.f32 %v1529
        %v2554 = vcvt.s32.f32 %v1530
        %v2555 = vcvt.s32.f32 %v1531
        %v2556 = vcvt.s32.f32 %v1532
        %v2557 = vcvt.s32.f32 %v1533
        %v2558 = vcvt.s32.f32 %v1534
        %v2559 = vcvt.s32.f32 %v1535
        %v2560 = vcvt.s32.f32 %v1536
        %v2561 = vcvt.s32.f32 %v1537
        %v2562 = vcvt.s32.f32 %v1538
        %v2563 = vcvt.s32.f32 %v1539
        %v2564 = vcvt.s32.f32 %v1540
        %v2565 = vcvt.s32.f32 %v1541
        %v2566 = vcvt.s32.f32 %v1542
        %v2567 = vcvt.s32.f32 %v1543
        %v2568 = vcvt.s32.f32 %v1544
        %v2569 = vcvt.s32.f32 %v1545
        %v2570 = vcvt.s32.f32 %v1546
        %v2571 = vcvt.s32.f32 %v1547
        %v2572 = vcvt.s32.f32 %v1548
        %v2573 = vcvt.s32.f32 %v1549
        %v2574 = vcvt.s32.f32 %v1550
        %v2575 = vcvt.s32.f32 %v1551
        %v2576 = vcvt.s32.f32 %v1552
        %v2577 = vcvt.s32.f32 %v1553
        %v2578 = vcvt.s32.f32 %v1554
        %v2579 = vcvt.s32.f32 %v1555
        %v2580 = vcvt.s32.f32 %v1556
        %v2581 = vcvt.s32.f32 %v1557
        %v2582 = vcvt.s32.f32 %v1558
        %v2583 = vcvt.s32.f32 %v1559
        %v2584 = vcvt.s32.f32 %v1560
        %v2585 = vcvt.s32.f32 %v1561
        %v2586 = vcvt.s32.f32 %v1562
        %v2587 = vcvt.s32.f32 %v1563
        %v2588 = vcvt.s32.f32 %v1564
        %v2589 = vcvt.s32.f32 %v1565
        %v2590 = vcvt.s32.f32 %v1566
        %v2591 = vcvt.s32.f32 %v1567
        %v2592 = vcvt.s32.f32 %v1568
        %v2593 = vcvt.s32.f32 %v1569
        %v2594 = vcvt.s32.f32 %v1570
        %v2595 = vcvt.s32.f32 %v1571
        %v2596 = vcvt.s32.f32 %v1572
        %v2597 = vcvt.s32.f32 %v1573
        %v2598 = vcvt.s32.f32 %v1574
        %v2599 = vcvt.s32.f32 %v1575
        %v2600 = vcvt.s32.f32 %v1576
        %v2601 = vcvt.s32.f32 %v1577
        %v2602 = vcvt.s32.f32 %v1578
        %v2603 = vcvt.s32.f32 %v1579
        %v2604 = vcvt.s32.f32 %v1580
        %v2605 = vcvt.s32.f32 %v1581
        %v2606 = vcvt.s32.f32 %v1582
        %v2607 = vcvt.s32.f32 %v1583
        %v2608 = vcvt.s32.f32 %v1584
        %v2609 = vcvt.s32.f32 %v1585
        %v2610 = vcvt.s32.f32 %v1586
        %v2611 = vcvt.s32.f32 %v1587
        %v2612 = vcvt.s32.f32 %v1588
        %v2613 = vcvt.s32.f32 %v1589
        %v2614 = vcvt.s32.f32 %v1590
        %v2615 = vcvt.s32.f32 %v1591
        %v2616 = vcvt.s32.f32 %v1592
        %v2617 = vcvt.s32.f32 %v1593
        %v2618 = vcvt.s32.f32 %v1594
        %v2619 = vcvt.s32.f32 %v1595
        %v2620 = vcvt.s32.f32 %v1596
        %v2621 = vcvt.s32.f32 %v1597
        %v2622 = vcvt.s32.f32 %v1598
        %v2623 = vcvt.s32.f32 %v1599
        %v2624 = vcvt.s32.f32 %v1600
        %v2625 = vcvt.s32.f32 %v1601
        %v2626 = vcvt.s32.f32 %v1602
        %v2627 = vcvt.s32.f32 %v1603
        %v2628 = vcvt.s32.f32 %v1604
        %v2629 = vcvt.s32.f32 %v1605
        %v2630 = vcvt.s32.f32 %v1606
        %v2631 = vcvt.s32.f32 %v1607
        %v2632 = vcvt.s32.f32 %v1608
        %v2633 = vcvt.s32.f32 %v1609
        %v2634 = vcvt.s32.f32 %v1610
        %v2635 = vcvt.s32.f32 %v1611
        %v2636 = vcvt.s32.f32 %v1612
        %v2637 = vcvt.s32.f32 %v1613
        %v2638 = vcvt.s32.f32 %v1614
        %v2639 = vcvt.s32.f32 %v1615
        %v2640 = vcvt.s32.f32 %v1616
        %v2641 = vcvt.s32.f32 %v1617
        %v2642 = vcvt.s32.f32 %v1618
        %v2643 = vcvt.s32.f32 %v1619
        %v2644 = vcvt.s32.f32 %v1620
        %v2645 = vcvt.s32.f32 %v1621
        %v2646 = vcvt.s32.f32 %v1622
        %v2647 = vcvt.s32.f32 %v1623
        %v2648 = vcvt.s32.f32 %v1624
        %v2649 = vcvt.s32.f32 %v1625
        %v2650 = vcvt.s32.f32 %v1626
        %v2651 = vcvt.s32.f32 %v1627
        %v2652 = vcvt.s32.f32 %v1628
        %v2653 = vcvt.s32.f32 %v1629
        %v2654 = vcvt.s32.f32 %v1630
        %v2655 = vcvt.s32.f32 %v1631
        %v2656 = vcvt.s32.f32 %v1632
        %v2657 = vcvt.s32.f32 %v1633
        %v2658 = vcvt.s32.f32 %v1634
        %v2659 = vcvt.s32.f32 %v1635
        %v2660 = vcvt.s32.f32 %v1636
        %v2661 = vcvt.s32.f32 %v1637
        %v2662 = vcvt.s32.f32 %v1638
        %v2663 = vcvt.s32.f32 %v1639
        %v2664 = vcvt.s32.f32 %v1640
        %v2665 = vcvt.s32.f32 %v1641
        %v2666 = vcvt.s32.f32 %v1642
        %v2667 = vcvt.s32.f32 %v1643
        %v2668 = vcvt.s32.f32 %v1644
        %v2669 = vcvt.s32.f32 %v1645
        %v2670 = vcvt.s32.f32 %v1646
        %v2671 = vcvt.s32.f32 %v1647
        %v2672 = vcvt.s32.f32 %v1648
        %v2673 = vcvt.s32.f32 %v1649
        %v2674 = vcvt.s32.f32 %v1650
        %v2675 = vcvt.s32.f32 %v1651
        %v2676 = vcvt.s32.f32 %v1652
        %v2677 = vcvt.s32.f32 %v1653
        %v2678 = vcvt.s32.f32 %v1654
        %v2679 = vcvt.s32.f32 %v1655
        %v2680 = vcvt.s32.f32 %v1656
        %v2681 = vcvt.s32.f32 %v1657
        %v2682 = vcvt.s32.f32 %v1658
        %v2683 = vcvt.s32.f32 %v1659
        %v2684 = vcvt.s32.f32 %v1660
        %v2685 = vcvt.s32.f32 %v1661
        %v2686 = vcvt.s32.f32 %v1662
        %v2687 = vcvt.s32.f32 %v1663
        %v2688 = vcvt.s32.f32 %v1664
        %v2689 = vcvt.s32.f32 %v1665
        %v2690 = vcvt.s32.f32 %v1666
        %v2691 = vcvt.s32.f32 %v1667
        %v2692 = vcvt.s32.f32 %v1668
        %v2693 = vcvt.s32.f32 %v1669
        %v2694 = vcvt.s32.f32 %v1670
        %v2695 = vcvt.s32.f32 %v1671
        %v2696 = vcvt.s32.f32 %v1672
        %v2697 = vcvt.s32.f32 %v1673
        %v2698 = vcvt.s32.f32 %v1674
        %v2699 = vcvt.s32.f32 %v1675
        %v2700 = vcvt.s32.f32 %v1676
        %v2701 = vcvt.s32.f32 %v1677
        %v2702 = vcvt.s32.f32 %v1678
        %v2703 = vcvt.s32.f32 %v1679
        %v2704 = vcvt.s32.f32 %v1680
        %v2705 = vcvt.s32.f32 %v1681
        %v2706 = vcvt.s32.f32 %v1682
        %v2707 = vcvt.s32.f32 %v1683
        %v2708 = vcvt.s32.f32 %v1684
        %v2709 = vcvt.s32.f32 %v1685
        %v2710 = vcvt.s32.f32 %v1686
        %v2711 = vcvt.s32.f32 %v1687
        %v2712 = vcvt.s32.f32 %v1688
        %v2713 = vcvt.s32.f32 %v1689
        %v2714 = vcvt.s32.f32 %v1690
        %v2715 = vcvt.s32.f32 %v1691
        %v2716 = vcvt.s32.f32 %v1692
        %v2717 = vcvt.s32.f32 %v1693
        %v2718 = vcvt.s32.f32 %v1694
        %v2719 = vcvt.s32.f32 %v1695
        %v2720 = vcvt.s32.f32 %v1696
        %v2721 = vcvt.s32.f32 %v1697
        %v2722 = vcvt.s32.f32 %v1698
        %v2723 = vcvt.s32.f32 %v1699
        %v2724 = vcvt.s32.f32 %v1700
        %v2725 = vcvt.s32.f32 %v1701
        %v2726 = vcvt.s32.f32 %v1702
        %v2727 = vcvt.s32.f32 %v1703
        %v2728 = vcvt.s32.f32 %v1704
        %v2729 = vcvt.s32.f32 %v1705
        %v2730 = vcvt.s32.f32 %v1706
        %v2731 = vcvt.s32.f32 %v1707
        %v2732 = vcvt.s32.f32 %v1708
        %v2733 = vcvt.s32.f32 %v1709
        %v2734 = vcvt.s32.f32 %v1710
        %v2735 = vcvt.s32.f32 %v1711
        %v2736 = vcvt.s32.f32 %v1712
        %v2737 = vcvt.s32.f32 %v1713
        %v2738 = vcvt.s32.f32 %v1714
        %v2739 = vcvt.s32.f32 %v1715
        %v2740 = vcvt.s32.f32 %v1716
        %v2741 = vcvt.s32.f32 %v1717
        %v2742 = vcvt.s32.f32 %v1718
        %v2743 = vcvt.s32.f32 %v1719
        %v2744 = vcvt.s32.f32 %v1720
        %v2745 = vcvt.s32.f32 %v1721
        %v2746 = vcvt.s32.f32 %v1722
        %v2747 = vcvt.s32.f32 %v1723
        %v2748 = vcvt.s32.f32 %v1724
        %v2749 = vcvt.s32.f32 %v1725
        %v2750 = vcvt.s32.f32 %v1726
        %v2751 = vcvt.s32.f32 %v1727
        %v2752 = vcvt.s32.f32 %v1728
        %v2753 = vcvt.s32.f32 %v1729
        %v2754 = vcvt.s32.f32 %v1730
        %v2755 = vcvt.s32.f32 %v1731
        %v2756 = vcvt.s32.f32 %v1732
        %v2757 = vcvt.s32.f32 %v1733
        %v2758 = vcvt.s32.f32 %v1734
        %v2759 = vcvt.s32.f32 %v1735
        %v2760 = vcvt.s32.f32 %v1736
        %v2761 = vcvt.s32.f32 %v1737
        %v2762 = vcvt.s32.f32 %v1738
        %v2763 = vcvt.s32.f32 %v1739
        %v2764 = vcvt.s32.f32 %v1740
        %v2765 = vcvt.s32.f32 %v1741
        %v2766 = vcvt.s32.f32 %v1742
        %v2767 = vcvt.s32.f32 %v1743
        %v2768 = vcvt.s32.f32 %v1744
        %v2769 = vcvt.s32.f32 %v1745
        %v2770 = vcvt.s32.f32 %v1746
        %v2771 = vcvt.s32.f32 %v1747
        %v2772 = vcvt.s32.f32 %v1748
        %v2773 = vcvt.s32.f32 %v1749
        %v2774 = vcvt.s32.f32 %v1750
        %v2775 = vcvt.s32.f32 %v1751
        %v2776 = vcvt.s32.f32 %v1752
        %v2777 = vcvt.s32.f32 %v1753
        %v2778 = vcvt.s32.f32 %v1754
        %v2779 = vcvt.s32.f32 %v1755
        %v2780 = vcvt.s32.f32 %v1756
        %v2781 = vcvt.s32.f32 %v1757
        %v2782 = vcvt.s32.f32 %v1758
        %v2783 = vcvt.s32.f32 %v1759
        %v2784 = vcvt.s32.f32 %v1760
        %v2785 = vcvt.s32.f32 %v1761
        %v2786 = vcvt.s32.f32 %v1762
        %v2787 = vcvt.s32.f32 %v1763
        %v2788 = vcvt.s32.f32 %v1764
        %v2789 = vcvt.s32.f32 %v1765
        %v2790 = vcvt.s32.f32 %v1766
        %v2791 = vcvt.s32.f32 %v1767
        %v2792 = vcvt.s32.f32 %v1768
        %v2793 = vcvt.s32.f32 %v1769
        %v2794 = vcvt.s32.f32 %v1770
        %v2795 = vcvt.s32.f32 %v1771
        %v2796 = vcvt.s32.f32 %v1772
        %v2797 = vcvt.s32.f32 %v1773
        %v2798 = vcvt.s32.f32 %v1774
        %v2799 = vcvt.s32.f32 %v1775
        %v2800 = vcvt.s32.f32 %v1776
        %v2801 = vcvt.s32.f32 %v1777
        %v2802 = vcvt.s32.f32 %v1778
        %v2803 = vcvt.s32.f32 %v1779
        %v2804 = vcvt.s32.f32 %v1780
        %v2805 = vcvt.s32.f32 %v1781
        %v2806 = vcvt.s32.f32 %v1782
        %v2807 = vcvt.s32.f32 %v1783
        %v2808 = vld [vmem:[#allocation8] ss:$4 sm:$0xf]
        %v2810 = vlaneseq
        %v2811 = vshrl.u32 %v2810, 7
        %v2812 = vsub.s32 0, %v2811
        %v2813 = vrot.slane %v2808, %v2812
        %v2814 = vlaneseq
        %v2815 = vshrl.u32 %v2814, 7
        %v2816 = vsub.s32 1, %v2815
        %v2817 = vrot.slane %v2808, %v2816
        %v2818 = vlaneseq
        %v2819 = vshrl.u32 %v2818, 7
        %v2820 = vsub.s32 2, %v2819
        %v2821 = vrot.slane %v2808, %v2820
        %v2822 = vlaneseq
        %v2823 = vshrl.u32 %v2822, 7
        %v2824 = vsub.s32 3, %v2823
        %v2825 = vrot.slane %v2808, %v2824
        %v2830 = vmul.f32 %v1784, %v2813
        %v2831 = vmul.f32 %v1785, %v2817
        %v2832 = vmul.f32 %v1786, %v2821
        %v2833 = vmul.f32 %v1787, %v2825
        %v2834 = vmul.f32 %v1788, %v2813
        %v2835 = vmul.f32 %v1789, %v2817
        %v2836 = vmul.f32 %v1790, %v2821
        %v2837 = vmul.f32 %v1791, %v2825
        %v2838 = vmul.f32 %v1792, %v2813
        %v2839 = vmul.f32 %v1793, %v2817
        %v2840 = vmul.f32 %v1794, %v2821
        %v2841 = vmul.f32 %v1795, %v2825
        %v2842 = vmul.f32 %v1796, %v2813
        %v2843 = vmul.f32 %v1797, %v2817
        %v2844 = vmul.f32 %v1798, %v2821
        %v2845 = vmul.f32 %v1799, %v2825
        %v2846 = vmul.f32 %v1800, %v2813
        %v2847 = vmul.f32 %v1801, %v2817
        %v2848 = vmul.f32 %v1802, %v2821
        %v2849 = vmul.f32 %v1803, %v2825
        %v2850 = vmul.f32 %v1804, %v2813
        %v2851 = vmul.f32 %v1805, %v2817
        %v2852 = vmul.f32 %v1806, %v2821
        %v2853 = vmul.f32 %v1807, %v2825
        %v2854 = vmul.f32 %v1808, %v2813
        %v2855 = vmul.f32 %v1809, %v2817
        %v2856 = vmul.f32 %v1810, %v2821
        %v2857 = vmul.f32 %v1811, %v2825
        %v2858 = vmul.f32 %v1812, %v2813
        %v2859 = vmul.f32 %v1813, %v2817
        %v2860 = vmul.f32 %v1814, %v2821
        %v2861 = vmul.f32 %v1815, %v2825
        %v2862 = vmul.f32 %v1816, %v2813
        %v2863 = vmul.f32 %v1817, %v2817
        %v2864 = vmul.f32 %v1818, %v2821
        %v2865 = vmul.f32 %v1819, %v2825
        %v2866 = vmul.f32 %v1820, %v2813
        %v2867 = vmul.f32 %v1821, %v2817
        %v2868 = vmul.f32 %v1822, %v2821
        %v2869 = vmul.f32 %v1823, %v2825
        %v2870 = vmul.f32 %v1824, %v2813
        %v2871 = vmul.f32 %v1825, %v2817
        %v2872 = vmul.f32 %v1826, %v2821
        %v2873 = vmul.f32 %v1827, %v2825
        %v2874 = vmul.f32 %v1828, %v2813
        %v2875 = vmul.f32 %v1829, %v2817
        %v2876 = vmul.f32 %v1830, %v2821
        %v2877 = vmul.f32 %v1831, %v2825
        %v2878 = vmul.f32 %v1832, %v2813
        %v2879 = vmul.f32 %v1833, %v2817
        %v2880 = vmul.f32 %v1834, %v2821
        %v2881 = vmul.f32 %v1835, %v2825
        %v2882 = vmul.f32 %v1836, %v2813
        %v2883 = vmul.f32 %v1837, %v2817
        %v2884 = vmul.f32 %v1838, %v2821
        %v2885 = vmul.f32 %v1839, %v2825
        %v2886 = vmul.f32 %v1840, %v2813
        %v2887 = vmul.f32 %v1841, %v2817
        %v2888 = vmul.f32 %v1842, %v2821
        %v2889 = vmul.f32 %v1843, %v2825
        %v2890 = vmul.f32 %v1844, %v2813
        %v2891 = vmul.f32 %v1845, %v2817
        %v2892 = vmul.f32 %v1846, %v2821
        %v2893 = vmul.f32 %v1847, %v2825
        %v2894 = vmul.f32 %v1848, %v2813
        %v2895 = vmul.f32 %v1849, %v2817
        %v2896 = vmul.f32 %v1850, %v2821
        %v2897 = vmul.f32 %v1851, %v2825
        %v2898 = vmul.f32 %v1852, %v2813
        %v2899 = vmul.f32 %v1853, %v2817
        %v2900 = vmul.f32 %v1854, %v2821
        %v2901 = vmul.f32 %v1855, %v2825
        %v2902 = vmul.f32 %v1856, %v2813
        %v2903 = vmul.f32 %v1857, %v2817
        %v2904 = vmul.f32 %v1858, %v2821
        %v2905 = vmul.f32 %v1859, %v2825
        %v2906 = vmul.f32 %v1860, %v2813
        %v2907 = vmul.f32 %v1861, %v2817
        %v2908 = vmul.f32 %v1862, %v2821
        %v2909 = vmul.f32 %v1863, %v2825
        %v2910 = vmul.f32 %v1864, %v2813
        %v2911 = vmul.f32 %v1865, %v2817
        %v2912 = vmul.f32 %v1866, %v2821
        %v2913 = vmul.f32 %v1867, %v2825
        %v2914 = vmul.f32 %v1868, %v2813
        %v2915 = vmul.f32 %v1869, %v2817
        %v2916 = vmul.f32 %v1870, %v2821
        %v2917 = vmul.f32 %v1871, %v2825
        %v2918 = vmul.f32 %v1872, %v2813
        %v2919 = vmul.f32 %v1873, %v2817
        %v2920 = vmul.f32 %v1874, %v2821
        %v2921 = vmul.f32 %v1875, %v2825
        %v2922 = vmul.f32 %v1876, %v2813
        %v2923 = vmul.f32 %v1877, %v2817
        %v2924 = vmul.f32 %v1878, %v2821
        %v2925 = vmul.f32 %v1879, %v2825
        %v2926 = vmul.f32 %v1880, %v2813
        %v2927 = vmul.f32 %v1881, %v2817
        %v2928 = vmul.f32 %v1882, %v2821
        %v2929 = vmul.f32 %v1883, %v2825
        %v2930 = vmul.f32 %v1884, %v2813
        %v2931 = vmul.f32 %v1885, %v2817
        %v2932 = vmul.f32 %v1886, %v2821
        %v2933 = vmul.f32 %v1887, %v2825
        %v2934 = vmul.f32 %v1888, %v2813
        %v2935 = vmul.f32 %v1889, %v2817
        %v2936 = vmul.f32 %v1890, %v2821
        %v2937 = vmul.f32 %v1891, %v2825
        %v2938 = vmul.f32 %v1892, %v2813
        %v2939 = vmul.f32 %v1893, %v2817
        %v2940 = vmul.f32 %v1894, %v2821
        %v2941 = vmul.f32 %v1895, %v2825
        %v2942 = vmul.f32 %v1896, %v2813
        %v2943 = vmul.f32 %v1897, %v2817
        %v2944 = vmul.f32 %v1898, %v2821
        %v2945 = vmul.f32 %v1899, %v2825
        %v2946 = vmul.f32 %v1900, %v2813
        %v2947 = vmul.f32 %v1901, %v2817
        %v2948 = vmul.f32 %v1902, %v2821
        %v2949 = vmul.f32 %v1903, %v2825
        %v2950 = vmul.f32 %v1904, %v2813
        %v2951 = vmul.f32 %v1905, %v2817
        %v2952 = vmul.f32 %v1906, %v2821
        %v2953 = vmul.f32 %v1907, %v2825
        %v2954 = vmul.f32 %v1908, %v2813
        %v2955 = vmul.f32 %v1909, %v2817
        %v2956 = vmul.f32 %v1910, %v2821
        %v2957 = vmul.f32 %v1911, %v2825
        %v2958 = vmul.f32 %v1912, %v2813
        %v2959 = vmul.f32 %v1913, %v2817
        %v2960 = vmul.f32 %v1914, %v2821
        %v2961 = vmul.f32 %v1915, %v2825
        %v2962 = vmul.f32 %v1916, %v2813
        %v2963 = vmul.f32 %v1917, %v2817
        %v2964 = vmul.f32 %v1918, %v2821
        %v2965 = vmul.f32 %v1919, %v2825
        %v2966 = vmul.f32 %v1920, %v2813
        %v2967 = vmul.f32 %v1921, %v2817
        %v2968 = vmul.f32 %v1922, %v2821
        %v2969 = vmul.f32 %v1923, %v2825
        %v2970 = vmul.f32 %v1924, %v2813
        %v2971 = vmul.f32 %v1925, %v2817
        %v2972 = vmul.f32 %v1926, %v2821
        %v2973 = vmul.f32 %v1927, %v2825
        %v2974 = vmul.f32 %v1928, %v2813
        %v2975 = vmul.f32 %v1929, %v2817
        %v2976 = vmul.f32 %v1930, %v2821
        %v2977 = vmul.f32 %v1931, %v2825
        %v2978 = vmul.f32 %v1932, %v2813
        %v2979 = vmul.f32 %v1933, %v2817
        %v2980 = vmul.f32 %v1934, %v2821
        %v2981 = vmul.f32 %v1935, %v2825
        %v2982 = vmul.f32 %v1936, %v2813
        %v2983 = vmul.f32 %v1937, %v2817
        %v2984 = vmul.f32 %v1938, %v2821
        %v2985 = vmul.f32 %v1939, %v2825
        %v2986 = vmul.f32 %v1940, %v2813
        %v2987 = vmul.f32 %v1941, %v2817
        %v2988 = vmul.f32 %v1942, %v2821
        %v2989 = vmul.f32 %v1943, %v2825
        %v2990 = vmul.f32 %v1944, %v2813
        %v2991 = vmul.f32 %v1945, %v2817
        %v2992 = vmul.f32 %v1946, %v2821
        %v2993 = vmul.f32 %v1947, %v2825
        %v2994 = vmul.f32 %v1948, %v2813
        %v2995 = vmul.f32 %v1949, %v2817
        %v2996 = vmul.f32 %v1950, %v2821
        %v2997 = vmul.f32 %v1951, %v2825
        %v2998 = vmul.f32 %v1952, %v2813
        %v2999 = vmul.f32 %v1953, %v2817
        %v3000 = vmul.f32 %v1954, %v2821
        %v3001 = vmul.f32 %v1955, %v2825
        %v3002 = vmul.f32 %v1956, %v2813
        %v3003 = vmul.f32 %v1957, %v2817
        %v3004 = vmul.f32 %v1958, %v2821
        %v3005 = vmul.f32 %v1959, %v2825
        %v3006 = vmul.f32 %v1960, %v2813
        %v3007 = vmul.f32 %v1961, %v2817
        %v3008 = vmul.f32 %v1962, %v2821
        %v3009 = vmul.f32 %v1963, %v2825
        %v3010 = vmul.f32 %v1964, %v2813
        %v3011 = vmul.f32 %v1965, %v2817
        %v3012 = vmul.f32 %v1966, %v2821
        %v3013 = vmul.f32 %v1967, %v2825
        %v3014 = vmul.f32 %v1968, %v2813
        %v3015 = vmul.f32 %v1969, %v2817
        %v3016 = vmul.f32 %v1970, %v2821
        %v3017 = vmul.f32 %v1971, %v2825
        %v3018 = vmul.f32 %v1972, %v2813
        %v3019 = vmul.f32 %v1973, %v2817
        %v3020 = vmul.f32 %v1974, %v2821
        %v3021 = vmul.f32 %v1975, %v2825
        %v3022 = vmul.f32 %v1976, %v2813
        %v3023 = vmul.f32 %v1977, %v2817
        %v3024 = vmul.f32 %v1978, %v2821
        %v3025 = vmul.f32 %v1979, %v2825
        %v3026 = vmul.f32 %v1980, %v2813
        %v3027 = vmul.f32 %v1981, %v2817
        %v3028 = vmul.f32 %v1982, %v2821
        %v3029 = vmul.f32 %v1983, %v2825
        %v3030 = vmul.f32 %v1984, %v2813
        %v3031 = vmul.f32 %v1985, %v2817
        %v3032 = vmul.f32 %v1986, %v2821
        %v3033 = vmul.f32 %v1987, %v2825
        %v3034 = vmul.f32 %v1988, %v2813
        %v3035 = vmul.f32 %v1989, %v2817
        %v3036 = vmul.f32 %v1990, %v2821
        %v3037 = vmul.f32 %v1991, %v2825
        %v3038 = vmul.f32 %v1992, %v2813
        %v3039 = vmul.f32 %v1993, %v2817
        %v3040 = vmul.f32 %v1994, %v2821
        %v3041 = vmul.f32 %v1995, %v2825
        %v3042 = vmul.f32 %v1996, %v2813
        %v3043 = vmul.f32 %v1997, %v2817
        %v3044 = vmul.f32 %v1998, %v2821
        %v3045 = vmul.f32 %v1999, %v2825
        %v3046 = vmul.f32 %v2000, %v2813
        %v3047 = vmul.f32 %v2001, %v2817
        %v3048 = vmul.f32 %v2002, %v2821
        %v3049 = vmul.f32 %v2003, %v2825
        %v3050 = vmul.f32 %v2004, %v2813
        %v3051 = vmul.f32 %v2005, %v2817
        %v3052 = vmul.f32 %v2006, %v2821
        %v3053 = vmul.f32 %v2007, %v2825
        %v3054 = vmul.f32 %v2008, %v2813
        %v3055 = vmul.f32 %v2009, %v2817
        %v3056 = vmul.f32 %v2010, %v2821
        %v3057 = vmul.f32 %v2011, %v2825
        %v3058 = vmul.f32 %v2012, %v2813
        %v3059 = vmul.f32 %v2013, %v2817
        %v3060 = vmul.f32 %v2014, %v2821
        %v3061 = vmul.f32 %v2015, %v2825
        %v3062 = vmul.f32 %v2016, %v2813
        %v3063 = vmul.f32 %v2017, %v2817
        %v3064 = vmul.f32 %v2018, %v2821
        %v3065 = vmul.f32 %v2019, %v2825
        %v3066 = vmul.f32 %v2020, %v2813
        %v3067 = vmul.f32 %v2021, %v2817
        %v3068 = vmul.f32 %v2022, %v2821
        %v3069 = vmul.f32 %v2023, %v2825
        %v3070 = vmul.f32 %v2024, %v2813
        %v3071 = vmul.f32 %v2025, %v2817
        %v3072 = vmul.f32 %v2026, %v2821
        %v3073 = vmul.f32 %v2027, %v2825
        %v3074 = vmul.f32 %v2028, %v2813
        %v3075 = vmul.f32 %v2029, %v2817
        %v3076 = vmul.f32 %v2030, %v2821
        %v3077 = vmul.f32 %v2031, %v2825
        %v3078 = vmul.f32 %v2032, %v2813
        %v3079 = vmul.f32 %v2033, %v2817
        %v3080 = vmul.f32 %v2034, %v2821
        %v3081 = vmul.f32 %v2035, %v2825
        %v3082 = vmul.f32 %v2036, %v2813
        %v3083 = vmul.f32 %v2037, %v2817
        %v3084 = vmul.f32 %v2038, %v2821
        %v3085 = vmul.f32 %v2039, %v2825
        %v3086 = vmul.f32 %v2040, %v2813
        %v3087 = vmul.f32 %v2041, %v2817
        %v3088 = vmul.f32 %v2042, %v2821
        %v3089 = vmul.f32 %v2043, %v2825
        %v3090 = vmul.f32 %v2044, %v2813
        %v3091 = vmul.f32 %v2045, %v2817
        %v3092 = vmul.f32 %v2046, %v2821
        %v3093 = vmul.f32 %v2047, %v2825
        %v3094 = vmul.f32 %v2048, %v2813
        %v3095 = vmul.f32 %v2049, %v2817
        %v3096 = vmul.f32 %v2050, %v2821
        %v3097 = vmul.f32 %v2051, %v2825
        %v3098 = vmul.f32 %v2052, %v2813
        %v3099 = vmul.f32 %v2053, %v2817
        %v3100 = vmul.f32 %v2054, %v2821
        %v3101 = vmul.f32 %v2055, %v2825
        %v3102 = vmul.f32 %v2056, %v2813
        %v3103 = vmul.f32 %v2057, %v2817
        %v3104 = vmul.f32 %v2058, %v2821
        %v3105 = vmul.f32 %v2059, %v2825
        %v3106 = vmul.f32 %v2060, %v2813
        %v3107 = vmul.f32 %v2061, %v2817
        %v3108 = vmul.f32 %v2062, %v2821
        %v3109 = vmul.f32 %v2063, %v2825
        %v3110 = vmul.f32 %v2064, %v2813
        %v3111 = vmul.f32 %v2065, %v2817
        %v3112 = vmul.f32 %v2066, %v2821
        %v3113 = vmul.f32 %v2067, %v2825
        %v3114 = vmul.f32 %v2068, %v2813
        %v3115 = vmul.f32 %v2069, %v2817
        %v3116 = vmul.f32 %v2070, %v2821
        %v3117 = vmul.f32 %v2071, %v2825
        %v3118 = vmul.f32 %v2072, %v2813
        %v3119 = vmul.f32 %v2073, %v2817
        %v3120 = vmul.f32 %v2074, %v2821
        %v3121 = vmul.f32 %v2075, %v2825
        %v3122 = vmul.f32 %v2076, %v2813
        %v3123 = vmul.f32 %v2077, %v2817
        %v3124 = vmul.f32 %v2078, %v2821
        %v3125 = vmul.f32 %v2079, %v2825
        %v3126 = vmul.f32 %v2080, %v2813
        %v3127 = vmul.f32 %v2081, %v2817
        %v3128 = vmul.f32 %v2082, %v2821
        %v3129 = vmul.f32 %v2083, %v2825
        %v3130 = vmul.f32 %v2084, %v2813
        %v3131 = vmul.f32 %v2085, %v2817
        %v3132 = vmul.f32 %v2086, %v2821
        %v3133 = vmul.f32 %v2087, %v2825
        %v3134 = vmul.f32 %v2088, %v2813
        %v3135 = vmul.f32 %v2089, %v2817
        %v3136 = vmul.f32 %v2090, %v2821
        %v3137 = vmul.f32 %v2091, %v2825
        %v3138 = vmul.f32 %v2092, %v2813
        %v3139 = vmul.f32 %v2093, %v2817
        %v3140 = vmul.f32 %v2094, %v2821
        %v3141 = vmul.f32 %v2095, %v2825
        %v3142 = vmul.f32 %v2096, %v2813
        %v3143 = vmul.f32 %v2097, %v2817
        %v3144 = vmul.f32 %v2098, %v2821
        %v3145 = vmul.f32 %v2099, %v2825
        %v3146 = vmul.f32 %v2100, %v2813
        %v3147 = vmul.f32 %v2101, %v2817
        %v3148 = vmul.f32 %v2102, %v2821
        %v3149 = vmul.f32 %v2103, %v2825
        %v3150 = vmul.f32 %v2104, %v2813
        %v3151 = vmul.f32 %v2105, %v2817
        %v3152 = vmul.f32 %v2106, %v2821
        %v3153 = vmul.f32 %v2107, %v2825
        %v3154 = vmul.f32 %v2108, %v2813
        %v3155 = vmul.f32 %v2109, %v2817
        %v3156 = vmul.f32 %v2110, %v2821
        %v3157 = vmul.f32 %v2111, %v2825
        %v3158 = vmul.f32 %v2112, %v2813
        %v3159 = vmul.f32 %v2113, %v2817
        %v3160 = vmul.f32 %v2114, %v2821
        %v3161 = vmul.f32 %v2115, %v2825
        %v3162 = vmul.f32 %v2116, %v2813
        %v3163 = vmul.f32 %v2117, %v2817
        %v3164 = vmul.f32 %v2118, %v2821
        %v3165 = vmul.f32 %v2119, %v2825
        %v3166 = vmul.f32 %v2120, %v2813
        %v3167 = vmul.f32 %v2121, %v2817
        %v3168 = vmul.f32 %v2122, %v2821
        %v3169 = vmul.f32 %v2123, %v2825
        %v3170 = vmul.f32 %v2124, %v2813
        %v3171 = vmul.f32 %v2125, %v2817
        %v3172 = vmul.f32 %v2126, %v2821
        %v3173 = vmul.f32 %v2127, %v2825
        %v3174 = vmul.f32 %v2128, %v2813
        %v3175 = vmul.f32 %v2129, %v2817
        %v3176 = vmul.f32 %v2130, %v2821
        %v3177 = vmul.f32 %v2131, %v2825
        %v3178 = vmul.f32 %v2132, %v2813
        %v3179 = vmul.f32 %v2133, %v2817
        %v3180 = vmul.f32 %v2134, %v2821
        %v3181 = vmul.f32 %v2135, %v2825
        %v3182 = vmul.f32 %v2136, %v2813
        %v3183 = vmul.f32 %v2137, %v2817
        %v3184 = vmul.f32 %v2138, %v2821
        %v3185 = vmul.f32 %v2139, %v2825
        %v3186 = vmul.f32 %v2140, %v2813
        %v3187 = vmul.f32 %v2141, %v2817
        %v3188 = vmul.f32 %v2142, %v2821
        %v3189 = vmul.f32 %v2143, %v2825
        %v3190 = vmul.f32 %v2144, %v2813
        %v3191 = vmul.f32 %v2145, %v2817
        %v3192 = vmul.f32 %v2146, %v2821
        %v3193 = vmul.f32 %v2147, %v2825
        %v3194 = vmul.f32 %v2148, %v2813
        %v3195 = vmul.f32 %v2149, %v2817
        %v3196 = vmul.f32 %v2150, %v2821
        %v3197 = vmul.f32 %v2151, %v2825
        %v3198 = vmul.f32 %v2152, %v2813
        %v3199 = vmul.f32 %v2153, %v2817
        %v3200 = vmul.f32 %v2154, %v2821
        %v3201 = vmul.f32 %v2155, %v2825
        %v3202 = vmul.f32 %v2156, %v2813
        %v3203 = vmul.f32 %v2157, %v2817
        %v3204 = vmul.f32 %v2158, %v2821
        %v3205 = vmul.f32 %v2159, %v2825
        %v3206 = vmul.f32 %v2160, %v2813
        %v3207 = vmul.f32 %v2161, %v2817
        %v3208 = vmul.f32 %v2162, %v2821
        %v3209 = vmul.f32 %v2163, %v2825
        %v3210 = vmul.f32 %v2164, %v2813
        %v3211 = vmul.f32 %v2165, %v2817
        %v3212 = vmul.f32 %v2166, %v2821
        %v3213 = vmul.f32 %v2167, %v2825
        %v3214 = vmul.f32 %v2168, %v2813
        %v3215 = vmul.f32 %v2169, %v2817
        %v3216 = vmul.f32 %v2170, %v2821
        %v3217 = vmul.f32 %v2171, %v2825
        %v3218 = vmul.f32 %v2172, %v2813
        %v3219 = vmul.f32 %v2173, %v2817
        %v3220 = vmul.f32 %v2174, %v2821
        %v3221 = vmul.f32 %v2175, %v2825
        %v3222 = vmul.f32 %v2176, %v2813
        %v3223 = vmul.f32 %v2177, %v2817
        %v3224 = vmul.f32 %v2178, %v2821
        %v3225 = vmul.f32 %v2179, %v2825
        %v3226 = vmul.f32 %v2180, %v2813
        %v3227 = vmul.f32 %v2181, %v2817
        %v3228 = vmul.f32 %v2182, %v2821
        %v3229 = vmul.f32 %v2183, %v2825
        %v3230 = vmul.f32 %v2184, %v2813
        %v3231 = vmul.f32 %v2185, %v2817
        %v3232 = vmul.f32 %v2186, %v2821
        %v3233 = vmul.f32 %v2187, %v2825
        %v3234 = vmul.f32 %v2188, %v2813
        %v3235 = vmul.f32 %v2189, %v2817
        %v3236 = vmul.f32 %v2190, %v2821
        %v3237 = vmul.f32 %v2191, %v2825
        %v3238 = vmul.f32 %v2192, %v2813
        %v3239 = vmul.f32 %v2193, %v2817
        %v3240 = vmul.f32 %v2194, %v2821
        %v3241 = vmul.f32 %v2195, %v2825
        %v3242 = vmul.f32 %v2196, %v2813
        %v3243 = vmul.f32 %v2197, %v2817
        %v3244 = vmul.f32 %v2198, %v2821
        %v3245 = vmul.f32 %v2199, %v2825
        %v3246 = vmul.f32 %v2200, %v2813
        %v3247 = vmul.f32 %v2201, %v2817
        %v3248 = vmul.f32 %v2202, %v2821
        %v3249 = vmul.f32 %v2203, %v2825
        %v3250 = vmul.f32 %v2204, %v2813
        %v3251 = vmul.f32 %v2205, %v2817
        %v3252 = vmul.f32 %v2206, %v2821
        %v3253 = vmul.f32 %v2207, %v2825
        %v3254 = vmul.f32 %v2208, %v2813
        %v3255 = vmul.f32 %v2209, %v2817
        %v3256 = vmul.f32 %v2210, %v2821
        %v3257 = vmul.f32 %v2211, %v2825
        %v3258 = vmul.f32 %v2212, %v2813
        %v3259 = vmul.f32 %v2213, %v2817
        %v3260 = vmul.f32 %v2214, %v2821
        %v3261 = vmul.f32 %v2215, %v2825
        %v3262 = vmul.f32 %v2216, %v2813
        %v3263 = vmul.f32 %v2217, %v2817
        %v3264 = vmul.f32 %v2218, %v2821
        %v3265 = vmul.f32 %v2219, %v2825
        %v3266 = vmul.f32 %v2220, %v2813
        %v3267 = vmul.f32 %v2221, %v2817
        %v3268 = vmul.f32 %v2222, %v2821
        %v3269 = vmul.f32 %v2223, %v2825
        %v3270 = vmul.f32 %v2224, %v2813
        %v3271 = vmul.f32 %v2225, %v2817
        %v3272 = vmul.f32 %v2226, %v2821
        %v3273 = vmul.f32 %v2227, %v2825
        %v3274 = vmul.f32 %v2228, %v2813
        %v3275 = vmul.f32 %v2229, %v2817
        %v3276 = vmul.f32 %v2230, %v2821
        %v3277 = vmul.f32 %v2231, %v2825
        %v3278 = vmul.f32 %v2232, %v2813
        %v3279 = vmul.f32 %v2233, %v2817
        %v3280 = vmul.f32 %v2234, %v2821
        %v3281 = vmul.f32 %v2235, %v2825
        %v3282 = vmul.f32 %v2236, %v2813
        %v3283 = vmul.f32 %v2237, %v2817
        %v3284 = vmul.f32 %v2238, %v2821
        %v3285 = vmul.f32 %v2239, %v2825
        %v3286 = vmul.f32 %v2240, %v2813
        %v3287 = vmul.f32 %v2241, %v2817
        %v3288 = vmul.f32 %v2242, %v2821
        %v3289 = vmul.f32 %v2243, %v2825
        %v3290 = vmul.f32 %v2244, %v2813
        %v3291 = vmul.f32 %v2245, %v2817
        %v3292 = vmul.f32 %v2246, %v2821
        %v3293 = vmul.f32 %v2247, %v2825
        %v3294 = vmul.f32 %v2248, %v2813
        %v3295 = vmul.f32 %v2249, %v2817
        %v3296 = vmul.f32 %v2250, %v2821
        %v3297 = vmul.f32 %v2251, %v2825
        %v3298 = vmul.f32 %v2252, %v2813
        %v3299 = vmul.f32 %v2253, %v2817
        %v3300 = vmul.f32 %v2254, %v2821
        %v3301 = vmul.f32 %v2255, %v2825
        %v3302 = vmul.f32 %v2256, %v2813
        %v3303 = vmul.f32 %v2257, %v2817
        %v3304 = vmul.f32 %v2258, %v2821
        %v3305 = vmul.f32 %v2259, %v2825
        %v3306 = vmul.f32 %v2260, %v2813
        %v3307 = vmul.f32 %v2261, %v2817
        %v3308 = vmul.f32 %v2262, %v2821
        %v3309 = vmul.f32 %v2263, %v2825
        %v3310 = vmul.f32 %v2264, %v2813
        %v3311 = vmul.f32 %v2265, %v2817
        %v3312 = vmul.f32 %v2266, %v2821
        %v3313 = vmul.f32 %v2267, %v2825
        %v3314 = vmul.f32 %v2268, %v2813
        %v3315 = vmul.f32 %v2269, %v2817
        %v3316 = vmul.f32 %v2270, %v2821
        %v3317 = vmul.f32 %v2271, %v2825
        %v3318 = vmul.f32 %v2272, %v2813
        %v3319 = vmul.f32 %v2273, %v2817
        %v3320 = vmul.f32 %v2274, %v2821
        %v3321 = vmul.f32 %v2275, %v2825
        %v3322 = vmul.f32 %v2276, %v2813
        %v3323 = vmul.f32 %v2277, %v2817
        %v3324 = vmul.f32 %v2278, %v2821
        %v3325 = vmul.f32 %v2279, %v2825
        %v3326 = vmul.f32 %v2280, %v2813
        %v3327 = vmul.f32 %v2281, %v2817
        %v3328 = vmul.f32 %v2282, %v2821
        %v3329 = vmul.f32 %v2283, %v2825
        %v3330 = vmul.f32 %v2284, %v2813
        %v3331 = vmul.f32 %v2285, %v2817
        %v3332 = vmul.f32 %v2286, %v2821
        %v3333 = vmul.f32 %v2287, %v2825
        %v3334 = vmul.f32 %v2288, %v2813
        %v3335 = vmul.f32 %v2289, %v2817
        %v3336 = vmul.f32 %v2290, %v2821
        %v3337 = vmul.f32 %v2291, %v2825
        %v3338 = vmul.f32 %v2292, %v2813
        %v3339 = vmul.f32 %v2293, %v2817
        %v3340 = vmul.f32 %v2294, %v2821
        %v3341 = vmul.f32 %v2295, %v2825
        %v3342 = vmul.f32 %v2296, %v2813
        %v3343 = vmul.f32 %v2297, %v2817
        %v3344 = vmul.f32 %v2298, %v2821
        %v3345 = vmul.f32 %v2299, %v2825
        %v3346 = vmul.f32 %v2300, %v2813
        %v3347 = vmul.f32 %v2301, %v2817
        %v3348 = vmul.f32 %v2302, %v2821
        %v3349 = vmul.f32 %v2303, %v2825
        %v3350 = vmul.f32 %v2304, %v2813
        %v3351 = vmul.f32 %v2305, %v2817
        %v3352 = vmul.f32 %v2306, %v2821
        %v3353 = vmul.f32 %v2307, %v2825
        %v3354 = vmul.f32 %v2308, %v2813
        %v3355 = vmul.f32 %v2309, %v2817
        %v3356 = vmul.f32 %v2310, %v2821
        %v3357 = vmul.f32 %v2311, %v2825
        %v3358 = vmul.f32 %v2312, %v2813
        %v3359 = vmul.f32 %v2313, %v2817
        %v3360 = vmul.f32 %v2314, %v2821
        %v3361 = vmul.f32 %v2315, %v2825
        %v3362 = vmul.f32 %v2316, %v2813
        %v3363 = vmul.f32 %v2317, %v2817
        %v3364 = vmul.f32 %v2318, %v2821
        %v3365 = vmul.f32 %v2319, %v2825
        %v3366 = vmul.f32 %v2320, %v2813
        %v3367 = vmul.f32 %v2321, %v2817
        %v3368 = vmul.f32 %v2322, %v2821
        %v3369 = vmul.f32 %v2323, %v2825
        %v3370 = vmul.f32 %v2324, %v2813
        %v3371 = vmul.f32 %v2325, %v2817
        %v3372 = vmul.f32 %v2326, %v2821
        %v3373 = vmul.f32 %v2327, %v2825
        %v3374 = vmul.f32 %v2328, %v2813
        %v3375 = vmul.f32 %v2329, %v2817
        %v3376 = vmul.f32 %v2330, %v2821
        %v3377 = vmul.f32 %v2331, %v2825
        %v3378 = vmul.f32 %v2332, %v2813
        %v3379 = vmul.f32 %v2333, %v2817
        %v3380 = vmul.f32 %v2334, %v2821
        %v3381 = vmul.f32 %v2335, %v2825
        %v3382 = vmul.f32 %v2336, %v2813
        %v3383 = vmul.f32 %v2337, %v2817
        %v3384 = vmul.f32 %v2338, %v2821
        %v3385 = vmul.f32 %v2339, %v2825
        %v3386 = vmul.f32 %v2340, %v2813
        %v3387 = vmul.f32 %v2341, %v2817
        %v3388 = vmul.f32 %v2342, %v2821
        %v3389 = vmul.f32 %v2343, %v2825
        %v3390 = vmul.f32 %v2344, %v2813
        %v3391 = vmul.f32 %v2345, %v2817
        %v3392 = vmul.f32 %v2346, %v2821
        %v3393 = vmul.f32 %v2347, %v2825
        %v3394 = vmul.f32 %v2348, %v2813
        %v3395 = vmul.f32 %v2349, %v2817
        %v3396 = vmul.f32 %v2350, %v2821
        %v3397 = vmul.f32 %v2351, %v2825
        %v3398 = vmul.f32 %v2352, %v2813
        %v3399 = vmul.f32 %v2353, %v2817
        %v3400 = vmul.f32 %v2354, %v2821
        %v3401 = vmul.f32 %v2355, %v2825
        %v3402 = vmul.f32 %v2356, %v2813
        %v3403 = vmul.f32 %v2357, %v2817
        %v3404 = vmul.f32 %v2358, %v2821
        %v3405 = vmul.f32 %v2359, %v2825
        %v3406 = vmul.f32 %v2360, %v2813
        %v3407 = vmul.f32 %v2361, %v2817
        %v3408 = vmul.f32 %v2362, %v2821
        %v3409 = vmul.f32 %v2363, %v2825
        %v3410 = vmul.f32 %v2364, %v2813
        %v3411 = vmul.f32 %v2365, %v2817
        %v3412 = vmul.f32 %v2366, %v2821
        %v3413 = vmul.f32 %v2367, %v2825
        %v3414 = vmul.f32 %v2368, %v2813
        %v3415 = vmul.f32 %v2369, %v2817
        %v3416 = vmul.f32 %v2370, %v2821
        %v3417 = vmul.f32 %v2371, %v2825
        %v3418 = vmul.f32 %v2372, %v2813
        %v3419 = vmul.f32 %v2373, %v2817
        %v3420 = vmul.f32 %v2374, %v2821
        %v3421 = vmul.f32 %v2375, %v2825
        %v3422 = vmul.f32 %v2376, %v2813
        %v3423 = vmul.f32 %v2377, %v2817
        %v3424 = vmul.f32 %v2378, %v2821
        %v3425 = vmul.f32 %v2379, %v2825
        %v3426 = vmul.f32 %v2380, %v2813
        %v3427 = vmul.f32 %v2381, %v2817
        %v3428 = vmul.f32 %v2382, %v2821
        %v3429 = vmul.f32 %v2383, %v2825
        %v3430 = vmul.f32 %v2384, %v2813
        %v3431 = vmul.f32 %v2385, %v2817
        %v3432 = vmul.f32 %v2386, %v2821
        %v3433 = vmul.f32 %v2387, %v2825
        %v3434 = vmul.f32 %v2388, %v2813
        %v3435 = vmul.f32 %v2389, %v2817
        %v3436 = vmul.f32 %v2390, %v2821
        %v3437 = vmul.f32 %v2391, %v2825
        %v3438 = vmul.f32 %v2392, %v2813
        %v3439 = vmul.f32 %v2393, %v2817
        %v3440 = vmul.f32 %v2394, %v2821
        %v3441 = vmul.f32 %v2395, %v2825
        %v3442 = vmul.f32 %v2396, %v2813
        %v3443 = vmul.f32 %v2397, %v2817
        %v3444 = vmul.f32 %v2398, %v2821
        %v3445 = vmul.f32 %v2399, %v2825
        %v3446 = vmul.f32 %v2400, %v2813
        %v3447 = vmul.f32 %v2401, %v2817
        %v3448 = vmul.f32 %v2402, %v2821
        %v3449 = vmul.f32 %v2403, %v2825
        %v3450 = vmul.f32 %v2404, %v2813
        %v3451 = vmul.f32 %v2405, %v2817
        %v3452 = vmul.f32 %v2406, %v2821
        %v3453 = vmul.f32 %v2407, %v2825
        %v3454 = vmul.f32 %v2408, %v2813
        %v3455 = vmul.f32 %v2409, %v2817
        %v3456 = vmul.f32 %v2410, %v2821
        %v3457 = vmul.f32 %v2411, %v2825
        %v3458 = vmul.f32 %v2412, %v2813
        %v3459 = vmul.f32 %v2413, %v2817
        %v3460 = vmul.f32 %v2414, %v2821
        %v3461 = vmul.f32 %v2415, %v2825
        %v3462 = vmul.f32 %v2416, %v2813
        %v3463 = vmul.f32 %v2417, %v2817
        %v3464 = vmul.f32 %v2418, %v2821
        %v3465 = vmul.f32 %v2419, %v2825
        %v3466 = vmul.f32 %v2420, %v2813
        %v3467 = vmul.f32 %v2421, %v2817
        %v3468 = vmul.f32 %v2422, %v2821
        %v3469 = vmul.f32 %v2423, %v2825
        %v3470 = vmul.f32 %v2424, %v2813
        %v3471 = vmul.f32 %v2425, %v2817
        %v3472 = vmul.f32 %v2426, %v2821
        %v3473 = vmul.f32 %v2427, %v2825
        %v3474 = vmul.f32 %v2428, %v2813
        %v3475 = vmul.f32 %v2429, %v2817
        %v3476 = vmul.f32 %v2430, %v2821
        %v3477 = vmul.f32 %v2431, %v2825
        %v3478 = vmul.f32 %v2432, %v2813
        %v3479 = vmul.f32 %v2433, %v2817
        %v3480 = vmul.f32 %v2434, %v2821
        %v3481 = vmul.f32 %v2435, %v2825
        %v3482 = vmul.f32 %v2436, %v2813
        %v3483 = vmul.f32 %v2437, %v2817
        %v3484 = vmul.f32 %v2438, %v2821
        %v3485 = vmul.f32 %v2439, %v2825
        %v3486 = vmul.f32 %v2440, %v2813
        %v3487 = vmul.f32 %v2441, %v2817
        %v3488 = vmul.f32 %v2442, %v2821
        %v3489 = vmul.f32 %v2443, %v2825
        %v3490 = vmul.f32 %v2444, %v2813
        %v3491 = vmul.f32 %v2445, %v2817
        %v3492 = vmul.f32 %v2446, %v2821
        %v3493 = vmul.f32 %v2447, %v2825
        %v3494 = vmul.f32 %v2448, %v2813
        %v3495 = vmul.f32 %v2449, %v2817
        %v3496 = vmul.f32 %v2450, %v2821
        %v3497 = vmul.f32 %v2451, %v2825
        %v3498 = vmul.f32 %v2452, %v2813
        %v3499 = vmul.f32 %v2453, %v2817
        %v3500 = vmul.f32 %v2454, %v2821
        %v3501 = vmul.f32 %v2455, %v2825
        %v3502 = vmul.f32 %v2456, %v2813
        %v3503 = vmul.f32 %v2457, %v2817
        %v3504 = vmul.f32 %v2458, %v2821
        %v3505 = vmul.f32 %v2459, %v2825
        %v3506 = vmul.f32 %v2460, %v2813
        %v3507 = vmul.f32 %v2461, %v2817
        %v3508 = vmul.f32 %v2462, %v2821
        %v3509 = vmul.f32 %v2463, %v2825
        %v3510 = vmul.f32 %v2464, %v2813
        %v3511 = vmul.f32 %v2465, %v2817
        %v3512 = vmul.f32 %v2466, %v2821
        %v3513 = vmul.f32 %v2467, %v2825
        %v3514 = vmul.f32 %v2468, %v2813
        %v3515 = vmul.f32 %v2469, %v2817
        %v3516 = vmul.f32 %v2470, %v2821
        %v3517 = vmul.f32 %v2471, %v2825
        %v3518 = vmul.f32 %v2472, %v2813
        %v3519 = vmul.f32 %v2473, %v2817
        %v3520 = vmul.f32 %v2474, %v2821
        %v3521 = vmul.f32 %v2475, %v2825
        %v3522 = vmul.f32 %v2476, %v2813
        %v3523 = vmul.f32 %v2477, %v2817
        %v3524 = vmul.f32 %v2478, %v2821
        %v3525 = vmul.f32 %v2479, %v2825
        %v3526 = vmul.f32 %v2480, %v2813
        %v3527 = vmul.f32 %v2481, %v2817
        %v3528 = vmul.f32 %v2482, %v2821
        %v3529 = vmul.f32 %v2483, %v2825
        %v3530 = vmul.f32 %v2484, %v2813
        %v3531 = vmul.f32 %v2485, %v2817
        %v3532 = vmul.f32 %v2486, %v2821
        %v3533 = vmul.f32 %v2487, %v2825
        %v3534 = vmul.f32 %v2488, %v2813
        %v3535 = vmul.f32 %v2489, %v2817
        %v3536 = vmul.f32 %v2490, %v2821
        %v3537 = vmul.f32 %v2491, %v2825
        %v3538 = vmul.f32 %v2492, %v2813
        %v3539 = vmul.f32 %v2493, %v2817
        %v3540 = vmul.f32 %v2494, %v2821
        %v3541 = vmul.f32 %v2495, %v2825
        %v3542 = vmul.f32 %v2496, %v2813
        %v3543 = vmul.f32 %v2497, %v2817
        %v3544 = vmul.f32 %v2498, %v2821
        %v3545 = vmul.f32 %v2499, %v2825
        %v3546 = vmul.f32 %v2500, %v2813
        %v3547 = vmul.f32 %v2501, %v2817
        %v3548 = vmul.f32 %v2502, %v2821
        %v3549 = vmul.f32 %v2503, %v2825
        %v3550 = vmul.f32 %v2504, %v2813
        %v3551 = vmul.f32 %v2505, %v2817
        %v3552 = vmul.f32 %v2506, %v2821
        %v3553 = vmul.f32 %v2507, %v2825
        %v3554 = vmul.f32 %v2508, %v2813
        %v3555 = vmul.f32 %v2509, %v2817
        %v3556 = vmul.f32 %v2510, %v2821
        %v3557 = vmul.f32 %v2511, %v2825
        %v3558 = vmul.f32 %v2512, %v2813
        %v3559 = vmul.f32 %v2513, %v2817
        %v3560 = vmul.f32 %v2514, %v2821
        %v3561 = vmul.f32 %v2515, %v2825
        %v3562 = vmul.f32 %v2516, %v2813
        %v3563 = vmul.f32 %v2517, %v2817
        %v3564 = vmul.f32 %v2518, %v2821
        %v3565 = vmul.f32 %v2519, %v2825
        %v3566 = vmul.f32 %v2520, %v2813
        %v3567 = vmul.f32 %v2521, %v2817
        %v3568 = vmul.f32 %v2522, %v2821
        %v3569 = vmul.f32 %v2523, %v2825
        %v3570 = vmul.f32 %v2524, %v2813
        %v3571 = vmul.f32 %v2525, %v2817
        %v3572 = vmul.f32 %v2526, %v2821
        %v3573 = vmul.f32 %v2527, %v2825
        %v3574 = vmul.f32 %v2528, %v2813
        %v3575 = vmul.f32 %v2529, %v2817
        %v3576 = vmul.f32 %v2530, %v2821
        %v3577 = vmul.f32 %v2531, %v2825
        %v3578 = vmul.f32 %v2532, %v2813
        %v3579 = vmul.f32 %v2533, %v2817
        %v3580 = vmul.f32 %v2534, %v2821
        %v3581 = vmul.f32 %v2535, %v2825
        %v3582 = vmul.f32 %v2536, %v2813
        %v3583 = vmul.f32 %v2537, %v2817
        %v3584 = vmul.f32 %v2538, %v2821
        %v3585 = vmul.f32 %v2539, %v2825
        %v3586 = vmul.f32 %v2540, %v2813
        %v3587 = vmul.f32 %v2541, %v2817
        %v3588 = vmul.f32 %v2542, %v2821
        %v3589 = vmul.f32 %v2543, %v2825
        %v3590 = vmul.f32 %v2544, %v2813
        %v3591 = vmul.f32 %v2545, %v2817
        %v3592 = vmul.f32 %v2546, %v2821
        %v3593 = vmul.f32 %v2547, %v2825
        %v3594 = vmul.f32 %v2548, %v2813
        %v3595 = vmul.f32 %v2549, %v2817
        %v3596 = vmul.f32 %v2550, %v2821
        %v3597 = vmul.f32 %v2551, %v2825
        %v3598 = vmul.f32 %v2552, %v2813
        %v3599 = vmul.f32 %v2553, %v2817
        %v3600 = vmul.f32 %v2554, %v2821
        %v3601 = vmul.f32 %v2555, %v2825
        %v3602 = vmul.f32 %v2556, %v2813
        %v3603 = vmul.f32 %v2557, %v2817
        %v3604 = vmul.f32 %v2558, %v2821
        %v3605 = vmul.f32 %v2559, %v2825
        %v3606 = vmul.f32 %v2560, %v2813
        %v3607 = vmul.f32 %v2561, %v2817
        %v3608 = vmul.f32 %v2562, %v2821
        %v3609 = vmul.f32 %v2563, %v2825
        %v3610 = vmul.f32 %v2564, %v2813
        %v3611 = vmul.f32 %v2565, %v2817
        %v3612 = vmul.f32 %v2566, %v2821
        %v3613 = vmul.f32 %v2567, %v2825
        %v3614 = vmul.f32 %v2568, %v2813
        %v3615 = vmul.f32 %v2569, %v2817
        %v3616 = vmul.f32 %v2570, %v2821
        %v3617 = vmul.f32 %v2571, %v2825
        %v3618 = vmul.f32 %v2572, %v2813
        %v3619 = vmul.f32 %v2573, %v2817
        %v3620 = vmul.f32 %v2574, %v2821
        %v3621 = vmul.f32 %v2575, %v2825
        %v3622 = vmul.f32 %v2576, %v2813
        %v3623 = vmul.f32 %v2577, %v2817
        %v3624 = vmul.f32 %v2578, %v2821
        %v3625 = vmul.f32 %v2579, %v2825
        %v3626 = vmul.f32 %v2580, %v2813
        %v3627 = vmul.f32 %v2581, %v2817
        %v3628 = vmul.f32 %v2582, %v2821
        %v3629 = vmul.f32 %v2583, %v2825
        %v3630 = vmul.f32 %v2584, %v2813
        %v3631 = vmul.f32 %v2585, %v2817
        %v3632 = vmul.f32 %v2586, %v2821
        %v3633 = vmul.f32 %v2587, %v2825
        %v3634 = vmul.f32 %v2588, %v2813
        %v3635 = vmul.f32 %v2589, %v2817
        %v3636 = vmul.f32 %v2590, %v2821
        %v3637 = vmul.f32 %v2591, %v2825
        %v3638 = vmul.f32 %v2592, %v2813
        %v3639 = vmul.f32 %v2593, %v2817
        %v3640 = vmul.f32 %v2594, %v2821
        %v3641 = vmul.f32 %v2595, %v2825
        %v3642 = vmul.f32 %v2596, %v2813
        %v3643 = vmul.f32 %v2597, %v2817
        %v3644 = vmul.f32 %v2598, %v2821
        %v3645 = vmul.f32 %v2599, %v2825
        %v3646 = vmul.f32 %v2600, %v2813
        %v3647 = vmul.f32 %v2601, %v2817
        %v3648 = vmul.f32 %v2602, %v2821
        %v3649 = vmul.f32 %v2603, %v2825
        %v3650 = vmul.f32 %v2604, %v2813
        %v3651 = vmul.f32 %v2605, %v2817
        %v3652 = vmul.f32 %v2606, %v2821
        %v3653 = vmul.f32 %v2607, %v2825
        %v3654 = vmul.f32 %v2608, %v2813
        %v3655 = vmul.f32 %v2609, %v2817
        %v3656 = vmul.f32 %v2610, %v2821
        %v3657 = vmul.f32 %v2611, %v2825
        %v3658 = vmul.f32 %v2612, %v2813
        %v3659 = vmul.f32 %v2613, %v2817
        %v3660 = vmul.f32 %v2614, %v2821
        %v3661 = vmul.f32 %v2615, %v2825
        %v3662 = vmul.f32 %v2616, %v2813
        %v3663 = vmul.f32 %v2617, %v2817
        %v3664 = vmul.f32 %v2618, %v2821
        %v3665 = vmul.f32 %v2619, %v2825
        %v3666 = vmul.f32 %v2620, %v2813
        %v3667 = vmul.f32 %v2621, %v2817
        %v3668 = vmul.f32 %v2622, %v2821
        %v3669 = vmul.f32 %v2623, %v2825
        %v3670 = vmul.f32 %v2624, %v2813
        %v3671 = vmul.f32 %v2625, %v2817
        %v3672 = vmul.f32 %v2626, %v2821
        %v3673 = vmul.f32 %v2627, %v2825
        %v3674 = vmul.f32 %v2628, %v2813
        %v3675 = vmul.f32 %v2629, %v2817
        %v3676 = vmul.f32 %v2630, %v2821
        %v3677 = vmul.f32 %v2631, %v2825
        %v3678 = vmul.f32 %v2632, %v2813
        %v3679 = vmul.f32 %v2633, %v2817
        %v3680 = vmul.f32 %v2634, %v2821
        %v3681 = vmul.f32 %v2635, %v2825
        %v3682 = vmul.f32 %v2636, %v2813
        %v3683 = vmul.f32 %v2637, %v2817
        %v3684 = vmul.f32 %v2638, %v2821
        %v3685 = vmul.f32 %v2639, %v2825
        %v3686 = vmul.f32 %v2640, %v2813
        %v3687 = vmul.f32 %v2641, %v2817
        %v3688 = vmul.f32 %v2642, %v2821
        %v3689 = vmul.f32 %v2643, %v2825
        %v3690 = vmul.f32 %v2644, %v2813
        %v3691 = vmul.f32 %v2645, %v2817
        %v3692 = vmul.f32 %v2646, %v2821
        %v3693 = vmul.f32 %v2647, %v2825
        %v3694 = vmul.f32 %v2648, %v2813
        %v3695 = vmul.f32 %v2649, %v2817
        %v3696 = vmul.f32 %v2650, %v2821
        %v3697 = vmul.f32 %v2651, %v2825
        %v3698 = vmul.f32 %v2652, %v2813
        %v3699 = vmul.f32 %v2653, %v2817
        %v3700 = vmul.f32 %v2654, %v2821
        %v3701 = vmul.f32 %v2655, %v2825
        %v3702 = vmul.f32 %v2656, %v2813
        %v3703 = vmul.f32 %v2657, %v2817
        %v3704 = vmul.f32 %v2658, %v2821
        %v3705 = vmul.f32 %v2659, %v2825
        %v3706 = vmul.f32 %v2660, %v2813
        %v3707 = vmul.f32 %v2661, %v2817
        %v3708 = vmul.f32 %v2662, %v2821
        %v3709 = vmul.f32 %v2663, %v2825
        %v3710 = vmul.f32 %v2664, %v2813
        %v3711 = vmul.f32 %v2665, %v2817
        %v3712 = vmul.f32 %v2666, %v2821
        %v3713 = vmul.f32 %v2667, %v2825
        %v3714 = vmul.f32 %v2668, %v2813
        %v3715 = vmul.f32 %v2669, %v2817
        %v3716 = vmul.f32 %v2670, %v2821
        %v3717 = vmul.f32 %v2671, %v2825
        %v3718 = vmul.f32 %v2672, %v2813
        %v3719 = vmul.f32 %v2673, %v2817
        %v3720 = vmul.f32 %v2674, %v2821
        %v3721 = vmul.f32 %v2675, %v2825
        %v3722 = vmul.f32 %v2676, %v2813
        %v3723 = vmul.f32 %v2677, %v2817
        %v3724 = vmul.f32 %v2678, %v2821
        %v3725 = vmul.f32 %v2679, %v2825
        %v3726 = vmul.f32 %v2680, %v2813
        %v3727 = vmul.f32 %v2681, %v2817
        %v3728 = vmul.f32 %v2682, %v2821
        %v3729 = vmul.f32 %v2683, %v2825
        %v3730 = vmul.f32 %v2684, %v2813
        %v3731 = vmul.f32 %v2685, %v2817
        %v3732 = vmul.f32 %v2686, %v2821
        %v3733 = vmul.f32 %v2687, %v2825
        %v3734 = vmul.f32 %v2688, %v2813
        %v3735 = vmul.f32 %v2689, %v2817
        %v3736 = vmul.f32 %v2690, %v2821
        %v3737 = vmul.f32 %v2691, %v2825
        %v3738 = vmul.f32 %v2692, %v2813
        %v3739 = vmul.f32 %v2693, %v2817
        %v3740 = vmul.f32 %v2694, %v2821
        %v3741 = vmul.f32 %v2695, %v2825
        %v3742 = vmul.f32 %v2696, %v2813
        %v3743 = vmul.f32 %v2697, %v2817
        %v3744 = vmul.f32 %v2698, %v2821
        %v3745 = vmul.f32 %v2699, %v2825
        %v3746 = vmul.f32 %v2700, %v2813
        %v3747 = vmul.f32 %v2701, %v2817
        %v3748 = vmul.f32 %v2702, %v2821
        %v3749 = vmul.f32 %v2703, %v2825
        %v3750 = vmul.f32 %v2704, %v2813
        %v3751 = vmul.f32 %v2705, %v2817
        %v3752 = vmul.f32 %v2706, %v2821
        %v3753 = vmul.f32 %v2707, %v2825
        %v3754 = vmul.f32 %v2708, %v2813
        %v3755 = vmul.f32 %v2709, %v2817
        %v3756 = vmul.f32 %v2710, %v2821
        %v3757 = vmul.f32 %v2711, %v2825
        %v3758 = vmul.f32 %v2712, %v2813
        %v3759 = vmul.f32 %v2713, %v2817
        %v3760 = vmul.f32 %v2714, %v2821
        %v3761 = vmul.f32 %v2715, %v2825
        %v3762 = vmul.f32 %v2716, %v2813
        %v3763 = vmul.f32 %v2717, %v2817
        %v3764 = vmul.f32 %v2718, %v2821
        %v3765 = vmul.f32 %v2719, %v2825
        %v3766 = vmul.f32 %v2720, %v2813
        %v3767 = vmul.f32 %v2721, %v2817
        %v3768 = vmul.f32 %v2722, %v2821
        %v3769 = vmul.f32 %v2723, %v2825
        %v3770 = vmul.f32 %v2724, %v2813
        %v3771 = vmul.f32 %v2725, %v2817
        %v3772 = vmul.f32 %v2726, %v2821
        %v3773 = vmul.f32 %v2727, %v2825
        %v3774 = vmul.f32 %v2728, %v2813
        %v3775 = vmul.f32 %v2729, %v2817
        %v3776 = vmul.f32 %v2730, %v2821
        %v3777 = vmul.f32 %v2731, %v2825
        %v3778 = vmul.f32 %v2732, %v2813
        %v3779 = vmul.f32 %v2733, %v2817
        %v3780 = vmul.f32 %v2734, %v2821
        %v3781 = vmul.f32 %v2735, %v2825
        %v3782 = vmul.f32 %v2736, %v2813
        %v3783 = vmul.f32 %v2737, %v2817
        %v3784 = vmul.f32 %v2738, %v2821
        %v3785 = vmul.f32 %v2739, %v2825
        %v3786 = vmul.f32 %v2740, %v2813
        %v3787 = vmul.f32 %v2741, %v2817
        %v3788 = vmul.f32 %v2742, %v2821
        %v3789 = vmul.f32 %v2743, %v2825
        %v3790 = vmul.f32 %v2744, %v2813
        %v3791 = vmul.f32 %v2745, %v2817
        %v3792 = vmul.f32 %v2746, %v2821
        %v3793 = vmul.f32 %v2747, %v2825
        %v3794 = vmul.f32 %v2748, %v2813
        %v3795 = vmul.f32 %v2749, %v2817
        %v3796 = vmul.f32 %v2750, %v2821
        %v3797 = vmul.f32 %v2751, %v2825
        %v3798 = vmul.f32 %v2752, %v2813
        %v3799 = vmul.f32 %v2753, %v2817
        %v3800 = vmul.f32 %v2754, %v2821
        %v3801 = vmul.f32 %v2755, %v2825
        %v3802 = vmul.f32 %v2756, %v2813
        %v3803 = vmul.f32 %v2757, %v2817
        %v3804 = vmul.f32 %v2758, %v2821
        %v3805 = vmul.f32 %v2759, %v2825
        %v3806 = vmul.f32 %v2760, %v2813
        %v3807 = vmul.f32 %v2761, %v2817
        %v3808 = vmul.f32 %v2762, %v2821
        %v3809 = vmul.f32 %v2763, %v2825
        %v3810 = vmul.f32 %v2764, %v2813
        %v3811 = vmul.f32 %v2765, %v2817
        %v3812 = vmul.f32 %v2766, %v2821
        %v3813 = vmul.f32 %v2767, %v2825
        %v3814 = vmul.f32 %v2768, %v2813
        %v3815 = vmul.f32 %v2769, %v2817
        %v3816 = vmul.f32 %v2770, %v2821
        %v3817 = vmul.f32 %v2771, %v2825
        %v3818 = vmul.f32 %v2772, %v2813
        %v3819 = vmul.f32 %v2773, %v2817
        %v3820 = vmul.f32 %v2774, %v2821
        %v3821 = vmul.f32 %v2775, %v2825
        %v3822 = vmul.f32 %v2776, %v2813
        %v3823 = vmul.f32 %v2777, %v2817
        %v3824 = vmul.f32 %v2778, %v2821
        %v3825 = vmul.f32 %v2779, %v2825
        %v3826 = vmul.f32 %v2780, %v2813
        %v3827 = vmul.f32 %v2781, %v2817
        %v3828 = vmul.f32 %v2782, %v2821
        %v3829 = vmul.f32 %v2783, %v2825
        %v3830 = vmul.f32 %v2784, %v2813
        %v3831 = vmul.f32 %v2785, %v2817
        %v3832 = vmul.f32 %v2786, %v2821
        %v3833 = vmul.f32 %v2787, %v2825
        %v3834 = vmul.f32 %v2788, %v2813
        %v3835 = vmul.f32 %v2789, %v2817
        %v3836 = vmul.f32 %v2790, %v2821
        %v3837 = vmul.f32 %v2791, %v2825
        %v3838 = vmul.f32 %v2792, %v2813
        %v3839 = vmul.f32 %v2793, %v2817
        %v3840 = vmul.f32 %v2794, %v2821
        %v3841 = vmul.f32 %v2795, %v2825
        %v3842 = vmul.f32 %v2796, %v2813
        %v3843 = vmul.f32 %v2797, %v2817
        %v3844 = vmul.f32 %v2798, %v2821
        %v3845 = vmul.f32 %v2799, %v2825
        %v3846 = vmul.f32 %v2800, %v2813
        %v3847 = vmul.f32 %v2801, %v2817
        %v3848 = vmul.f32 %v2802, %v2821
        %v3849 = vmul.f32 %v2803, %v2825
        %v3850 = vmul.f32 %v2804, %v2813
        %v3851 = vmul.f32 %v2805, %v2817
        %v3852 = vmul.f32 %v2806, %v2821
        %v3853 = vmul.f32 %v2807, %v2825
        %v3854 = vpack.c.bf16 %v2834, %v2830
        %v3855 = vpack.c.bf16 %v2835, %v2831
        %v3856 = vpack.c.bf16 %v2836, %v2832
        %v3857 = vpack.c.bf16 %v2837, %v2833
        %v3858 = vpack.c.bf16 %v2842, %v2838
        %v3859 = vpack.c.bf16 %v2843, %v2839
        %v3860 = vpack.c.bf16 %v2844, %v2840
        %v3861 = vpack.c.bf16 %v2845, %v2841
        %v3862 = vpack.c.bf16 %v2850, %v2846
        %v3863 = vpack.c.bf16 %v2851, %v2847
        %v3864 = vpack.c.bf16 %v2852, %v2848
        %v3865 = vpack.c.bf16 %v2853, %v2849
        %v3866 = vpack.c.bf16 %v2858, %v2854
        %v3867 = vpack.c.bf16 %v2859, %v2855
        %v3868 = vpack.c.bf16 %v2860, %v2856
        %v3869 = vpack.c.bf16 %v2861, %v2857
        %v3870 = vpack.c.bf16 %v2866, %v2862
        %v3871 = vpack.c.bf16 %v2867, %v2863
        %v3872 = vpack.c.bf16 %v2868, %v2864
        %v3873 = vpack.c.bf16 %v2869, %v2865
        %v3874 = vpack.c.bf16 %v2874, %v2870
        %v3875 = vpack.c.bf16 %v2875, %v2871
        %v3876 = vpack.c.bf16 %v2876, %v2872
        %v3877 = vpack.c.bf16 %v2877, %v2873
        %v3878 = vpack.c.bf16 %v2882, %v2878
        %v3879 = vpack.c.bf16 %v2883, %v2879
        %v3880 = vpack.c.bf16 %v2884, %v2880
        %v3881 = vpack.c.bf16 %v2885, %v2881
        %v3882 = vpack.c.bf16 %v2890, %v2886
        %v3883 = vpack.c.bf16 %v2891, %v2887
        %v3884 = vpack.c.bf16 %v2892, %v2888
        %v3885 = vpack.c.bf16 %v2893, %v2889
        %v3886 = vpack.c.bf16 %v2898, %v2894
        %v3887 = vpack.c.bf16 %v2899, %v2895
        %v3888 = vpack.c.bf16 %v2900, %v2896
        %v3889 = vpack.c.bf16 %v2901, %v2897
        %v3890 = vpack.c.bf16 %v2906, %v2902
        %v3891 = vpack.c.bf16 %v2907, %v2903
        %v3892 = vpack.c.bf16 %v2908, %v2904
        %v3893 = vpack.c.bf16 %v2909, %v2905
        %v3894 = vpack.c.bf16 %v2914, %v2910
        %v3895 = vpack.c.bf16 %v2915, %v2911
        %v3896 = vpack.c.bf16 %v2916, %v2912
        %v3897 = vpack.c.bf16 %v2917, %v2913
        %v3898 = vpack.c.bf16 %v2922, %v2918
        %v3899 = vpack.c.bf16 %v2923, %v2919
        %v3900 = vpack.c.bf16 %v2924, %v2920
        %v3901 = vpack.c.bf16 %v2925, %v2921
        %v3902 = vpack.c.bf16 %v2930, %v2926
        %v3903 = vpack.c.bf16 %v2931, %v2927
        %v3904 = vpack.c.bf16 %v2932, %v2928
        %v3905 = vpack.c.bf16 %v2933, %v2929
        %v3906 = vpack.c.bf16 %v2938, %v2934
        %v3907 = vpack.c.bf16 %v2939, %v2935
        %v3908 = vpack.c.bf16 %v2940, %v2936
        %v3909 = vpack.c.bf16 %v2941, %v2937
        %v3910 = vpack.c.bf16 %v2946, %v2942
        %v3911 = vpack.c.bf16 %v2947, %v2943
        %v3912 = vpack.c.bf16 %v2948, %v2944
        %v3913 = vpack.c.bf16 %v2949, %v2945
        %v3914 = vpack.c.bf16 %v2954, %v2950
        %v3915 = vpack.c.bf16 %v2955, %v2951
        %v3916 = vpack.c.bf16 %v2956, %v2952
        %v3917 = vpack.c.bf16 %v2957, %v2953
        %v3918 = vpack.c.bf16 %v2962, %v2958
        %v3919 = vpack.c.bf16 %v2963, %v2959
        %v3920 = vpack.c.bf16 %v2964, %v2960
        %v3921 = vpack.c.bf16 %v2965, %v2961
        %v3922 = vpack.c.bf16 %v2970, %v2966
        %v3923 = vpack.c.bf16 %v2971, %v2967
        %v3924 = vpack.c.bf16 %v2972, %v2968
        %v3925 = vpack.c.bf16 %v2973, %v2969
        %v3926 = vpack.c.bf16 %v2978, %v2974
        %v3927 = vpack.c.bf16 %v2979, %v2975
        %v3928 = vpack.c.bf16 %v2980, %v2976
        %v3929 = vpack.c.bf16 %v2981, %v2977
        %v3930 = vpack.c.bf16 %v2986, %v2982
        %v3931 = vpack.c.bf16 %v2987, %v2983
        %v3932 = vpack.c.bf16 %v2988, %v2984
        %v3933 = vpack.c.bf16 %v2989, %v2985
        %v3934 = vpack.c.bf16 %v2994, %v2990
        %v3935 = vpack.c.bf16 %v2995, %v2991
        %v3936 = vpack.c.bf16 %v2996, %v2992
        %v3937 = vpack.c.bf16 %v2997, %v2993
        %v3938 = vpack.c.bf16 %v3002, %v2998
        %v3939 = vpack.c.bf16 %v3003, %v2999
        %v3940 = vpack.c.bf16 %v3004, %v3000
        %v3941 = vpack.c.bf16 %v3005, %v3001
        %v3942 = vpack.c.bf16 %v3010, %v3006
        %v3943 = vpack.c.bf16 %v3011, %v3007
        %v3944 = vpack.c.bf16 %v3012, %v3008
        %v3945 = vpack.c.bf16 %v3013, %v3009
        %v3946 = vpack.c.bf16 %v3018, %v3014
        %v3947 = vpack.c.bf16 %v3019, %v3015
        %v3948 = vpack.c.bf16 %v3020, %v3016
        %v3949 = vpack.c.bf16 %v3021, %v3017
        %v3950 = vpack.c.bf16 %v3026, %v3022
        %v3951 = vpack.c.bf16 %v3027, %v3023
        %v3952 = vpack.c.bf16 %v3028, %v3024
        %v3953 = vpack.c.bf16 %v3029, %v3025
        %v3954 = vpack.c.bf16 %v3034, %v3030
        %v3955 = vpack.c.bf16 %v3035, %v3031
        %v3956 = vpack.c.bf16 %v3036, %v3032
        %v3957 = vpack.c.bf16 %v3037, %v3033
        %v3958 = vpack.c.bf16 %v3042, %v3038
        %v3959 = vpack.c.bf16 %v3043, %v3039
        %v3960 = vpack.c.bf16 %v3044, %v3040
        %v3961 = vpack.c.bf16 %v3045, %v3041
        %v3962 = vpack.c.bf16 %v3050, %v3046
        %v3963 = vpack.c.bf16 %v3051, %v3047
        %v3964 = vpack.c.bf16 %v3052, %v3048
        %v3965 = vpack.c.bf16 %v3053, %v3049
        %v3966 = vpack.c.bf16 %v3058, %v3054
        %v3967 = vpack.c.bf16 %v3059, %v3055
        %v3968 = vpack.c.bf16 %v3060, %v3056
        %v3969 = vpack.c.bf16 %v3061, %v3057
        %v3970 = vpack.c.bf16 %v3066, %v3062
        %v3971 = vpack.c.bf16 %v3067, %v3063
        %v3972 = vpack.c.bf16 %v3068, %v3064
        %v3973 = vpack.c.bf16 %v3069, %v3065
        %v3974 = vpack.c.bf16 %v3074, %v3070
        %v3975 = vpack.c.bf16 %v3075, %v3071
        %v3976 = vpack.c.bf16 %v3076, %v3072
        %v3977 = vpack.c.bf16 %v3077, %v3073
        %v3978 = vpack.c.bf16 %v3082, %v3078
        %v3979 = vpack.c.bf16 %v3083, %v3079
        %v3980 = vpack.c.bf16 %v3084, %v3080
        %v3981 = vpack.c.bf16 %v3085, %v3081
        %v3982 = vpack.c.bf16 %v3090, %v3086
        %v3983 = vpack.c.bf16 %v3091, %v3087
        %v3984 = vpack.c.bf16 %v3092, %v3088
        %v3985 = vpack.c.bf16 %v3093, %v3089
        %v3986 = vpack.c.bf16 %v3098, %v3094
        %v3987 = vpack.c.bf16 %v3099, %v3095
        %v3988 = vpack.c.bf16 %v3100, %v3096
        %v3989 = vpack.c.bf16 %v3101, %v3097
        %v3990 = vpack.c.bf16 %v3106, %v3102
        %v3991 = vpack.c.bf16 %v3107, %v3103
        %v3992 = vpack.c.bf16 %v3108, %v3104
        %v3993 = vpack.c.bf16 %v3109, %v3105
        %v3994 = vpack.c.bf16 %v3114, %v3110
        %v3995 = vpack.c.bf16 %v3115, %v3111
        %v3996 = vpack.c.bf16 %v3116, %v3112
        %v3997 = vpack.c.bf16 %v3117, %v3113
        %v3998 = vpack.c.bf16 %v3122, %v3118
        %v3999 = vpack.c.bf16 %v3123, %v3119
        %v4000 = vpack.c.bf16 %v3124, %v3120
        %v4001 = vpack.c.bf16 %v3125, %v3121
        %v4002 = vpack.c.bf16 %v3130, %v3126
        %v4003 = vpack.c.bf16 %v3131, %v3127
        %v4004 = vpack.c.bf16 %v3132, %v3128
        %v4005 = vpack.c.bf16 %v3133, %v3129
        %v4006 = vpack.c.bf16 %v3138, %v3134
        %v4007 = vpack.c.bf16 %v3139, %v3135
        %v4008 = vpack.c.bf16 %v3140, %v3136
        %v4009 = vpack.c.bf16 %v3141, %v3137
        %v4010 = vpack.c.bf16 %v3146, %v3142
        %v4011 = vpack.c.bf16 %v3147, %v3143
        %v4012 = vpack.c.bf16 %v3148, %v3144
        %v4013 = vpack.c.bf16 %v3149, %v3145
        %v4014 = vpack.c.bf16 %v3154, %v3150
        %v4015 = vpack.c.bf16 %v3155, %v3151
        %v4016 = vpack.c.bf16 %v3156, %v3152
        %v4017 = vpack.c.bf16 %v3157, %v3153
        %v4018 = vpack.c.bf16 %v3162, %v3158
        %v4019 = vpack.c.bf16 %v3163, %v3159
        %v4020 = vpack.c.bf16 %v3164, %v3160
        %v4021 = vpack.c.bf16 %v3165, %v3161
        %v4022 = vpack.c.bf16 %v3170, %v3166
        %v4023 = vpack.c.bf16 %v3171, %v3167
        %v4024 = vpack.c.bf16 %v3172, %v3168
        %v4025 = vpack.c.bf16 %v3173, %v3169
        %v4026 = vpack.c.bf16 %v3178, %v3174
        %v4027 = vpack.c.bf16 %v3179, %v3175
        %v4028 = vpack.c.bf16 %v3180, %v3176
        %v4029 = vpack.c.bf16 %v3181, %v3177
        %v4030 = vpack.c.bf16 %v3186, %v3182
        %v4031 = vpack.c.bf16 %v3187, %v3183
        %v4032 = vpack.c.bf16 %v3188, %v3184
        %v4033 = vpack.c.bf16 %v3189, %v3185
        %v4034 = vpack.c.bf16 %v3194, %v3190
        %v4035 = vpack.c.bf16 %v3195, %v3191
        %v4036 = vpack.c.bf16 %v3196, %v3192
        %v4037 = vpack.c.bf16 %v3197, %v3193
        %v4038 = vpack.c.bf16 %v3202, %v3198
        %v4039 = vpack.c.bf16 %v3203, %v3199
        %v4040 = vpack.c.bf16 %v3204, %v3200
        %v4041 = vpack.c.bf16 %v3205, %v3201
        %v4042 = vpack.c.bf16 %v3210, %v3206
        %v4043 = vpack.c.bf16 %v3211, %v3207
        %v4044 = vpack.c.bf16 %v3212, %v3208
        %v4045 = vpack.c.bf16 %v3213, %v3209
        %v4046 = vpack.c.bf16 %v3218, %v3214
        %v4047 = vpack.c.bf16 %v3219, %v3215
        %v4048 = vpack.c.bf16 %v3220, %v3216
        %v4049 = vpack.c.bf16 %v3221, %v3217
        %v4050 = vpack.c.bf16 %v3226, %v3222
        %v4051 = vpack.c.bf16 %v3227, %v3223
        %v4052 = vpack.c.bf16 %v3228, %v3224
        %v4053 = vpack.c.bf16 %v3229, %v3225
        %v4054 = vpack.c.bf16 %v3234, %v3230
        %v4055 = vpack.c.bf16 %v3235, %v3231
        %v4056 = vpack.c.bf16 %v3236, %v3232
        %v4057 = vpack.c.bf16 %v3237, %v3233
        %v4058 = vpack.c.bf16 %v3242, %v3238
        %v4059 = vpack.c.bf16 %v3243, %v3239
        %v4060 = vpack.c.bf16 %v3244, %v3240
        %v4061 = vpack.c.bf16 %v3245, %v3241
        %v4062 = vpack.c.bf16 %v3250, %v3246
        %v4063 = vpack.c.bf16 %v3251, %v3247
        %v4064 = vpack.c.bf16 %v3252, %v3248
        %v4065 = vpack.c.bf16 %v3253, %v3249
        %v4066 = vpack.c.bf16 %v3258, %v3254
        %v4067 = vpack.c.bf16 %v3259, %v3255
        %v4068 = vpack.c.bf16 %v3260, %v3256
        %v4069 = vpack.c.bf16 %v3261, %v3257
        %v4070 = vpack.c.bf16 %v3266, %v3262
        %v4071 = vpack.c.bf16 %v3267, %v3263
        %v4072 = vpack.c.bf16 %v3268, %v3264
        %v4073 = vpack.c.bf16 %v3269, %v3265
        %v4074 = vpack.c.bf16 %v3274, %v3270
        %v4075 = vpack.c.bf16 %v3275, %v3271
        %v4076 = vpack.c.bf16 %v3276, %v3272
        %v4077 = vpack.c.bf16 %v3277, %v3273
        %v4078 = vpack.c.bf16 %v3282, %v3278
        %v4079 = vpack.c.bf16 %v3283, %v3279
        %v4080 = vpack.c.bf16 %v3284, %v3280
        %v4081 = vpack.c.bf16 %v3285, %v3281
        %v4082 = vpack.c.bf16 %v3290, %v3286
        %v4083 = vpack.c.bf16 %v3291, %v3287
        %v4084 = vpack.c.bf16 %v3292, %v3288
        %v4085 = vpack.c.bf16 %v3293, %v3289
        %v4086 = vpack.c.bf16 %v3298, %v3294
        %v4087 = vpack.c.bf16 %v3299, %v3295
        %v4088 = vpack.c.bf16 %v3300, %v3296
        %v4089 = vpack.c.bf16 %v3301, %v3297
        %v4090 = vpack.c.bf16 %v3306, %v3302
        %v4091 = vpack.c.bf16 %v3307, %v3303
        %v4092 = vpack.c.bf16 %v3308, %v3304
        %v4093 = vpack.c.bf16 %v3309, %v3305
        %v4094 = vpack.c.bf16 %v3314, %v3310
        %v4095 = vpack.c.bf16 %v3315, %v3311
        %v4096 = vpack.c.bf16 %v3316, %v3312
        %v4097 = vpack.c.bf16 %v3317, %v3313
        %v4098 = vpack.c.bf16 %v3322, %v3318
        %v4099 = vpack.c.bf16 %v3323, %v3319
        %v4100 = vpack.c.bf16 %v3324, %v3320
        %v4101 = vpack.c.bf16 %v3325, %v3321
        %v4102 = vpack.c.bf16 %v3330, %v3326
        %v4103 = vpack.c.bf16 %v3331, %v3327
        %v4104 = vpack.c.bf16 %v3332, %v3328
        %v4105 = vpack.c.bf16 %v3333, %v3329
        %v4106 = vpack.c.bf16 %v3338, %v3334
        %v4107 = vpack.c.bf16 %v3339, %v3335
        %v4108 = vpack.c.bf16 %v3340, %v3336
        %v4109 = vpack.c.bf16 %v3341, %v3337
        %v4110 = vpack.c.bf16 %v3346, %v3342
        %v4111 = vpack.c.bf16 %v3347, %v3343
        %v4112 = vpack.c.bf16 %v3348, %v3344
        %v4113 = vpack.c.bf16 %v3349, %v3345
        %v4114 = vpack.c.bf16 %v3354, %v3350
        %v4115 = vpack.c.bf16 %v3355, %v3351
        %v4116 = vpack.c.bf16 %v3356, %v3352
        %v4117 = vpack.c.bf16 %v3357, %v3353
        %v4118 = vpack.c.bf16 %v3362, %v3358
        %v4119 = vpack.c.bf16 %v3363, %v3359
        %v4120 = vpack.c.bf16 %v3364, %v3360
        %v4121 = vpack.c.bf16 %v3365, %v3361
        %v4122 = vpack.c.bf16 %v3370, %v3366
        %v4123 = vpack.c.bf16 %v3371, %v3367
        %v4124 = vpack.c.bf16 %v3372, %v3368
        %v4125 = vpack.c.bf16 %v3373, %v3369
        %v4126 = vpack.c.bf16 %v3378, %v3374
        %v4127 = vpack.c.bf16 %v3379, %v3375
        %v4128 = vpack.c.bf16 %v3380, %v3376
        %v4129 = vpack.c.bf16 %v3381, %v3377
        %v4130 = vpack.c.bf16 %v3386, %v3382
        %v4131 = vpack.c.bf16 %v3387, %v3383
        %v4132 = vpack.c.bf16 %v3388, %v3384
        %v4133 = vpack.c.bf16 %v3389, %v3385
        %v4134 = vpack.c.bf16 %v3394, %v3390
        %v4135 = vpack.c.bf16 %v3395, %v3391
        %v4136 = vpack.c.bf16 %v3396, %v3392
        %v4137 = vpack.c.bf16 %v3397, %v3393
        %v4138 = vpack.c.bf16 %v3402, %v3398
        %v4139 = vpack.c.bf16 %v3403, %v3399
        %v4140 = vpack.c.bf16 %v3404, %v3400
        %v4141 = vpack.c.bf16 %v3405, %v3401
        %v4142 = vpack.c.bf16 %v3410, %v3406
        %v4143 = vpack.c.bf16 %v3411, %v3407
        %v4144 = vpack.c.bf16 %v3412, %v3408
        %v4145 = vpack.c.bf16 %v3413, %v3409
        %v4146 = vpack.c.bf16 %v3418, %v3414
        %v4147 = vpack.c.bf16 %v3419, %v3415
        %v4148 = vpack.c.bf16 %v3420, %v3416
        %v4149 = vpack.c.bf16 %v3421, %v3417
        %v4150 = vpack.c.bf16 %v3426, %v3422
        %v4151 = vpack.c.bf16 %v3427, %v3423
        %v4152 = vpack.c.bf16 %v3428, %v3424
        %v4153 = vpack.c.bf16 %v3429, %v3425
        %v4154 = vpack.c.bf16 %v3434, %v3430
        %v4155 = vpack.c.bf16 %v3435, %v3431
        %v4156 = vpack.c.bf16 %v3436, %v3432
        %v4157 = vpack.c.bf16 %v3437, %v3433
        %v4158 = vpack.c.bf16 %v3442, %v3438
        %v4159 = vpack.c.bf16 %v3443, %v3439
        %v4160 = vpack.c.bf16 %v3444, %v3440
        %v4161 = vpack.c.bf16 %v3445, %v3441
        %v4162 = vpack.c.bf16 %v3450, %v3446
        %v4163 = vpack.c.bf16 %v3451, %v3447
        %v4164 = vpack.c.bf16 %v3452, %v3448
        %v4165 = vpack.c.bf16 %v3453, %v3449
        %v4166 = vpack.c.bf16 %v3458, %v3454
        %v4167 = vpack.c.bf16 %v3459, %v3455
        %v4168 = vpack.c.bf16 %v3460, %v3456
        %v4169 = vpack.c.bf16 %v3461, %v3457
        %v4170 = vpack.c.bf16 %v3466, %v3462
        %v4171 = vpack.c.bf16 %v3467, %v3463
        %v4172 = vpack.c.bf16 %v3468, %v3464
        %v4173 = vpack.c.bf16 %v3469, %v3465
        %v4174 = vpack.c.bf16 %v3474, %v3470
        %v4175 = vpack.c.bf16 %v3475, %v3471
        %v4176 = vpack.c.bf16 %v3476, %v3472
        %v4177 = vpack.c.bf16 %v3477, %v3473
        %v4178 = vpack.c.bf16 %v3482, %v3478
        %v4179 = vpack.c.bf16 %v3483, %v3479
        %v4180 = vpack.c.bf16 %v3484, %v3480
        %v4181 = vpack.c.bf16 %v3485, %v3481
        %v4182 = vpack.c.bf16 %v3490, %v3486
        %v4183 = vpack.c.bf16 %v3491, %v3487
        %v4184 = vpack.c.bf16 %v3492, %v3488
        %v4185 = vpack.c.bf16 %v3493, %v3489
        %v4186 = vpack.c.bf16 %v3498, %v3494
        %v4187 = vpack.c.bf16 %v3499, %v3495
        %v4188 = vpack.c.bf16 %v3500, %v3496
        %v4189 = vpack.c.bf16 %v3501, %v3497
        %v4190 = vpack.c.bf16 %v3506, %v3502
        %v4191 = vpack.c.bf16 %v3507, %v3503
        %v4192 = vpack.c.bf16 %v3508, %v3504
        %v4193 = vpack.c.bf16 %v3509, %v3505
        %v4194 = vpack.c.bf16 %v3514, %v3510
        %v4195 = vpack.c.bf16 %v3515, %v3511
        %v4196 = vpack.c.bf16 %v3516, %v3512
        %v4197 = vpack.c.bf16 %v3517, %v3513
        %v4198 = vpack.c.bf16 %v3522, %v3518
        %v4199 = vpack.c.bf16 %v3523, %v3519
        %v4200 = vpack.c.bf16 %v3524, %v3520
        %v4201 = vpack.c.bf16 %v3525, %v3521
        %v4202 = vpack.c.bf16 %v3530, %v3526
        %v4203 = vpack.c.bf16 %v3531, %v3527
        %v4204 = vpack.c.bf16 %v3532, %v3528
        %v4205 = vpack.c.bf16 %v3533, %v3529
        %v4206 = vpack.c.bf16 %v3538, %v3534
        %v4207 = vpack.c.bf16 %v3539, %v3535
        %v4208 = vpack.c.bf16 %v3540, %v3536
        %v4209 = vpack.c.bf16 %v3541, %v3537
        %v4210 = vpack.c.bf16 %v3546, %v3542
        %v4211 = vpack.c.bf16 %v3547, %v3543
        %v4212 = vpack.c.bf16 %v3548, %v3544
        %v4213 = vpack.c.bf16 %v3549, %v3545
        %v4214 = vpack.c.bf16 %v3554, %v3550
        %v4215 = vpack.c.bf16 %v3555, %v3551
        %v4216 = vpack.c.bf16 %v3556, %v3552
        %v4217 = vpack.c.bf16 %v3557, %v3553
        %v4218 = vpack.c.bf16 %v3562, %v3558
        %v4219 = vpack.c.bf16 %v3563, %v3559
        %v4220 = vpack.c.bf16 %v3564, %v3560
        %v4221 = vpack.c.bf16 %v3565, %v3561
        %v4222 = vpack.c.bf16 %v3570, %v3566
        %v4223 = vpack.c.bf16 %v3571, %v3567
        %v4224 = vpack.c.bf16 %v3572, %v3568
        %v4225 = vpack.c.bf16 %v3573, %v3569
        %v4226 = vpack.c.bf16 %v3578, %v3574
        %v4227 = vpack.c.bf16 %v3579, %v3575
        %v4228 = vpack.c.bf16 %v3580, %v3576
        %v4229 = vpack.c.bf16 %v3581, %v3577
        %v4230 = vpack.c.bf16 %v3586, %v3582
        %v4231 = vpack.c.bf16 %v3587, %v3583
        %v4232 = vpack.c.bf16 %v3588, %v3584
        %v4233 = vpack.c.bf16 %v3589, %v3585
        %v4234 = vpack.c.bf16 %v3594, %v3590
        %v4235 = vpack.c.bf16 %v3595, %v3591
        %v4236 = vpack.c.bf16 %v3596, %v3592
        %v4237 = vpack.c.bf16 %v3597, %v3593
        %v4238 = vpack.c.bf16 %v3602, %v3598
        %v4239 = vpack.c.bf16 %v3603, %v3599
        %v4240 = vpack.c.bf16 %v3604, %v3600
        %v4241 = vpack.c.bf16 %v3605, %v3601
        %v4242 = vpack.c.bf16 %v3610, %v3606
        %v4243 = vpack.c.bf16 %v3611, %v3607
        %v4244 = vpack.c.bf16 %v3612, %v3608
        %v4245 = vpack.c.bf16 %v3613, %v3609
        %v4246 = vpack.c.bf16 %v3618, %v3614
        %v4247 = vpack.c.bf16 %v3619, %v3615
        %v4248 = vpack.c.bf16 %v3620, %v3616
        %v4249 = vpack.c.bf16 %v3621, %v3617
        %v4250 = vpack.c.bf16 %v3626, %v3622
        %v4251 = vpack.c.bf16 %v3627, %v3623
        %v4252 = vpack.c.bf16 %v3628, %v3624
        %v4253 = vpack.c.bf16 %v3629, %v3625
        %v4254 = vpack.c.bf16 %v3634, %v3630
        %v4255 = vpack.c.bf16 %v3635, %v3631
        %v4256 = vpack.c.bf16 %v3636, %v3632
        %v4257 = vpack.c.bf16 %v3637, %v3633
        %v4258 = vpack.c.bf16 %v3642, %v3638
        %v4259 = vpack.c.bf16 %v3643, %v3639
        %v4260 = vpack.c.bf16 %v3644, %v3640
        %v4261 = vpack.c.bf16 %v3645, %v3641
        %v4262 = vpack.c.bf16 %v3650, %v3646
        %v4263 = vpack.c.bf16 %v3651, %v3647
        %v4264 = vpack.c.bf16 %v3652, %v3648
        %v4265 = vpack.c.bf16 %v3653, %v3649
        %v4266 = vpack.c.bf16 %v3658, %v3654
        %v4267 = vpack.c.bf16 %v3659, %v3655
        %v4268 = vpack.c.bf16 %v3660, %v3656
        %v4269 = vpack.c.bf16 %v3661, %v3657
        %v4270 = vpack.c.bf16 %v3666, %v3662
        %v4271 = vpack.c.bf16 %v3667, %v3663
        %v4272 = vpack.c.bf16 %v3668, %v3664
        %v4273 = vpack.c.bf16 %v3669, %v3665
        %v4274 = vpack.c.bf16 %v3674, %v3670
        %v4275 = vpack.c.bf16 %v3675, %v3671
        %v4276 = vpack.c.bf16 %v3676, %v3672
        %v4277 = vpack.c.bf16 %v3677, %v3673
        %v4278 = vpack.c.bf16 %v3682, %v3678
        %v4279 = vpack.c.bf16 %v3683, %v3679
        %v4280 = vpack.c.bf16 %v3684, %v3680
        %v4281 = vpack.c.bf16 %v3685, %v3681
        %v4282 = vpack.c.bf16 %v3690, %v3686
        %v4283 = vpack.c.bf16 %v3691, %v3687
        %v4284 = vpack.c.bf16 %v3692, %v3688
        %v4285 = vpack.c.bf16 %v3693, %v3689
        %v4286 = vpack.c.bf16 %v3698, %v3694
        %v4287 = vpack.c.bf16 %v3699, %v3695
        %v4288 = vpack.c.bf16 %v3700, %v3696
        %v4289 = vpack.c.bf16 %v3701, %v3697
        %v4290 = vpack.c.bf16 %v3706, %v3702
        %v4291 = vpack.c.bf16 %v3707, %v3703
        %v4292 = vpack.c.bf16 %v3708, %v3704
        %v4293 = vpack.c.bf16 %v3709, %v3705
        %v4294 = vpack.c.bf16 %v3714, %v3710
        %v4295 = vpack.c.bf16 %v3715, %v3711
        %v4296 = vpack.c.bf16 %v3716, %v3712
        %v4297 = vpack.c.bf16 %v3717, %v3713
        %v4298 = vpack.c.bf16 %v3722, %v3718
        %v4299 = vpack.c.bf16 %v3723, %v3719
        %v4300 = vpack.c.bf16 %v3724, %v3720
        %v4301 = vpack.c.bf16 %v3725, %v3721
        %v4302 = vpack.c.bf16 %v3730, %v3726
        %v4303 = vpack.c.bf16 %v3731, %v3727
        %v4304 = vpack.c.bf16 %v3732, %v3728
        %v4305 = vpack.c.bf16 %v3733, %v3729
        %v4306 = vpack.c.bf16 %v3738, %v3734
        %v4307 = vpack.c.bf16 %v3739, %v3735
        %v4308 = vpack.c.bf16 %v3740, %v3736
        %v4309 = vpack.c.bf16 %v3741, %v3737
        %v4310 = vpack.c.bf16 %v3746, %v3742
        %v4311 = vpack.c.bf16 %v3747, %v3743
        %v4312 = vpack.c.bf16 %v3748, %v3744
        %v4313 = vpack.c.bf16 %v3749, %v3745
        %v4314 = vpack.c.bf16 %v3754, %v3750
        %v4315 = vpack.c.bf16 %v3755, %v3751
        %v4316 = vpack.c.bf16 %v3756, %v3752
        %v4317 = vpack.c.bf16 %v3757, %v3753
        %v4318 = vpack.c.bf16 %v3762, %v3758
        %v4319 = vpack.c.bf16 %v3763, %v3759
        %v4320 = vpack.c.bf16 %v3764, %v3760
        %v4321 = vpack.c.bf16 %v3765, %v3761
        %v4322 = vpack.c.bf16 %v3770, %v3766
        %v4323 = vpack.c.bf16 %v3771, %v3767
        %v4324 = vpack.c.bf16 %v3772, %v3768
        %v4325 = vpack.c.bf16 %v3773, %v3769
        %v4326 = vpack.c.bf16 %v3778, %v3774
        %v4327 = vpack.c.bf16 %v3779, %v3775
        %v4328 = vpack.c.bf16 %v3780, %v3776
        %v4329 = vpack.c.bf16 %v3781, %v3777
        %v4330 = vpack.c.bf16 %v3786, %v3782
        %v4331 = vpack.c.bf16 %v3787, %v3783
        %v4332 = vpack.c.bf16 %v3788, %v3784
        %v4333 = vpack.c.bf16 %v3789, %v3785
        %v4334 = vpack.c.bf16 %v3794, %v3790
        %v4335 = vpack.c.bf16 %v3795, %v3791
        %v4336 = vpack.c.bf16 %v3796, %v3792
        %v4337 = vpack.c.bf16 %v3797, %v3793
        %v4338 = vpack.c.bf16 %v3802, %v3798
        %v4339 = vpack.c.bf16 %v3803, %v3799
        %v4340 = vpack.c.bf16 %v3804, %v3800
        %v4341 = vpack.c.bf16 %v3805, %v3801
        %v4342 = vpack.c.bf16 %v3810, %v3806
        %v4343 = vpack.c.bf16 %v3811, %v3807
        %v4344 = vpack.c.bf16 %v3812, %v3808
        %v4345 = vpack.c.bf16 %v3813, %v3809
        %v4346 = vpack.c.bf16 %v3818, %v3814
        %v4347 = vpack.c.bf16 %v3819, %v3815
        %v4348 = vpack.c.bf16 %v3820, %v3816
        %v4349 = vpack.c.bf16 %v3821, %v3817
        %v4350 = vpack.c.bf16 %v3826, %v3822
        %v4351 = vpack.c.bf16 %v3827, %v3823
        %v4352 = vpack.c.bf16 %v3828, %v3824
        %v4353 = vpack.c.bf16 %v3829, %v3825
        %v4354 = vpack.c.bf16 %v3834, %v3830
        %v4355 = vpack.c.bf16 %v3835, %v3831
        %v4356 = vpack.c.bf16 %v3836, %v3832
        %v4357 = vpack.c.bf16 %v3837, %v3833
        %v4358 = vpack.c.bf16 %v3842, %v3838
        %v4359 = vpack.c.bf16 %v3843, %v3839
        %v4360 = vpack.c.bf16 %v3844, %v3840
        %v4361 = vpack.c.bf16 %v3845, %v3841
        %v4362 = vpack.c.bf16 %v3850, %v3846
        %v4363 = vpack.c.bf16 %v3851, %v3847
        %v4364 = vpack.c.bf16 %v3852, %v3848
        %v4365 = vpack.c.bf16 %v3853, %v3849
        %v4366 = vld [vmem:[#allocation2] sm:$0xff]
        %v4367 = vld [vmem:[#allocation2 + $0x8] sm:$0xff]
        %v4368 = vld [vmem:[#allocation2 + $0x10] sm:$0xff]
        %v4369 = vld [vmem:[#allocation2 + $0x18] sm:$0xff]
        %v4370 = vld [vmem:[%s399] sm:$0xff]
        %v4371 = vld [vmem:[%s399 + $0x8] sm:$0xff]
        %v4372 = vld [vmem:[%s399 + $0x10] sm:$0xff]
        %v4373 = vld [vmem:[%s399 + $0x18] sm:$0xff]
        %v4374 = vld [vmem:[%s399 + $0x20] sm:$0xff]
        %v4375 = vld [vmem:[%s399 + $0x28] sm:$0xff]
        %v4376 = vld [vmem:[%s399 + $0x30] sm:$0xff]
        %v4377 = vld [vmem:[%s399 + $0x38] sm:$0xff]
        %v4378 = vld [vmem:[%s399 + $0x40] sm:$0xff]
        %v4379 = vld [vmem:[%s399 + $0x48] sm:$0xff]
        %v4380 = vld [vmem:[%s399 + $0x50] sm:$0xff]
        %v4381 = vld [vmem:[%s399 + $0x58] sm:$0xff]
        %v4382 = vld [vmem:[%s399 + $0x60] sm:$0xff]
        %v4383 = vld [vmem:[%s399 + $0x68] sm:$0xff]
        %v4384 = vld [vmem:[%s399 + $0x70] sm:$0xff]
        %v4385 = vld [vmem:[%s399 + $0x78] sm:$0xff]
        %v4386 = vpack.c.bf16 %v4370, %v4370
        %v4387 = vpack.c.bf16 %v4371, %v4371
        %v4388 = vpack.c.bf16 %v4372, %v4372
        %v4389 = vpack.c.bf16 %v4373, %v4373
        %v4390 = vpack.c.bf16 %v4374, %v4374
        %v4391 = vpack.c.bf16 %v4375, %v4375
        %v4392 = vpack.c.bf16 %v4376, %v4376
        %v4393 = vpack.c.bf16 %v4377, %v4377
        %v4394 = vpack.c.bf16 %v4378, %v4378
        %v4395 = vpack.c.bf16 %v4379, %v4379
        %v4396 = vpack.c.bf16 %v4380, %v4380
        %v4397 = vpack.c.bf16 %v4381, %v4381
        %v4398 = vpack.c.bf16 %v4382, %v4382
        %v4399 = vpack.c.bf16 %v4383, %v4383
        %v4400 = vpack.c.bf16 %v4384, %v4384
        %v4401 = vpack.c.bf16 %v4385, %v4385
        %4402 = vmatprep.subr.bf16.mxu0 %v3855
        %4403 = vmatpush1.bf16.msra.mxu0 %v3854
        %4404 = vmatprep.subr.bf16.mxu0 %v3859
        %4405 = vmatpush1.bf16.msra.mxu0 %v3858
        %4406 = vmatprep.subr.bf16.mxu0 %v3863
        %4407 = vmatpush1.bf16.msra.mxu0 %v3862
        %4408 = vmatprep.subr.bf16.mxu0 %v3867
        %4409 = vmatpush1.bf16.msra.mxu0 %v3866
        %4410 = vmatprep.subr.bf16.mxu0 %v3871
        %4411 = vmatpush1.bf16.msra.mxu0 %v3870
        %4412 = vmatprep.subr.bf16.mxu0 %v3875
        %4413 = vmatpush1.bf16.msra.mxu0 %v3874
        %4414 = vmatprep.subr.bf16.mxu0 %v3879
        %4415 = vmatpush1.bf16.msra.mxu0 %v3878
        %4416 = vmatprep.subr.bf16.mxu0 %v3883
        %4417 = vmatpush1.bf16.msra.mxu0 %v3882
        %4418 = vmatprep.subr.bf16.mxu0 %v3887
        %4419 = vmatpush1.bf16.msra.mxu0 %v3886
        %4420 = vmatprep.subr.bf16.mxu0 %v3891
        %4421 = vmatpush1.bf16.msra.mxu0 %v3890
        %4422 = vmatprep.subr.bf16.mxu0 %v3895
        %4423 = vmatpush1.bf16.msra.mxu0 %v3894
        %4424 = vmatprep.subr.bf16.mxu0 %v3899
        %4425 = vmatpush1.bf16.msra.mxu0 %v3898
        %4426 = vmatprep.subr.bf16.mxu0 %v3903
        %4427 = vmatpush1.bf16.msra.mxu0 %v3902
        %4428 = vmatprep.subr.bf16.mxu0 %v3907
        %4429 = vmatpush1.bf16.msra.mxu0 %v3906
        %4430 = vmatprep.subr.bf16.mxu0 %v3911
        %4431 = vmatpush1.bf16.msra.mxu0 %v3910
        %4432 = vmatprep.subr.bf16.mxu0 %v3915
        %4433 = vmatpush1.bf16.msra.mxu0 %v3914
        %4434 = vmatprep.mubr.bf16.mxu0 %v4387
        %4435 = vmatmul.mubr.bf16.gmra.mrb[0].mxu0 %v4386
        %v4436 = vpop.f32.mrb[0].mxu0
        %v4437 = vadd.f32 0.0, %v4436
        %v4438 = vpop.f32.mrb[0].mxu0
        %v4439 = vadd.f32 0.0, %v4438
        %v4440 = vpop.f32.mrb[0].mxu0
        %v4441 = vpop.f32.mrb[0].mxu0
        %4442 = vdwg.mxu0
        %4443 = vmatprep.subr.bf16.mxu0 %v3919
        %4444 = vmatpush1.bf16.msra.mxu0 %v3918
        %4445 = vmatprep.subr.bf16.mxu0 %v3923
        %4446 = vmatpush1.bf16.msra.mxu0 %v3922
        %4447 = vmatprep.subr.bf16.mxu0 %v3927
        %4448 = vmatpush1.bf16.msra.mxu0 %v3926
        %4449 = vmatprep.subr.bf16.mxu0 %v3931
        %4450 = vmatpush1.bf16.msra.mxu0 %v3930
        %4451 = vmatprep.subr.bf16.mxu0 %v3935
        %4452 = vmatpush1.bf16.msra.mxu0 %v3934
        %4453 = vmatprep.subr.bf16.mxu0 %v3939
        %4454 = vmatpush1.bf16.msra.mxu0 %v3938
        %4455 = vmatprep.subr.bf16.mxu0 %v3943
        %4456 = vmatpush1.bf16.msra.mxu0 %v3942
        %4457 = vmatprep.subr.bf16.mxu0 %v3947
        %4458 = vmatpush1.bf16.msra.mxu0 %v3946
        %4459 = vmatprep.subr.bf16.mxu0 %v3951
        %4460 = vmatpush1.bf16.msra.mxu0 %v3950
        %4461 = vmatprep.subr.bf16.mxu0 %v3955
        %4462 = vmatpush1.bf16.msra.mxu0 %v3954
        %4463 = vmatprep.subr.bf16.mxu0 %v3959
        %4464 = vmatpush1.bf16.msra.mxu0 %v3958
        %4465 = vmatprep.subr.bf16.mxu0 %v3963
        %4466 = vmatpush1.bf16.msra.mxu0 %v3962
        %4467 = vmatprep.subr.bf16.mxu0 %v3967
        %4468 = vmatpush1.bf16.msra.mxu0 %v3966
        %4469 = vmatprep.subr.bf16.mxu0 %v3971
        %4470 = vmatpush1.bf16.msra.mxu0 %v3970
        %4471 = vmatprep.subr.bf16.mxu0 %v3975
        %4472 = vmatpush1.bf16.msra.mxu0 %v3974
        %4473 = vmatprep.subr.bf16.mxu0 %v3979
        %4474 = vmatpush1.bf16.msra.mxu0 %v3978
        %4475 = vmatprep.mubr.bf16.mxu0 %v4389
        %4476 = vmatmul.mubr.bf16.gmra.mrb[0].mxu0 %v4388
        %v4477 = vpop.f32.mrb[0].mxu0
        %v4478 = vadd.f32 %v4437, %v4477
        %v4479 = vpop.f32.mrb[0].mxu0
        %v4480 = vadd.f32 %v4439, %v4479
        %v4481 = vpop.f32.mrb[0].mxu0
        %v4482 = vpop.f32.mrb[0].mxu0
        %4483 = vdwg.mxu0
        %4484 = vmatprep.subr.bf16.mxu0 %v3983
        %4485 = vmatpush1.bf16.msra.mxu0 %v3982
        %4486 = vmatprep.subr.bf16.mxu0 %v3987
        %4487 = vmatpush1.bf16.msra.mxu0 %v3986
        %4488 = vmatprep.subr.bf16.mxu0 %v3991
        %4489 = vmatpush1.bf16.msra.mxu0 %v3990
        %4490 = vmatprep.subr.bf16.mxu0 %v3995
        %4491 = vmatpush1.bf16.msra.mxu0 %v3994
        %4492 = vmatprep.subr.bf16.mxu0 %v3999
        %4493 = vmatpush1.bf16.msra.mxu0 %v3998
        %4494 = vmatprep.subr.bf16.mxu0 %v4003
        %4495 = vmatpush1.bf16.msra.mxu0 %v4002
        %4496 = vmatprep.subr.bf16.mxu0 %v4007
        %4497 = vmatpush1.bf16.msra.mxu0 %v4006
        %4498 = vmatprep.subr.bf16.mxu0 %v4011
        %4499 = vmatpush1.bf16.msra.mxu0 %v4010
        %4500 = vmatprep.subr.bf16.mxu0 %v4015
        %4501 = vmatpush1.bf16.msra.mxu0 %v4014
        %4502 = vmatprep.subr.bf16.mxu0 %v4019
        %4503 = vmatpush1.bf16.msra.mxu0 %v4018
        %4504 = vmatprep.subr.bf16.mxu0 %v4023
        %4505 = vmatpush1.bf16.msra.mxu0 %v4022
        %4506 = vmatprep.subr.bf16.mxu0 %v4027
        %4507 = vmatpush1.bf16.msra.mxu0 %v4026
        %4508 = vmatprep.subr.bf16.mxu0 %v4031
        %4509 = vmatpush1.bf16.msra.mxu0 %v4030
        %4510 = vmatprep.subr.bf16.mxu0 %v4035
        %4511 = vmatpush1.bf16.msra.mxu0 %v4034
        %4512 = vmatprep.subr.bf16.mxu0 %v4039
        %4513 = vmatpush1.bf16.msra.mxu0 %v4038
        %4514 = vmatprep.subr.bf16.mxu0 %v4043
        %4515 = vmatpush1.bf16.msra.mxu0 %v4042
        %4516 = vmatprep.mubr.bf16.mxu0 %v4391
        %4517 = vmatmul.mubr.bf16.gmra.mrb[0].mxu0 %v4390
        %v4518 = vpop.f32.mrb[0].mxu0
        %v4519 = vadd.f32 %v4478, %v4518
        %v4520 = vpop.f32.mrb[0].mxu0
        %v4521 = vadd.f32 %v4480, %v4520
        %v4522 = vpop.f32.mrb[0].mxu0
        %v4523 = vpop.f32.mrb[0].mxu0
        %4524 = vdwg.mxu0
        %4525 = vmatprep.subr.bf16.mxu0 %v4047
        %4526 = vmatpush1.bf16.msra.mxu0 %v4046
        %4527 = vmatprep.subr.bf16.mxu0 %v4051
        %4528 = vmatpush1.bf16.msra.mxu0 %v4050
        %4529 = vmatprep.subr.bf16.mxu0 %v4055
        %4530 = vmatpush1.bf16.msra.mxu0 %v4054
        %4531 = vmatprep.subr.bf16.mxu0 %v4059
        %4532 = vmatpush1.bf16.msra.mxu0 %v4058
        %4533 = vmatprep.subr.bf16.mxu0 %v4063
        %4534 = vmatpush1.bf16.msra.mxu0 %v4062
        %4535 = vmatprep.subr.bf16.mxu0 %v4067
        %4536 = vmatpush1.bf16.msra.mxu0 %v4066
        %4537 = vmatprep.subr.bf16.mxu0 %v4071
        %4538 = vmatpush1.bf16.msra.mxu0 %v4070
        %4539 = vmatprep.subr.bf16.mxu0 %v4075
        %4540 = vmatpush1.bf16.msra.mxu0 %v4074
        %4541 = vmatprep.subr.bf16.mxu0 %v4079
        %4542 = vmatpush1.bf16.msra.mxu0 %v4078
        %4543 = vmatprep.subr.bf16.mxu0 %v4083
        %4544 = vmatpush1.bf16.msra.mxu0 %v4082
        %4545 = vmatprep.subr.bf16.mxu0 %v4087
        %4546 = vmatpush1.bf16.msra.mxu0 %v4086
        %4547 = vmatprep.subr.bf16.mxu0 %v4091
        %4548 = vmatpush1.bf16.msra.mxu0 %v4090
        %4549 = vmatprep.subr.bf16.mxu0 %v4095
        %4550 = vmatpush1.bf16.msra.mxu0 %v4094
        %4551 = vmatprep.subr.bf16.mxu0 %v4099
        %4552 = vmatpush1.bf16.msra.mxu0 %v4098
        %4553 = vmatprep.subr.bf16.mxu0 %v4103
        %4554 = vmatpush1.bf16.msra.mxu0 %v4102
        %4555 = vmatprep.subr.bf16.mxu0 %v4107
        %4556 = vmatpush1.bf16.msra.mxu0 %v4106
        %4557 = vmatprep.mubr.bf16.mxu0 %v4393
        %4558 = vmatmul.mubr.bf16.gmra.mrb[0].mxu0 %v4392
        %v4559 = vpop.f32.mrb[0].mxu0
        %v4560 = vadd.f32 %v4519, %v4559
        %v4561 = vpop.f32.mrb[0].mxu0
        %v4562 = vadd.f32 %v4521, %v4561
        %v4563 = vpop.f32.mrb[0].mxu0
        %v4564 = vpop.f32.mrb[0].mxu0
        %4565 = vdwg.mxu0
        %4566 = vmatprep.subr.bf16.mxu0 %v4111
        %4567 = vmatpush1.bf16.msra.mxu0 %v4110
        %4568 = vmatprep.subr.bf16.mxu0 %v4115
        %4569 = vmatpush1.bf16.msra.mxu0 %v4114
        %4570 = vmatprep.subr.bf16.mxu0 %v4119
        %4571 = vmatpush1.bf16.msra.mxu0 %v4118
        %4572 = vmatprep.subr.bf16.mxu0 %v4123
        %4573 = vmatpush1.bf16.msra.mxu0 %v4122
        %4574 = vmatprep.subr.bf16.mxu0 %v4127
        %4575 = vmatpush1.bf16.msra.mxu0 %v4126
        %4576 = vmatprep.subr.bf16.mxu0 %v4131
        %4577 = vmatpush1.bf16.msra.mxu0 %v4130
        %4578 = vmatprep.subr.bf16.mxu0 %v4135
        %4579 = vmatpush1.bf16.msra.mxu0 %v4134
        %4580 = vmatprep.subr.bf16.mxu0 %v4139
        %4581 = vmatpush1.bf16.msra.mxu0 %v4138
        %4582 = vmatprep.subr.bf16.mxu0 %v4143
        %4583 = vmatpush1.bf16.msra.mxu0 %v4142
        %4584 = vmatprep.subr.bf16.mxu0 %v4147
        %4585 = vmatpush1.bf16.msra.mxu0 %v4146
        %4586 = vmatprep.subr.bf16.mxu0 %v4151
        %4587 = vmatpush1.bf16.msra.mxu0 %v4150
        %4588 = vmatprep.subr.bf16.mxu0 %v4155
        %4589 = vmatpush1.bf16.msra.mxu0 %v4154
        %4590 = vmatprep.subr.bf16.mxu0 %v4159
        %4591 = vmatpush1.bf16.msra.mxu0 %v4158
        %4592 = vmatprep.subr.bf16.mxu0 %v4163
        %4593 = vmatpush1.bf16.msra.mxu0 %v4162
        %4594 = vmatprep.subr.bf16.mxu0 %v4167
        %4595 = vmatpush1.bf16.msra.mxu0 %v4166
        %4596 = vmatprep.subr.bf16.mxu0 %v4171
        %4597 = vmatpush1.bf16.msra.mxu0 %v4170
        %4598 = vmatprep.mubr.bf16.mxu0 %v4395
        %4599 = vmatmul.mubr.bf16.gmra.mrb[0].mxu0 %v4394
        %v4600 = vpop.f32.mrb[0].mxu0
        %v4601 = vadd.f32 %v4560, %v4600
        %v4602 = vpop.f32.mrb[0].mxu0
        %v4603 = vadd.f32 %v4562, %v4602
        %v4604 = vpop.f32.mrb[0].mxu0
        %v4605 = vpop.f32.mrb[0].mxu0
        %4606 = vdwg.mxu0
        %4607 = vmatprep.subr.bf16.mxu0 %v4175
        %4608 = vmatpush1.bf16.msra.mxu0 %v4174
        %4609 = vmatprep.subr.bf16.mxu0 %v4179
        %4610 = vmatpush1.bf16.msra.mxu0 %v4178
        %4611 = vmatprep.subr.bf16.mxu0 %v4183
        %4612 = vmatpush1.bf16.msra.mxu0 %v4182
        %4613 = vmatprep.subr.bf16.mxu0 %v4187
        %4614 = vmatpush1.bf16.msra.mxu0 %v4186
        %4615 = vmatprep.subr.bf16.mxu0 %v4191
        %4616 = vmatpush1.bf16.msra.mxu0 %v4190
        %4617 = vmatprep.subr.bf16.mxu0 %v4195
        %4618 = vmatpush1.bf16.msra.mxu0 %v4194
        %4619 = vmatprep.subr.bf16.mxu0 %v4199
        %4620 = vmatpush1.bf16.msra.mxu0 %v4198
        %4621 = vmatprep.subr.bf16.mxu0 %v4203
        %4622 = vmatpush1.bf16.msra.mxu0 %v4202
        %4623 = vmatprep.subr.bf16.mxu0 %v4207
        %4624 = vmatpush1.bf16.msra.mxu0 %v4206
        %4625 = vmatprep.subr.bf16.mxu0 %v4211
        %4626 = vmatpush1.bf16.msra.mxu0 %v4210
        %4627 = vmatprep.subr.bf16.mxu0 %v4215
        %4628 = vmatpush1.bf16.msra.mxu0 %v4214
        %4629 = vmatprep.subr.bf16.mxu0 %v4219
        %4630 = vmatpush1.bf16.msra.mxu0 %v4218
        %4631 = vmatprep.subr.bf16.mxu0 %v4223
        %4632 = vmatpush1.bf16.msra.mxu0 %v4222
        %4633 = vmatprep.subr.bf16.mxu0 %v4227
        %4634 = vmatpush1.bf16.msra.mxu0 %v4226
        %4635 = vmatprep.subr.bf16.mxu0 %v4231
        %4636 = vmatpush1.bf16.msra.mxu0 %v4230
        %4637 = vmatprep.subr.bf16.mxu0 %v4235
        %4638 = vmatpush1.bf16.msra.mxu0 %v4234
        %4639 = vmatprep.mubr.bf16.mxu0 %v4397
        %4640 = vmatmul.mubr.bf16.gmra.mrb[0].mxu0 %v4396
        %v4641 = vpop.f32.mrb[0].mxu0
        %v4642 = vadd.f32 %v4601, %v4641
        %v4643 = vpop.f32.mrb[0].mxu0
        %v4644 = vadd.f32 %v4603, %v4643
        %v4645 = vpop.f32.mrb[0].mxu0
        %v4646 = vpop.f32.mrb[0].mxu0
        %4647 = vdwg.mxu0
        %4648 = vmatprep.subr.bf16.mxu0 %v4239
        %4649 = vmatpush1.bf16.msra.mxu0 %v4238
        %4650 = vmatprep.subr.bf16.mxu0 %v4243
        %4651 = vmatpush1.bf16.msra.mxu0 %v4242
        %4652 = vmatprep.subr.bf16.mxu0 %v4247
        %4653 = vmatpush1.bf16.msra.mxu0 %v4246
        %4654 = vmatprep.subr.bf16.mxu0 %v4251
        %4655 = vmatpush1.bf16.msra.mxu0 %v4250
        %4656 = vmatprep.subr.bf16.mxu0 %v4255
        %4657 = vmatpush1.bf16.msra.mxu0 %v4254
        %4658 = vmatprep.subr.bf16.mxu0 %v4259
        %4659 = vmatpush1.bf16.msra.mxu0 %v4258
        %4660 = vmatprep.subr.bf16.mxu0 %v4263
        %4661 = vmatpush1.bf16.msra.mxu0 %v4262
        %4662 = vmatprep.subr.bf16.mxu0 %v4267
        %4663 = vmatpush1.bf16.msra.mxu0 %v4266
        %4664 = vmatprep.subr.bf16.mxu0 %v4271
        %4665 = vmatpush1.bf16.msra.mxu0 %v4270
        %4666 = vmatprep.subr.bf16.mxu0 %v4275
        %4667 = vmatpush1.bf16.msra.mxu0 %v4274
        %4668 = vmatprep.subr.bf16.mxu0 %v4279
        %4669 = vmatpush1.bf16.msra.mxu0 %v4278
        %4670 = vmatprep.subr.bf16.mxu0 %v4283
        %4671 = vmatpush1.bf16.msra.mxu0 %v4282
        %4672 = vmatprep.subr.bf16.mxu0 %v4287
        %4673 = vmatpush1.bf16.msra.mxu0 %v4286
        %4674 = vmatprep.subr.bf16.mxu0 %v4291
        %4675 = vmatpush1.bf16.msra.mxu0 %v4290
        %4676 = vmatprep.subr.bf16.mxu0 %v4295
        %4677 = vmatpush1.bf16.msra.mxu0 %v4294
        %4678 = vmatprep.subr.bf16.mxu0 %v4299
        %4679 = vmatpush1.bf16.msra.mxu0 %v4298
        %4680 = vmatprep.mubr.bf16.mxu0 %v4399
        %4681 = vmatmul.mubr.bf16.gmra.mrb[0].mxu0 %v4398
        %v4682 = vpop.f32.mrb[0].mxu0
        %v4683 = vadd.f32 %v4642, %v4682
        %v4684 = vpop.f32.mrb[0].mxu0
        %v4685 = vadd.f32 %v4644, %v4684
        %v4686 = vpop.f32.mrb[0].mxu0
        %v4687 = vpop.f32.mrb[0].mxu0
        %4688 = vdwg.mxu0
        %4689 = vmatprep.subr.bf16.mxu0 %v4303
        %4690 = vmatpush1.bf16.msra.mxu0 %v4302
        %4691 = vmatprep.subr.bf16.mxu0 %v4307
        %4692 = vmatpush1.bf16.msra.mxu0 %v4306
        %4693 = vmatprep.subr.bf16.mxu0 %v4311
        %4694 = vmatpush1.bf16.msra.mxu0 %v4310
        %4695 = vmatprep.subr.bf16.mxu0 %v4315
        %4696 = vmatpush1.bf16.msra.mxu0 %v4314
        %4697 = vmatprep.subr.bf16.mxu0 %v4319
        %4698 = vmatpush1.bf16.msra.mxu0 %v4318
        %4699 = vmatprep.subr.bf16.mxu0 %v4323
        %4700 = vmatpush1.bf16.msra.mxu0 %v4322
        %4701 = vmatprep.subr.bf16.mxu0 %v4327
        %4702 = vmatpush1.bf16.msra.mxu0 %v4326
        %4703 = vmatprep.subr.bf16.mxu0 %v4331
        %4704 = vmatpush1.bf16.msra.mxu0 %v4330
        %4705 = vmatprep.subr.bf16.mxu0 %v4335
        %4706 = vmatpush1.bf16.msra.mxu0 %v4334
        %4707 = vmatprep.subr.bf16.mxu0 %v4339
        %4708 = vmatpush1.bf16.msra.mxu0 %v4338
        %4709 = vmatprep.subr.bf16.mxu0 %v4343
        %4710 = vmatpush1.bf16.msra.mxu0 %v4342
        %4711 = vmatprep.subr.bf16.mxu0 %v4347
        %4712 = vmatpush1.bf16.msra.mxu0 %v4346
        %4713 = vmatprep.subr.bf16.mxu0 %v4351
        %4714 = vmatpush1.bf16.msra.mxu0 %v4350
        %4715 = vmatprep.subr.bf16.mxu0 %v4355
        %4716 = vmatpush1.bf16.msra.mxu0 %v4354
        %4717 = vmatprep.subr.bf16.mxu0 %v4359
        %4718 = vmatpush1.bf16.msra.mxu0 %v4358
        %4719 = vmatprep.subr.bf16.mxu0 %v4363
        %4720 = vmatpush1.bf16.msra.mxu0 %v4362
        %4721 = vmatprep.mubr.bf16.mxu0 %v4401
        %4722 = vmatmul.mubr.bf16.gmra.mrb[0].mxu0 %v4400
        %v4723 = vpop.f32.mrb[0].mxu0
        %v4724 = vadd.f32 %v4683, %v4723
        %v4725 = vpop.f32.mrb[0].mxu0
        %v4726 = vadd.f32 %v4685, %v4725
        %v4727 = vpop.f32.mrb[0].mxu0
        %v4728 = vpop.f32.mrb[0].mxu0
        %4729 = vdwg.mxu0
        %4730 = vmatprep.subr.bf16.mxu0 %v3857
        %4731 = vmatpush1.bf16.msra.mxu0 %v3856
        %4732 = vmatprep.subr.bf16.mxu0 %v3861
        %4733 = vmatpush1.bf16.msra.mxu0 %v3860
        %4734 = vmatprep.subr.bf16.mxu0 %v3865
        %4735 = vmatpush1.bf16.msra.mxu0 %v3864
        %4736 = vmatprep.subr.bf16.mxu0 %v3869
        %4737 = vmatpush1.bf16.msra.mxu0 %v3868
        %4738 = vmatprep.subr.bf16.mxu0 %v3873
        %4739 = vmatpush1.bf16.msra.mxu0 %v3872
        %4740 = vmatprep.subr.bf16.mxu0 %v3877
        %4741 = vmatpush1.bf16.msra.mxu0 %v3876
        %4742 = vmatprep.subr.bf16.mxu0 %v3881
        %4743 = vmatpush1.bf16.msra.mxu0 %v3880
        %4744 = vmatprep.subr.bf16.mxu0 %v3885
        %4745 = vmatpush1.bf16.msra.mxu0 %v3884
        %4746 = vmatprep.subr.bf16.mxu0 %v3889
        %4747 = vmatpush1.bf16.msra.mxu0 %v3888
        %4748 = vmatprep.subr.bf16.mxu0 %v3893
        %4749 = vmatpush1.bf16.msra.mxu0 %v3892
        %4750 = vmatprep.subr.bf16.mxu0 %v3897
        %4751 = vmatpush1.bf16.msra.mxu0 %v3896
        %4752 = vmatprep.subr.bf16.mxu0 %v3901
        %4753 = vmatpush1.bf16.msra.mxu0 %v3900
        %4754 = vmatprep.subr.bf16.mxu0 %v3905
        %4755 = vmatpush1.bf16.msra.mxu0 %v3904
        %4756 = vmatprep.subr.bf16.mxu0 %v3909
        %4757 = vmatpush1.bf16.msra.mxu0 %v3908
        %4758 = vmatprep.subr.bf16.mxu0 %v3913
        %4759 = vmatpush1.bf16.msra.mxu0 %v3912
        %4760 = vmatprep.subr.bf16.mxu0 %v3917
        %4761 = vmatpush1.bf16.msra.mxu0 %v3916
        %4762 = vmatprep.mubr.bf16.mxu0 %v4387
        %4763 = vmatmul.mubr.bf16.gmra.mrb[0].mxu0 %v4386
        %v4764 = vpop.f32.mrb[0].mxu0
        %v4765 = vadd.f32 0.0, %v4764
        %v4766 = vpop.f32.mrb[0].mxu0
        %v4767 = vadd.f32 0.0, %v4766
        %v4768 = vpop.f32.mrb[0].mxu0
        %v4769 = vpop.f32.mrb[0].mxu0
        %4770 = vdwg.mxu0
        %4771 = vmatprep.subr.bf16.mxu0 %v3921
        %4772 = vmatpush1.bf16.msra.mxu0 %v3920
        %4773 = vmatprep.subr.bf16.mxu0 %v3925
        %4774 = vmatpush1.bf16.msra.mxu0 %v3924
        %4775 = vmatprep.subr.bf16.mxu0 %v3929
        %4776 = vmatpush1.bf16.msra.mxu0 %v3928
        %4777 = vmatprep.subr.bf16.mxu0 %v3933
        %4778 = vmatpush1.bf16.msra.mxu0 %v3932
        %4779 = vmatprep.subr.bf16.mxu0 %v3937
        %4780 = vmatpush1.bf16.msra.mxu0 %v3936
        %4781 = vmatprep.subr.bf16.mxu0 %v3941
        %4782 = vmatpush1.bf16.msra.mxu0 %v3940
        %4783 = vmatprep.subr.bf16.mxu0 %v3945
        %4784 = vmatpush1.bf16.msra.mxu0 %v3944
        %4785 = vmatprep.subr.bf16.mxu0 %v3949
        %4786 = vmatpush1.bf16.msra.mxu0 %v3948
        %4787 = vmatprep.subr.bf16.mxu0 %v3953
        %4788 = vmatpush1.bf16.msra.mxu0 %v3952
        %4789 = vmatprep.subr.bf16.mxu0 %v3957
        %4790 = vmatpush1.bf16.msra.mxu0 %v3956
        %4791 = vmatprep.subr.bf16.mxu0 %v3961
        %4792 = vmatpush1.bf16.msra.mxu0 %v3960
        %4793 = vmatprep.subr.bf16.mxu0 %v3965
        %4794 = vmatpush1.bf16.msra.mxu0 %v3964
        %4795 = vmatprep.subr.bf16.mxu0 %v3969
        %4796 = vmatpush1.bf16.msra.mxu0 %v3968
        %4797 = vmatprep.subr.bf16.mxu0 %v3973
        %4798 = vmatpush1.bf16.msra.mxu0 %v3972
        %4799 = vmatprep.subr.bf16.mxu0 %v3977
        %4800 = vmatpush1.bf16.msra.mxu0 %v3976
        %4801 = vmatprep.subr.bf16.mxu0 %v3981
        %4802 = vmatpush1.bf16.msra.mxu0 %v3980
        %4803 = vmatprep.mubr.bf16.mxu0 %v4389
        %4804 = vmatmul.mubr.bf16.gmra.mrb[0].mxu0 %v4388
        %v4805 = vpop.f32.mrb[0].mxu0
        %v4806 = vadd.f32 %v4765, %v4805
        %v4807 = vpop.f32.mrb[0].mxu0
        %v4808 = vadd.f32 %v4767, %v4807
        %v4809 = vpop.f32.mrb[0].mxu0
        %v4810 = vpop.f32.mrb[0].mxu0
        %4811 = vdwg.mxu0
        %4812 = vmatprep.subr.bf16.mxu0 %v3985
        %4813 = vmatpush1.bf16.msra.mxu0 %v3984
        %4814 = vmatprep.subr.bf16.mxu0 %v3989
        %4815 = vmatpush1.bf16.msra.mxu0 %v3988
        %4816 = vmatprep.subr.bf16.mxu0 %v3993
        %4817 = vmatpush1.bf16.msra.mxu0 %v3992
        %4818 = vmatprep.subr.bf16.mxu0 %v3997
        %4819 = vmatpush1.bf16.msra.mxu0 %v3996
        %4820 = vmatprep.subr.bf16.mxu0 %v4001
        %4821 = vmatpush1.bf16.msra.mxu0 %v4000
        %4822 = vmatprep.subr.bf16.mxu0 %v4005
        %4823 = vmatpush1.bf16.msra.mxu0 %v4004
        %4824 = vmatprep.subr.bf16.mxu0 %v4009
        %4825 = vmatpush1.bf16.msra.mxu0 %v4008
        %4826 = vmatprep.subr.bf16.mxu0 %v4013
        %4827 = vmatpush1.bf16.msra.mxu0 %v4012
        %4828 = vmatprep.subr.bf16.mxu0 %v4017
        %4829 = vmatpush1.bf16.msra.mxu0 %v4016
        %4830 = vmatprep.subr.bf16.mxu0 %v4021
        %4831 = vmatpush1.bf16.msra.mxu0 %v4020
        %4832 = vmatprep.subr.bf16.mxu0 %v4025
        %4833 = vmatpush1.bf16.msra.mxu0 %v4024
        %4834 = vmatprep.subr.bf16.mxu0 %v4029
        %4835 = vmatpush1.bf16.msra.mxu0 %v4028
        %4836 = vmatprep.subr.bf16.mxu0 %v4033
        %4837 = vmatpush1.bf16.msra.mxu0 %v4032
        %4838 = vmatprep.subr.bf16.mxu0 %v4037
        %4839 = vmatpush1.bf16.msra.mxu0 %v4036
        %4840 = vmatprep.subr.bf16.mxu0 %v4041
        %4841 = vmatpush1.bf16.msra.mxu0 %v4040
        %4842 = vmatprep.subr.bf16.mxu0 %v4045
        %4843 = vmatpush1.bf16.msra.mxu0 %v4044
        %4844 = vmatprep.mubr.bf16.mxu0 %v4391
        %4845 = vmatmul.mubr.bf16.gmra.mrb[0].mxu0 %v4390
        %v4846 = vpop.f32.mrb[0].mxu0
        %v4847 = vadd.f32 %v4806, %v4846
        %v4848 = vpop.f32.mrb[0].mxu0
        %v4849 = vadd.f32 %v4808, %v4848
        %v4850 = vpop.f32.mrb[0].mxu0
        %v4851 = vpop.f32.mrb[0].mxu0
        %4852 = vdwg.mxu0
        %4853 = vmatprep.subr.bf16.mxu0 %v4049
        %4854 = vmatpush1.bf16.msra.mxu0 %v4048
        %4855 = vmatprep.subr.bf16.mxu0 %v4053
        %4856 = vmatpush1.bf16.msra.mxu0 %v4052
        %4857 = vmatprep.subr.bf16.mxu0 %v4057
        %4858 = vmatpush1.bf16.msra.mxu0 %v4056
        %4859 = vmatprep.subr.bf16.mxu0 %v4061
        %4860 = vmatpush1.bf16.msra.mxu0 %v4060
        %4861 = vmatprep.subr.bf16.mxu0 %v4065
        %4862 = vmatpush1.bf16.msra.mxu0 %v4064
        %4863 = vmatprep.subr.bf16.mxu0 %v4069
        %4864 = vmatpush1.bf16.msra.mxu0 %v4068
        %4865 = vmatprep.subr.bf16.mxu0 %v4073
        %4866 = vmatpush1.bf16.msra.mxu0 %v4072
        %4867 = vmatprep.subr.bf16.mxu0 %v4077
        %4868 = vmatpush1.bf16.msra.mxu0 %v4076
        %4869 = vmatprep.subr.bf16.mxu0 %v4081
        %4870 = vmatpush1.bf16.msra.mxu0 %v4080
        %4871 = vmatprep.subr.bf16.mxu0 %v4085
        %4872 = vmatpush1.bf16.msra.mxu0 %v4084
        %4873 = vmatprep.subr.bf16.mxu0 %v4089
        %4874 = vmatpush1.bf16.msra.mxu0 %v4088
        %4875 = vmatprep.subr.bf16.mxu0 %v4093
        %4876 = vmatpush1.bf16.msra.mxu0 %v4092
        %4877 = vmatprep.subr.bf16.mxu0 %v4097
        %4878 = vmatpush1.bf16.msra.mxu0 %v4096
        %4879 = vmatprep.subr.bf16.mxu0 %v4101
        %4880 = vmatpush1.bf16.msra.mxu0 %v4100
        %4881 = vmatprep.subr.bf16.mxu0 %v4105
        %4882 = vmatpush1.bf16.msra.mxu0 %v4104
        %4883 = vmatprep.subr.bf16.mxu0 %v4109
        %4884 = vmatpush1.bf16.msra.mxu0 %v4108
        %4885 = vmatprep.mubr.bf16.mxu0 %v4393
        %4886 = vmatmul.mubr.bf16.gmra.mrb[0].mxu0 %v4392
        %v4887 = vpop.f32.mrb[0].mxu0
        %v4888 = vadd.f32 %v4847, %v4887
        %v4889 = vpop.f32.mrb[0].mxu0
        %v4890 = vadd.f32 %v4849, %v4889
        %v4891 = vpop.f32.mrb[0].mxu0
        %v4892 = vpop.f32.mrb[0].mxu0
        %4893 = vdwg.mxu0
        %4894 = vmatprep.subr.bf16.mxu0 %v4113
        %4895 = vmatpush1.bf16.msra.mxu0 %v4112
        %4896 = vmatprep.subr.bf16.mxu0 %v4117
        %4897 = vmatpush1.bf16.msra.mxu0 %v4116
        %4898 = vmatprep.subr.bf16.mxu0 %v4121
        %4899 = vmatpush1.bf16.msra.mxu0 %v4120
        %4900 = vmatprep.subr.bf16.mxu0 %v4125
        %4901 = vmatpush1.bf16.msra.mxu0 %v4124
        %4902 = vmatprep.subr.bf16.mxu0 %v4129
        %4903 = vmatpush1.bf16.msra.mxu0 %v4128
        %4904 = vmatprep.subr.bf16.mxu0 %v4133
        %4905 = vmatpush1.bf16.msra.mxu0 %v4132
        %4906 = vmatprep.subr.bf16.mxu0 %v4137
        %4907 = vmatpush1.bf16.msra.mxu0 %v4136
        %4908 = vmatprep.subr.bf16.mxu0 %v4141
        %4909 = vmatpush1.bf16.msra.mxu0 %v4140
        %4910 = vmatprep.subr.bf16.mxu0 %v4145
        %4911 = vmatpush1.bf16.msra.mxu0 %v4144
        %4912 = vmatprep.subr.bf16.mxu0 %v4149
        %4913 = vmatpush1.bf16.msra.mxu0 %v4148
        %4914 = vmatprep.subr.bf16.mxu0 %v4153
        %4915 = vmatpush1.bf16.msra.mxu0 %v4152
        %4916 = vmatprep.subr.bf16.mxu0 %v4157
        %4917 = vmatpush1.bf16.msra.mxu0 %v4156
        %4918 = vmatprep.subr.bf16.mxu0 %v4161
        %4919 = vmatpush1.bf16.msra.mxu0 %v4160
        %4920 = vmatprep.subr.bf16.mxu0 %v4165
        %4921 = vmatpush1.bf16.msra.mxu0 %v4164
        %4922 = vmatprep.subr.bf16.mxu0 %v4169
        %4923 = vmatpush1.bf16.msra.mxu0 %v4168
        %4924 = vmatprep.subr.bf16.mxu0 %v4173
        %4925 = vmatpush1.bf16.msra.mxu0 %v4172
        %4926 = vmatprep.mubr.bf16.mxu0 %v4395
        %4927 = vmatmul.mubr.bf16.gmra.mrb[0].mxu0 %v4394
        %v4928 = vpop.f32.mrb[0].mxu0
        %v4929 = vadd.f32 %v4888, %v4928
        %v4930 = vpop.f32.mrb[0].mxu0
        %v4931 = vadd.f32 %v4890, %v4930
        %v4932 = vpop.f32.mrb[0].mxu0
        %v4933 = vpop.f32.mrb[0].mxu0
        %4934 = vdwg.mxu0
        %4935 = vmatprep.subr.bf16.mxu0 %v4177
        %4936 = vmatpush1.bf16.msra.mxu0 %v4176
        %4937 = vmatprep.subr.bf16.mxu0 %v4181
        %4938 = vmatpush1.bf16.msra.mxu0 %v4180
        %4939 = vmatprep.subr.bf16.mxu0 %v4185
        %4940 = vmatpush1.bf16.msra.mxu0 %v4184
        %4941 = vmatprep.subr.bf16.mxu0 %v4189
        %4942 = vmatpush1.bf16.msra.mxu0 %v4188
        %4943 = vmatprep.subr.bf16.mxu0 %v4193
        %4944 = vmatpush1.bf16.msra.mxu0 %v4192
        %4945 = vmatprep.subr.bf16.mxu0 %v4197
        %4946 = vmatpush1.bf16.msra.mxu0 %v4196
        %4947 = vmatprep.subr.bf16.mxu0 %v4201
        %4948 = vmatpush1.bf16.msra.mxu0 %v4200
        %4949 = vmatprep.subr.bf16.mxu0 %v4205
        %4950 = vmatpush1.bf16.msra.mxu0 %v4204
        %4951 = vmatprep.subr.bf16.mxu0 %v4209
        %4952 = vmatpush1.bf16.msra.mxu0 %v4208
        %4953 = vmatprep.subr.bf16.mxu0 %v4213
        %4954 = vmatpush1.bf16.msra.mxu0 %v4212
        %4955 = vmatprep.subr.bf16.mxu0 %v4217
        %4956 = vmatpush1.bf16.msra.mxu0 %v4216
        %4957 = vmatprep.subr.bf16.mxu0 %v4221
        %4958 = vmatpush1.bf16.msra.mxu0 %v4220
        %4959 = vmatprep.subr.bf16.mxu0 %v4225
        %4960 = vmatpush1.bf16.msra.mxu0 %v4224
        %4961 = vmatprep.subr.bf16.mxu0 %v4229
        %4962 = vmatpush1.bf16.msra.mxu0 %v4228
        %4963 = vmatprep.subr.bf16.mxu0 %v4233
        %4964 = vmatpush1.bf16.msra.mxu0 %v4232
        %4965 = vmatprep.subr.bf16.mxu0 %v4237
        %4966 = vmatpush1.bf16.msra.mxu0 %v4236
        %4967 = vmatprep.mubr.bf16.mxu0 %v4397
        %4968 = vmatmul.mubr.bf16.gmra.mrb[0].mxu0 %v4396
        %v4969 = vpop.f32.mrb[0].mxu0
        %v4970 = vadd.f32 %v4929, %v4969
        %v4971 = vpop.f32.mrb[0].mxu0
        %v4972 = vadd.f32 %v4931, %v4971
        %v4973 = vpop.f32.mrb[0].mxu0
        %v4974 = vpop.f32.mrb[0].mxu0
        %4975 = vdwg.mxu0
        %4976 = vmatprep.subr.bf16.mxu0 %v4241
        %4977 = vmatpush1.bf16.msra.mxu0 %v4240
        %4978 = vmatprep.subr.bf16.mxu0 %v4245
        %4979 = vmatpush1.bf16.msra.mxu0 %v4244
        %4980 = vmatprep.subr.bf16.mxu0 %v4249
        %4981 = vmatpush1.bf16.msra.mxu0 %v4248
        %4982 = vmatprep.subr.bf16.mxu0 %v4253
        %4983 = vmatpush1.bf16.msra.mxu0 %v4252
        %4984 = vmatprep.subr.bf16.mxu0 %v4257
        %4985 = vmatpush1.bf16.msra.mxu0 %v4256
        %4986 = vmatprep.subr.bf16.mxu0 %v4261
        %4987 = vmatpush1.bf16.msra.mxu0 %v4260
        %4988 = vmatprep.subr.bf16.mxu0 %v4265
        %4989 = vmatpush1.bf16.msra.mxu0 %v4264
        %4990 = vmatprep.subr.bf16.mxu0 %v4269
        %4991 = vmatpush1.bf16.msra.mxu0 %v4268
        %4992 = vmatprep.subr.bf16.mxu0 %v4273
        %4993 = vmatpush1.bf16.msra.mxu0 %v4272
        %4994 = vmatprep.subr.bf16.mxu0 %v4277
        %4995 = vmatpush1.bf16.msra.mxu0 %v4276
        %4996 = vmatprep.subr.bf16.mxu0 %v4281
        %4997 = vmatpush1.bf16.msra.mxu0 %v4280
        %4998 = vmatprep.subr.bf16.mxu0 %v4285
        %4999 = vmatpush1.bf16.msra.mxu0 %v4284
        %5000 = vmatprep.subr.bf16.mxu0 %v4289
        %5001 = vmatpush1.bf16.msra.mxu0 %v4288
        %5002 = vmatprep.subr.bf16.mxu0 %v4293
        %5003 = vmatpush1.bf16.msra.mxu0 %v4292
        %5004 = vmatprep.subr.bf16.mxu0 %v4297
        %5005 = vmatpush1.bf16.msra.mxu0 %v4296
        %5006 = vmatprep.subr.bf16.mxu0 %v4301
        %5007 = vmatpush1.bf16.msra.mxu0 %v4300
        %5008 = vmatprep.mubr.bf16.mxu0 %v4399
        %5009 = vmatmul.mubr.bf16.gmra.mrb[0].mxu0 %v4398
        %v5010 = vpop.f32.mrb[0].mxu0
        %v5011 = vadd.f32 %v4970, %v5010
        %v5012 = vpop.f32.mrb[0].mxu0
        %v5013 = vadd.f32 %v4972, %v5012
        %v5014 = vpop.f32.mrb[0].mxu0
        %v5015 = vpop.f32.mrb[0].mxu0
        %5016 = vdwg.mxu0
        %5017 = vmatprep.subr.bf16.mxu0 %v4305
        %5018 = vmatpush1.bf16.msra.mxu0 %v4304
        %5019 = vmatprep.subr.bf16.mxu0 %v4309
        %5020 = vmatpush1.bf16.msra.mxu0 %v4308
        %5021 = vmatprep.subr.bf16.mxu0 %v4313
        %5022 = vmatpush1.bf16.msra.mxu0 %v4312
        %5023 = vmatprep.subr.bf16.mxu0 %v4317
        %5024 = vmatpush1.bf16.msra.mxu0 %v4316
        %5025 = vmatprep.subr.bf16.mxu0 %v4321
        %5026 = vmatpush1.bf16.msra.mxu0 %v4320
        %5027 = vmatprep.subr.bf16.mxu0 %v4325
        %5028 = vmatpush1.bf16.msra.mxu0 %v4324
        %5029 = vmatprep.subr.bf16.mxu0 %v4329
        %5030 = vmatpush1.bf16.msra.mxu0 %v4328
        %5031 = vmatprep.subr.bf16.mxu0 %v4333
        %5032 = vmatpush1.bf16.msra.mxu0 %v4332
        %5033 = vmatprep.subr.bf16.mxu0 %v4337
        %5034 = vmatpush1.bf16.msra.mxu0 %v4336
        %5035 = vmatprep.subr.bf16.mxu0 %v4341
        %5036 = vmatpush1.bf16.msra.mxu0 %v4340
        %5037 = vmatprep.subr.bf16.mxu0 %v4345
        %5038 = vmatpush1.bf16.msra.mxu0 %v4344
        %5039 = vmatprep.subr.bf16.mxu0 %v4349
        %5040 = vmatpush1.bf16.msra.mxu0 %v4348
        %5041 = vmatprep.subr.bf16.mxu0 %v4353
        %5042 = vmatpush1.bf16.msra.mxu0 %v4352
        %5043 = vmatprep.subr.bf16.mxu0 %v4357
        %5044 = vmatpush1.bf16.msra.mxu0 %v4356
        %5045 = vmatprep.subr.bf16.mxu0 %v4361
        %5046 = vmatpush1.bf16.msra.mxu0 %v4360
        %5047 = vmatprep.subr.bf16.mxu0 %v4365
        %5048 = vmatpush1.bf16.msra.mxu0 %v4364
        %5049 = vmatprep.mubr.bf16.mxu0 %v4401
        %5050 = vmatmul.mubr.bf16.gmra.mrb[0].mxu0 %v4400
        %v5051 = vpop.f32.mrb[0].mxu0
        %v5052 = vadd.f32 %v5011, %v5051
        %v5053 = vpop.f32.mrb[0].mxu0
        %v5054 = vadd.f32 %v5013, %v5053
        %v5055 = vpop.f32.mrb[0].mxu0
        %v5056 = vpop.f32.mrb[0].mxu0
        %5057 = vdwg.mxu0
        %v5058 = vadd.f32 %v4366, %v4724
        %v5059 = vadd.f32 %v4367, %v4726
        %v5060 = vadd.f32 %v4368, %v5052
        %v5061 = vadd.f32 %v4369, %v5054
        %5062 = vst [vmem:[#allocation2] sm:$0xff] %v5058
        %5063 = vst [vmem:[#allocation2 + $0x8] sm:$0xff] %v5059
        %5064 = vst [vmem:[#allocation2 + $0x10] sm:$0xff] %v5060
        %5065 = vst [vmem:[#allocation2 + $0x18] sm:$0xff] %v5061
        %p5066 = scmp.eq.s32.totalorder %s30, 1
        // Predicated region
        $region97: #{tpu_custom_call.1} parent=55 // pred_check
          %p5067 = pneg %p5066
        $region98: #{tpu_custom_call.1} parent=55 // pred_check_branch
          %5069 = sbr.rel (%p5067) target = $region100
        $region99: #{tpu_custom_call.1} parent=55 // pred_region
          %v5070 = vld [vmem:[#allocation2] sm:$0xff]
          %v5071 = vld [vmem:[#allocation2 + $0x8] sm:$0xff]
          %v5072 = vld [vmem:[#allocation2 + $0x10] sm:$0xff]
          %v5073 = vld [vmem:[#allocation2 + $0x18] sm:$0xff]
          %s5074 = scalar_lea.vmem [#allocation8], 2
          %v5075 = vld [vmem:[%s5074] ss:$4 sm:$0xf]
          %s5076 = scalar_lea.vmem [#allocation8], 3
          %v5077 = vld [vmem:[%s5076] ss:$4 sm:$0xf]
          %v5078 = vrot.slane %v5070, 4
          %v5079 = vadd.f32 %v5070, %v5078
          %v5080 = vrot.slane %v5079, 2
          %v5081 = vadd.f32 %v5079, %v5080
          %v5082 = vrot.slane %v5081, 1
          %v5083 = vadd.f32 %v5081, %v5082
          %v5084 = vrot.slane %v5071, 4
          %v5085 = vadd.f32 %v5071, %v5084
          %v5086 = vrot.slane %v5085, 2
          %v5087 = vadd.f32 %v5085, %v5086
          %v5088 = vrot.slane %v5087, 1
          %v5089 = vadd.f32 %v5087, %v5088
          %v5090 = vrot.slane %v5072, 4
          %v5091 = vadd.f32 %v5072, %v5090
          %v5092 = vrot.slane %v5091, 2
          %v5093 = vadd.f32 %v5091, %v5092
          %v5094 = vrot.slane %v5093, 1
          %v5095 = vadd.f32 %v5093, %v5094
          %v5096 = vrot.slane %v5073, 4
          %v5097 = vadd.f32 %v5073, %v5096
          %v5098 = vrot.slane %v5097, 2
          %v5099 = vadd.f32 %v5097, %v5098
          %v5100 = vrot.slane %v5099, 1
          %v5101 = vadd.f32 %v5099, %v5100
          %v5102 = vrcp.pop 8.0
          %v5103 = vmul.f32 %v5083, %v5102
          %v5104 = vmul.f32 %v5089, %v5102
          %v5105 = vmul.f32 %v5095, %v5102
          %v5106 = vmul.f32 %v5101, %v5102
          %v5107 = vsub.f32 %v5070, %v5103
          %v5108 = vsub.f32 %v5071, %v5104
          %v5109 = vsub.f32 %v5072, %v5105
          %v5110 = vsub.f32 %v5073, %v5106
          %v5111 = vmul.f32 %v5107, %v5107
          %v5112 = vmul.f32 %v5108, %v5108
          %v5113 = vmul.f32 %v5109, %v5109
          %v5114 = vmul.f32 %v5110, %v5110
          %v5115 = vrot.slane %v5111, 4
          %v5116 = vadd.f32 %v5111, %v5115
          %v5117 = vrot.slane %v5116, 2
          %v5118 = vadd.f32 %v5116, %v5117
          %v5119 = vrot.slane %v5118, 1
          %v5120 = vadd.f32 %v5118, %v5119
          %v5121 = vrot.slane %v5112, 4
          %v5122 = vadd.f32 %v5112, %v5121
          %v5123 = vrot.slane %v5122, 2
          %v5124 = vadd.f32 %v5122, %v5123
          %v5125 = vrot.slane %v5124, 1
          %v5126 = vadd.f32 %v5124, %v5125
          %v5127 = vrot.slane %v5113, 4
          %v5128 = vadd.f32 %v5113, %v5127
          %v5129 = vrot.slane %v5128, 2
          %v5130 = vadd.f32 %v5128, %v5129
          %v5131 = vrot.slane %v5130, 1
          %v5132 = vadd.f32 %v5130, %v5131
          %v5133 = vrot.slane %v5114, 4
          %v5134 = vadd.f32 %v5114, %v5133
          %v5135 = vrot.slane %v5134, 2
          %v5136 = vadd.f32 %v5134, %v5135
          %v5137 = vrot.slane %v5136, 1
          %v5138 = vadd.f32 %v5136, %v5137
          %v5139 = vmul.f32 %v5120, %v5102
          %v5140 = vmul.f32 %v5126, %v5102
          %v5141 = vmul.f32 %v5132, %v5102
          %v5142 = vmul.f32 %v5138, %v5102
          %v5143 = vadd.f32 %v5139, 1e-05
          %v5144 = vadd.f32 %v5140, 1e-05
          %v5145 = vadd.f32 %v5141, 1e-05
          %v5146 = vadd.f32 %v5142, 1e-05
          %v5147 = vrsqrt.pop %v5143
          %v5148 = vrsqrt.pop %v5144
          %v5149 = vrsqrt.pop %v5145
          %v5150 = vrsqrt.pop %v5146
          %v5151 = vmul.f32 %v5107, %v5147
          %v5152 = vmul.f32 %v5108, %v5148
          %v5153 = vmul.f32 %v5109, %v5149
          %v5154 = vmul.f32 %v5110, %v5150
          %v5156 = vlaneseq
          %v5157 = vshrl.u32 %v5156, 7
          %v5158 = vsub.s32 0, %v5157
          %v5159 = vrot.slane %v5075, %v5158
          %v5160 = vlaneseq
          %v5161 = vshrl.u32 %v5160, 7
          %v5162 = vsub.s32 1, %v5161
          %v5163 = vrot.slane %v5075, %v5162
          %v5164 = vlaneseq
          %v5165 = vshrl.u32 %v5164, 7
          %v5166 = vsub.s32 2, %v5165
          %v5167 = vrot.slane %v5075, %v5166
          %v5168 = vlaneseq
          %v5169 = vshrl.u32 %v5168, 7
          %v5170 = vsub.s32 3, %v5169
          %v5171 = vrot.slane %v5075, %v5170
          %v5176 = vmul.f32 %v5151, %v5159
          %v5177 = vmul.f32 %v5152, %v5163
          %v5178 = vmul.f32 %v5153, %v5167
          %v5179 = vmul.f32 %v5154, %v5171
          %v5181 = vlaneseq
          %v5182 = vshrl.u32 %v5181, 7
          %v5183 = vsub.s32 0, %v5182
          %v5184 = vrot.slane %v5077, %v5183
          %v5185 = vlaneseq
          %v5186 = vshrl.u32 %v5185, 7
          %v5187 = vsub.s32 1, %v5186
          %v5188 = vrot.slane %v5077, %v5187
          %v5189 = vlaneseq
          %v5190 = vshrl.u32 %v5189, 7
          %v5191 = vsub.s32 2, %v5190
          %v5192 = vrot.slane %v5077, %v5191
          %v5193 = vlaneseq
          %v5194 = vshrl.u32 %v5193, 7
          %v5195 = vsub.s32 3, %v5194
          %v5196 = vrot.slane %v5077, %v5195
          %v5201 = vadd.f32 %v5176, %v5184
          %v5202 = vadd.f32 %v5177, %v5188
          %v5203 = vadd.f32 %v5178, %v5192
          %v5204 = vadd.f32 %v5179, %v5196
          %v5205 = vmax.f32 %v5201, 0.0
          %v5206 = vmax.f32 %v5202, 0.0
          %v5207 = vmax.f32 %v5203, 0.0
          %v5208 = vmax.f32 %v5204, 0.0
          %v5209 = vpack.c.bf16 %v5205, %v5205
          %v5210 = vpack.c.bf16 %v5206, %v5206
          %v5211 = vpack.c.bf16 %v5207, %v5207
          %v5212 = vpack.c.bf16 %v5208, %v5208
          %v5213 = vld [vmem:[#allocation9] sm:$0xff]
          %v5214 = vld [vmem:[#allocation9 + $0x8] sm:$0xff]
          %v5215 = vld [vmem:[#allocation9 + $0x10] sm:$0xff]
          %v5216 = vld [vmem:[#allocation9 + $0x18] sm:$0xff]
          %v5217 = vld [vmem:[#allocation9 + $0x20] sm:$0xff]
          %v5218 = vld [vmem:[#allocation9 + $0x28] sm:$0xff]
          %v5219 = vld [vmem:[#allocation9 + $0x30] sm:$0xff]
          %v5220 = vld [vmem:[#allocation9 + $0x38] sm:$0xff]
          %v5221 = vld [vmem:[#allocation9 + $0x40] sm:$0xff]
          %v5222 = vld [vmem:[#allocation9 + $0x48] sm:$0xff]
          %v5223 = vld [vmem:[#allocation9 + $0x50] sm:$0xff]
          %v5224 = vld [vmem:[#allocation9 + $0x58] sm:$0xff]
          %v5225 = vld [vmem:[#allocation9 + $0x60] sm:$0xff]
          %v5226 = vld [vmem:[#allocation9 + $0x68] sm:$0xff]
          %v5227 = vld [vmem:[#allocation9 + $0x70] sm:$0xff]
          %v5228 = vld [vmem:[#allocation9 + $0x78] sm:$0xff]
          %v5229 = vld [vmem:[#allocation9 + $0x80] sm:$0xff]
          %v5230 = vld [vmem:[#allocation9 + $0x88] sm:$0xff]
          %v5231 = vld [vmem:[#allocation9 + $0x90] sm:$0xff]
          %v5232 = vld [vmem:[#allocation9 + $0x98] sm:$0xff]
          %v5233 = vld [vmem:[#allocation9 + $0xa0] sm:$0xff]
          %v5234 = vld [vmem:[#allocation9 + $0xa8] sm:$0xff]
          %v5235 = vld [vmem:[#allocation9 + $0xb0] sm:$0xff]
          %v5236 = vld [vmem:[#allocation9 + $0xb8] sm:$0xff]
          %v5237 = vld [vmem:[#allocation9 + $0xc0] sm:$0xff]
          %v5238 = vld [vmem:[#allocation9 + $0xc8] sm:$0xff]
          %v5239 = vld [vmem:[#allocation9 + $0xd0] sm:$0xff]
          %v5240 = vld [vmem:[#allocation9 + $0xd8] sm:$0xff]
          %v5241 = vld [vmem:[#allocation9 + $0xe0] sm:$0xff]
          %v5242 = vld [vmem:[#allocation9 + $0xe8] sm:$0xff]
          %v5243 = vld [vmem:[#allocation9 + $0xf0] sm:$0xff]
          %v5244 = vld [vmem:[#allocation9 + $0xf8] sm:$0xff]
          %v5245 = vld [vmem:[#allocation9 + $0x100] sm:$0xff]
          %v5246 = vld [vmem:[#allocation9 + $0x108] sm:$0xff]
          %v5247 = vld [vmem:[#allocation9 + $0x110] sm:$0xff]
          %v5248 = vld [vmem:[#allocation9 + $0x118] sm:$0xff]
          %v5249 = vld [vmem:[#allocation9 + $0x120] sm:$0xff]
          %v5250 = vld [vmem:[#allocation9 + $0x128] sm:$0xff]
          %v5251 = vld [vmem:[#allocation9 + $0x130] sm:$0xff]
          %v5252 = vld [vmem:[#allocation9 + $0x138] sm:$0xff]
          %v5253 = vld [vmem:[#allocation9 + $0x140] sm:$0xff]
          %v5254 = vld [vmem:[#allocation9 + $0x148] sm:$0xff]
          %v5255 = vld [vmem:[#allocation9 + $0x150] sm:$0xff]
          %v5256 = vld [vmem:[#allocation9 + $0x158] sm:$0xff]
          %v5257 = vld [vmem:[#allocation9 + $0x160] sm:$0xff]
          %v5258 = vld [vmem:[#allocation9 + $0x168] sm:$0xff]
          %v5259 = vld [vmem:[#allocation9 + $0x170] sm:$0xff]
          %v5260 = vld [vmem:[#allocation9 + $0x178] sm:$0xff]
          %v5261 = vld [vmem:[#allocation9 + $0x180] sm:$0xff]
          %v5262 = vld [vmem:[#allocation9 + $0x188] sm:$0xff]
          %v5263 = vld [vmem:[#allocation9 + $0x190] sm:$0xff]
          %v5264 = vld [vmem:[#allocation9 + $0x198] sm:$0xff]
          %v5265 = vld [vmem:[#allocation9 + $0x1a0] sm:$0xff]
          %v5266 = vld [vmem:[#allocation9 + $0x1a8] sm:$0xff]
          %v5267 = vld [vmem:[#allocation9 + $0x1b0] sm:$0xff]
          %v5268 = vld [vmem:[#allocation9 + $0x1b8] sm:$0xff]
          %v5269 = vld [vmem:[#allocation9 + $0x1c0] sm:$0xff]
          %v5270 = vld [vmem:[#allocation9 + $0x1c8] sm:$0xff]
          %v5271 = vld [vmem:[#allocation9 + $0x1d0] sm:$0xff]
          %v5272 = vld [vmem:[#allocation9 + $0x1d8] sm:$0xff]
          %v5273 = vld [vmem:[#allocation9 + $0x1e0] sm:$0xff]
          %v5274 = vld [vmem:[#allocation9 + $0x1e8] sm:$0xff]
          %v5275 = vld [vmem:[#allocation9 + $0x1f0] sm:$0xff]
          %v5276 = vld [vmem:[#allocation9 + $0x1f8] sm:$0xff]
          %v5277 = vld [vmem:[#allocation11] ss:$4 sm:$0x3]
          %v5279 = vlaneseq
          %v5280 = vshrl.u32 %v5279, 7
          %v5281 = vsub.s32 0, %v5280
          %v5282 = vrot.slane %v5277, %v5281
          %v5283 = vlaneseq
          %v5284 = vshrl.u32 %v5283, 7
          %v5285 = vsub.s32 1, %v5284
          %v5286 = vrot.slane %v5277, %v5285
          %v5353 = vunpack.c.l.b16 %v5213
          %v5354 = vunpack.c.h.b16 %v5213
          %v5355 = vunpack.c.l.b16 %v5214
          %v5356 = vunpack.c.h.b16 %v5214
          %v5357 = vunpack.c.l.b16 %v5215
          %v5358 = vunpack.c.h.b16 %v5215
          %v5359 = vunpack.c.l.b16 %v5216
          %v5360 = vunpack.c.h.b16 %v5216
          %v5361 = vunpack.c.l.b16 %v5217
          %v5362 = vunpack.c.h.b16 %v5217
          %v5363 = vunpack.c.l.b16 %v5218
          %v5364 = vunpack.c.h.b16 %v5218
          %v5365 = vunpack.c.l.b16 %v5219
          %v5366 = vunpack.c.h.b16 %v5219
          %v5367 = vunpack.c.l.b16 %v5220
          %v5368 = vunpack.c.h.b16 %v5220
          %v5369 = vunpack.c.l.b16 %v5221
          %v5370 = vunpack.c.h.b16 %v5221
          %v5371 = vunpack.c.l.b16 %v5222
          %v5372 = vunpack.c.h.b16 %v5222
          %v5373 = vunpack.c.l.b16 %v5223
          %v5374 = vunpack.c.h.b16 %v5223
          %v5375 = vunpack.c.l.b16 %v5224
          %v5376 = vunpack.c.h.b16 %v5224
          %v5377 = vunpack.c.l.b16 %v5225
          %v5378 = vunpack.c.h.b16 %v5225
          %v5379 = vunpack.c.l.b16 %v5226
          %v5380 = vunpack.c.h.b16 %v5226
          %v5381 = vunpack.c.l.b16 %v5227
          %v5382 = vunpack.c.h.b16 %v5227
          %v5383 = vunpack.c.l.b16 %v5228
          %v5384 = vunpack.c.h.b16 %v5228
          %v5385 = vunpack.c.l.b16 %v5229
          %v5386 = vunpack.c.h.b16 %v5229
          %v5387 = vunpack.c.l.b16 %v5230
          %v5388 = vunpack.c.h.b16 %v5230
          %v5389 = vunpack.c.l.b16 %v5231
          %v5390 = vunpack.c.h.b16 %v5231
          %v5391 = vunpack.c.l.b16 %v5232
          %v5392 = vunpack.c.h.b16 %v5232
          %v5393 = vunpack.c.l.b16 %v5233
          %v5394 = vunpack.c.h.b16 %v5233
          %v5395 = vunpack.c.l.b16 %v5234
          %v5396 = vunpack.c.h.b16 %v5234
          %v5397 = vunpack.c.l.b16 %v5235
          %v5398 = vunpack.c.h.b16 %v5235
          %v5399 = vunpack.c.l.b16 %v5236
          %v5400 = vunpack.c.h.b16 %v5236
          %v5401 = vunpack.c.l.b16 %v5237
          %v5402 = vunpack.c.h.b16 %v5237
          %v5403 = vunpack.c.l.b16 %v5238
          %v5404 = vunpack.c.h.b16 %v5238
          %v5405 = vunpack.c.l.b16 %v5239
          %v5406 = vunpack.c.h.b16 %v5239
          %v5407 = vunpack.c.l.b16 %v5240
          %v5408 = vunpack.c.h.b16 %v5240
          %v5409 = vunpack.c.l.b16 %v5241
          %v5410 = vunpack.c.h.b16 %v5241
          %v5411 = vunpack.c.l.b16 %v5242
          %v5412 = vunpack.c.h.b16 %v5242
          %v5413 = vunpack.c.l.b16 %v5243
          %v5414 = vunpack.c.h.b16 %v5243
          %v5415 = vunpack.c.l.b16 %v5244
          %v5416 = vunpack.c.h.b16 %v5244
          %v5417 = vunpack.c.l.b16 %v5245
          %v5418 = vunpack.c.h.b16 %v5245
          %v5419 = vunpack.c.l.b16 %v5246
          %v5420 = vunpack.c.h.b16 %v5246
          %v5421 = vunpack.c.l.b16 %v5247
          %v5422 = vunpack.c.h.b16 %v5247
          %v5423 = vunpack.c.l.b16 %v5248
          %v5424 = vunpack.c.h.b16 %v5248
          %v5425 = vunpack.c.l.b16 %v5249
          %v5426 = vunpack.c.h.b16 %v5249
          %v5427 = vunpack.c.l.b16 %v5250
          %v5428 = vunpack.c.h.b16 %v5250
          %v5429 = vunpack.c.l.b16 %v5251
          %v5430 = vunpack.c.h.b16 %v5251
          %v5431 = vunpack.c.l.b16 %v5252
          %v5432 = vunpack.c.h.b16 %v5252
          %v5433 = vunpack.c.l.b16 %v5253
          %v5434 = vunpack.c.h.b16 %v5253
          %v5435 = vunpack.c.l.b16 %v5254
          %v5436 = vunpack.c.h.b16 %v5254
          %v5437 = vunpack.c.l.b16 %v5255
          %v5438 = vunpack.c.h.b16 %v5255
          %v5439 = vunpack.c.l.b16 %v5256
          %v5440 = vunpack.c.h.b16 %v5256
          %v5441 = vunpack.c.l.b16 %v5257
          %v5442 = vunpack.c.h.b16 %v5257
          %v5443 = vunpack.c.l.b16 %v5258
          %v5444 = vunpack.c.h.b16 %v5258
          %v5445 = vunpack.c.l.b16 %v5259
          %v5446 = vunpack.c.h.b16 %v5259
          %v5447 = vunpack.c.l.b16 %v5260
          %v5448 = vunpack.c.h.b16 %v5260
          %v5449 = vunpack.c.l.b16 %v5261
          %v5450 = vunpack.c.h.b16 %v5261
          %v5451 = vunpack.c.l.b16 %v5262
          %v5452 = vunpack.c.h.b16 %v5262
          %v5453 = vunpack.c.l.b16 %v5263
          %v5454 = vunpack.c.h.b16 %v5263
          %v5455 = vunpack.c.l.b16 %v5264
          %v5456 = vunpack.c.h.b16 %v5264
          %v5457 = vunpack.c.l.b16 %v5265
          %v5458 = vunpack.c.h.b16 %v5265
          %v5459 = vunpack.c.l.b16 %v5266
          %v5460 = vunpack.c.h.b16 %v5266
          %v5461 = vunpack.c.l.b16 %v5267
          %v5462 = vunpack.c.h.b16 %v5267
          %v5463 = vunpack.c.l.b16 %v5268
          %v5464 = vunpack.c.h.b16 %v5268
          %v5465 = vunpack.c.l.b16 %v5269
          %v5466 = vunpack.c.h.b16 %v5269
          %v5467 = vunpack.c.l.b16 %v5270
          %v5468 = vunpack.c.h.b16 %v5270
          %v5469 = vunpack.c.l.b16 %v5271
          %v5470 = vunpack.c.h.b16 %v5271
          %v5471 = vunpack.c.l.b16 %v5272
          %v5472 = vunpack.c.h.b16 %v5272
          %v5473 = vunpack.c.l.b16 %v5273
          %v5474 = vunpack.c.h.b16 %v5273
          %v5475 = vunpack.c.l.b16 %v5274
          %v5476 = vunpack.c.h.b16 %v5274
          %v5477 = vunpack.c.l.b16 %v5275
          %v5478 = vunpack.c.h.b16 %v5275
          %v5479 = vunpack.c.l.b16 %v5276
          %v5480 = vunpack.c.h.b16 %v5276
          %v5481 = vpack.c.b16 %v5355, %v5353
          %v5482 = vpack.c.b16 %v5356, %v5354
          %v5483 = vpack.c.b16 %v5359, %v5357
          %v5484 = vpack.c.b16 %v5360, %v5358
          %v5485 = vpack.c.b16 %v5363, %v5361
          %v5486 = vpack.c.b16 %v5364, %v5362
          %v5487 = vpack.c.b16 %v5367, %v5365
          %v5488 = vpack.c.b16 %v5368, %v5366
          %v5489 = vpack.c.b16 %v5371, %v5369
          %v5490 = vpack.c.b16 %v5372, %v5370
          %v5491 = vpack.c.b16 %v5375, %v5373
          %v5492 = vpack.c.b16 %v5376, %v5374
          %v5493 = vpack.c.b16 %v5379, %v5377
          %v5494 = vpack.c.b16 %v5380, %v5378
          %v5495 = vpack.c.b16 %v5383, %v5381
          %v5496 = vpack.c.b16 %v5384, %v5382
          %v5497 = vpack.c.b16 %v5387, %v5385
          %v5498 = vpack.c.b16 %v5388, %v5386
          %v5499 = vpack.c.b16 %v5391, %v5389
          %v5500 = vpack.c.b16 %v5392, %v5390
          %v5501 = vpack.c.b16 %v5395, %v5393
          %v5502 = vpack.c.b16 %v5396, %v5394
          %v5503 = vpack.c.b16 %v5399, %v5397
          %v5504 = vpack.c.b16 %v5400, %v5398
          %v5505 = vpack.c.b16 %v5403, %v5401
          %v5506 = vpack.c.b16 %v5404, %v5402
          %v5507 = vpack.c.b16 %v5407, %v5405
          %v5508 = vpack.c.b16 %v5408, %v5406
          %v5509 = vpack.c.b16 %v5411, %v5409
          %v5510 = vpack.c.b16 %v5412, %v5410
          %v5511 = vpack.c.b16 %v5415, %v5413
          %v5512 = vpack.c.b16 %v5416, %v5414
          %v5513 = vpack.c.b16 %v5419, %v5417
          %v5514 = vpack.c.b16 %v5420, %v5418
          %v5515 = vpack.c.b16 %v5423, %v5421
          %v5516 = vpack.c.b16 %v5424, %v5422
          %v5517 = vpack.c.b16 %v5427, %v5425
          %v5518 = vpack.c.b16 %v5428, %v5426
          %v5519 = vpack.c.b16 %v5431, %v5429
          %v5520 = vpack.c.b16 %v5432, %v5430
          %v5521 = vpack.c.b16 %v5435, %v5433
          %v5522 = vpack.c.b16 %v5436, %v5434
          %v5523 = vpack.c.b16 %v5439, %v5437
          %v5524 = vpack.c.b16 %v5440, %v5438
          %v5525 = vpack.c.b16 %v5443, %v5441
          %v5526 = vpack.c.b16 %v5444, %v5442
          %v5527 = vpack.c.b16 %v5447, %v5445
          %v5528 = vpack.c.b16 %v5448, %v5446
          %v5529 = vpack.c.b16 %v5451, %v5449
          %v5530 = vpack.c.b16 %v5452, %v5450
          %v5531 = vpack.c.b16 %v5455, %v5453
          %v5532 = vpack.c.b16 %v5456, %v5454
          %v5533 = vpack.c.b16 %v5459, %v5457
          %v5534 = vpack.c.b16 %v5460, %v5458
          %v5535 = vpack.c.b16 %v5463, %v5461
          %v5536 = vpack.c.b16 %v5464, %v5462
          %v5537 = vpack.c.b16 %v5467, %v5465
          %v5538 = vpack.c.b16 %v5468, %v5466
          %v5539 = vpack.c.b16 %v5471, %v5469
          %v5540 = vpack.c.b16 %v5472, %v5470
          %v5541 = vpack.c.b16 %v5475, %v5473
          %v5542 = vpack.c.b16 %v5476, %v5474
          %v5543 = vpack.c.b16 %v5479, %v5477
          %v5544 = vpack.c.b16 %v5480, %v5478
          %5609 = vmatprep.subr.bf16.mxu0 %v5482
          %5610 = vmatpush1.bf16.msra.mxu0 %v5481
          %5611 = vmatprep.subr.bf16.mxu0 %v5484
          %5612 = vmatpush1.bf16.msra.mxu0 %v5483
          %5613 = vmatprep.subr.bf16.mxu0 %v5486
          %5614 = vmatpush1.bf16.msra.mxu0 %v5485
          %5615 = vmatprep.subr.bf16.mxu0 %v5488
          %5616 = vmatpush1.bf16.msra.mxu0 %v5487
          %5617 = vmatprep.subr.bf16.mxu0 %v5490
          %5618 = vmatpush1.bf16.msra.mxu0 %v5489
          %5619 = vmatprep.subr.bf16.mxu0 %v5492
          %5620 = vmatpush1.bf16.msra.mxu0 %v5491
          %5621 = vmatprep.subr.bf16.mxu0 %v5494
          %5622 = vmatpush1.bf16.msra.mxu0 %v5493
          %5623 = vmatprep.subr.bf16.mxu0 %v5496
          %5624 = vmatpush1.bf16.msra.mxu0 %v5495
          %5625 = vmatprep.subr.bf16.mxu0 %v5498
          %5626 = vmatpush1.bf16.msra.mxu0 %v5497
          %5627 = vmatprep.subr.bf16.mxu0 %v5500
          %5628 = vmatpush1.bf16.msra.mxu0 %v5499
          %5629 = vmatprep.subr.bf16.mxu0 %v5502
          %5630 = vmatpush1.bf16.msra.mxu0 %v5501
          %5631 = vmatprep.subr.bf16.mxu0 %v5504
          %5632 = vmatpush1.bf16.msra.mxu0 %v5503
          %5633 = vmatprep.subr.bf16.mxu0 %v5506
          %5634 = vmatpush1.bf16.msra.mxu0 %v5505
          %5635 = vmatprep.subr.bf16.mxu0 %v5508
          %5636 = vmatpush1.bf16.msra.mxu0 %v5507
          %5637 = vmatprep.subr.bf16.mxu0 %v5510
          %5638 = vmatpush1.bf16.msra.mxu0 %v5509
          %5639 = vmatprep.subr.bf16.mxu0 %v5512
          %5640 = vmatpush1.bf16.msra.mxu0 %v5511
          %5641 = vmatprep.mubr.bf16.mxu0 %v5210
          %5642 = vmatmul.mubr.bf16.gmra.mrb[0].mxu0 %v5209
          %v5643 = vpop.f32.mrb[0].mxu0
          %v5644 = vadd.f32 %v5282, %v5643
          %v5645 = vpop.f32.mrb[0].mxu0
          %v5646 = vadd.f32 %v5286, %v5645
          %v5647 = vpop.f32.mrb[0].mxu0
          %v5648 = vpop.f32.mrb[0].mxu0
          %5649 = vdwg.mxu0
          %5650 = vmatprep.subr.bf16.mxu0 %v5514
          %5651 = vmatpush1.bf16.msra.mxu0 %v5513
          %5652 = vmatprep.subr.bf16.mxu0 %v5516
          %5653 = vmatpush1.bf16.msra.mxu0 %v5515
          %5654 = vmatprep.subr.bf16.mxu0 %v5518
          %5655 = vmatpush1.bf16.msra.mxu0 %v5517
          %5656 = vmatprep.subr.bf16.mxu0 %v5520
          %5657 = vmatpush1.bf16.msra.mxu0 %v5519
          %5658 = vmatprep.subr.bf16.mxu0 %v5522
          %5659 = vmatpush1.bf16.msra.mxu0 %v5521
          %5660 = vmatprep.subr.bf16.mxu0 %v5524
          %5661 = vmatpush1.bf16.msra.mxu0 %v5523
          %5662 = vmatprep.subr.bf16.mxu0 %v5526
          %5663 = vmatpush1.bf16.msra.mxu0 %v5525
          %5664 = vmatprep.subr.bf16.mxu0 %v5528
          %5665 = vmatpush1.bf16.msra.mxu0 %v5527
          %5666 = vmatprep.subr.bf16.mxu0 %v5530
          %5667 = vmatpush1.bf16.msra.mxu0 %v5529
          %5668 = vmatprep.subr.bf16.mxu0 %v5532
          %5669 = vmatpush1.bf16.msra.mxu0 %v5531
          %5670 = vmatprep.subr.bf16.mxu0 %v5534
          %5671 = vmatpush1.bf16.msra.mxu0 %v5533
          %5672 = vmatprep.subr.bf16.mxu0 %v5536
          %5673 = vmatpush1.bf16.msra.mxu0 %v5535
          %5674 = vmatprep.subr.bf16.mxu0 %v5538
          %5675 = vmatpush1.bf16.msra.mxu0 %v5537
          %5676 = vmatprep.subr.bf16.mxu0 %v5540
          %5677 = vmatpush1.bf16.msra.mxu0 %v5539
          %5678 = vmatprep.subr.bf16.mxu0 %v5542
          %5679 = vmatpush1.bf16.msra.mxu0 %v5541
          %5680 = vmatprep.subr.bf16.mxu0 %v5544
          %5681 = vmatpush1.bf16.msra.mxu0 %v5543
          %5682 = vmatprep.mubr.bf16.mxu0 %v5212
          %5683 = vmatmul.mubr.bf16.gmra.mrb[0].mxu0 %v5211
          %v5684 = vpop.f32.mrb[0].mxu0
          %v5685 = vadd.f32 %v5644, %v5684
          %v5686 = vpop.f32.mrb[0].mxu0
          %v5687 = vadd.f32 %v5646, %v5686
          %v5688 = vpop.f32.mrb[0].mxu0
          %v5689 = vpop.f32.mrb[0].mxu0
          %5690 = vdwg.mxu0
          %s5691 = scalar_lea.vmem [#allocation11], 1
          %v5692 = vld [vmem:[%s5691] ss:$4 sm:$0x3]
          %s5693 = scalar_lea.vmem [#allocation11], 2
          %v5694 = vld [vmem:[%s5693] ss:$4 sm:$0x3]
          %v5695 = vrot.slane %v5685, 4
          %v5696 = vadd.f32 %v5685, %v5695
          %v5697 = vrot.slane %v5696, 2
          %v5698 = vadd.f32 %v5696, %v5697
          %v5699 = vrot.slane %v5698, 1
          %v5700 = vadd.f32 %v5698, %v5699
          %v5701 = vrot.slane %v5687, 4
          %v5702 = vadd.f32 %v5687, %v5701
          %v5703 = vrot.slane %v5702, 2
          %v5704 = vadd.f32 %v5702, %v5703
          %v5705 = vrot.slane %v5704, 1
          %v5706 = vadd.f32 %v5704, %v5705
          %v5707 = vmul.f32 %v5700, %v5102
          %v5708 = vmul.f32 %v5706, %v5102
          %v5709 = vsub.f32 %v5685, %v5707
          %v5710 = vsub.f32 %v5687, %v5708
          %v5711 = vmul.f32 %v5709, %v5709
          %v5712 = vmul.f32 %v5710, %v5710
          %v5713 = vrot.slane %v5711, 4
          %v5714 = vadd.f32 %v5711, %v5713
          %v5715 = vrot.slane %v5714, 2
          %v5716 = vadd.f32 %v5714, %v5715
          %v5717 = vrot.slane %v5716, 1
          %v5718 = vadd.f32 %v5716, %v5717
          %v5719 = vrot.slane %v5712, 4
          %v5720 = vadd.f32 %v5712, %v5719
          %v5721 = vrot.slane %v5720, 2
          %v5722 = vadd.f32 %v5720, %v5721
          %v5723 = vrot.slane %v5722, 1
          %v5724 = vadd.f32 %v5722, %v5723
          %v5725 = vmul.f32 %v5718, %v5102
          %v5726 = vmul.f32 %v5724, %v5102
          %v5727 = vadd.f32 %v5725, 1e-05
          %v5728 = vadd.f32 %v5726, 1e-05
          %v5729 = vrsqrt.pop %v5727
          %v5730 = vrsqrt.pop %v5728
          %v5731 = vmul.f32 %v5709, %v5729
          %v5732 = vmul.f32 %v5710, %v5730
          %v5734 = vlaneseq
          %v5735 = vshrl.u32 %v5734, 7
          %v5736 = vsub.s32 0, %v5735
          %v5737 = vrot.slane %v5692, %v5736
          %v5738 = vlaneseq
          %v5739 = vshrl.u32 %v5738, 7
          %v5740 = vsub.s32 1, %v5739
          %v5741 = vrot.slane %v5692, %v5740
          %v5744 = vmul.f32 %v5731, %v5737
          %v5745 = vmul.f32 %v5732, %v5741
          %v5747 = vlaneseq
          %v5748 = vshrl.u32 %v5747, 7
          %v5749 = vsub.s32 0, %v5748
          %v5750 = vrot.slane %v5694, %v5749
          %v5751 = vlaneseq
          %v5752 = vshrl.u32 %v5751, 7
          %v5753 = vsub.s32 1, %v5752
          %v5754 = vrot.slane %v5694, %v5753
          %v5757 = vadd.f32 %v5744, %v5750
          %v5758 = vadd.f32 %v5745, %v5754
          %v5759 = vmax.f32 %v5757, 0.0
          %v5760 = vmax.f32 %v5758, 0.0
          %v5761 = vpack.c.bf16 %v5759, %v5759
          %v5762 = vpack.c.bf16 %v5760, %v5760
          %v5763 = vld [vmem:[#allocation12] sm:$0xff]
          %v5764 = vld [vmem:[#allocation12 + $0x8] sm:$0xff]
          %v5765 = vld [vmem:[#allocation12 + $0x10] sm:$0xff]
          %v5766 = vld [vmem:[#allocation12 + $0x18] sm:$0xff]
          %v5767 = vld [vmem:[#allocation12 + $0x20] sm:$0xff]
          %v5768 = vld [vmem:[#allocation12 + $0x28] sm:$0xff]
          %v5769 = vld [vmem:[#allocation12 + $0x30] sm:$0xff]
          %v5770 = vld [vmem:[#allocation12 + $0x38] sm:$0xff]
          %v5771 = vld [vmem:[#allocation12 + $0x40] sm:$0xff]
          %v5772 = vld [vmem:[#allocation12 + $0x48] sm:$0xff]
          %v5773 = vld [vmem:[#allocation12 + $0x50] sm:$0xff]
          %v5774 = vld [vmem:[#allocation12 + $0x58] sm:$0xff]
          %v5775 = vld [vmem:[#allocation12 + $0x60] sm:$0xff]
          %v5776 = vld [vmem:[#allocation12 + $0x68] sm:$0xff]
          %v5777 = vld [vmem:[#allocation12 + $0x70] sm:$0xff]
          %v5778 = vld [vmem:[#allocation12 + $0x78] sm:$0xff]
          %v5779 = vld [vmem:[#allocation12 + $0x80] sm:$0xff]
          %v5780 = vld [vmem:[#allocation12 + $0x88] sm:$0xff]
          %v5781 = vld [vmem:[#allocation12 + $0x90] sm:$0xff]
          %v5782 = vld [vmem:[#allocation12 + $0x98] sm:$0xff]
          %v5783 = vld [vmem:[#allocation12 + $0xa0] sm:$0xff]
          %v5784 = vld [vmem:[#allocation12 + $0xa8] sm:$0xff]
          %v5785 = vld [vmem:[#allocation12 + $0xb0] sm:$0xff]
          %v5786 = vld [vmem:[#allocation12 + $0xb8] sm:$0xff]
          %v5787 = vld [vmem:[#allocation12 + $0xc0] sm:$0xff]
          %v5788 = vld [vmem:[#allocation12 + $0xc8] sm:$0xff]
          %v5789 = vld [vmem:[#allocation12 + $0xd0] sm:$0xff]
          %v5790 = vld [vmem:[#allocation12 + $0xd8] sm:$0xff]
          %v5791 = vld [vmem:[#allocation12 + $0xe0] sm:$0xff]
          %v5792 = vld [vmem:[#allocation12 + $0xe8] sm:$0xff]
          %v5793 = vld [vmem:[#allocation12 + $0xf0] sm:$0xff]
          %v5794 = vld [vmem:[#allocation12 + $0xf8] sm:$0xff]
          %v5795 = vld [vmem:[#allocation12 + $0x100] sm:$0xff]
          %v5796 = vld [vmem:[#allocation12 + $0x108] sm:$0xff]
          %v5797 = vld [vmem:[#allocation12 + $0x110] sm:$0xff]
          %v5798 = vld [vmem:[#allocation12 + $0x118] sm:$0xff]
          %v5799 = vld [vmem:[#allocation12 + $0x120] sm:$0xff]
          %v5800 = vld [vmem:[#allocation12 + $0x128] sm:$0xff]
          %v5801 = vld [vmem:[#allocation12 + $0x130] sm:$0xff]
          %v5802 = vld [vmem:[#allocation12 + $0x138] sm:$0xff]
          %v5803 = vld [vmem:[#allocation12 + $0x140] sm:$0xff]
          %v5804 = vld [vmem:[#allocation12 + $0x148] sm:$0xff]
          %v5805 = vld [vmem:[#allocation12 + $0x150] sm:$0xff]
          %v5806 = vld [vmem:[#allocation12 + $0x158] sm:$0xff]
          %v5807 = vld [vmem:[#allocation12 + $0x160] sm:$0xff]
          %v5808 = vld [vmem:[#allocation12 + $0x168] sm:$0xff]
          %v5809 = vld [vmem:[#allocation12 + $0x170] sm:$0xff]
          %v5810 = vld [vmem:[#allocation12 + $0x178] sm:$0xff]
          %v5811 = vld [vmem:[#allocation12 + $0x180] sm:$0xff]
          %v5812 = vld [vmem:[#allocation12 + $0x188] sm:$0xff]
          %v5813 = vld [vmem:[#allocation12 + $0x190] sm:$0xff]
          %v5814 = vld [vmem:[#allocation12 + $0x198] sm:$0xff]
          %v5815 = vld [vmem:[#allocation12 + $0x1a0] sm:$0xff]
          %v5816 = vld [vmem:[#allocation12 + $0x1a8] sm:$0xff]
          %v5817 = vld [vmem:[#allocation12 + $0x1b0] sm:$0xff]
          %v5818 = vld [vmem:[#allocation12 + $0x1b8] sm:$0xff]
          %v5819 = vld [vmem:[#allocation12 + $0x1c0] sm:$0xff]
          %v5820 = vld [vmem:[#allocation12 + $0x1c8] sm:$0xff]
          %v5821 = vld [vmem:[#allocation12 + $0x1d0] sm:$0xff]
          %v5822 = vld [vmem:[#allocation12 + $0x1d8] sm:$0xff]
          %v5823 = vld [vmem:[#allocation12 + $0x1e0] sm:$0xff]
          %v5824 = vld [vmem:[#allocation12 + $0x1e8] sm:$0xff]
          %v5825 = vld [vmem:[#allocation12 + $0x1f0] sm:$0xff]
          %v5826 = vld [vmem:[#allocation12 + $0x1f8] sm:$0xff]
          %v5827 = vld [vmem:[#allocation14] ss:$4 sm:$0xf]
          %v5829 = vlaneseq
          %v5830 = vshrl.u32 %v5829, 7
          %v5831 = vsub.s32 0, %v5830
          %v5832 = vrot.slane %v5827, %v5831
          %v5833 = vlaneseq
          %v5834 = vshrl.u32 %v5833, 7
          %v5835 = vsub.s32 1, %v5834
          %v5836 = vrot.slane %v5827, %v5835
          %v5837 = vlaneseq
          %v5838 = vshrl.u32 %v5837, 7
          %v5839 = vsub.s32 2, %v5838
          %v5840 = vrot.slane %v5827, %v5839
          %v5841 = vlaneseq
          %v5842 = vshrl.u32 %v5841, 7
          %v5843 = vsub.s32 3, %v5842
          %v5844 = vrot.slane %v5827, %v5843
          %v5913 = vunpack.c.l.b16 %v5763
          %v5914 = vunpack.c.h.b16 %v5763
          %v5915 = vunpack.c.l.b16 %v5764
          %v5916 = vunpack.c.h.b16 %v5764
          %v5917 = vunpack.c.l.b16 %v5765
          %v5918 = vunpack.c.h.b16 %v5765
          %v5919 = vunpack.c.l.b16 %v5766
          %v5920 = vunpack.c.h.b16 %v5766
          %v5921 = vunpack.c.l.b16 %v5767
          %v5922 = vunpack.c.h.b16 %v5767
          %v5923 = vunpack.c.l.b16 %v5768
          %v5924 = vunpack.c.h.b16 %v5768
          %v5925 = vunpack.c.l.b16 %v5769
          %v5926 = vunpack.c.h.b16 %v5769
          %v5927 = vunpack.c.l.b16 %v5770
          %v5928 = vunpack.c.h.b16 %v5770
          %v5929 = vunpack.c.l.b16 %v5771
          %v5930 = vunpack.c.h.b16 %v5771
          %v5931 = vunpack.c.l.b16 %v5772
          %v5932 = vunpack.c.h.b16 %v5772
          %v5933 = vunpack.c.l.b16 %v5773
          %v5934 = vunpack.c.h.b16 %v5773
          %v5935 = vunpack.c.l.b16 %v5774
          %v5936 = vunpack.c.h.b16 %v5774
          %v5937 = vunpack.c.l.b16 %v5775
          %v5938 = vunpack.c.h.b16 %v5775
          %v5939 = vunpack.c.l.b16 %v5776
          %v5940 = vunpack.c.h.b16 %v5776
          %v5941 = vunpack.c.l.b16 %v5777
          %v5942 = vunpack.c.h.b16 %v5777
          %v5943 = vunpack.c.l.b16 %v5778
          %v5944 = vunpack.c.h.b16 %v5778
          %v5945 = vunpack.c.l.b16 %v5779
          %v5946 = vunpack.c.h.b16 %v5779
          %v5947 = vunpack.c.l.b16 %v5780
          %v5948 = vunpack.c.h.b16 %v5780
          %v5949 = vunpack.c.l.b16 %v5781
          %v5950 = vunpack.c.h.b16 %v5781
          %v5951 = vunpack.c.l.b16 %v5782
          %v5952 = vunpack.c.h.b16 %v5782
          %v5953 = vunpack.c.l.b16 %v5783
          %v5954 = vunpack.c.h.b16 %v5783
          %v5955 = vunpack.c.l.b16 %v5784
          %v5956 = vunpack.c.h.b16 %v5784
          %v5957 = vunpack.c.l.b16 %v5785
          %v5958 = vunpack.c.h.b16 %v5785
          %v5959 = vunpack.c.l.b16 %v5786
          %v5960 = vunpack.c.h.b16 %v5786
          %v5961 = vunpack.c.l.b16 %v5787
          %v5962 = vunpack.c.h.b16 %v5787
          %v5963 = vunpack.c.l.b16 %v5788
          %v5964 = vunpack.c.h.b16 %v5788
          %v5965 = vunpack.c.l.b16 %v5789
          %v5966 = vunpack.c.h.b16 %v5789
          %v5967 = vunpack.c.l.b16 %v5790
          %v5968 = vunpack.c.h.b16 %v5790
          %v5969 = vunpack.c.l.b16 %v5791
          %v5970 = vunpack.c.h.b16 %v5791
          %v5971 = vunpack.c.l.b16 %v5792
          %v5972 = vunpack.c.h.b16 %v5792
          %v5973 = vunpack.c.l.b16 %v5793
          %v5974 = vunpack.c.h.b16 %v5793
          %v5975 = vunpack.c.l.b16 %v5794
          %v5976 = vunpack.c.h.b16 %v5794
          %v5977 = vunpack.c.l.b16 %v5795
          %v5978 = vunpack.c.h.b16 %v5795
          %v5979 = vunpack.c.l.b16 %v5796
          %v5980 = vunpack.c.h.b16 %v5796
          %v5981 = vunpack.c.l.b16 %v5797
          %v5982 = vunpack.c.h.b16 %v5797
          %v5983 = vunpack.c.l.b16 %v5798
          %v5984 = vunpack.c.h.b16 %v5798
          %v5985 = vunpack.c.l.b16 %v5799
          %v5986 = vunpack.c.h.b16 %v5799
          %v5987 = vunpack.c.l.b16 %v5800
          %v5988 = vunpack.c.h.b16 %v5800
          %v5989 = vunpack.c.l.b16 %v5801
          %v5990 = vunpack.c.h.b16 %v5801
          %v5991 = vunpack.c.l.b16 %v5802
          %v5992 = vunpack.c.h.b16 %v5802
          %v5993 = vunpack.c.l.b16 %v5803
          %v5994 = vunpack.c.h.b16 %v5803
          %v5995 = vunpack.c.l.b16 %v5804
          %v5996 = vunpack.c.h.b16 %v5804
          %v5997 = vunpack.c.l.b16 %v5805
          %v5998 = vunpack.c.h.b16 %v5805
          %v5999 = vunpack.c.l.b16 %v5806
          %v6000 = vunpack.c.h.b16 %v5806
          %v6001 = vunpack.c.l.b16 %v5807
          %v6002 = vunpack.c.h.b16 %v5807
          %v6003 = vunpack.c.l.b16 %v5808
          %v6004 = vunpack.c.h.b16 %v5808
          %v6005 = vunpack.c.l.b16 %v5809
          %v6006 = vunpack.c.h.b16 %v5809
          %v6007 = vunpack.c.l.b16 %v5810
          %v6008 = vunpack.c.h.b16 %v5810
          %v6009 = vunpack.c.l.b16 %v5811
          %v6010 = vunpack.c.h.b16 %v5811
          %v6011 = vunpack.c.l.b16 %v5812
          %v6012 = vunpack.c.h.b16 %v5812
          %v6013 = vunpack.c.l.b16 %v5813
          %v6014 = vunpack.c.h.b16 %v5813
          %v6015 = vunpack.c.l.b16 %v5814
          %v6016 = vunpack.c.h.b16 %v5814
          %v6017 = vunpack.c.l.b16 %v5815
          %v6018 = vunpack.c.h.b16 %v5815
          %v6019 = vunpack.c.l.b16 %v5816
          %v6020 = vunpack.c.h.b16 %v5816
          %v6021 = vunpack.c.l.b16 %v5817
          %v6022 = vunpack.c.h.b16 %v5817
          %v6023 = vunpack.c.l.b16 %v5818
          %v6024 = vunpack.c.h.b16 %v5818
          %v6025 = vunpack.c.l.b16 %v5819
          %v6026 = vunpack.c.h.b16 %v5819
          %v6027 = vunpack.c.l.b16 %v5820
          %v6028 = vunpack.c.h.b16 %v5820
          %v6029 = vunpack.c.l.b16 %v5821
          %v6030 = vunpack.c.h.b16 %v5821
          %v6031 = vunpack.c.l.b16 %v5822
          %v6032 = vunpack.c.h.b16 %v5822
          %v6033 = vunpack.c.l.b16 %v5823
          %v6034 = vunpack.c.h.b16 %v5823
          %v6035 = vunpack.c.l.b16 %v5824
          %v6036 = vunpack.c.h.b16 %v5824
          %v6037 = vunpack.c.l.b16 %v5825
          %v6038 = vunpack.c.h.b16 %v5825
          %v6039 = vunpack.c.l.b16 %v5826
          %v6040 = vunpack.c.h.b16 %v5826
          %v6041 = vpack.c.b16 %v5917, %v5913
          %v6042 = vpack.c.b16 %v5918, %v5914
          %v6043 = vpack.c.b16 %v5919, %v5915
          %v6044 = vpack.c.b16 %v5920, %v5916
          %v6045 = vpack.c.b16 %v5925, %v5921
          %v6046 = vpack.c.b16 %v5926, %v5922
          %v6047 = vpack.c.b16 %v5927, %v5923
          %v6048 = vpack.c.b16 %v5928, %v5924
          %v6049 = vpack.c.b16 %v5933, %v5929
          %v6050 = vpack.c.b16 %v5934, %v5930
          %v6051 = vpack.c.b16 %v5935, %v5931
          %v6052 = vpack.c.b16 %v5936, %v5932
          %v6053 = vpack.c.b16 %v5941, %v5937
          %v6054 = vpack.c.b16 %v5942, %v5938
          %v6055 = vpack.c.b16 %v5943, %v5939
          %v6056 = vpack.c.b16 %v5944, %v5940
          %v6057 = vpack.c.b16 %v5949, %v5945
          %v6058 = vpack.c.b16 %v5950, %v5946
          %v6059 = vpack.c.b16 %v5951, %v5947
          %v6060 = vpack.c.b16 %v5952, %v5948
          %v6061 = vpack.c.b16 %v5957, %v5953
          %v6062 = vpack.c.b16 %v5958, %v5954
          %v6063 = vpack.c.b16 %v5959, %v5955
          %v6064 = vpack.c.b16 %v5960, %v5956
          %v6065 = vpack.c.b16 %v5965, %v5961
          %v6066 = vpack.c.b16 %v5966, %v5962
          %v6067 = vpack.c.b16 %v5967, %v5963
          %v6068 = vpack.c.b16 %v5968, %v5964
          %v6069 = vpack.c.b16 %v5973, %v5969
          %v6070 = vpack.c.b16 %v5974, %v5970
          %v6071 = vpack.c.b16 %v5975, %v5971
          %v6072 = vpack.c.b16 %v5976, %v5972
          %v6073 = vpack.c.b16 %v5981, %v5977
          %v6074 = vpack.c.b16 %v5982, %v5978
          %v6075 = vpack.c.b16 %v5983, %v5979
          %v6076 = vpack.c.b16 %v5984, %v5980
          %v6077 = vpack.c.b16 %v5989, %v5985
          %v6078 = vpack.c.b16 %v5990, %v5986
          %v6079 = vpack.c.b16 %v5991, %v5987
          %v6080 = vpack.c.b16 %v5992, %v5988
          %v6081 = vpack.c.b16 %v5997, %v5993
          %v6082 = vpack.c.b16 %v5998, %v5994
          %v6083 = vpack.c.b16 %v5999, %v5995
          %v6084 = vpack.c.b16 %v6000, %v5996
          %v6085 = vpack.c.b16 %v6005, %v6001
          %v6086 = vpack.c.b16 %v6006, %v6002
          %v6087 = vpack.c.b16 %v6007, %v6003
          %v6088 = vpack.c.b16 %v6008, %v6004
          %v6089 = vpack.c.b16 %v6013, %v6009
          %v6090 = vpack.c.b16 %v6014, %v6010
          %v6091 = vpack.c.b16 %v6015, %v6011
          %v6092 = vpack.c.b16 %v6016, %v6012
          %v6093 = vpack.c.b16 %v6021, %v6017
          %v6094 = vpack.c.b16 %v6022, %v6018
          %v6095 = vpack.c.b16 %v6023, %v6019
          %v6096 = vpack.c.b16 %v6024, %v6020
          %v6097 = vpack.c.b16 %v6029, %v6025
          %v6098 = vpack.c.b16 %v6030, %v6026
          %v6099 = vpack.c.b16 %v6031, %v6027
          %v6100 = vpack.c.b16 %v6032, %v6028
          %v6101 = vpack.c.b16 %v6037, %v6033
          %v6102 = vpack.c.b16 %v6038, %v6034
          %v6103 = vpack.c.b16 %v6039, %v6035
          %v6104 = vpack.c.b16 %v6040, %v6036
          %6169 = vmatprep.subr.bf16.mxu0 %v6042
          %6170 = vmatpush1.bf16.msra.mxu0 %v6041
          %6171 = vmatprep.subr.bf16.mxu0 %v6046
          %6172 = vmatpush1.bf16.msra.mxu0 %v6045
          %6173 = vmatprep.subr.bf16.mxu0 %v6050
          %6174 = vmatpush1.bf16.msra.mxu0 %v6049
          %6175 = vmatprep.subr.bf16.mxu0 %v6054
          %6176 = vmatpush1.bf16.msra.mxu0 %v6053
          %6177 = vmatprep.subr.bf16.mxu0 %v6058
          %6178 = vmatpush1.bf16.msra.mxu0 %v6057
          %6179 = vmatprep.subr.bf16.mxu0 %v6062
          %6180 = vmatpush1.bf16.msra.mxu0 %v6061
          %6181 = vmatprep.subr.bf16.mxu0 %v6066
          %6182 = vmatpush1.bf16.msra.mxu0 %v6065
          %6183 = vmatprep.subr.bf16.mxu0 %v6070
          %6184 = vmatpush1.bf16.msra.mxu0 %v6069
          %6185 = vmatprep.subr.bf16.mxu0 %v6074
          %6186 = vmatpush1.bf16.msra.mxu0 %v6073
          %6187 = vmatprep.subr.bf16.mxu0 %v6078
          %6188 = vmatpush1.bf16.msra.mxu0 %v6077
          %6189 = vmatprep.subr.bf16.mxu0 %v6082
          %6190 = vmatpush1.bf16.msra.mxu0 %v6081
          %6191 = vmatprep.subr.bf16.mxu0 %v6086
          %6192 = vmatpush1.bf16.msra.mxu0 %v6085
          %6193 = vmatprep.subr.bf16.mxu0 %v6090
          %6194 = vmatpush1.bf16.msra.mxu0 %v6089
          %6195 = vmatprep.subr.bf16.mxu0 %v6094
          %6196 = vmatpush1.bf16.msra.mxu0 %v6093
          %6197 = vmatprep.subr.bf16.mxu0 %v6098
          %6198 = vmatpush1.bf16.msra.mxu0 %v6097
          %6199 = vmatprep.subr.bf16.mxu0 %v6102
          %6200 = vmatpush1.bf16.msra.mxu0 %v6101
          %6201 = vmatprep.mubr.bf16.mxu0 %v5762
          %6202 = vmatmul.mubr.bf16.gmra.mrb[0].mxu0 %v5761
          %v6203 = vpop.f32.mrb[0].mxu0
          %v6204 = vadd.f32 %v5832, %v6203
          %v6205 = vpop.f32.mrb[0].mxu0
          %v6206 = vadd.f32 %v5836, %v6205
          %v6207 = vpop.f32.mrb[0].mxu0
          %v6208 = vpop.f32.mrb[0].mxu0
          %6209 = vdwg.mxu0
          %6210 = vmatprep.subr.bf16.mxu0 %v6044
          %6211 = vmatpush1.bf16.msra.mxu0 %v6043
          %6212 = vmatprep.subr.bf16.mxu0 %v6048
          %6213 = vmatpush1.bf16.msra.mxu0 %v6047
          %6214 = vmatprep.subr.bf16.mxu0 %v6052
          %6215 = vmatpush1.bf16.msra.mxu0 %v6051
          %6216 = vmatprep.subr.bf16.mxu0 %v6056
          %6217 = vmatpush1.bf16.msra.mxu0 %v6055
          %6218 = vmatprep.subr.bf16.mxu0 %v6060
          %6219 = vmatpush1.bf16.msra.mxu0 %v6059
          %6220 = vmatprep.subr.bf16.mxu0 %v6064
          %6221 = vmatpush1.bf16.msra.mxu0 %v6063
          %6222 = vmatprep.subr.bf16.mxu0 %v6068
          %6223 = vmatpush1.bf16.msra.mxu0 %v6067
          %6224 = vmatprep.subr.bf16.mxu0 %v6072
          %6225 = vmatpush1.bf16.msra.mxu0 %v6071
          %6226 = vmatprep.subr.bf16.mxu0 %v6076
          %6227 = vmatpush1.bf16.msra.mxu0 %v6075
          %6228 = vmatprep.subr.bf16.mxu0 %v6080
          %6229 = vmatpush1.bf16.msra.mxu0 %v6079
          %6230 = vmatprep.subr.bf16.mxu0 %v6084
          %6231 = vmatpush1.bf16.msra.mxu0 %v6083
          %6232 = vmatprep.subr.bf16.mxu0 %v6088
          %6233 = vmatpush1.bf16.msra.mxu0 %v6087
          %6234 = vmatprep.subr.bf16.mxu0 %v6092
          %6235 = vmatpush1.bf16.msra.mxu0 %v6091
          %6236 = vmatprep.subr.bf16.mxu0 %v6096
          %6237 = vmatpush1.bf16.msra.mxu0 %v6095
          %6238 = vmatprep.subr.bf16.mxu0 %v6100
          %6239 = vmatpush1.bf16.msra.mxu0 %v6099
          %6240 = vmatprep.subr.bf16.mxu0 %v6104
          %6241 = vmatpush1.bf16.msra.mxu0 %v6103
          %6242 = vmatprep.mubr.bf16.mxu0 %v5762
          %6243 = vmatmul.mubr.bf16.gmra.mrb[0].mxu0 %v5761
          %v6244 = vpop.f32.mrb[0].mxu0
          %v6245 = vadd.f32 %v5840, %v6244
          %v6246 = vpop.f32.mrb[0].mxu0
          %v6247 = vadd.f32 %v5844, %v6246
          %v6248 = vpop.f32.mrb[0].mxu0
          %v6249 = vpop.f32.mrb[0].mxu0
          %6250 = vdwg.mxu0
          %s6251 = scalar_lea.vmem [#allocation14], 1
          %v6252 = vld [vmem:[%s6251] ss:$4 sm:$0xf]
          %s6253 = scalar_lea.vmem [#allocation14], 2
          %v6254 = vld [vmem:[%s6253] ss:$4 sm:$0xf]
          %v6255 = vrot.slane %v6204, 4
          %v6256 = vadd.f32 %v6204, %v6255
          %v6257 = vrot.slane %v6256, 2
          %v6258 = vadd.f32 %v6256, %v6257
          %v6259 = vrot.slane %v6258, 1
          %v6260 = vadd.f32 %v6258, %v6259
          %v6261 = vrot.slane %v6206, 4
          %v6262 = vadd.f32 %v6206, %v6261
          %v6263 = vrot.slane %v6262, 2
          %v6264 = vadd.f32 %v6262, %v6263
          %v6265 = vrot.slane %v6264, 1
          %v6266 = vadd.f32 %v6264, %v6265
          %v6267 = vrot.slane %v6245, 4
          %v6268 = vadd.f32 %v6245, %v6267
          %v6269 = vrot.slane %v6268, 2
          %v6270 = vadd.f32 %v6268, %v6269
          %v6271 = vrot.slane %v6270, 1
          %v6272 = vadd.f32 %v6270, %v6271
          %v6273 = vrot.slane %v6247, 4
          %v6274 = vadd.f32 %v6247, %v6273
          %v6275 = vrot.slane %v6274, 2
          %v6276 = vadd.f32 %v6274, %v6275
          %v6277 = vrot.slane %v6276, 1
          %v6278 = vadd.f32 %v6276, %v6277
          %v6279 = vmul.f32 %v6260, %v5102
          %v6280 = vmul.f32 %v6266, %v5102
          %v6281 = vmul.f32 %v6272, %v5102
          %v6282 = vmul.f32 %v6278, %v5102
          %v6283 = vsub.f32 %v6204, %v6279
          %v6284 = vsub.f32 %v6206, %v6280
          %v6285 = vsub.f32 %v6245, %v6281
          %v6286 = vsub.f32 %v6247, %v6282
          %v6287 = vmul.f32 %v6283, %v6283
          %v6288 = vmul.f32 %v6284, %v6284
          %v6289 = vmul.f32 %v6285, %v6285
          %v6290 = vmul.f32 %v6286, %v6286
          %v6291 = vrot.slane %v6287, 4
          %v6292 = vadd.f32 %v6287, %v6291
          %v6293 = vrot.slane %v6292, 2
          %v6294 = vadd.f32 %v6292, %v6293
          %v6295 = vrot.slane %v6294, 1
          %v6296 = vadd.f32 %v6294, %v6295
          %v6297 = vrot.slane %v6288, 4
          %v6298 = vadd.f32 %v6288, %v6297
          %v6299 = vrot.slane %v6298, 2
          %v6300 = vadd.f32 %v6298, %v6299
          %v6301 = vrot.slane %v6300, 1
          %v6302 = vadd.f32 %v6300, %v6301
          %v6303 = vrot.slane %v6289, 4
          %v6304 = vadd.f32 %v6289, %v6303
          %v6305 = vrot.slane %v6304, 2
          %v6306 = vadd.f32 %v6304, %v6305
          %v6307 = vrot.slane %v6306, 1
          %v6308 = vadd.f32 %v6306, %v6307
          %v6309 = vrot.slane %v6290, 4
          %v6310 = vadd.f32 %v6290, %v6309
          %v6311 = vrot.slane %v6310, 2
          %v6312 = vadd.f32 %v6310, %v6311
          %v6313 = vrot.slane %v6312, 1
          %v6314 = vadd.f32 %v6312, %v6313
          %v6315 = vmul.f32 %v6296, %v5102
          %v6316 = vmul.f32 %v6302, %v5102
          %v6317 = vmul.f32 %v6308, %v5102
          %v6318 = vmul.f32 %v6314, %v5102
          %v6319 = vadd.f32 %v6315, 1e-05
          %v6320 = vadd.f32 %v6316, 1e-05
          %v6321 = vadd.f32 %v6317, 1e-05
          %v6322 = vadd.f32 %v6318, 1e-05
          %v6323 = vrsqrt.pop %v6319
          %v6324 = vrsqrt.pop %v6320
          %v6325 = vrsqrt.pop %v6321
          %v6326 = vrsqrt.pop %v6322
          %v6327 = vmul.f32 %v6283, %v6323
          %v6328 = vmul.f32 %v6284, %v6324
          %v6329 = vmul.f32 %v6285, %v6325
          %v6330 = vmul.f32 %v6286, %v6326
          %v6332 = vlaneseq
          %v6333 = vshrl.u32 %v6332, 7
          %v6334 = vsub.s32 0, %v6333
          %v6335 = vrot.slane %v6252, %v6334
          %v6336 = vlaneseq
          %v6337 = vshrl.u32 %v6336, 7
          %v6338 = vsub.s32 1, %v6337
          %v6339 = vrot.slane %v6252, %v6338
          %v6340 = vlaneseq
          %v6341 = vshrl.u32 %v6340, 7
          %v6342 = vsub.s32 2, %v6341
          %v6343 = vrot.slane %v6252, %v6342
          %v6344 = vlaneseq
          %v6345 = vshrl.u32 %v6344, 7
          %v6346 = vsub.s32 3, %v6345
          %v6347 = vrot.slane %v6252, %v6346
          %v6352 = vmul.f32 %v6327, %v6335
          %v6353 = vmul.f32 %v6328, %v6339
          %v6354 = vmul.f32 %v6329, %v6343
          %v6355 = vmul.f32 %v6330, %v6347
          %v6357 = vlaneseq
          %v6358 = vshrl.u32 %v6357, 7
          %v6359 = vsub.s32 0, %v6358
          %v6360 = vrot.slane %v6254, %v6359
          %v6361 = vlaneseq
          %v6362 = vshrl.u32 %v6361, 7
          %v6363 = vsub.s32 1, %v6362
          %v6364 = vrot.slane %v6254, %v6363
          %v6365 = vlaneseq
          %v6366 = vshrl.u32 %v6365, 7
          %v6367 = vsub.s32 2, %v6366
          %v6368 = vrot.slane %v6254, %v6367
          %v6369 = vlaneseq
          %v6370 = vshrl.u32 %v6369, 7
          %v6371 = vsub.s32 3, %v6370
          %v6372 = vrot.slane %v6254, %v6371
          %v6377 = vadd.f32 %v6352, %v6360
          %v6378 = vadd.f32 %v6353, %v6364
          %v6379 = vadd.f32 %v6354, %v6368
          %v6380 = vadd.f32 %v6355, %v6372
          %v6381 = vmax.f32 %v6377, 0.0
          %v6382 = vmax.f32 %v6378, 0.0
          %v6383 = vmax.f32 %v6379, 0.0
          %v6384 = vmax.f32 %v6380, 0.0
          %v6385 = vpack.c.bf16 %v6381, %v6381
          %v6386 = vpack.c.bf16 %v6382, %v6382
          %v6387 = vpack.c.bf16 %v6383, %v6383
          %v6388 = vpack.c.bf16 %v6384, %v6384
          %v6389 = vld [vmem:[#allocation15] sm:$0xff]
          %v6390 = vld [vmem:[#allocation15 + $0x8] sm:$0xff]
          %v6391 = vld [vmem:[#allocation15 + $0x10] sm:$0xff]
          %v6392 = vld [vmem:[#allocation15 + $0x18] sm:$0xff]
          %v6393 = vld [vmem:[#allocation15 + $0x20] sm:$0xff]
          %v6394 = vld [vmem:[#allocation15 + $0x28] sm:$0xff]
          %v6395 = vld [vmem:[#allocation15 + $0x30] sm:$0xff]
          %v6396 = vld [vmem:[#allocation15 + $0x38] sm:$0xff]
          %v6397 = vld [vmem:[#allocation15 + $0x40] sm:$0xff]
          %v6398 = vld [vmem:[#allocation15 + $0x48] sm:$0xff]
          %v6399 = vld [vmem:[#allocation15 + $0x50] sm:$0xff]
          %v6400 = vld [vmem:[#allocation15 + $0x58] sm:$0xff]
          %v6401 = vld [vmem:[#allocation15 + $0x60] sm:$0xff]
          %v6402 = vld [vmem:[#allocation15 + $0x68] sm:$0xff]
          %v6403 = vld [vmem:[#allocation15 + $0x70] sm:$0xff]
          %v6404 = vld [vmem:[#allocation15 + $0x78] sm:$0xff]
          %v6405 = vld [vmem:[#allocation15 + $0x80] sm:$0xff]
          %v6406 = vld [vmem:[#allocation15 + $0x88] sm:$0xff]
          %v6407 = vld [vmem:[#allocation15 + $0x90] sm:$0xff]
          %v6408 = vld [vmem:[#allocation15 + $0x98] sm:$0xff]
          %v6409 = vld [vmem:[#allocation15 + $0xa0] sm:$0xff]
          %v6410 = vld [vmem:[#allocation15 + $0xa8] sm:$0xff]
          %v6411 = vld [vmem:[#allocation15 + $0xb0] sm:$0xff]
          %v6412 = vld [vmem:[#allocation15 + $0xb8] sm:$0xff]
          %v6413 = vld [vmem:[#allocation15 + $0xc0] sm:$0xff]
          %v6414 = vld [vmem:[#allocation15 + $0xc8] sm:$0xff]
          %v6415 = vld [vmem:[#allocation15 + $0xd0] sm:$0xff]
          %v6416 = vld [vmem:[#allocation15 + $0xd8] sm:$0xff]
          %v6417 = vld [vmem:[#allocation15 + $0xe0] sm:$0xff]
          %v6418 = vld [vmem:[#allocation15 + $0xe8] sm:$0xff]
          %v6419 = vld [vmem:[#allocation15 + $0xf0] sm:$0xff]
          %v6420 = vld [vmem:[#allocation15 + $0xf8] sm:$0xff]
          %v6421 = vld [vmem:[#allocation15 + $0x100] sm:$0xff]
          %v6422 = vld [vmem:[#allocation15 + $0x108] sm:$0xff]
          %v6423 = vld [vmem:[#allocation15 + $0x110] sm:$0xff]
          %v6424 = vld [vmem:[#allocation15 + $0x118] sm:$0xff]
          %v6425 = vld [vmem:[#allocation15 + $0x120] sm:$0xff]
          %v6426 = vld [vmem:[#allocation15 + $0x128] sm:$0xff]
          %v6427 = vld [vmem:[#allocation15 + $0x130] sm:$0xff]
          %v6428 = vld [vmem:[#allocation15 + $0x138] sm:$0xff]
          %v6429 = vld [vmem:[#allocation15 + $0x140] sm:$0xff]
          %v6430 = vld [vmem:[#allocation15 + $0x148] sm:$0xff]
          %v6431 = vld [vmem:[#allocation15 + $0x150] sm:$0xff]
          %v6432 = vld [vmem:[#allocation15 + $0x158] sm:$0xff]
          %v6433 = vld [vmem:[#allocation15 + $0x160] sm:$0xff]
          %v6434 = vld [vmem:[#allocation15 + $0x168] sm:$0xff]
          %v6435 = vld [vmem:[#allocation15 + $0x170] sm:$0xff]
          %v6436 = vld [vmem:[#allocation15 + $0x178] sm:$0xff]
          %v6437 = vld [vmem:[#allocation15 + $0x180] sm:$0xff]
          %v6438 = vld [vmem:[#allocation15 + $0x188] sm:$0xff]
          %v6439 = vld [vmem:[#allocation15 + $0x190] sm:$0xff]
          %v6440 = vld [vmem:[#allocation15 + $0x198] sm:$0xff]
          %v6441 = vld [vmem:[#allocation15 + $0x1a0] sm:$0xff]
          %v6442 = vld [vmem:[#allocation15 + $0x1a8] sm:$0xff]
          %v6443 = vld [vmem:[#allocation15 + $0x1b0] sm:$0xff]
          %v6444 = vld [vmem:[#allocation15 + $0x1b8] sm:$0xff]
          %v6445 = vld [vmem:[#allocation15 + $0x1c0] sm:$0xff]
          %v6446 = vld [vmem:[#allocation15 + $0x1c8] sm:$0xff]
          %v6447 = vld [vmem:[#allocation15 + $0x1d0] sm:$0xff]
          %v6448 = vld [vmem:[#allocation15 + $0x1d8] sm:$0xff]
          %v6449 = vld [vmem:[#allocation15 + $0x1e0] sm:$0xff]
          %v6450 = vld [vmem:[#allocation15 + $0x1e8] sm:$0xff]
          %v6451 = vld [vmem:[#allocation15 + $0x1f0] sm:$0xff]
          %v6452 = vld [vmem:[#allocation15 + $0x1f8] sm:$0xff]
          %v6453 = vld [vmem:[#allocation17] sm:$0x3]
          %v6455 = vlaneseq
          %v6456 = vshrl.u32 %v6455, 7
          %v6457 = vsub.s32 0, %v6456
          %v6458 = vrot.slane %v6453, %v6457
          %v6459 = vlaneseq
          %v6460 = vshrl.u32 %v6459, 7
          %v6461 = vsub.s32 1, %v6460
          %v6462 = vrot.slane %v6453, %v6461
          %v6529 = vunpack.c.l.b16 %v6389
          %v6530 = vunpack.c.h.b16 %v6389
          %v6531 = vunpack.c.l.b16 %v6390
          %v6532 = vunpack.c.h.b16 %v6390
          %v6533 = vunpack.c.l.b16 %v6391
          %v6534 = vunpack.c.h.b16 %v6391
          %v6535 = vunpack.c.l.b16 %v6392
          %v6536 = vunpack.c.h.b16 %v6392
          %v6537 = vunpack.c.l.b16 %v6393
          %v6538 = vunpack.c.h.b16 %v6393
          %v6539 = vunpack.c.l.b16 %v6394
          %v6540 = vunpack.c.h.b16 %v6394
          %v6541 = vunpack.c.l.b16 %v6395
          %v6542 = vunpack.c.h.b16 %v6395
          %v6543 = vunpack.c.l.b16 %v6396
          %v6544 = vunpack.c.h.b16 %v6396
          %v6545 = vunpack.c.l.b16 %v6397
          %v6546 = vunpack.c.h.b16 %v6397
          %v6547 = vunpack.c.l.b16 %v6398
          %v6548 = vunpack.c.h.b16 %v6398
          %v6549 = vunpack.c.l.b16 %v6399
          %v6550 = vunpack.c.h.b16 %v6399
          %v6551 = vunpack.c.l.b16 %v6400
          %v6552 = vunpack.c.h.b16 %v6400
          %v6553 = vunpack.c.l.b16 %v6401
          %v6554 = vunpack.c.h.b16 %v6401
          %v6555 = vunpack.c.l.b16 %v6402
          %v6556 = vunpack.c.h.b16 %v6402
          %v6557 = vunpack.c.l.b16 %v6403
          %v6558 = vunpack.c.h.b16 %v6403
          %v6559 = vunpack.c.l.b16 %v6404
          %v6560 = vunpack.c.h.b16 %v6404
          %v6561 = vunpack.c.l.b16 %v6405
          %v6562 = vunpack.c.h.b16 %v6405
          %v6563 = vunpack.c.l.b16 %v6406
          %v6564 = vunpack.c.h.b16 %v6406
          %v6565 = vunpack.c.l.b16 %v6407
          %v6566 = vunpack.c.h.b16 %v6407
          %v6567 = vunpack.c.l.b16 %v6408
          %v6568 = vunpack.c.h.b16 %v6408
          %v6569 = vunpack.c.l.b16 %v6409
          %v6570 = vunpack.c.h.b16 %v6409
          %v6571 = vunpack.c.l.b16 %v6410
          %v6572 = vunpack.c.h.b16 %v6410
          %v6573 = vunpack.c.l.b16 %v6411
          %v6574 = vunpack.c.h.b16 %v6411
          %v6575 = vunpack.c.l.b16 %v6412
          %v6576 = vunpack.c.h.b16 %v6412
          %v6577 = vunpack.c.l.b16 %v6413
          %v6578 = vunpack.c.h.b16 %v6413
          %v6579 = vunpack.c.l.b16 %v6414
          %v6580 = vunpack.c.h.b16 %v6414
          %v6581 = vunpack.c.l.b16 %v6415
          %v6582 = vunpack.c.h.b16 %v6415
          %v6583 = vunpack.c.l.b16 %v6416
          %v6584 = vunpack.c.h.b16 %v6416
          %v6585 = vunpack.c.l.b16 %v6417
          %v6586 = vunpack.c.h.b16 %v6417
          %v6587 = vunpack.c.l.b16 %v6418
          %v6588 = vunpack.c.h.b16 %v6418
          %v6589 = vunpack.c.l.b16 %v6419
          %v6590 = vunpack.c.h.b16 %v6419
          %v6591 = vunpack.c.l.b16 %v6420
          %v6592 = vunpack.c.h.b16 %v6420
          %v6593 = vunpack.c.l.b16 %v6421
          %v6594 = vunpack.c.h.b16 %v6421
          %v6595 = vunpack.c.l.b16 %v6422
          %v6596 = vunpack.c.h.b16 %v6422
          %v6597 = vunpack.c.l.b16 %v6423
          %v6598 = vunpack.c.h.b16 %v6423
          %v6599 = vunpack.c.l.b16 %v6424
          %v6600 = vunpack.c.h.b16 %v6424
          %v6601 = vunpack.c.l.b16 %v6425
          %v6602 = vunpack.c.h.b16 %v6425
          %v6603 = vunpack.c.l.b16 %v6426
          %v6604 = vunpack.c.h.b16 %v6426
          %v6605 = vunpack.c.l.b16 %v6427
          %v6606 = vunpack.c.h.b16 %v6427
          %v6607 = vunpack.c.l.b16 %v6428
          %v6608 = vunpack.c.h.b16 %v6428
          %v6609 = vunpack.c.l.b16 %v6429
          %v6610 = vunpack.c.h.b16 %v6429
          %v6611 = vunpack.c.l.b16 %v6430
          %v6612 = vunpack.c.h.b16 %v6430
          %v6613 = vunpack.c.l.b16 %v6431
          %v6614 = vunpack.c.h.b16 %v6431
          %v6615 = vunpack.c.l.b16 %v6432
          %v6616 = vunpack.c.h.b16 %v6432
          %v6617 = vunpack.c.l.b16 %v6433
          %v6618 = vunpack.c.h.b16 %v6433
          %v6619 = vunpack.c.l.b16 %v6434
          %v6620 = vunpack.c.h.b16 %v6434
          %v6621 = vunpack.c.l.b16 %v6435
          %v6622 = vunpack.c.h.b16 %v6435
          %v6623 = vunpack.c.l.b16 %v6436
          %v6624 = vunpack.c.h.b16 %v6436
          %v6625 = vunpack.c.l.b16 %v6437
          %v6626 = vunpack.c.h.b16 %v6437
          %v6627 = vunpack.c.l.b16 %v6438
          %v6628 = vunpack.c.h.b16 %v6438
          %v6629 = vunpack.c.l.b16 %v6439
          %v6630 = vunpack.c.h.b16 %v6439
          %v6631 = vunpack.c.l.b16 %v6440
          %v6632 = vunpack.c.h.b16 %v6440
          %v6633 = vunpack.c.l.b16 %v6441
          %v6634 = vunpack.c.h.b16 %v6441
          %v6635 = vunpack.c.l.b16 %v6442
          %v6636 = vunpack.c.h.b16 %v6442
          %v6637 = vunpack.c.l.b16 %v6443
          %v6638 = vunpack.c.h.b16 %v6443
          %v6639 = vunpack.c.l.b16 %v6444
          %v6640 = vunpack.c.h.b16 %v6444
          %v6641 = vunpack.c.l.b16 %v6445
          %v6642 = vunpack.c.h.b16 %v6445
          %v6643 = vunpack.c.l.b16 %v6446
          %v6644 = vunpack.c.h.b16 %v6446
          %v6645 = vunpack.c.l.b16 %v6447
          %v6646 = vunpack.c.h.b16 %v6447
          %v6647 = vunpack.c.l.b16 %v6448
          %v6648 = vunpack.c.h.b16 %v6448
          %v6649 = vunpack.c.l.b16 %v6449
          %v6650 = vunpack.c.h.b16 %v6449
          %v6651 = vunpack.c.l.b16 %v6450
          %v6652 = vunpack.c.h.b16 %v6450
          %v6653 = vunpack.c.l.b16 %v6451
          %v6654 = vunpack.c.h.b16 %v6451
          %v6655 = vunpack.c.l.b16 %v6452
          %v6656 = vunpack.c.h.b16 %v6452
          %v6657 = vpack.c.b16 %v6531, %v6529
          %v6658 = vpack.c.b16 %v6532, %v6530
          %v6659 = vpack.c.b16 %v6535, %v6533
          %v6660 = vpack.c.b16 %v6536, %v6534
          %v6661 = vpack.c.b16 %v6539, %v6537
          %v6662 = vpack.c.b16 %v6540, %v6538
          %v6663 = vpack.c.b16 %v6543, %v6541
          %v6664 = vpack.c.b16 %v6544, %v6542
          %v6665 = vpack.c.b16 %v6547, %v6545
          %v6666 = vpack.c.b16 %v6548, %v6546
          %v6667 = vpack.c.b16 %v6551, %v6549
          %v6668 = vpack.c.b16 %v6552, %v6550
          %v6669 = vpack.c.b16 %v6555, %v6553
          %v6670 = vpack.c.b16 %v6556, %v6554
          %v6671 = vpack.c.b16 %v6559, %v6557
          %v6672 = vpack.c.b16 %v6560, %v6558
          %v6673 = vpack.c.b16 %v6563, %v6561
          %v6674 = vpack.c.b16 %v6564, %v6562
          %v6675 = vpack.c.b16 %v6567, %v6565
          %v6676 = vpack.c.b16 %v6568, %v6566
          %v6677 = vpack.c.b16 %v6571, %v6569
          %v6678 = vpack.c.b16 %v6572, %v6570
          %v6679 = vpack.c.b16 %v6575, %v6573
          %v6680 = vpack.c.b16 %v6576, %v6574
          %v6681 = vpack.c.b16 %v6579, %v6577
          %v6682 = vpack.c.b16 %v6580, %v6578
          %v6683 = vpack.c.b16 %v6583, %v6581
          %v6684 = vpack.c.b16 %v6584, %v6582
          %v6685 = vpack.c.b16 %v6587, %v6585
          %v6686 = vpack.c.b16 %v6588, %v6586
          %v6687 = vpack.c.b16 %v6591, %v6589
          %v6688 = vpack.c.b16 %v6592, %v6590
          %v6689 = vpack.c.b16 %v6595, %v6593
          %v6690 = vpack.c.b16 %v6596, %v6594
          %v6691 = vpack.c.b16 %v6599, %v6597
          %v6692 = vpack.c.b16 %v6600, %v6598
          %v6693 = vpack.c.b16 %v6603, %v6601
          %v6694 = vpack.c.b16 %v6604, %v6602
          %v6695 = vpack.c.b16 %v6607, %v6605
          %v6696 = vpack.c.b16 %v6608, %v6606
          %v6697 = vpack.c.b16 %v6611, %v6609
          %v6698 = vpack.c.b16 %v6612, %v6610
          %v6699 = vpack.c.b16 %v6615, %v6613
          %v6700 = vpack.c.b16 %v6616, %v6614
          %v6701 = vpack.c.b16 %v6619, %v6617
          %v6702 = vpack.c.b16 %v6620, %v6618
          %v6703 = vpack.c.b16 %v6623, %v6621
          %v6704 = vpack.c.b16 %v6624, %v6622
          %v6705 = vpack.c.b16 %v6627, %v6625
          %v6706 = vpack.c.b16 %v6628, %v6626
          %v6707 = vpack.c.b16 %v6631, %v6629
          %v6708 = vpack.c.b16 %v6632, %v6630
          %v6709 = vpack.c.b16 %v6635, %v6633
          %v6710 = vpack.c.b16 %v6636, %v6634
          %v6711 = vpack.c.b16 %v6639, %v6637
          %v6712 = vpack.c.b16 %v6640, %v6638
          %v6713 = vpack.c.b16 %v6643, %v6641
          %v6714 = vpack.c.b16 %v6644, %v6642
          %v6715 = vpack.c.b16 %v6647, %v6645
          %v6716 = vpack.c.b16 %v6648, %v6646
          %v6717 = vpack.c.b16 %v6651, %v6649
          %v6718 = vpack.c.b16 %v6652, %v6650
          %v6719 = vpack.c.b16 %v6655, %v6653
          %v6720 = vpack.c.b16 %v6656, %v6654
          %6785 = vmatprep.subr.bf16.mxu0 %v6658
          %6786 = vmatpush1.bf16.msra.mxu0 %v6657
          %6787 = vmatprep.subr.bf16.mxu0 %v6660
          %6788 = vmatpush1.bf16.msra.mxu0 %v6659
          %6789 = vmatprep.subr.bf16.mxu0 %v6662
          %6790 = vmatpush1.bf16.msra.mxu0 %v6661
          %6791 = vmatprep.subr.bf16.mxu0 %v6664
          %6792 = vmatpush1.bf16.msra.mxu0 %v6663
          %6793 = vmatprep.subr.bf16.mxu0 %v6666
          %6794 = vmatpush1.bf16.msra.mxu0 %v6665
          %6795 = vmatprep.subr.bf16.mxu0 %v6668
          %6796 = vmatpush1.bf16.msra.mxu0 %v6667
          %6797 = vmatprep.subr.bf16.mxu0 %v6670
          %6798 = vmatpush1.bf16.msra.mxu0 %v6669
          %6799 = vmatprep.subr.bf16.mxu0 %v6672
          %6800 = vmatpush1.bf16.msra.mxu0 %v6671
          %6801 = vmatprep.subr.bf16.mxu0 %v6674
          %6802 = vmatpush1.bf16.msra.mxu0 %v6673
          %6803 = vmatprep.subr.bf16.mxu0 %v6676
          %6804 = vmatpush1.bf16.msra.mxu0 %v6675
          %6805 = vmatprep.subr.bf16.mxu0 %v6678
          %6806 = vmatpush1.bf16.msra.mxu0 %v6677
          %6807 = vmatprep.subr.bf16.mxu0 %v6680
          %6808 = vmatpush1.bf16.msra.mxu0 %v6679
          %6809 = vmatprep.subr.bf16.mxu0 %v6682
          %6810 = vmatpush1.bf16.msra.mxu0 %v6681
          %6811 = vmatprep.subr.bf16.mxu0 %v6684
          %6812 = vmatpush1.bf16.msra.mxu0 %v6683
          %6813 = vmatprep.subr.bf16.mxu0 %v6686
          %6814 = vmatpush1.bf16.msra.mxu0 %v6685
          %6815 = vmatprep.subr.bf16.mxu0 %v6688
          %6816 = vmatpush1.bf16.msra.mxu0 %v6687
          %6817 = vmatprep.mubr.bf16.mxu0 %v6386
          %6818 = vmatmul.mubr.bf16.gmra.mrb[0].mxu0 %v6385
          %v6819 = vpop.f32.mrb[0].mxu0
          %v6820 = vadd.f32 %v6458, %v6819
          %v6821 = vpop.f32.mrb[0].mxu0
          %v6822 = vadd.f32 %v6462, %v6821
          %v6823 = vpop.f32.mrb[0].mxu0
          %v6824 = vpop.f32.mrb[0].mxu0
          %6825 = vdwg.mxu0
          %6826 = vmatprep.subr.bf16.mxu0 %v6690
          %6827 = vmatpush1.bf16.msra.mxu0 %v6689
          %6828 = vmatprep.subr.bf16.mxu0 %v6692
          %6829 = vmatpush1.bf16.msra.mxu0 %v6691
          %6830 = vmatprep.subr.bf16.mxu0 %v6694
          %6831 = vmatpush1.bf16.msra.mxu0 %v6693
          %6832 = vmatprep.subr.bf16.mxu0 %v6696
          %6833 = vmatpush1.bf16.msra.mxu0 %v6695
          %6834 = vmatprep.subr.bf16.mxu0 %v6698
          %6835 = vmatpush1.bf16.msra.mxu0 %v6697
          %6836 = vmatprep.subr.bf16.mxu0 %v6700
          %6837 = vmatpush1.bf16.msra.mxu0 %v6699
          %6838 = vmatprep.subr.bf16.mxu0 %v6702
          %6839 = vmatpush1.bf16.msra.mxu0 %v6701
          %6840 = vmatprep.subr.bf16.mxu0 %v6704
          %6841 = vmatpush1.bf16.msra.mxu0 %v6703
          %6842 = vmatprep.subr.bf16.mxu0 %v6706
          %6843 = vmatpush1.bf16.msra.mxu0 %v6705
          %6844 = vmatprep.subr.bf16.mxu0 %v6708
          %6845 = vmatpush1.bf16.msra.mxu0 %v6707
          %6846 = vmatprep.subr.bf16.mxu0 %v6710
          %6847 = vmatpush1.bf16.msra.mxu0 %v6709
          %6848 = vmatprep.subr.bf16.mxu0 %v6712
          %6849 = vmatpush1.bf16.msra.mxu0 %v6711
          %6850 = vmatprep.subr.bf16.mxu0 %v6714
          %6851 = vmatpush1.bf16.msra.mxu0 %v6713
          %6852 = vmatprep.subr.bf16.mxu0 %v6716
          %6853 = vmatpush1.bf16.msra.mxu0 %v6715
          %6854 = vmatprep.subr.bf16.mxu0 %v6718
          %6855 = vmatpush1.bf16.msra.mxu0 %v6717
          %6856 = vmatprep.subr.bf16.mxu0 %v6720
          %6857 = vmatpush1.bf16.msra.mxu0 %v6719
          %6858 = vmatprep.mubr.bf16.mxu0 %v6388
          %6859 = vmatmul.mubr.bf16.gmra.mrb[0].mxu0 %v6387
          %v6860 = vpop.f32.mrb[0].mxu0
          %v6861 = vadd.f32 %v6820, %v6860
          %v6862 = vpop.f32.mrb[0].mxu0
          %v6863 = vadd.f32 %v6822, %v6862
          %v6864 = vpop.f32.mrb[0].mxu0
          %v6865 = vpop.f32.mrb[0].mxu0
          %6866 = vdwg.mxu0
          %6867 = vst [vmem:[#allocation18] sm:$0xff] %v6861
          %6868 = vst [vmem:[#allocation18 + $0x8] sm:$0xff] %v6863
        $region100: #{tpu_custom_call.1} parent=55 // pred_fallthru
          _
        // Predicated region
        $region101: #{tpu_custom_call.1} parent=55 // pred_check
          %p6869 = pneg %p242
        $region102: #{tpu_custom_call.1} parent=55 // pred_check_branch
          %6871 = sbr.rel (%p6869) target = $region104
        $region103: #{tpu_custom_call.1} parent=55 // pred_region
          %s6873 = ssub.s32 256, 256
          %6874 = vsyncadd [#allocation5], %s6873
          %s6876 = sshll.u32 [#allocation18], 4
          %s6877 = int_to_ptr.vmem [resolvable:$true] %s6876
          %6879 = dma.vmem_to_hbm [thread:$0]  %s6877, 256, %s9, [#allocation5]
        $region104: #{tpu_custom_call.1} parent=55 // pred_fallthru
          _
        // Predicated region
        $region105: #{tpu_custom_call.1} parent=55 // pred_check
          %p6880 = pneg %p242
        $region106: #{tpu_custom_call.1} parent=55 // pred_check_branch
          %6882 = sbr.rel (%p6880) target = $region108
        $region107: #{tpu_custom_call.1} parent=55 // pred_region
          %6883 = dma.done [#allocation5], 256
        $region108: #{tpu_custom_call.1} parent=55 // pred_fallthru
          _
      $region56: #{tpu_custom_call.1} parent=5 // pred_fallthru
        _
      %p6884 = scmp.le.s32.totalorder 2, %s25
      // Predicated region
      $region109: #{tpu_custom_call.1} parent=5 // pred_check
        %p6885 = pneg %p6884
      $region110: #{tpu_custom_call.1} parent=5 // pred_check_branch
        %6887 = sbr.rel (%p6885) target = $region112
      $region111: #{tpu_custom_call.1} parent=5 // pred_region
        %s6888 = ssub.s32 %s25, 2
      $region112: #{tpu_custom_call.1} parent=5 // pred_fallthru
        _
    $region6: #{tpu_custom_call.1} parent=1 // loop_footer
      %s29 = sadd.s32 1, %s25
    $region7: #{tpu_custom_call.1} parent=1 // loop_footer_branch
      %24 = sbr.rel target = $region3
    $region8: #{tpu_custom_call.1} parent=1 // loop_exit
      _
    %6889 = vsyncpa [#allocation4], 1
    %s6890 = scalar_lea.sflag [#allocation4], 1
    %6891 = vsyncpa %s6890, 1
    %6892 = vsyncpa [#allocation7], 1
    %s6893 = scalar_lea.sflag [#allocation7], 1
    %6894 = vsyncpa %s6893, 1
    %6895 = vsyncpa [#allocation10], 1
    %6896 = vsyncpa [#allocation13], 1
    %6897 = vsyncpa [#allocation16], 1
    %6898 = vsyncpa [#allocation5], 1
    %s6899 = scalar_lea.sflag [#allocation5], 1
    %6900 = vsyncpa %s6899, 1

</llo_original>
